<compile_context>
chip_gen: v7x
topology: tpu7x:2x2x1
jax: 0.10.0
libtpu: 0.0.40
codegen_flags: <defaults>
</compile_context>

<pallas_src>
import functools

import jax
import jax.numpy as jnp
from jax.experimental import pallas as pl
from jax.experimental.pallas import tpu as pltpu

# ----------------------------- configuration --------------------------------
ARGS = dict(
    emb_dims=32,
    pe_out_L=2,
    neighbor_k=8,                 # knn used to build the local patch fed to DGCNN
    feature_unfolding_nei_num=4,  # knn used for local feature pooling
    over_sampling_up_ratio=4,     # training_up_ratio * over_sampling_scale
    mlp_fitting=[64, 32],
    dgcnn_k=4,                    # k inside get_graph_feature
)

PI = 3.14159265

ROW_ALIGN = 16        # bf16 sublane packing -> row tiles multiple of 16
MAX_TILE_ROWS = 512   # safe for v5e's 16 MiB scoped VMEM; v6e can go 1024-2048

_PARALLEL = pltpu.CompilerParams(dimension_semantics=("parallel",))


# ----------------------------- small helpers --------------------------------
def _round_up(x, m):
    return (x + m - 1) // m * m


def _choose_tile(rows):
    """Row padding + tile.  Prefers >=2 grid steps so the 'parallel' axis can
    shard across v7x's two TensorCores and the pipeline can double-buffer."""
    rp = _round_up(max(rows, ROW_ALIGN), ROW_ALIGN)
    tile = min(rp, MAX_TILE_ROWS)
    if tile == rp and rp >= 2 * ROW_ALIGN:
        half = _round_up(rp // 2, ROW_ALIGN)
        if rp % half == 0:
            tile = half
    rp = _round_up(rp, tile)
    return rp, tile


def _pad_rows(x, rp):
    r = x.shape[0]
    if r == rp:
        return x
    return jnp.pad(x, [(0, rp - r)] + [(0, 0)] * (x.ndim - 1))


def _pad_channels(x, cp):
    c = x.shape[-1]
    if c == cp:
        return x
    return jnp.pad(x, [(0, 0)] * (x.ndim - 1) + [(0, cp - c)])


# ----------------------------- Pallas kernels --------------------------------
def _edgeconv_kernel(nbr_ref, ctr_ref, wn_ref, wc_ref, o_ref):
    """o = max_k relu(cat(nbr_k, ctr) @ W) with W split into Wn / Wc.

    Per-k dot with a running max keeps the live f32 intermediate at (t, cout)
    (not (k*t, cout)); relu commutes with the max because the center shift is
    identical across k and relu is monotone."""
    k = nbr_ref.shape[0]
    f32 = jnp.float32
    ctr_out = jnp.dot(ctr_ref[...], wc_ref[...], preferred_element_type=f32)
    acc = jnp.dot(nbr_ref[0], wn_ref[...], preferred_element_type=f32)
    for kk in range(1, k):                         # k is tiny (4): static unroll
        acc = jnp.maximum(acc,
                          jnp.dot(nbr_ref[kk], wn_ref[...], preferred_element_type=f32))
    o_ref[...] = jnp.maximum(acc + ctr_out, 0.0).astype(o_ref.dtype)


def _conv5_kernel(x1_ref, x2_ref, x3_ref, x4_ref,
                  w1_ref, w2_ref, w3_ref, w4_ref, o_ref):
    """DGCNN conv5: o = tanh(cat(x1..x4) @ w5), without materializing the concat."""
    f32 = jnp.float32
    acc = jnp.dot(x1_ref[...], w1_ref[...], preferred_element_type=f32)
    acc = acc + jnp.dot(x2_ref[...], w2_ref[...], preferred_element_type=f32)
    acc = acc + jnp.dot(x3_ref[...], w3_ref[...], preferred_element_type=f32)
    acc = acc + jnp.dot(x4_ref[...], w4_ref[...], preferred_element_type=f32)
    o_ref[...] = jnp.tanh(acc).astype(o_ref.dtype)


def _tail_kernel(x_ref, ctr_ref, wcat_ref, bcat_ref, srw2_ref, srb2_ref,
                 w1f_ref, peb_ref, b1_ref, fw2_ref, fb2_ref, w3_ref, b3_ref,
                 xyz_ref, ins_ref, *, h1_dim, r_up):
    """Fused heads + residual + fitting MLP + center add.

    sr/ins heads share one lane-dense matmul (w_cat), the residual add keeps
    the embedding resident in VMEM, and all r_up samples are produced per row
    using the constant-folded PE bias table (peb)."""
    f32 = jnp.float32
    x = x_ref[...]                                                  # bf16 (t, 2emb)

    # --- sr / ins heads (stand-in MLPs, see TODO in wrapper) ---
    y = jnp.dot(x, wcat_ref[...], preferred_element_type=f32)
    y = jnp.maximum(y + bcat_ref[...], 0.0)
    ins_ref[...] = y[:, h1_dim:].astype(ins_ref.dtype)
    sr = jnp.dot(y[:, :h1_dim].astype(jnp.bfloat16), srw2_ref[...],
                 preferred_element_type=f32)
    sr = jnp.maximum(sr + srb2_ref[...], 0.0)

    # --- residual: sparse_embedding + sr_fea (fused, no HBM round trip) ---
    emb = x.astype(f32) + sr

    # --- fitting MLP: first-layer feature projection shared across samples ---
    h0 = jnp.dot(emb.astype(jnp.bfloat16), w1f_ref[...],
                 preferred_element_type=f32) + b1_ref[...]
    peb = peb_ref[...]                                              # (r_up, m1) f32
    ctr = ctr_ref[...].astype(f32)                                  # (t, 3)
    b3 = b3_ref[...]

    pieces = []
    for r in range(r_up):                                           # r_up = 4, unrolled
        h = jnp.maximum(h0 + peb[r:r + 1, :], 0.0)
        h = jnp.dot(h.astype(jnp.bfloat16), fw2_ref[...], preferred_element_type=f32)
        h = jnp.maximum(h + fb2_ref[...], 0.0)
        o = jnp.dot(h.astype(jnp.bfloat16), w3_ref[...], preferred_element_type=f32)
        pieces.append(o + b3 + ctr)
    xyz_ref[...] = jnp.concatenate(pieces, axis=-1).astype(xyz_ref.dtype)


# ----------------------------- kernel wrappers --------------------------------
def pallas_edgeconv(nbr, ctr, w_nbr, w_ctr, tile):
    """nbr:(K,RP,Cin) bf16, ctr:(RP,Cin) bf16 -> (RP,Cout) f32."""
    k, rp, cin = nbr.shape
    cout = w_nbr.shape[1]
    return pl.pallas_call(
        _edgeconv_kernel,
        out_shape=jax.ShapeDtypeStruct((rp, cout), jnp.float32),
        grid=(rp // tile,),
        in_specs=[
            pl.BlockSpec((k, tile, cin), lambda i: (0, i, 0)),
            pl.BlockSpec((tile, cin), lambda i: (i, 0)),
            pl.BlockSpec((cin, cout), lambda i: (0, 0)),   # resident weight
            pl.BlockSpec((cin, cout), lambda i: (0, 0)),   # resident weight
        ],
        out_specs=pl.BlockSpec((tile, cout), lambda i: (i, 0)),
        compiler_params=_PARALLEL,
    )(nbr, ctr, w_nbr.astype(jnp.bfloat16), w_ctr.astype(jnp.bfloat16))


def pallas_conv5_tanh(x1, x2, x3, x4, w5):
    r = x1.shape[0]
    splits = [x1.shape[1], x2.shape[1], x3.shape[1], x4.shape[1]]
    cout = w5.shape[1]
    rp, t = _choose_tile(r)
    xs = [_pad_rows(x.astype(jnp.bfloat16), rp) for x in (x1, x2, x3, x4)]
    w5b = w5.astype(jnp.bfloat16)
    ws, off = [], 0
    for c in splits:
        ws.append(w5b[off:off + c])
        off += c
    out = pl.pallas_call(
        _conv5_kernel,
        out_shape=jax.ShapeDtypeStruct((rp, cout), jnp.float32),
        grid=(rp // t,),
        in_specs=[pl.BlockSpec((t, c), lambda i: (i, 0)) for c in splits]
                + [pl.BlockSpec((c, cout), lambda i: (0, 0)) for c in splits],
        out_specs=pl.BlockSpec((t, cout), lambda i: (i, 0)),
        compiler_params=_PARALLEL,
    )(*xs, *ws)
    return out[:r]


def pallas_tail(x, ctr, p, pe_bias):
    """Fused sr/ins heads + residual + fit MLP.
    x:(R,2emb) ctr:(R,3) -> xyz:(R, r_up*3), ins:(R, 16)."""
    r, cf = x.shape
    ca = p["head_w_cat"].shape[1]
    h1 = p["sr_w2"].shape[0]
    c2 = p["sr_w2"].shape[1]
    cins = ca - h1
    m1 = p["fit_w1f"].shape[1]
    m2 = p["fit_w2"].shape[1]
    co = p["out_w"].shape[1]
    r_up = pe_bias.shape[0]
    rp, t = _choose_tile(r)
    xq = _pad_rows(x.astype(jnp.bfloat16), rp)
    ctrq = _pad_rows(ctr.astype(jnp.float32), rp)
    f32 = jnp.float32
    xyz, ins = pl.pallas_call(
        functools.partial(_tail_kernel, h1_dim=h1, r_up=r_up),
        out_shape=(jax.ShapeDtypeStruct((rp, r_up * co), jnp.float32),
                   jax.ShapeDtypeStruct((rp, cins), jnp.float32)),
        grid=(rp // t,),
        in_specs=[
            pl.BlockSpec((t, cf), lambda i: (i, 0)),
            pl.BlockSpec((t, co), lambda i: (i, 0)),
            pl.BlockSpec((cf, ca), lambda i: (0, 0)),
            pl.BlockSpec((1, ca), lambda i: (0, 0)),
            pl.BlockSpec((h1, c2), lambda i: (0, 0)),
            pl.BlockSpec((1, c2), lambda i: (0, 0)),
            pl.BlockSpec((cf, m1), lambda i: (0, 0)),
            pl.BlockSpec((r_up, m1), lambda i: (0, 0)),
            pl.BlockSpec((1, m1), lambda i: (0, 0)),
            pl.BlockSpec((m1, m2), lambda i: (0, 0)),
            pl.BlockSpec((1, m2), lambda i: (0, 0)),
            pl.BlockSpec((m2, co), lambda i: (0, 0)),
            pl.BlockSpec((1, co), lambda i: (0, 0)),
        ],
        out_specs=(pl.BlockSpec((t, r_up * co), lambda i: (i, 0)),
                   pl.BlockSpec((t, cins), lambda i: (i, 0))),
        compiler_params=_PARALLEL,
    )(xq, ctrq,
      p["head_w_cat"].astype(jnp.bfloat16),
      p["head_b_cat"].reshape(1, ca).astype(f32),
      p["sr_w2"].astype(jnp.bfloat16),
      p["sr_b2"].reshape(1, c2).astype(f32),
      p["fit_w1f"].astype(jnp.bfloat16),
      pe_bias.astype(f32),
      p["fit_b1"].reshape(1, m1).astype(f32),
      p["fit_w2"].astype(jnp.bfloat16),
      p["fit_b2"].reshape(1, m2).astype(f32),
      p["out_w"].astype(jnp.bfloat16),
      p["out_b"].reshape(1, co).astype(f32))
    return xyz[:r], ins[:r]


# ----------------------------- JAX glue --------------------------------------
def gather_points(x_cl, idx):
    """x_cl:(B,N,C), idx:(B,...) int -> (B,...,C)."""
    return jax.vmap(lambda f, i: f[i])(x_cl, idx)


def knn_include_self(x_cl, k):
    """Same semantics as reference knn(): top-k of -dist^2 (self included)."""
    x = x_cl.astype(jnp.float32)
    inner = jnp.einsum("mnc,mpc->mnp", x, x)
    sq = jnp.sum(x * x, axis=-1)
    neg_dist = 2.0 * inner - sq[:, :, None] - sq[:, None, :]
    return jax.lax.top_k(neg_dist, k)[1]                    # (M, N, k)


def get_neighbor_index(pts, k):
    """torch_tensor_functions.get_neighbor_index: k nearest excluding self."""
    inner = jnp.einsum("bnc,bmc->bnm", pts, pts)
    sq = jnp.sum(pts * pts, axis=-1)
    dist = sq[:, :, None] - 2.0 * inner + sq[:, None, :]
    return jax.lax.top_k(-dist, k + 1)[1][:, :, 1:]


def position_encoding_table(uv, pe_L):
    """Reference coding order: [uv, sin(uv*2^0*pi), cos(uv*2^0*pi), sin(uv*2^1*pi), ...]."""
    parts = [uv]
    for i in range(pe_L):
        ang = uv * (float(2 ** i) * PI)
        parts.append(jnp.sin(ang))
        parts.append(jnp.cos(ang))
    return jnp.concatenate(parts, axis=-1)                  # (r_up, 4*pe_L+2)


def _edge_layer(feat_cl, w, k):
    """One DGCNN edge conv: (M,P,C) f32 -> (M,P,Cout) f32."""
    m, p, c = feat_cl.shape
    rows = m * p

    # within-patch knn (self included), K-major flat indices
    idx = knn_include_self(feat_cl, k)                      # (M, P, k) int32
    base = (jnp.arange(m, dtype=idx.dtype) * p)[:, None, None]
    flat_idx = jnp.transpose(idx + base, (2, 0, 1)).reshape(k, rows)

    # torch.cat((neighbor, center), dim=3): rows [0:C] of W hit neighbor, [C:2C] center
    wn, wc = w[:c], w[c:]
    x_flat = feat_cl.reshape(rows, c)

    # pad the FLAT feature map / index table (cheap), never the (K,R,C) tensor
    cp = _round_up(c, 8)
    if cp != c:
        x_flat = _pad_channels(x_flat, cp)
        wn = _pad_rows(wn, cp)
        wc = _pad_rows(wc, cp)
    rp, tile = _choose_tile(rows)
    if rp != rows:
        flat_idx = jnp.pad(flat_idx, ((0, 0), (0, rp - rows)))
        x_flat = _pad_rows(x_flat, rp)

    x_flat_bf = x_flat.astype(jnp.bfloat16)
    # TODO(synk): neighbor gather stays in XLA (per-row dynamic gather inside a
    # Pallas kernel is not reliably lowerable); gather bytes are halved via bf16.
    nbr = jnp.take(x_flat_bf, flat_idx, axis=0)             # (k, rp, cp) bf16
    out = pallas_edgeconv(nbr, x_flat_bf, wn, wc, tile)     # (rp, cout) f32
    return out[:rows].reshape(m, p, -1)


def dgcnn_forward(x_cl, p, k):
    """DGCNN_multi_knn_c5 (if_bn=False, if_relu_atlast=False): (M,P,3)->(M,P,emb)."""
    m, pts, _ = x_cl.shape
    x1 = _edge_layer(x_cl, p["w1"], k)                      # (M,P,64)
    x2 = _edge_layer(x1, p["w2"], k)                        # (M,P,64)
    x3 = _edge_layer(x2, p["w3"], k)                        # (M,P,128)
    x4 = _edge_layer(x3, p["w4"], k)                        # (M,P,256)
    r = m * pts
    emb = pallas_conv5_tanh(x1.reshape(r, -1), x2.reshape(r, -1),
                            x3.reshape(r, -1), x4.reshape(r, -1), p["w5"])
    return emb.reshape(m, pts, -1)                          # f32


def net_conpu_v7_forward(params, points_sparse, sem_info):
    """points_sparse:(B,N,3) sem_info:(B,N,1) -> (upsampled_p:(B,N*R,3), ins:(B,N,16))."""
    del sem_info  # only consumed by LocalTransformer (see TODO below)
    B, N, _ = points_sparse.shape
    r_up = ARGS["over_sampling_up_ratio"]
    emb = ARGS["emb_dims"]
    k_patch = ARGS["neighbor_k"]

    nei_unfold = get_neighbor_index(points_sparse, ARGS["feature_unfolding_nei_num"])
    nei_feat = get_neighbor_index(points_sparse, k_patch)

    # local patches, centered on each point
    local_pts = gather_points(points_sparse, nei_feat) - points_sparse[:, :, None, :]
    local_pts = local_pts.reshape(B * N, k_patch, 3)

    patch_emb = dgcnn_forward(local_pts, params["dgcnn"], ARGS["dgcnn_k"])  # (B*N,K,emb)
    sparse_embedding = jnp.max(patch_emb, axis=1).reshape(B, N, emb)

    # local feature pooling over unfolding neighbors
    pooled = jnp.max(gather_points(sparse_embedding, nei_unfold), axis=2)
    sparse_embedding = jnp.concatenate([sparse_embedding, pooled], axis=-1)  # (B,N,2emb)

    # TODO(synk): LocalTransformer source not provided in the reference; identity
    # pass-through for Final_feature (sem_info therefore unused).
    final_rows = sparse_embedding.reshape(B * N, 2 * emb)
    ctr_rows = points_sparse.reshape(B * N, 3)

    # fix_sample(up_ratio=4): fixed 2x2 grid in [-1,1]^2 -> constant-fold
    # position_encoding(uv) @ fit_w1p into a (r_up, m1) bias table.
    uv_grid = jnp.array([[-1., -1.], [-1., 1.], [1., -1.], [1., 1.]], jnp.float32)
    pe_bias = position_encoding_table(uv_grid, ARGS["pe_out_L"]) @ params["fit_w1p"]

    # TODO(synk): Feature_MLPNet_relu source not provided; stand-in = pointwise
    # ReLU MLPs (sr: 2emb->128->2emb, ins: 2emb->16), fused with the residual add
    # and the fitting MLP (all r_up samples per row) into ONE Pallas kernel.
    xyz, ins = pallas_tail(final_rows, ctr_rows, params, pe_bias)

    upsampled_p = xyz.reshape(B, N * r_up, 3)
    ins_embed = ins.reshape(B, N, -1)
    return upsampled_p, ins_embed


# ----------------------------- parameters ------------------------------------
def xavier(key, cin, cout):
    std = (2.0 / (cin + cout)) ** 0.5
    return std * jax.random.normal(key, (cin, cout), jnp.float32)


def init_params(key):
    emb = ARGS["emb_dims"]
    coding_dim = 4 * ARGS["pe_out_L"] + 2
    m1, m2 = ARGS["mlp_fitting"]
    ks = jax.random.split(key, 16)
    sr_w1 = xavier(ks[5], 2 * emb, 128)
    sr_b1 = jnp.zeros((128,), jnp.float32)
    ins_w = xavier(ks[7], 2 * emb, 16)
    ins_b = jnp.zeros((16,), jnp.float32)
    fit_w1 = xavier(ks[8], 2 * emb + coding_dim, m1)
    return {
        "dgcnn": {
            "w1": xavier(ks[0], 6, 64),
            "w2": xavier(ks[1], 128, 64),
            "w3": xavier(ks[2], 128, 128),
            "w4": xavier(ks[3], 256, 256),
            "w5": xavier(ks[4], 512, emb),
        },
        # sr_head layer-1 and ins_head fused into one lane-dense matmul
        "head_w_cat": jnp.concatenate([sr_w1, ins_w], axis=1),   # (2emb, 128+16)
        "head_b_cat": jnp.concatenate([sr_b1, ins_b], axis=0),   # (144,)
        "sr_w2": xavier(ks[6], 128, 2 * emb),
        "sr_b2": jnp.zeros((2 * emb,), jnp.float32),
        # fit_w1 split into feature half and positional-encoding half
        "fit_w1f": fit_w1[:2 * emb],                             # (2emb, m1)
        "fit_w1p": fit_w1[2 * emb:],                             # (coding_dim, m1)
        "fit_b1": jnp.zeros((m1,), jnp.float32),
        "fit_w2": xavier(ks[9], m1, m2),
        "fit_b2": jnp.zeros((m2,), jnp.float32),
        "out_w": xavier(ks[10], m2, 3),
        "out_b": jnp.zeros((3,), jnp.float32),
    }


# ----------------------------- main -------------------------------------------
if __name__ == "__main__":
    key = jax.random.PRNGKey(0)
    kp, kx, ks = jax.random.split(key, 3)

    B, N = 2, 16
    points_sparse = jax.random.normal(kx, (B, N, 3), jnp.float32)
    sem_info = jax.random.normal(ks, (B, N, 1), jnp.float32)

    params = init_params(kp)

    fwd = jax.jit(net_conpu_v7_forward)
    upsampled_p, ins_embed = fwd(params, points_sparse, sem_info)
    jax.block_until_ready((upsampled_p, ins_embed))

    assert upsampled_p.shape == (B, N * ARGS["over_sampling_up_ratio"], 3)
    assert ins_embed.shape == (B, N, 16)
    assert bool(jnp.all(jnp.isfinite(upsampled_p)))
    assert bool(jnp.all(jnp.isfinite(ins_embed)))
    print("KERNEL_OK")
</pallas_src>

<mosaic_0001>
module attributes {stable_mosaic.version = 11 : i64} {
  func.func @_edgeconv_kernel(%arg0: i32, %arg1: memref<4x128x8xbf16, #tpu.memory_space<vmem>>, %arg2: memref<128x8xbf16, #tpu.memory_space<vmem>>, %arg3: memref<8x64xbf16, #tpu.memory_space<vmem>>, %arg4: memref<8x64xbf16, #tpu.memory_space<vmem>>, %arg5: memref<128x64xf32, #tpu.memory_space<vmem>>) attributes {dimension_semantics = [#tpu.dimension_semantics<parallel>], iteration_bounds = array<i64: 2>, scalar_prefetch = 0 : i64, scratch_operands = 0 : i64, tpu.core_type = #tpu.core_type<tc>, window_params = [{transform_indices = @transform_0, window_bounds = array<i64: 4, 128, 8>}, {transform_indices = @transform_1, window_bounds = array<i64: 128, 8>}, {pipeline_mode = #tpu.pipeline_mode<synchronous>, transform_indices = @transform_2, window_bounds = array<i64: 8, 64>}, {pipeline_mode = #tpu.pipeline_mode<synchronous>, transform_indices = @transform_3, window_bounds = array<i64: 8, 64>}, {transform_indices = @transform_4, window_bounds = array<i64: 128, 64>}]} {
    %c0 = arith.constant 0 : index
    %c0_0 = arith.constant 0 : index
    %0 = vector.load %arg2[%c0, %c0_0] : memref<128x8xbf16, #tpu.memory_space<vmem>>, vector<128x8xbf16>
    %c0_1 = arith.constant 0 : index
    %c0_2 = arith.constant 0 : index
    %1 = vector.load %arg4[%c0_1, %c0_2] : memref<8x64xbf16, #tpu.memory_space<vmem>>, vector<8x64xbf16>
    %cst = arith.constant dense<0.000000e+00> : vector<128x64xf32>
    %2 = tpu.matmul %0, %1, %cst {dimension_numbers = #tpu.dot_dimension_numbers<[1], [0], [0], [1], [0, 0, 1, 1], [], []>} : vector<128x8xbf16>, vector<8x64xbf16>, vector<128x64xf32> -> vector<128x64xf32>
    %c0_3 = arith.constant 0 : index
    %c0_4 = arith.constant 0 : index
    %c0_5 = arith.constant 0 : index
    %3 = vector.load %arg1[%c0_3, %c0_4, %c0_5] : memref<4x128x8xbf16, #tpu.memory_space<vmem>>, vector<1x128x8xbf16>
    %4 = vector.shape_cast %3 : vector<1x128x8xbf16> to vector<128x8xbf16>
    %c0_6 = arith.constant 0 : index
    %c0_7 = arith.constant 0 : index
    %5 = vector.load %arg3[%c0_6, %c0_7] : memref<8x64xbf16, #tpu.memory_space<vmem>>, vector<8x64xbf16>
    %cst_8 = arith.constant dense<0.000000e+00> : vector<128x64xf32>
    %6 = tpu.matmul %4, %5, %cst_8 {dimension_numbers = #tpu.dot_dimension_numbers<[1], [0], [0], [1], [0, 0, 1, 1], [], []>} : vector<128x8xbf16>, vector<8x64xbf16>, vector<128x64xf32> -> vector<128x64xf32>
    %c1 = arith.constant 1 : index
    %c0_9 = arith.constant 0 : index
    %c0_10 = arith.constant 0 : index
    %7 = vector.load %arg1[%c1, %c0_9, %c0_10] : memref<4x128x8xbf16, #tpu.memory_space<vmem>>, vector<1x128x8xbf16>
    %8 = vector.shape_cast %7 : vector<1x128x8xbf16> to vector<128x8xbf16>
    %c0_11 = arith.constant 0 : index
    %c0_12 = arith.constant 0 : index
    %9 = vector.load %arg3[%c0_11, %c0_12] : memref<8x64xbf16, #tpu.memory_space<vmem>>, vector<8x64xbf16>
    %cst_13 = arith.constant dense<0.000000e+00> : vector<128x64xf32>
    %10 = tpu.matmul %8, %9, %cst_13 {dimension_numbers = #tpu.dot_dimension_numbers<[1], [0], [0], [1], [0, 0, 1, 1], [], []>} : vector<128x8xbf16>, vector<8x64xbf16>, vector<128x64xf32> -> vector<128x64xf32>
    %11 = arith.maximumf %6, %10 : vector<128x64xf32>
    %c2 = arith.constant 2 : index
    %c0_14 = arith.constant 0 : index
    %c0_15 = arith.constant 0 : index
    %12 = vector.load %arg1[%c2, %c0_14, %c0_15] : memref<4x128x8xbf16, #tpu.memory_space<vmem>>, vector<1x128x8xbf16>
    %13 = vector.shape_cast %12 : vector<1x128x8xbf16> to vector<128x8xbf16>
    %c0_16 = arith.constant 0 : index
    %c0_17 = arith.constant 0 : index
    %14 = vector.load %arg3[%c0_16, %c0_17] : memref<8x64xbf16, #tpu.memory_space<vmem>>, vector<8x64xbf16>
    %cst_18 = arith.constant dense<0.000000e+00> : vector<128x64xf32>
    %15 = tpu.matmul %13, %14, %cst_18 {dimension_numbers = #tpu.dot_dimension_numbers<[1], [0], [0], [1], [0, 0, 1, 1], [], []>} : vector<128x8xbf16>, vector<8x64xbf16>, vector<128x64xf32> -> vector<128x64xf32>
    %16 = arith.maximumf %11, %15 : vector<128x64xf32>
    %c3 = arith.constant 3 : index
    %c0_19 = arith.constant 0 : index
    %c0_20 = arith.constant 0 : index
    %17 = vector.load %arg1[%c3, %c0_19, %c0_20] : memref<4x128x8xbf16, #tpu.memory_space<vmem>>, vector<1x128x8xbf16>
    %18 = vector.shape_cast %17 : vector<1x128x8xbf16> to vector<128x8xbf16>
    %c0_21 = arith.constant 0 : index
    %c0_22 = arith.constant 0 : index
    %19 = vector.load %arg3[%c0_21, %c0_22] : memref<8x64xbf16, #tpu.memory_space<vmem>>, vector<8x64xbf16>
    %cst_23 = arith.constant dense<0.000000e+00> : vector<128x64xf32>
    %20 = tpu.matmul %18, %19, %cst_23 {dimension_numbers = #tpu.dot_dimension_numbers<[1], [0], [0], [1], [0, 0, 1, 1], [], []>} : vector<128x8xbf16>, vector<8x64xbf16>, vector<128x64xf32> -> vector<128x64xf32>
    %21 = arith.maximumf %16, %20 : vector<128x64xf32>
    %22 = arith.addf %21, %2 : vector<128x64xf32>
    %cst_24 = arith.constant 0.000000e+00 : f32
    %23 = vector.broadcast %cst_24 : f32 to vector<128x64xf32>
    %24 = arith.maximumf %22, %23 : vector<128x64xf32>
    %c0_25 = arith.constant 0 : index
    %c0_26 = arith.constant 0 : index
    %25 = vector.load %arg5[%c0_25, %c0_26] : memref<128x64xf32, #tpu.memory_space<vmem>>, vector<128x64xf32>
    tpu.vector_store %arg5[%c0_25, %c0_26], %24 {strides = array<i32>} : memref<128x64xf32, #tpu.memory_space<vmem>>, vector<128x64xf32>,
    return
  }
  func.func @transform_0(%arg0: i32) -> (i32, i32, i32) {
    %c0_i32 = arith.constant 0 : i32
    %c0_i32_0 = arith.constant 0 : i32
    %c0_i32_1 = arith.constant 0 : i32
    return %c0_i32, %arg0, %c0_i32_0 : i32, i32, i32
  }
  func.func @transform_1(%arg0: i32) -> (i32, i32) {
    %c0_i32 = arith.constant 0 : i32
    %c0_i32_0 = arith.constant 0 : i32
    return %arg0, %c0_i32 : i32, i32
  }
  func.func @transform_2(%arg0: i32) -> (i32, i32) {
    %c0_i32 = arith.constant 0 : i32
    %c0_i32_0 = arith.constant 0 : i32
    %c0_i32_1 = arith.constant 0 : i32
    return %c0_i32, %c0_i32_0 : i32, i32
  }
  func.func @transform_3(%arg0: i32) -> (i32, i32) {
    %c0_i32 = arith.constant 0 : i32
    %c0_i32_0 = arith.constant 0 : i32
    %c0_i32_1 = arith.constant 0 : i32
    return %c0_i32, %c0_i32_0 : i32, i32
  }
  func.func @transform_4(%arg0: i32) -> (i32, i32) {
    %c0_i32 = arith.constant 0 : i32
    %c0_i32_0 = arith.constant 0 : i32
    return %arg0, %c0_i32 : i32, i32
  }
}

module attributes {stable_mosaic.version = 11 : i64} {
  func.func @_edgeconv_kernel(%arg0: i32, %arg1: memref<4x128x64xbf16, #tpu.memory_space<vmem>>, %arg2: memref<128x64xbf16, #tpu.memory_space<vmem>>, %arg3: memref<64x64xbf16, #tpu.memory_space<vmem>>, %arg4: memref<64x64xbf16, #tpu.memory_space<vmem>>, %arg5: memref<128x64xf32, #tpu.memory_space<vmem>>) attributes {dimension_semantics = [#tpu.dimension_semantics<parallel>], iteration_bounds = array<i64: 2>, scalar_prefetch = 0 : i64, scratch_operands = 0 : i64, tpu.core_type = #tpu.core_type<tc>, window_params = [{transform_indices = @transform_0, window_bounds = array<i64: 4, 128, 64>}, {transform_indices = @transform_1, window_bounds = array<i64: 128, 64>}, {pipeline_mode = #tpu.pipeline_mode<synchronous>, transform_indices = @transform_2, window_bounds = array<i64: 64, 64>}, {pipeline_mode = #tpu.pipeline_mode<synchronous>, transform_indices = @transform_3, window_bounds = array<i64: 64, 64>}, {transform_indices = @transform_4, window_bounds = array<i64: 128, 64>}]} {
    %c0 = arith.constant 0 : index
    %c0_0 = arith.constant 0 : index
    %0 = vector.load %arg2[%c0, %c0_0] : memref<128x64xbf16, #tpu.memory_space<vmem>>, vector<128x64xbf16>
    %c0_1 = arith.constant 0 : index
    %c0_2 = arith.constant 0 : index
    %1 = vector.load %arg4[%c0_1, %c0_2] : memref<64x64xbf16, #tpu.memory_space<vmem>>, vector<64x64xbf16>
    %cst = arith.constant dense<0.000000e+00> : vector<128x64xf32>
    %2 = tpu.matmul %0, %1, %cst {dimension_numbers = #tpu.dot_dimension_numbers<[1], [0], [0], [1], [0, 0, 1, 1], [], []>} : vector<128x64xbf16>, vector<64x64xbf16>, vector<128x64xf32> -> vector<128x64xf32>
    %c0_3 = arith.constant 0 : index
    %c0_4 = arith.constant 0 : index
    %c0_5 = arith.constant 0 : index
    %3 = vector.load %arg1[%c0_3, %c0_4, %c0_5] : memref<4x128x64xbf16, #tpu.memory_space<vmem>>, vector<1x128x64xbf16>
    %4 = vector.shape_cast %3 : vector<1x128x64xbf16> to vector<128x64xbf16>
    %c0_6 = arith.constant 0 : index
    %c0_7 = arith.constant 0 : index
    %5 = vector.load %arg3[%c0_6, %c0_7] : memref<64x64xbf16, #tpu.memory_space<vmem>>, vector<64x64xbf16>
    %cst_8 = arith.constant dense<0.000000e+00> : vector<128x64xf32>
    %6 = tpu.matmul %4, %5, %cst_8 {dimension_numbers = #tpu.dot_dimension_numbers<[1], [0], [0], [1], [0, 0, 1, 1], [], []>} : vector<128x64xbf16>, vector<64x64xbf16>, vector<128x64xf32> -> vector<128x64xf32>
    %c1 = arith.constant 1 : index
    %c0_9 = arith.constant 0 : index
    %c0_10 = arith.constant 0 : index
    %7 = vector.load %arg1[%c1, %c0_9, %c0_10] : memref<4x128x64xbf16, #tpu.memory_space<vmem>>, vector<1x128x64xbf16>
    %8 = vector.shape_cast %7 : vector<1x128x64xbf16> to vector<128x64xbf16>
    %c0_11 = arith.constant 0 : index
    %c0_12 = arith.constant 0 : index
    %9 = vector.load %arg3[%c0_11, %c0_12] : memref<64x64xbf16, #tpu.memory_space<vmem>>, vector<64x64xbf16>
    %cst_13 = arith.constant dense<0.000000e+00> : vector<128x64xf32>
    %10 = tpu.matmul %8, %9, %cst_13 {dimension_numbers = #tpu.dot_dimension_numbers<[1], [0], [0], [1], [0, 0, 1, 1], [], []>} : vector<128x64xbf16>, vector<64x64xbf16>, vector<128x64xf32> -> vector<128x64xf32>
    %11 = arith.maximumf %6, %10 : vector<128x64xf32>
    %c2 = arith.constant 2 : index
    %c0_14 = arith.constant 0 : index
    %c0_15 = arith.constant 0 : index
    %12 = vector.load %arg1[%c2, %c0_14, %c0_15] : memref<4x128x64xbf16, #tpu.memory_space<vmem>>, vector<1x128x64xbf16>
    %13 = vector.shape_cast %12 : vector<1x128x64xbf16> to vector<128x64xbf16>
    %c0_16 = arith.constant 0 : index
    %c0_17 = arith.constant 0 : index
    %14 = vector.load %arg3[%c0_16, %c0_17] : memref<64x64xbf16, #tpu.memory_space<vmem>>, vector<64x64xbf16>
    %cst_18 = arith.constant dense<0.000000e+00> : vector<128x64xf32>
    %15 = tpu.matmul %13, %14, %cst_18 {dimension_numbers = #tpu.dot_dimension_numbers<[1], [0], [0], [1], [0, 0, 1, 1], [], []>} : vector<128x64xbf16>, vector<64x64xbf16>, vector<128x64xf32> -> vector<128x64xf32>
    %16 = arith.maximumf %11, %15 : vector<128x64xf32>
    %c3 = arith.constant 3 : index
    %c0_19 = arith.constant 0 : index
    %c0_20 = arith.constant 0 : index
    %17 = vector.load %arg1[%c3, %c0_19, %c0_20] : memref<4x128x64xbf16, #tpu.memory_space<vmem>>, vector<1x128x64xbf16>
    %18 = vector.shape_cast %17 : vector<1x128x64xbf16> to vector<128x64xbf16>
    %c0_21 = arith.constant 0 : index
    %c0_22 = arith.constant 0 : index
    %19 = vector.load %arg3[%c0_21, %c0_22] : memref<64x64xbf16, #tpu.memory_space<vmem>>, vector<64x64xbf16>
    %cst_23 = arith.constant dense<0.000000e+00> : vector<128x64xf32>
    %20 = tpu.matmul %18, %19, %cst_23 {dimension_numbers = #tpu.dot_dimension_numbers<[1], [0], [0], [1], [0, 0, 1, 1], [], []>} : vector<128x64xbf16>, vector<64x64xbf16>, vector<128x64xf32> -> vector<128x64xf32>
    %21 = arith.maximumf %16, %20 : vector<128x64xf32>
    %22 = arith.addf %21, %2 : vector<128x64xf32>
    %cst_24 = arith.constant 0.000000e+00 : f32
    %23 = vector.broadcast %cst_24 : f32 to vector<128x64xf32>
    %24 = arith.maximumf %22, %23 : vector<128x64xf32>
    %c0_25 = arith.constant 0 : index
    %c0_26 = arith.constant 0 : index
    %25 = vector.load %arg5[%c0_25, %c0_26] : memref<128x64xf32, #tpu.memory_space<vmem>>, vector<128x64xf32>
    tpu.vector_store %arg5[%c0_25, %c0_26], %24 {strides = array<i32>} : memref<128x64xf32, #tpu.memory_space<vmem>>, vector<128x64xf32>,
    return
  }
  func.func @transform_0(%arg0: i32) -> (i32, i32, i32) {
    %c0_i32 = arith.constant 0 : i32
    %c0_i32_0 = arith.constant 0 : i32
    %c0_i32_1 = arith.constant 0 : i32
    return %c0_i32, %arg0, %c0_i32_0 : i32, i32, i32
  }
  func.func @transform_1(%arg0: i32) -> (i32, i32) {
    %c0_i32 = arith.constant 0 : i32
    %c0_i32_0 = arith.constant 0 : i32
    return %arg0, %c0_i32 : i32, i32
  }
  func.func @transform_2(%arg0: i32) -> (i32, i32) {
    %c0_i32 = arith.constant 0 : i32
    %c0_i32_0 = arith.constant 0 : i32
    %c0_i32_1 = arith.constant 0 : i32
    return %c0_i32, %c0_i32_0 : i32, i32
  }
  func.func @transform_3(%arg0: i32) -> (i32, i32) {
    %c0_i32 = arith.constant 0 : i32
    %c0_i32_0 = arith.constant 0 : i32
    %c0_i32_1 = arith.constant 0 : i32
    return %c0_i32, %c0_i32_0 : i32, i32
  }
  func.func @transform_4(%arg0: i32) -> (i32, i32) {
    %c0_i32 = arith.constant 0 : i32
    %c0_i32_0 = arith.constant 0 : i32
    return %arg0, %c0_i32 : i32, i32
  }
}

module attributes {stable_mosaic.version = 11 : i64} {
  func.func @_edgeconv_kernel(%arg0: i32, %arg1: memref<4x128x64xbf16, #tpu.memory_space<vmem>>, %arg2: memref<128x64xbf16, #tpu.memory_space<vmem>>, %arg3: memref<64x128xbf16, #tpu.memory_space<vmem>>, %arg4: memref<64x128xbf16, #tpu.memory_space<vmem>>, %arg5: memref<128x128xf32, #tpu.memory_space<vmem>>) attributes {dimension_semantics = [#tpu.dimension_semantics<parallel>], iteration_bounds = array<i64: 2>, scalar_prefetch = 0 : i64, scratch_operands = 0 : i64, tpu.core_type = #tpu.core_type<tc>, window_params = [{transform_indices = @transform_0, window_bounds = array<i64: 4, 128, 64>}, {transform_indices = @transform_1, window_bounds = array<i64: 128, 64>}, {pipeline_mode = #tpu.pipeline_mode<synchronous>, transform_indices = @transform_2, window_bounds = array<i64: 64, 128>}, {pipeline_mode = #tpu.pipeline_mode<synchronous>, transform_indices = @transform_3, window_bounds = array<i64: 64, 128>}, {transform_indices = @transform_4, window_bounds = array<i64: 128, 128>}]} {
    %c0 = arith.constant 0 : index
    %c0_0 = arith.constant 0 : index
    %0 = vector.load %arg2[%c0, %c0_0] : memref<128x64xbf16, #tpu.memory_space<vmem>>, vector<128x64xbf16>
    %c0_1 = arith.constant 0 : index
    %c0_2 = arith.constant 0 : index
    %1 = vector.load %arg4[%c0_1, %c0_2] : memref<64x128xbf16, #tpu.memory_space<vmem>>, vector<64x128xbf16>
    %cst = arith.constant dense<0.000000e+00> : vector<128x128xf32>
    %2 = tpu.matmul %0, %1, %cst {dimension_numbers = #tpu.dot_dimension_numbers<[1], [0], [0], [1], [0, 0, 1, 1], [], []>} : vector<128x64xbf16>, vector<64x128xbf16>, vector<128x128xf32> -> vector<128x128xf32>
    %c0_3 = arith.constant 0 : index
    %c0_4 = arith.constant 0 : index
    %c0_5 = arith.constant 0 : index
    %3 = vector.load %arg1[%c0_3, %c0_4, %c0_5] : memref<4x128x64xbf16, #tpu.memory_space<vmem>>, vector<1x128x64xbf16>
    %4 = vector.shape_cast %3 : vector<1x128x64xbf16> to vector<128x64xbf16>
    %c0_6 = arith.constant 0 : index
    %c0_7 = arith.constant 0 : index
    %5 = vector.load %arg3[%c0_6, %c0_7] : memref<64x128xbf16, #tpu.memory_space<vmem>>, vector<64x128xbf16>
    %cst_8 = arith.constant dense<0.000000e+00> : vector<128x128xf32>
    %6 = tpu.matmul %4, %5, %cst_8 {dimension_numbers = #tpu.dot_dimension_numbers<[1], [0], [0], [1], [0, 0, 1, 1], [], []>} : vector<128x64xbf16>, vector<64x128xbf16>, vector<128x128xf32> -> vector<128x128xf32>
    %c1 = arith.constant 1 : index
    %c0_9 = arith.constant 0 : index
    %c0_10 = arith.constant 0 : index
    %7 = vector.load %arg1[%c1, %c0_9, %c0_10] : memref<4x128x64xbf16, #tpu.memory_space<vmem>>, vector<1x128x64xbf16>
    %8 = vector.shape_cast %7 : vector<1x128x64xbf16> to vector<128x64xbf16>
    %c0_11 = arith.constant 0 : index
    %c0_12 = arith.constant 0 : index
    %9 = vector.load %arg3[%c0_11, %c0_12] : memref<64x128xbf16, #tpu.memory_space<vmem>>, vector<64x128xbf16>
    %cst_13 = arith.constant dense<0.000000e+00> : vector<128x128xf32>
    %10 = tpu.matmul %8, %9, %cst_13 {dimension_numbers = #tpu.dot_dimension_numbers<[1], [0], [0], [1], [0, 0, 1, 1], [], []>} : vector<128x64xbf16>, vector<64x128xbf16>, vector<128x128xf32> -> vector<128x128xf32>
    %11 = arith.maximumf %6, %10 : vector<128x128xf32>
    %c2 = arith.constant 2 : index
    %c0_14 = arith.constant 0 : index
    %c0_15 = arith.constant 0 : index
    %12 = vector.load %arg1[%c2, %c0_14, %c0_15] : memref<4x128x64xbf16, #tpu.memory_space<vmem>>, vector<1x128x64xbf16>
    %13 = vector.shape_cast %12 : vector<1x128x64xbf16> to vector<128x64xbf16>
    %c0_16 = arith.constant 0 : index
    %c0_17 = arith.constant 0 : index
    %14 = vector.load %arg3[%c0_16, %c0_17] : memref<64x128xbf16, #tpu.memory_space<vmem>>, vector<64x128xbf16>
    %cst_18 = arith.constant dense<0.000000e+00> : vector<128x128xf32>
    %15 = tpu.matmul %13, %14, %cst_18 {dimension_numbers = #tpu.dot_dimension_numbers<[1], [0], [0], [1], [0, 0, 1, 1], [], []>} : vector<128x64xbf16>, vector<64x128xbf16>, vector<128x128xf32> -> vector<128x128xf32>
    %16 = arith.maximumf %11, %15 : vector<128x128xf32>
    %c3 = arith.constant 3 : index
    %c0_19 = arith.constant 0 : index
    %c0_20 = arith.constant 0 : index
    %17 = vector.load %arg1[%c3, %c0_19, %c0_20] : memref<4x128x64xbf16, #tpu.memory_space<vmem>>, vector<1x128x64xbf16>
    %18 = vector.shape_cast %17 : vector<1x128x64xbf16> to vector<128x64xbf16>
    %c0_21 = arith.constant 0 : index
    %c0_22 = arith.constant 0 : index
    %19 = vector.load %arg3[%c0_21, %c0_22] : memref<64x128xbf16, #tpu.memory_space<vmem>>, vector<64x128xbf16>
    %cst_23 = arith.constant dense<0.000000e+00> : vector<128x128xf32>
    %20 = tpu.matmul %18, %19, %cst_23 {dimension_numbers = #tpu.dot_dimension_numbers<[1], [0], [0], [1], [0, 0, 1, 1], [], []>} : vector<128x64xbf16>, vector<64x128xbf16>, vector<128x128xf32> -> vector<128x128xf32>
    %21 = arith.maximumf %16, %20 : vector<128x128xf32>
    %22 = arith.addf %21, %2 : vector<128x128xf32>
    %cst_24 = arith.constant 0.000000e+00 : f32
    %23 = vector.broadcast %cst_24 : f32 to vector<128x128xf32>
    %24 = arith.maximumf %22, %23 : vector<128x128xf32>
    %c0_25 = arith.constant 0 : index
    %c0_26 = arith.constant 0 : index
    %25 = vector.load %arg5[%c0_25, %c0_26] : memref<128x128xf32, #tpu.memory_space<vmem>>, vector<128x128xf32>
    tpu.vector_store %arg5[%c0_25, %c0_26], %24 {strides = array<i32>} : memref<128x128xf32, #tpu.memory_space<vmem>>, vector<128x128xf32>,
    return
  }
  func.func @transform_0(%arg0: i32) -> (i32, i32, i32) {
    %c0_i32 = arith.constant 0 : i32
    %c0_i32_0 = arith.constant 0 : i32
    %c0_i32_1 = arith.constant 0 : i32
    return %c0_i32, %arg0, %c0_i32_0 : i32, i32, i32
  }
  func.func @transform_1(%arg0: i32) -> (i32, i32) {
    %c0_i32 = arith.constant 0 : i32
    %c0_i32_0 = arith.constant 0 : i32
    return %arg0, %c0_i32 : i32, i32
  }
  func.func @transform_2(%arg0: i32) -> (i32, i32) {
    %c0_i32 = arith.constant 0 : i32
    %c0_i32_0 = arith.constant 0 : i32
    %c0_i32_1 = arith.constant 0 : i32
    return %c0_i32, %c0_i32_0 : i32, i32
  }
  func.func @transform_3(%arg0: i32) -> (i32, i32) {
    %c0_i32 = arith.constant 0 : i32
    %c0_i32_0 = arith.constant 0 : i32
    %c0_i32_1 = arith.constant 0 : i32
    return %c0_i32, %c0_i32_0 : i32, i32
  }
  func.func @transform_4(%arg0: i32) -> (i32, i32) {
    %c0_i32 = arith.constant 0 : i32
    %c0_i32_0 = arith.constant 0 : i32
    return %arg0, %c0_i32 : i32, i32
  }
}

module attributes {stable_mosaic.version = 11 : i64} {
  func.func @_edgeconv_kernel(%arg0: i32, %arg1: memref<4x128x128xbf16, #tpu.memory_space<vmem>>, %arg2: memref<128x128xbf16, #tpu.memory_space<vmem>>, %arg3: memref<128x256xbf16, #tpu.memory_space<vmem>>, %arg4: memref<128x256xbf16, #tpu.memory_space<vmem>>, %arg5: memref<128x256xf32, #tpu.memory_space<vmem>>) attributes {dimension_semantics = [#tpu.dimension_semantics<parallel>], iteration_bounds = array<i64: 2>, scalar_prefetch = 0 : i64, scratch_operands = 0 : i64, tpu.core_type = #tpu.core_type<tc>, window_params = [{transform_indices = @transform_0, window_bounds = array<i64: 4, 128, 128>}, {transform_indices = @transform_1, window_bounds = array<i64: 128, 128>}, {pipeline_mode = #tpu.pipeline_mode<synchronous>, transform_indices = @transform_2, window_bounds = array<i64: 128, 256>}, {pipeline_mode = #tpu.pipeline_mode<synchronous>, transform_indices = @transform_3, window_bounds = array<i64: 128, 256>}, {transform_indices = @transform_4, window_bounds = array<i64: 128, 256>}]} {
    %c0 = arith.constant 0 : index
    %c0_0 = arith.constant 0 : index
    %0 = vector.load %arg2[%c0, %c0_0] : memref<128x128xbf16, #tpu.memory_space<vmem>>, vector<128x128xbf16>
    %c0_1 = arith.constant 0 : index
    %c0_2 = arith.constant 0 : index
    %1 = vector.load %arg4[%c0_1, %c0_2] : memref<128x256xbf16, #tpu.memory_space<vmem>>, vector<128x256xbf16>
    %cst = arith.constant dense<0.000000e+00> : vector<128x256xf32>
    %2 = tpu.matmul %0, %1, %cst {dimension_numbers = #tpu.dot_dimension_numbers<[1], [0], [0], [1], [0, 0, 1, 1], [], []>} : vector<128x128xbf16>, vector<128x256xbf16>, vector<128x256xf32> -> vector<128x256xf32>
    %c0_3 = arith.constant 0 : index
    %c0_4 = arith.constant 0 : index
    %c0_5 = arith.constant 0 : index
    %3 = vector.load %arg1[%c0_3, %c0_4, %c0_5] : memref<4x128x128xbf16, #tpu.memory_space<vmem>>, vector<1x128x128xbf16>
    %4 = vector.shape_cast %3 : vector<1x128x128xbf16> to vector<128x128xbf16>
    %c0_6 = arith.constant 0 : index
    %c0_7 = arith.constant 0 : index
    %5 = vector.load %arg3[%c0_6, %c0_7] : memref<128x256xbf16, #tpu.memory_space<vmem>>, vector<128x256xbf16>
    %cst_8 = arith.constant dense<0.000000e+00> : vector<128x256xf32>
    %6 = tpu.matmul %4, %5, %cst_8 {dimension_numbers = #tpu.dot_dimension_numbers<[1], [0], [0], [1], [0, 0, 1, 1], [], []>} : vector<128x128xbf16>, vector<128x256xbf16>, vector<128x256xf32> -> vector<128x256xf32>
    %c1 = arith.constant 1 : index
    %c0_9 = arith.constant 0 : index
    %c0_10 = arith.constant 0 : index
    %7 = vector.load %arg1[%c1, %c0_9, %c0_10] : memref<4x128x128xbf16, #tpu.memory_space<vmem>>, vector<1x128x128xbf16>
    %8 = vector.shape_cast %7 : vector<1x128x128xbf16> to vector<128x128xbf16>
    %c0_11 = arith.constant 0 : index
    %c0_12 = arith.constant 0 : index
    %9 = vector.load %arg3[%c0_11, %c0_12] : memref<128x256xbf16, #tpu.memory_space<vmem>>, vector<128x256xbf16>
    %cst_13 = arith.constant dense<0.000000e+00> : vector<128x256xf32>
    %10 = tpu.matmul %8, %9, %cst_13 {dimension_numbers = #tpu.dot_dimension_numbers<[1], [0], [0], [1], [0, 0, 1, 1], [], []>} : vector<128x128xbf16>, vector<128x256xbf16>, vector<128x256xf32> -> vector<128x256xf32>
    %11 = arith.maximumf %6, %10 : vector<128x256xf32>
    %c2 = arith.constant 2 : index
    %c0_14 = arith.constant 0 : index
    %c0_15 = arith.constant 0 : index
    %12 = vector.load %arg1[%c2, %c0_14, %c0_15] : memref<4x128x128xbf16, #tpu.memory_space<vmem>>, vector<1x128x128xbf16>
    %13 = vector.shape_cast %12 : vector<1x128x128xbf16> to vector<128x128xbf16>
    %c0_16 = arith.constant 0 : index
    %c0_17 = arith.constant 0 : index
    %14 = vector.load %arg3[%c0_16, %c0_17] : memref<128x256xbf16, #tpu.memory_space<vmem>>, vector<128x256xbf16>
    %cst_18 = arith.constant dense<0.000000e+00> : vector<128x256xf32>
    %15 = tpu.matmul %13, %14, %cst_18 {dimension_numbers = #tpu.dot_dimension_numbers<[1], [0], [0], [1], [0, 0, 1, 1], [], []>} : vector<128x128xbf16>, vector<128x256xbf16>, vector<128x256xf32> -> vector<128x256xf32>
    %16 = arith.maximumf %11, %15 : vector<128x256xf32>
    %c3 = arith.constant 3 : index
    %c0_19 = arith.constant 0 : index
    %c0_20 = arith.constant 0 : index
    %17 = vector.load %arg1[%c3, %c0_19, %c0_20] : memref<4x128x128xbf16, #tpu.memory_space<vmem>>, vector<1x128x128xbf16>
    %18 = vector.shape_cast %17 : vector<1x128x128xbf16> to vector<128x128xbf16>
    %c0_21 = arith.constant 0 : index
    %c0_22 = arith.constant 0 : index
    %19 = vector.load %arg3[%c0_21, %c0_22] : memref<128x256xbf16, #tpu.memory_space<vmem>>, vector<128x256xbf16>
    %cst_23 = arith.constant dense<0.000000e+00> : vector<128x256xf32>
    %20 = tpu.matmul %18, %19, %cst_23 {dimension_numbers = #tpu.dot_dimension_numbers<[1], [0], [0], [1], [0, 0, 1, 1], [], []>} : vector<128x128xbf16>, vector<128x256xbf16>, vector<128x256xf32> -> vector<128x256xf32>
    %21 = arith.maximumf %16, %20 : vector<128x256xf32>
    %22 = arith.addf %21, %2 : vector<128x256xf32>
    %cst_24 = arith.constant 0.000000e+00 : f32
    %23 = vector.broadcast %cst_24 : f32 to vector<128x256xf32>
    %24 = arith.maximumf %22, %23 : vector<128x256xf32>
    %c0_25 = arith.constant 0 : index
    %c0_26 = arith.constant 0 : index
    %25 = vector.load %arg5[%c0_25, %c0_26] : memref<128x256xf32, #tpu.memory_space<vmem>>, vector<128x256xf32>
    tpu.vector_store %arg5[%c0_25, %c0_26], %24 {strides = array<i32>} : memref<128x256xf32, #tpu.memory_space<vmem>>, vector<128x256xf32>,
    return
  }
  func.func @transform_0(%arg0: i32) -> (i32, i32, i32) {
    %c0_i32 = arith.constant 0 : i32
    %c0_i32_0 = arith.constant 0 : i32
    %c0_i32_1 = arith.constant 0 : i32
    return %c0_i32, %arg0, %c0_i32_0 : i32, i32, i32
  }
  func.func @transform_1(%arg0: i32) -> (i32, i32) {
    %c0_i32 = arith.constant 0 : i32
    %c0_i32_0 = arith.constant 0 : i32
    return %arg0, %c0_i32 : i32, i32
  }
  func.func @transform_2(%arg0: i32) -> (i32, i32) {
    %c0_i32 = arith.constant 0 : i32
    %c0_i32_0 = arith.constant 0 : i32
    %c0_i32_1 = arith.constant 0 : i32
    return %c0_i32, %c0_i32_0 : i32, i32
  }
  func.func @transform_3(%arg0: i32) -> (i32, i32) {
    %c0_i32 = arith.constant 0 : i32
    %c0_i32_0 = arith.constant 0 : i32
    %c0_i32_1 = arith.constant 0 : i32
    return %c0_i32, %c0_i32_0 : i32, i32
  }
  func.func @transform_4(%arg0: i32) -> (i32, i32) {
    %c0_i32 = arith.constant 0 : i32
    %c0_i32_0 = arith.constant 0 : i32
    return %arg0, %c0_i32 : i32, i32
  }
}

module attributes {stable_mosaic.version = 11 : i64} {
  func.func @_conv5_kernel(%arg0: i32, %arg1: memref<128x64xbf16, #tpu.memory_space<vmem>>, %arg2: memref<128x64xbf16, #tpu.memory_space<vmem>>, %arg3: memref<128x128xbf16, #tpu.memory_space<vmem>>, %arg4: memref<128x256xbf16, #tpu.memory_space<vmem>>, %arg5: memref<64x32xbf16, #tpu.memory_space<vmem>>, %arg6: memref<64x32xbf16, #tpu.memory_space<vmem>>, %arg7: memref<128x32xbf16, #tpu.memory_space<vmem>>, %arg8: memref<256x32xbf16, #tpu.memory_space<vmem>>, %arg9: memref<128x32xf32, #tpu.memory_space<vmem>>) attributes {dimension_semantics = [#tpu.dimension_semantics<parallel>], iteration_bounds = array<i64: 2>, scalar_prefetch = 0 : i64, scratch_operands = 0 : i64, tpu.core_type = #tpu.core_type<tc>, window_params = [{transform_indices = @transform_0, window_bounds = array<i64: 128, 64>}, {transform_indices = @transform_1, window_bounds = array<i64: 128, 64>}, {transform_indices = @transform_2, window_bounds = array<i64: 128, 128>}, {transform_indices = @transform_3, window_bounds = array<i64: 128, 256>}, {pipeline_mode = #tpu.pipeline_mode<synchronous>, transform_indices = @transform_4, window_bounds = array<i64: 64, 32>}, {pipeline_mode = #tpu.pipeline_mode<synchronous>, transform_indices = @transform_5, window_bounds = array<i64: 64, 32>}, {pipeline_mode = #tpu.pipeline_mode<synchronous>, transform_indices = @transform_6, window_bounds = array<i64: 128, 32>}, {pipeline_mode = #tpu.pipeline_mode<synchronous>, transform_indices = @transform_7, window_bounds = array<i64: 256, 32>}, {transform_indices = @transform_8, window_bounds = array<i64: 128, 32>}]} {
    %c0 = arith.constant 0 : index
    %c0_0 = arith.constant 0 : index
    %0 = vector.load %arg1[%c0, %c0_0] : memref<128x64xbf16, #tpu.memory_space<vmem>>, vector<128x64xbf16>
    %c0_1 = arith.constant 0 : index
    %c0_2 = arith.constant 0 : index
    %1 = vector.load %arg5[%c0_1, %c0_2] : memref<64x32xbf16, #tpu.memory_space<vmem>>, vector<64x32xbf16>
    %cst = arith.constant dense<0.000000e+00> : vector<128x32xf32>
    %2 = tpu.matmul %0, %1, %cst {dimension_numbers = #tpu.dot_dimension_numbers<[1], [0], [0], [1], [0, 0, 1, 1], [], []>} : vector<128x64xbf16>, vector<64x32xbf16>, vector<128x32xf32> -> vector<128x32xf32>
    %c0_3 = arith.constant 0 : index
    %c0_4 = arith.constant 0 : index
    %3 = vector.load %arg2[%c0_3, %c0_4] : memref<128x64xbf16, #tpu.memory_space<vmem>>, vector<128x64xbf16>
    %c0_5 = arith.constant 0 : index
    %c0_6 = arith.constant 0 : index
    %4 = vector.load %arg6[%c0_5, %c0_6] : memref<64x32xbf16, #tpu.memory_space<vmem>>, vector<64x32xbf16>
    %cst_7 = arith.constant dense<0.000000e+00> : vector<128x32xf32>
    %5 = tpu.matmul %3, %4, %cst_7 {dimension_numbers = #tpu.dot_dimension_numbers<[1], [0], [0], [1], [0, 0, 1, 1], [], []>} : vector<128x64xbf16>, vector<64x32xbf16>, vector<128x32xf32> -> vector<128x32xf32>
    %6 = arith.addf %2, %5 : vector<128x32xf32>
    %c0_8 = arith.constant 0 : index
    %c0_9 = arith.constant 0 : index
    %7 = vector.load %arg3[%c0_8, %c0_9] : memref<128x128xbf16, #tpu.memory_space<vmem>>, vector<128x128xbf16>
    %c0_10 = arith.constant 0 : index
    %c0_11 = arith.constant 0 : index
    %8 = vector.load %arg7[%c0_10, %c0_11] : memref<128x32xbf16, #tpu.memory_space<vmem>>, vector<128x32xbf16>
    %cst_12 = arith.constant dense<0.000000e+00> : vector<128x32xf32>
    %9 = tpu.matmul %7, %8, %cst_12 {dimension_numbers = #tpu.dot_dimension_numbers<[1], [0], [0], [1], [0, 0, 1, 1], [], []>} : vector<128x128xbf16>, vector<128x32xbf16>, vector<128x32xf32> -> vector<128x32xf32>
    %10 = arith.addf %6, %9 : vector<128x32xf32>
    %c0_13 = arith.constant 0 : index
    %c0_14 = arith.constant 0 : index
    %11 = vector.load %arg4[%c0_13, %c0_14] : memref<128x256xbf16, #tpu.memory_space<vmem>>, vector<128x256xbf16>
    %c0_15 = arith.constant 0 : index
    %c0_16 = arith.constant 0 : index
    %12 = vector.load %arg8[%c0_15, %c0_16] : memref<256x32xbf16, #tpu.memory_space<vmem>>, vector<256x32xbf16>
    %cst_17 = arith.constant dense<0.000000e+00> : vector<128x32xf32>
    %13 = tpu.matmul %11, %12, %cst_17 {dimension_numbers = #tpu.dot_dimension_numbers<[1], [0], [0], [1], [0, 0, 1, 1], [], []>} : vector<128x256xbf16>, vector<256x32xbf16>, vector<128x32xf32> -> vector<128x32xf32>
    %14 = arith.addf %10, %13 : vector<128x32xf32>
    %15 = math.tanh %14 : vector<128x32xf32>
    %c0_18 = arith.constant 0 : index
    %c0_19 = arith.constant 0 : index
    %16 = vector.load %arg9[%c0_18, %c0_19] : memref<128x32xf32, #tpu.memory_space<vmem>>, vector<128x32xf32>
    tpu.vector_store %arg9[%c0_18, %c0_19], %15 {strides = array<i32>} : memref<128x32xf32, #tpu.memory_space<vmem>>, vector<128x32xf32>,
    return
  }
  func.func @transform_0(%arg0: i32) -> (i32, i32) {
    %c0_i32 = arith.constant 0 : i32
    %c0_i32_0 = arith.constant 0 : i32
    return %arg0, %c0_i32 : i32, i32
  }
  func.func @transform_1(%arg0: i32) -> (i32, i32) {
    %c0_i32 = arith.constant 0 : i32
    %c0_i32_0 = arith.constant 0 : i32
    return %arg0, %c0_i32 : i32, i32
  }
  func.func @transform_2(%arg0: i32) -> (i32, i32) {
    %c0_i32 = arith.constant 0 : i32
    %c0_i32_0 = arith.constant 0 : i32
    return %arg0, %c0_i32 : i32, i32
  }
  func.func @transform_3(%arg0: i32) -> (i32, i32) {
    %c0_i32 = arith.constant 0 : i32
    %c0_i32_0 = arith.constant 0 : i32
    return %arg0, %c0_i32 : i32, i32
  }
  func.func @transform_4(%arg0: i32) -> (i32, i32) {
    %c0_i32 = arith.constant 0 : i32
    %c0_i32_0 = arith.constant 0 : i32
    %c0_i32_1 = arith.constant 0 : i32
    return %c0_i32, %c0_i32_0 : i32, i32
  }
  func.func @transform_5(%arg0: i32) -> (i32, i32) {
    %c0_i32 = arith.constant 0 : i32
    %c0_i32_0 = arith.constant 0 : i32
    %c0_i32_1 = arith.constant 0 : i32
    return %c0_i32, %c0_i32_0 : i32, i32
  }
  func.func @transform_6(%arg0: i32) -> (i32, i32) {
    %c0_i32 = arith.constant 0 : i32
    %c0_i32_0 = arith.constant 0 : i32
    %c0_i32_1 = arith.constant 0 : i32
    return %c0_i32, %c0_i32_0 : i32, i32
  }
  func.func @transform_7(%arg0: i32) -> (i32, i32) {
    %c0_i32 = arith.constant 0 : i32
    %c0_i32_0 = arith.constant 0 : i32
    %c0_i32_1 = arith.constant 0 : i32
    return %c0_i32, %c0_i32_0 : i32, i32
  }
  func.func @transform_8(%arg0: i32) -> (i32, i32) {
    %c0_i32 = arith.constant 0 : i32
    %c0_i32_0 = arith.constant 0 : i32
    return %arg0, %c0_i32 : i32, i32
  }
}

module attributes {stable_mosaic.version = 11 : i64} {
  func.func @_tail_kernel(%arg0: i32, %arg1: memref<16x64xbf16, #tpu.memory_space<vmem>>, %arg2: memref<16x3xf32, #tpu.memory_space<vmem>>, %arg3: memref<64x144xbf16, #tpu.memory_space<vmem>>, %arg4: memref<1x144xf32, #tpu.memory_space<vmem>>, %arg5: memref<128x64xbf16, #tpu.memory_space<vmem>>, %arg6: memref<1x64xf32, #tpu.memory_space<vmem>>, %arg7: memref<64x64xbf16, #tpu.memory_space<vmem>>, %arg8: memref<4x64xf32, #tpu.memory_space<vmem>>, %arg9: memref<1x64xf32, #tpu.memory_space<vmem>>, %arg10: memref<64x32xbf16, #tpu.memory_space<vmem>>, %arg11: memref<1x32xf32, #tpu.memory_space<vmem>>, %arg12: memref<32x3xbf16, #tpu.memory_space<vmem>>, %arg13: memref<1x3xf32, #tpu.memory_space<vmem>>, %arg14: memref<16x12xf32, #tpu.memory_space<vmem>>, %arg15: memref<16x16xf32, #tpu.memory_space<vmem>>) attributes {dimension_semantics = [#tpu.dimension_semantics<parallel>], iteration_bounds = array<i64: 2>, scalar_prefetch = 0 : i64, scratch_operands = 0 : i64, tpu.core_type = #tpu.core_type<tc>, window_params = [{transform_indices = @transform_0, window_bounds = array<i64: 16, 64>}, {transform_indices = @transform_1, window_bounds = array<i64: 16, 3>}, {pipeline_mode = #tpu.pipeline_mode<synchronous>, transform_indices = @transform_2, window_bounds = array<i64: 64, 144>}, {pipeline_mode = #tpu.pipeline_mode<synchronous>, transform_indices = @transform_3, window_bounds = array<i64: 1, 144>}, {pipeline_mode = #tpu.pipeline_mode<synchronous>, transform_indices = @transform_4, window_bounds = array<i64: 128, 64>}, {pipeline_mode = #tpu.pipeline_mode<synchronous>, transform_indices = @transform_5, window_bounds = array<i64: 1, 64>}, {pipeline_mode = #tpu.pipeline_mode<synchronous>, transform_indices = @transform_6, window_bounds = array<i64: 64, 64>}, {pipeline_mode = #tpu.pipeline_mode<synchronous>, transform_indices = @transform_7, window_bounds = array<i64: 4, 64>}, {pipeline_mode = #tpu.pipeline_mode<synchronous>, transform_indices = @transform_8, window_bounds = array<i64: 1, 64>}, {pipeline_mode = #tpu.pipeline_mode<synchronous>, transform_indices = @transform_9, window_bounds = array<i64: 64, 32>}, {pipeline_mode = #tpu.pipeline_mode<synchronous>, transform_indices = @transform_10, window_bounds = array<i64: 1, 32>}, {pipeline_mode = #tpu.pipeline_mode<synchronous>, transform_indices = @transform_11, window_bounds = array<i64: 32, 3>}, {pipeline_mode = #tpu.pipeline_mode<synchronous>, transform_indices = @transform_12, window_bounds = array<i64: 1, 3>}, {transform_indices = @transform_13, window_bounds = array<i64: 16, 12>}, {transform_indices = @transform_14, window_bounds = array<i64: 16, 16>}]} {
    %c0 = arith.constant 0 : index
    %c0_0 = arith.constant 0 : index
    %0 = vector.load %arg1[%c0, %c0_0] : memref<16x64xbf16, #tpu.memory_space<vmem>>, vector<16x64xbf16>
    %c0_1 = arith.constant 0 : index
    %c0_2 = arith.constant 0 : index
    %1 = vector.load %arg3[%c0_1, %c0_2] : memref<64x144xbf16, #tpu.memory_space<vmem>>, vector<64x144xbf16>
    %cst = arith.constant dense<0.000000e+00> : vector<16x144xf32>
    %2 = tpu.matmul %0, %1, %cst {dimension_numbers = #tpu.dot_dimension_numbers<[1], [0], [0], [1], [0, 0, 1, 1], [], []>} : vector<16x64xbf16>, vector<64x144xbf16>, vector<16x144xf32> -> vector<16x144xf32>
    %c0_3 = arith.constant 0 : index
    %c0_4 = arith.constant 0 : index
    %3 = vector.load %arg4[%c0_3, %c0_4] : memref<1x144xf32, #tpu.memory_space<vmem>>, vector<1x144xf32>
    %4 = vector.broadcast %3 : vector<1x144xf32> to vector<16x144xf32>
    %5 = arith.addf %2, %4 : vector<16x144xf32>
    %cst_5 = arith.constant 0.000000e+00 : f32
    %6 = vector.broadcast %cst_5 : f32 to vector<16x144xf32>
    %7 = arith.maximumf %5, %6 : vector<16x144xf32>
    %8 = vector.extract_strided_slice %7 {offsets = [0, 128], sizes = [16, 16], strides = [1, 1]} : vector<16x144xf32> to vector<16x16xf32>
    %c0_6 = arith.constant 0 : index
    %c0_7 = arith.constant 0 : index
    %9 = vector.load %arg15[%c0_6, %c0_7] : memref<16x16xf32, #tpu.memory_space<vmem>>, vector<16x16xf32>
    tpu.vector_store %arg15[%c0_6, %c0_7], %8 {strides = array<i32>} : memref<16x16xf32, #tpu.memory_space<vmem>>, vector<16x16xf32>,
    %10 = vector.extract_strided_slice %7 {offsets = [0, 0], sizes = [16, 128], strides = [1, 1]} : vector<16x144xf32> to vector<16x128xf32>
    %11 = arith.truncf %10 : vector<16x128xf32> to vector<16x128xbf16>
    %c0_8 = arith.constant 0 : index
    %c0_9 = arith.constant 0 : index
    %12 = vector.load %arg5[%c0_8, %c0_9] : memref<128x64xbf16, #tpu.memory_space<vmem>>, vector<128x64xbf16>
    %cst_10 = arith.constant dense<0.000000e+00> : vector<16x64xf32>
    %13 = tpu.matmul %11, %12, %cst_10 {dimension_numbers = #tpu.dot_dimension_numbers<[1], [0], [0], [1], [0, 0, 1, 1], [], []>} : vector<16x128xbf16>, vector<128x64xbf16>, vector<16x64xf32> -> vector<16x64xf32>
    %c0_11 = arith.constant 0 : index
    %c0_12 = arith.constant 0 : index
    %14 = vector.load %arg6[%c0_11, %c0_12] : memref<1x64xf32, #tpu.memory_space<vmem>>, vector<1x64xf32>
    %15 = vector.broadcast %14 : vector<1x64xf32> to vector<16x64xf32>
    %16 = arith.addf %13, %15 : vector<16x64xf32>
    %cst_13 = arith.constant 0.000000e+00 : f32
    %17 = vector.broadcast %cst_13 : f32 to vector<16x64xf32>
    %18 = arith.maximumf %16, %17 : vector<16x64xf32>
    %19 = arith.extf %0 : vector<16x64xbf16> to vector<16x64xf32>
    %20 = arith.addf %19, %18 : vector<16x64xf32>
    %21 = arith.truncf %20 : vector<16x64xf32> to vector<16x64xbf16>
    %c0_14 = arith.constant 0 : index
    %c0_15 = arith.constant 0 : index
    %22 = vector.load %arg7[%c0_14, %c0_15] : memref<64x64xbf16, #tpu.memory_space<vmem>>, vector<64x64xbf16>
    %cst_16 = arith.constant dense<0.000000e+00> : vector<16x64xf32>
    %23 = tpu.matmul %21, %22, %cst_16 {dimension_numbers = #tpu.dot_dimension_numbers<[1], [0], [0], [1], [0, 0, 1, 1], [], []>} : vector<16x64xbf16>, vector<64x64xbf16>, vector<16x64xf32> -> vector<16x64xf32>
    %c0_17 = arith.constant 0 : index
    %c0_18 = arith.constant 0 : index
    %24 = vector.load %arg9[%c0_17, %c0_18] : memref<1x64xf32, #tpu.memory_space<vmem>>, vector<1x64xf32>
    %25 = vector.broadcast %24 : vector<1x64xf32> to vector<16x64xf32>
    %26 = arith.addf %23, %25 : vector<16x64xf32>
    %c0_19 = arith.constant 0 : index
    %c0_20 = arith.constant 0 : index
    %27 = vector.load %arg8[%c0_19, %c0_20] : memref<4x64xf32, #tpu.memory_space<vmem>>, vector<4x64xf32>
    %c0_21 = arith.constant 0 : index
    %c0_22 = arith.constant 0 : index
    %28 = vector.load %arg2[%c0_21, %c0_22] : memref<16x3xf32, #tpu.memory_space<vmem>>, vector<16x3xf32>
    %c0_23 = arith.constant 0 : index
    %c0_24 = arith.constant 0 : index
    %29 = vector.load %arg13[%c0_23, %c0_24] : memref<1x3xf32, #tpu.memory_space<vmem>>, vector<1x3xf32>
    %30 = vector.extract_strided_slice %27 {offsets = [0, 0], sizes = [1, 64], strides = [1, 1]} : vector<4x64xf32> to vector<1x64xf32>
    %31 = vector.broadcast %30 : vector<1x64xf32> to vector<16x64xf32>
    %32 = arith.addf %26, %31 : vector<16x64xf32>
    %cst_25 = arith.constant 0.000000e+00 : f32
    %33 = vector.broadcast %cst_25 : f32 to vector<16x64xf32>
    %34 = arith.maximumf %32, %33 : vector<16x64xf32>
    %35 = arith.truncf %34 : vector<16x64xf32> to vector<16x64xbf16>
    %c0_26 = arith.constant 0 : index
    %c0_27 = arith.constant 0 : index
    %36 = vector.load %arg10[%c0_26, %c0_27] : memref<64x32xbf16, #tpu.memory_space<vmem>>, vector<64x32xbf16>
    %cst_28 = arith.constant dense<0.000000e+00> : vector<16x32xf32>
    %37 = tpu.matmul %35, %36, %cst_28 {dimension_numbers = #tpu.dot_dimension_numbers<[1], [0], [0], [1], [0, 0, 1, 1], [], []>} : vector<16x64xbf16>, vector<64x32xbf16>, vector<16x32xf32> -> vector<16x32xf32>
    %c0_29 = arith.constant 0 : index
    %c0_30 = arith.constant 0 : index
    %38 = vector.load %arg11[%c0_29, %c0_30] : memref<1x32xf32, #tpu.memory_space<vmem>>, vector<1x32xf32>
    %39 = vector.broadcast %38 : vector<1x32xf32> to vector<16x32xf32>
    %40 = arith.addf %37, %39 : vector<16x32xf32>
    %cst_31 = arith.constant 0.000000e+00 : f32
    %41 = vector.broadcast %cst_31 : f32 to vector<16x32xf32>
    %42 = arith.maximumf %40, %41 : vector<16x32xf32>
    %43 = arith.truncf %42 : vector<16x32xf32> to vector<16x32xbf16>
    %c0_32 = arith.constant 0 : index
    %c0_33 = arith.constant 0 : index
    %44 = vector.load %arg12[%c0_32, %c0_33] : memref<32x3xbf16, #tpu.memory_space<vmem>>, vector<32x3xbf16>
    %cst_34 = arith.constant dense<0.000000e+00> : vector<16x3xf32>
    %45 = tpu.matmul %43, %44, %cst_34 {dimension_numbers = #tpu.dot_dimension_numbers<[1], [0], [0], [1], [0, 0, 1, 1], [], []>} : vector<16x32xbf16>, vector<32x3xbf16>, vector<16x3xf32> -> vector<16x3xf32>
    %46 = vector.broadcast %29 : vector<1x3xf32> to vector<16x3xf32>
    %47 = arith.addf %45, %46 : vector<16x3xf32>
    %48 = arith.addf %47, %28 : vector<16x3xf32>
    %49 = vector.extract_strided_slice %27 {offsets = [1, 0], sizes = [1, 64], strides = [1, 1]} : vector<4x64xf32> to vector<1x64xf32>
    %50 = vector.broadcast %49 : vector<1x64xf32> to vector<16x64xf32>
    %51 = arith.addf %26, %50 : vector<16x64xf32>
    %cst_35 = arith.constant 0.000000e+00 : f32
    %52 = vector.broadcast %cst_35 : f32 to vector<16x64xf32>
    %53 = arith.maximumf %51, %52 : vector<16x64xf32>
    %54 = arith.truncf %53 : vector<16x64xf32> to vector<16x64xbf16>
    %c0_36 = arith.constant 0 : index
    %c0_37 = arith.constant 0 : index
    %55 = vector.load %arg10[%c0_36, %c0_37] : memref<64x32xbf16, #tpu.memory_space<vmem>>, vector<64x32xbf16>
    %cst_38 = arith.constant dense<0.000000e+00> : vector<16x32xf32>
    %56 = tpu.matmul %54, %55, %cst_38 {dimension_numbers = #tpu.dot_dimension_numbers<[1], [0], [0], [1], [0, 0, 1, 1], [], []>} : vector<16x64xbf16>, vector<64x32xbf16>, vector<16x32xf32> -> vector<16x32xf32>
    %c0_39 = arith.constant 0 : index
    %c0_40 = arith.constant 0 : index
    %57 = vector.load %arg11[%c0_39, %c0_40] : memref<1x32xf32, #tpu.memory_space<vmem>>, vector<1x32xf32>
    %58 = vector.broadcast %57 : vector<1x32xf32> to vector<16x32xf32>
    %59 = arith.addf %56, %58 : vector<16x32xf32>
    %cst_41 = arith.constant 0.000000e+00 : f32
    %60 = vector.broadcast %cst_41 : f32 to vector<16x32xf32>
    %61 = arith.maximumf %59, %60 : vector<16x32xf32>
    %62 = arith.truncf %61 : vector<16x32xf32> to vector<16x32xbf16>
    %c0_42 = arith.constant 0 : index
    %c0_43 = arith.constant 0 : index
    %63 = vector.load %arg12[%c0_42, %c0_43] : memref<32x3xbf16, #tpu.memory_space<vmem>>, vector<32x3xbf16>
    %cst_44 = arith.constant dense<0.000000e+00> : vector<16x3xf32>
    %64 = tpu.matmul %62, %63, %cst_44 {dimension_numbers = #tpu.dot_dimension_numbers<[1], [0], [0], [1], [0, 0, 1, 1], [], []>} : vector<16x32xbf16>, vector<32x3xbf16>, vector<16x3xf32> -> vector<16x3xf32>
    %65 = vector.broadcast %29 : vector<1x3xf32> to vector<16x3xf32>
    %66 = arith.addf %64, %65 : vector<16x3xf32>
    %67 = arith.addf %66, %28 : vector<16x3xf32>
    %68 = vector.extract_strided_slice %27 {offsets = [2, 0], sizes = [1, 64], strides = [1, 1]} : vector<4x64xf32> to vector<1x64xf32>
    %69 = vector.broadcast %68 : vector<1x64xf32> to vector<16x64xf32>
    %70 = arith.addf %26, %69 : vector<16x64xf32>
    %cst_45 = arith.constant 0.000000e+00 : f32
    %71 = vector.broadcast %cst_45 : f32 to vector<16x64xf32>
    %72 = arith.maximumf %70, %71 : vector<16x64xf32>
    %73 = arith.truncf %72 : vector<16x64xf32> to vector<16x64xbf16>
    %c0_46 = arith.constant 0 : index
    %c0_47 = arith.constant 0 : index
    %74 = vector.load %arg10[%c0_46, %c0_47] : memref<64x32xbf16, #tpu.memory_space<vmem>>, vector<64x32xbf16>
    %cst_48 = arith.constant dense<0.000000e+00> : vector<16x32xf32>
    %75 = tpu.matmul %73, %74, %cst_48 {dimension_numbers = #tpu.dot_dimension_numbers<[1], [0], [0], [1], [0, 0, 1, 1], [], []>} : vector<16x64xbf16>, vector<64x32xbf16>, vector<16x32xf32> -> vector<16x32xf32>
    %c0_49 = arith.constant 0 : index
    %c0_50 = arith.constant 0 : index
    %76 = vector.load %arg11[%c0_49, %c0_50] : memref<1x32xf32, #tpu.memory_space<vmem>>, vector<1x32xf32>
    %77 = vector.broadcast %76 : vector<1x32xf32> to vector<16x32xf32>
    %78 = arith.addf %75, %77 : vector<16x32xf32>
    %cst_51 = arith.constant 0.000000e+00 : f32
    %79 = vector.broadcast %cst_51 : f32 to vector<16x32xf32>
    %80 = arith.maximumf %78, %79 : vector<16x32xf32>
    %81 = arith.truncf %80 : vector<16x32xf32> to vector<16x32xbf16>
    %c0_52 = arith.constant 0 : index
    %c0_53 = arith.constant 0 : index
    %82 = vector.load %arg12[%c0_52, %c0_53] : memref<32x3xbf16, #tpu.memory_space<vmem>>, vector<32x3xbf16>
    %cst_54 = arith.constant dense<0.000000e+00> : vector<16x3xf32>
    %83 = tpu.matmul %81, %82, %cst_54 {dimension_numbers = #tpu.dot_dimension_numbers<[1], [0], [0], [1], [0, 0, 1, 1], [], []>} : vector<16x32xbf16>, vector<32x3xbf16>, vector<16x3xf32> -> vector<16x3xf32>
    %84 = vector.broadcast %29 : vector<1x3xf32> to vector<16x3xf32>
    %85 = arith.addf %83, %84 : vector<16x3xf32>
    %86 = arith.addf %85, %28 : vector<16x3xf32>
    %87 = vector.extract_strided_slice %27 {offsets = [3, 0], sizes = [1, 64], strides = [1, 1]} : vector<4x64xf32> to vector<1x64xf32>
    %88 = vector.broadcast %87 : vector<1x64xf32> to vector<16x64xf32>
    %89 = arith.addf %26, %88 : vector<16x64xf32>
    %cst_55 = arith.constant 0.000000e+00 : f32
    %90 = vector.broadcast %cst_55 : f32 to vector<16x64xf32>
    %91 = arith.maximumf %89, %90 : vector<16x64xf32>
    %92 = arith.truncf %91 : vector<16x64xf32> to vector<16x64xbf16>
    %c0_56 = arith.constant 0 : index
    %c0_57 = arith.constant 0 : index
    %93 = vector.load %arg10[%c0_56, %c0_57] : memref<64x32xbf16, #tpu.memory_space<vmem>>, vector<64x32xbf16>
    %cst_58 = arith.constant dense<0.000000e+00> : vector<16x32xf32>
    %94 = tpu.matmul %92, %93, %cst_58 {dimension_numbers = #tpu.dot_dimension_numbers<[1], [0], [0], [1], [0, 0, 1, 1], [], []>} : vector<16x64xbf16>, vector<64x32xbf16>, vector<16x32xf32> -> vector<16x32xf32>
    %c0_59 = arith.constant 0 : index
    %c0_60 = arith.constant 0 : index
    %95 = vector.load %arg11[%c0_59, %c0_60] : memref<1x32xf32, #tpu.memory_space<vmem>>, vector<1x32xf32>
    %96 = vector.broadcast %95 : vector<1x32xf32> to vector<16x32xf32>
    %97 = arith.addf %94, %96 : vector<16x32xf32>
    %cst_61 = arith.constant 0.000000e+00 : f32
    %98 = vector.broadcast %cst_61 : f32 to vector<16x32xf32>
    %99 = arith.maximumf %97, %98 : vector<16x32xf32>
    %100 = arith.truncf %99 : vector<16x32xf32> to vector<16x32xbf16>
    %c0_62 = arith.constant 0 : index
    %c0_63 = arith.constant 0 : index
    %101 = vector.load %arg12[%c0_62, %c0_63] : memref<32x3xbf16, #tpu.memory_space<vmem>>, vector<32x3xbf16>
    %cst_64 = arith.constant dense<0.000000e+00> : vector<16x3xf32>
    %102 = tpu.matmul %100, %101, %cst_64 {dimension_numbers = #tpu.dot_dimension_numbers<[1], [0], [0], [1], [0, 0, 1, 1], [], []>} : vector<16x32xbf16>, vector<32x3xbf16>, vector<16x3xf32> -> vector<16x3xf32>
    %103 = vector.broadcast %29 : vector<1x3xf32> to vector<16x3xf32>
    %104 = arith.addf %102, %103 : vector<16x3xf32>
    %105 = arith.addf %104, %28 : vector<16x3xf32>
    %106 = tpu.concatenate %48, %67, %86, %105 in 1 : vector<16x3xf32>, vector<16x3xf32>, vector<16x3xf32>, vector<16x3xf32> -> vector<16x12xf32>
    %c0_65 = arith.constant 0 : index
    %c0_66 = arith.constant 0 : index
    %107 = vector.load %arg14[%c0_65, %c0_66] : memref<16x12xf32, #tpu.memory_space<vmem>>, vector<16x12xf32>
    tpu.vector_store %arg14[%c0_65, %c0_66], %106 {strides = array<i32>} : memref<16x12xf32, #tpu.memory_space<vmem>>, vector<16x12xf32>,
    return
  }
  func.func @transform_0(%arg0: i32) -> (i32, i32) {
    %c0_i32 = arith.constant 0 : i32
    %c0_i32_0 = arith.constant 0 : i32
    return %arg0, %c0_i32 : i32, i32
  }
  func.func @transform_1(%arg0: i32) -> (i32, i32) {
    %c0_i32 = arith.constant 0 : i32
    %c0_i32_0 = arith.constant 0 : i32
    return %arg0, %c0_i32 : i32, i32
  }
  func.func @transform_2(%arg0: i32) -> (i32, i32) {
    %c0_i32 = arith.constant 0 : i32
    %c0_i32_0 = arith.constant 0 : i32
    %c0_i32_1 = arith.constant 0 : i32
    return %c0_i32, %c0_i32_0 : i32, i32
  }
  func.func @transform_3(%arg0: i32) -> (i32, i32) {
    %c0_i32 = arith.constant 0 : i32
    %c0_i32_0 = arith.constant 0 : i32
    %c0_i32_1 = arith.constant 0 : i32
    return %c0_i32, %c0_i32_0 : i32, i32
  }
  func.func @transform_4(%arg0: i32) -> (i32, i32) {
    %c0_i32 = arith.constant 0 : i32
    %c0_i32_0 = arith.constant 0 : i32
    %c0_i32_1 = arith.constant 0 : i32
    return %c0_i32, %c0_i32_0 : i32, i32
  }
  func.func @transform_5(%arg0: i32) -> (i32, i32) {
    %c0_i32 = arith.constant 0 : i32
    %c0_i32_0 = arith.constant 0 : i32
    %c0_i32_1 = arith.constant 0 : i32
    return %c0_i32, %c0_i32_0 : i32, i32
  }
  func.func @transform_6(%arg0: i32) -> (i32, i32) {
    %c0_i32 = arith.constant 0 : i32
    %c0_i32_0 = arith.constant 0 : i32
    %c0_i32_1 = arith.constant 0 : i32
    return %c0_i32, %c0_i32_0 : i32, i32
  }
  func.func @transform_7(%arg0: i32) -> (i32, i32) {
    %c0_i32 = arith.constant 0 : i32
    %c0_i32_0 = arith.constant 0 : i32
    %c0_i32_1 = arith.constant 0 : i32
    return %c0_i32, %c0_i32_0 : i32, i32
  }
  func.func @transform_8(%arg0: i32) -> (i32, i32) {
    %c0_i32 = arith.constant 0 : i32
    %c0_i32_0 = arith.constant 0 : i32
    %c0_i32_1 = arith.constant 0 : i32
    return %c0_i32, %c0_i32_0 : i32, i32
  }
  func.func @transform_9(%arg0: i32) -> (i32, i32) {
    %c0_i32 = arith.constant 0 : i32
    %c0_i32_0 = arith.constant 0 : i32
    %c0_i32_1 = arith.constant 0 : i32
    return %c0_i32, %c0_i32_0 : i32, i32
  }
  func.func @transform_10(%arg0: i32) -> (i32, i32) {
    %c0_i32 = arith.constant 0 : i32
    %c0_i32_0 = arith.constant 0 : i32
    %c0_i32_1 = arith.constant 0 : i32
    return %c0_i32, %c0_i32_0 : i32, i32
  }
  func.func @transform_11(%arg0: i32) -> (i32, i32) {
    %c0_i32 = arith.constant 0 : i32
    %c0_i32_0 = arith.constant 0 : i32
    %c0_i32_1 = arith.constant 0 : i32
    return %c0_i32, %c0_i32_0 : i32, i32
  }
  func.func @transform_12(%arg0: i32) -> (i32, i32) {
    %c0_i32 = arith.constant 0 : i32
    %c0_i32_0 = arith.constant 0 : i32
    %c0_i32_1 = arith.constant 0 : i32
    return %c0_i32, %c0_i32_0 : i32, i32
  }
  func.func @transform_13(%arg0: i32) -> (i32, i32) {
    %c0_i32 = arith.constant 0 : i32
    %c0_i32_0 = arith.constant 0 : i32
    return %arg0, %c0_i32 : i32, i32
  }
  func.func @transform_14(%arg0: i32) -> (i32, i32) {
    %c0_i32 = arith.constant 0 : i32
    %c0_i32_0 = arith.constant 0 : i32
    return %arg0, %c0_i32 : i32, i32
  }
}

</mosaic_0001>

<llo_original>
// kernel: sub.65
$region0: #{sub.65}
  %s0 = inlined_call_operand.vmem [shape: f32[256], index: 0, kind: input, shape index: {}]
  %s1 = inlined_call_operand.vmem [shape: f32[32,8], index: 1, kind: output, shape index: {}]
  $region1: #{sub.65} parent=0
    #allocation0 [shape = 'u8[4096]{0}', space=vmem, size = 0x1000, scoped, tag = 'scoped mem for input reshape']
    %s3 = sshllo.u32 0, 2
    %v4 = vld [vmem:[%s0] sm:%s3]
    %5 = vst [vmem:[#allocation0] sm:%s3] %v4
    %v6 = vld [vmem:[#allocation0] sm:$0x3]
    %vm7 = vcmask 64512
    %8 = vst.msk [vmem:[%s1] ss:$16 sm:$0x3] %vm7, %v6
    %v9 = vld [vmem:[#allocation0] sm:$0x3]
    %10 = vrot.lane.b32.xlu0 %v9, 120
    %v11 = vpop.permute.xlu0 %10
    %vm12 = vcmask 64512
    %s13 = scalar_lea.vmem %s1, 1
    %14 = vst.msk [vmem:[%s13] ss:$16 sm:$0x3] %vm12, %v11
    %v15 = vld [vmem:[#allocation0] sm:$0x3]
    %16 = vrot.lane.b32.xlu0 %v15, 112
    %v17 = vpop.permute.xlu0 %16
    %vm18 = vcmask 64512
    %s19 = scalar_lea.vmem %s1, 2
    %20 = vst.msk [vmem:[%s19] ss:$16 sm:$0x3] %vm18, %v17
    %v21 = vld [vmem:[#allocation0] sm:$0x3]
    %22 = vrot.lane.b32.xlu0 %v21, 104
    %v23 = vpop.permute.xlu0 %22
    %vm24 = vcmask 64512
    %s25 = scalar_lea.vmem %s1, 3
    %26 = vst.msk [vmem:[%s25] ss:$16 sm:$0x3] %vm24, %v23
    %v27 = vld [vmem:[#allocation0] sm:$0x3]
    %28 = vrot.lane.b32.xlu0 %v27, 96
    %v29 = vpop.permute.xlu0 %28
    %vm30 = vcmask 64512
    %s31 = scalar_lea.vmem %s1, 4
    %32 = vst.msk [vmem:[%s31] ss:$16 sm:$0x3] %vm30, %v29
    %v33 = vld [vmem:[#allocation0] sm:$0x3]
    %34 = vrot.lane.b32.xlu0 %v33, 88
    %v35 = vpop.permute.xlu0 %34
    %vm36 = vcmask 64512
    %s37 = scalar_lea.vmem %s1, 5
    %38 = vst.msk [vmem:[%s37] ss:$16 sm:$0x3] %vm36, %v35
    %v39 = vld [vmem:[#allocation0] sm:$0x3]
    %40 = vrot.lane.b32.xlu0 %v39, 80
    %v41 = vpop.permute.xlu0 %40
    %vm42 = vcmask 64512
    %s43 = scalar_lea.vmem %s1, 6
    %44 = vst.msk [vmem:[%s43] ss:$16 sm:$0x3] %vm42, %v41
    %v45 = vld [vmem:[#allocation0] sm:$0x3]
    %46 = vrot.lane.b32.xlu0 %v45, 72
    %v47 = vpop.permute.xlu0 %46
    %vm48 = vcmask 64512
    %s49 = scalar_lea.vmem %s1, 7
    %50 = vst.msk [vmem:[%s49] ss:$16 sm:$0x3] %vm48, %v47
    %v51 = vld [vmem:[#allocation0] sm:$0x3]
    %52 = vrot.lane.b32.xlu0 %v51, 64
    %v53 = vpop.permute.xlu0 %52
    %vm54 = vcmask 64512
    %s55 = scalar_lea.vmem %s1, 8
    %56 = vst.msk [vmem:[%s55] ss:$16 sm:$0x3] %vm54, %v53
    %v57 = vld [vmem:[#allocation0] sm:$0x3]
    %58 = vrot.lane.b32.xlu0 %v57, 56
    %v59 = vpop.permute.xlu0 %58
    %vm60 = vcmask 64512
    %s61 = scalar_lea.vmem %s1, 9
    %62 = vst.msk [vmem:[%s61] ss:$16 sm:$0x3] %vm60, %v59
    %v63 = vld [vmem:[#allocation0] sm:$0x3]
    %64 = vrot.lane.b32.xlu0 %v63, 48
    %v65 = vpop.permute.xlu0 %64
    %vm66 = vcmask 64512
    %s67 = scalar_lea.vmem %s1, 10
    %68 = vst.msk [vmem:[%s67] ss:$16 sm:$0x3] %vm66, %v65
    %v69 = vld [vmem:[#allocation0] sm:$0x3]
    %70 = vrot.lane.b32.xlu0 %v69, 40
    %v71 = vpop.permute.xlu0 %70
    %vm72 = vcmask 64512
    %s73 = scalar_lea.vmem %s1, 11
    %74 = vst.msk [vmem:[%s73] ss:$16 sm:$0x3] %vm72, %v71
    %v75 = vld [vmem:[#allocation0] sm:$0x3]
    %76 = vrot.lane.b32.xlu0 %v75, 32
    %v77 = vpop.permute.xlu0 %76
    %vm78 = vcmask 64512
    %s79 = scalar_lea.vmem %s1, 12
    %80 = vst.msk [vmem:[%s79] ss:$16 sm:$0x3] %vm78, %v77
    %v81 = vld [vmem:[#allocation0] sm:$0x3]
    %82 = vrot.lane.b32.xlu0 %v81, 24
    %v83 = vpop.permute.xlu0 %82
    %vm84 = vcmask 64512
    %s85 = scalar_lea.vmem %s1, 13
    %86 = vst.msk [vmem:[%s85] ss:$16 sm:$0x3] %vm84, %v83
    %v87 = vld [vmem:[#allocation0] sm:$0x3]
    %88 = vrot.lane.b32.xlu0 %v87, 16
    %v89 = vpop.permute.xlu0 %88
    %vm90 = vcmask 64512
    %s91 = scalar_lea.vmem %s1, 14
    %92 = vst.msk [vmem:[%s91] ss:$16 sm:$0x3] %vm90, %v89
    %v93 = vld [vmem:[#allocation0] sm:$0x3]
    %94 = vrot.lane.b32.xlu0 %v93, 8
    %v95 = vpop.permute.xlu0 %94
    %vm96 = vcmask 64512
    %s97 = scalar_lea.vmem %s1, 15
    %98 = vst.msk [vmem:[%s97] ss:$16 sm:$0x3] %vm96, %v95

// kernel: net_conpu_v7_forward.6
$region0: #{net_conpu_v7_forward.6}
  #allocation0 [shape = 'u32[]', space=smem, size = 0x4, offset = 0x4, fixed_abs, tag = 'smem constant byte address 0x4 - core index']
  #allocation1 [shape = 'u32[144,128]{1,0:T(1,128)}', space=vmem, size = 0x12000, scoped, tag = 'internal scratch']
  %s0 = inlined_call_operand.vmem [shape: bf16[4,256,8], index: 0, kind: input, shape index: {}]
  %s1 = inlined_call_operand.vmem [shape: bf16[256,8], index: 1, kind: input, shape index: {}]
  %s2 = inlined_call_operand.vmem [shape: bf16[8,64], index: 2, kind: input, shape index: {}]
  %s3 = inlined_call_operand.vmem [shape: bf16[8,64], index: 3, kind: input, shape index: {}]
  %s4 = inlined_call_operand.vmem [shape: f32[256,64], index: 4, kind: output, shape index: {}]
  %s5 = sld [smem:[#allocation0]]
  $region90: #{net_conpu_v7_forward.6} parent=0
    _
  %s7 = ssub.s32 1, %s5
  %s8 = scalar_select 0, %s7, %s5
  $region1: #{net_conpu_v7_forward.6} parent=0
    #allocation2 [shape = 'u8[262144]{0}', space=vmem, size = 0x40000, scoped, tag = 'input window, operand 0']
    loop: start=0, step=1, limit=4
    $region2: #{net_conpu_v7_forward.6} parent=1 // loop_pre_header
      _
    $region3: #{net_conpu_v7_forward.6} parent=1 // loop_header
      %s10 = sphi 0, %s14
      %p11 = scmp.ge.s32.totalorder %s10, 4
      %s20 = sphi 0, %s22
      %s23 = sphi 0, %s20
      %s24 = sphi 0, %s23
      %s40 = sphi 0, %s24
      %s46 = sphi 0, %s48
      %s49 = sphi 0, %s46
      %s50 = sphi 0, %s49
      %s66 = sphi 0, %s50
      %s70 = sphi 0, %s70
      %s72 = sphi 0, %s70
      %s73 = sphi 0, %s72
      %s87 = sphi 0, %s73
      %s91 = sphi 0, %s91
      %s93 = sphi 0, %s91
      %s94 = sphi 0, %s93
      %s108 = sphi 0, %s94
      %s114 = sphi 0, %s116
      %s117 = sphi 0, %s114
      %s118 = sphi 0, %s117
      %s134 = sphi 0, %s118
    $region4: #{net_conpu_v7_forward.6} parent=1 // loop_header_branch
      %13 = sbr.rel (%p11) target = $region8
    $region5: #{net_conpu_v7_forward.6} parent=1 // loop_body
      %s15 = ssub.s32 %s10, 1
      %s16 = ssub.s32 %s10, 2
      %s17 = sadd.s32 %s10, 1
      %s18 = ssub.s32 %s10, %s17
      %p19 = scmp.eq.s32.totalorder %s18, 0
      %s21 = sadd.s32 %s20, 1
      %s22 = scalar_select %p19, %s20, %s21
      %p25 = pneg %p19
      %p26 = scmp.eq.s32.totalorder %s10, 1
      %p27 = por %p25, %p26
      %p28 = scmp.ne.s32.totalorder %s20, %s23
      %p29 = scmp.eq.s32.totalorder %s10, 0
      %p30 = por %p28, %p29
      %p31 = scmp.ne.s32.totalorder %s20, %s23
      %p32 = scmp.eq.s32.totalorder %s15, 1
      %p33 = por %p31, %p32
      %p34 = scmp.ne.s32.totalorder %s23, %s24
      %p35 = scmp.eq.s32.totalorder %s15, 0
      %p36 = por %p34, %p35
      %p37 = scmp.ne.s32.totalorder %s23, %s24
      %p38 = scmp.eq.s32.totalorder %s16, 1
      %p39 = por %p37, %p38
      %p41 = scmp.ne.s32.totalorder %s24, %s40
      %p42 = scmp.eq.s32.totalorder %s16, 0
      %p43 = por %p41, %p42
      %s44 = ssub.s32 %s10, %s17
      %p45 = scmp.eq.s32.totalorder %s44, 0
      %s47 = sadd.s32 %s46, 1
      %s48 = scalar_select %p45, %s46, %s47
      %p51 = pneg %p45
      %p52 = scmp.eq.s32.totalorder %s10, 1
      %p53 = por %p51, %p52
      %p54 = scmp.ne.s32.totalorder %s46, %s49
      %p55 = scmp.eq.s32.totalorder %s10, 0
      %p56 = por %p54, %p55
      %p57 = scmp.ne.s32.totalorder %s46, %s49
      %p58 = scmp.eq.s32.totalorder %s15, 1
      %p59 = por %p57, %p58
      %p60 = scmp.ne.s32.totalorder %s49, %s50
      %p61 = scmp.eq.s32.totalorder %s15, 0
      %p62 = por %p60, %p61
      %p63 = scmp.ne.s32.totalorder %s49, %s50
      %p64 = scmp.eq.s32.totalorder %s16, 1
      %p65 = por %p63, %p64
      %p67 = scmp.ne.s32.totalorder %s50, %s66
      %p68 = scmp.eq.s32.totalorder %s16, 0
      %p69 = por %p67, %p68
      %s71 = sadd.s32 %s70, 1
      %p74 = scmp.eq.s32.totalorder %s10, 1
      %p75 = scmp.ne.s32.totalorder %s70, %s72
      %p76 = scmp.eq.s32.totalorder %s10, 0
      %p77 = por %p75, %p76
      %p78 = scmp.ne.s32.totalorder %s70, %s72
      %p79 = scmp.eq.s32.totalorder %s15, 1
      %p80 = por %p78, %p79
      %p81 = scmp.ne.s32.totalorder %s72, %s73
      %p82 = scmp.eq.s32.totalorder %s15, 0
      %p83 = por %p81, %p82
      %p84 = scmp.ne.s32.totalorder %s72, %s73
      %p85 = scmp.eq.s32.totalorder %s16, 1
      %p86 = por %p84, %p85
      %p88 = scmp.ne.s32.totalorder %s73, %s87
      %p89 = scmp.eq.s32.totalorder %s16, 0
      %p90 = por %p88, %p89
      %s92 = sadd.s32 %s91, 1
      %p95 = scmp.eq.s32.totalorder %s10, 1
      %p96 = scmp.ne.s32.totalorder %s91, %s93
      %p97 = scmp.eq.s32.totalorder %s10, 0
      %p98 = por %p96, %p97
      %p99 = scmp.ne.s32.totalorder %s91, %s93
      %p100 = scmp.eq.s32.totalorder %s15, 1
      %p101 = por %p99, %p100
      %p102 = scmp.ne.s32.totalorder %s93, %s94
      %p103 = scmp.eq.s32.totalorder %s15, 0
      %p104 = por %p102, %p103
      %p105 = scmp.ne.s32.totalorder %s93, %s94
      %p106 = scmp.eq.s32.totalorder %s16, 1
      %p107 = por %p105, %p106
      %p109 = scmp.ne.s32.totalorder %s94, %s108
      %p110 = scmp.eq.s32.totalorder %s16, 0
      %p111 = por %p109, %p110
      %s112 = ssub.s32 %s10, %s17
      %p113 = scmp.eq.s32.totalorder %s112, 0
      %s115 = sadd.s32 %s114, 1
      %s116 = scalar_select %p113, %s114, %s115
      %p119 = pneg %p113
      %p120 = scmp.eq.s32.totalorder %s10, 1
      %p121 = por %p119, %p120
      %p122 = scmp.ne.s32.totalorder %s114, %s117
      %p123 = scmp.eq.s32.totalorder %s10, 0
      %p124 = por %p122, %p123
      %p125 = scmp.ne.s32.totalorder %s114, %s117
      %p126 = scmp.eq.s32.totalorder %s15, 1
      %p127 = por %p125, %p126
      %p128 = scmp.ne.s32.totalorder %s117, %s118
      %p129 = scmp.eq.s32.totalorder %s15, 0
      %p130 = por %p128, %p129
      %p131 = scmp.ne.s32.totalorder %s117, %s118
      %p132 = scmp.eq.s32.totalorder %s16, 1
      %p133 = por %p131, %p132
      %p135 = scmp.ne.s32.totalorder %s118, %s134
      %p136 = scmp.eq.s32.totalorder %s16, 0
      %p137 = por %p135, %p136
      %p138 = scmp.le.s32.totalorder 1, %s10
      %p139 = scmp.lt.s32.totalorder %s10, 3
      %p140 = pnand %p138, %p139
      %p141 = pneg %p140
      // Predicated region
      $region9: #{net_conpu_v7_forward.6} parent=5 // pred_check
        _
      $region10: #{net_conpu_v7_forward.6} parent=5 // pred_check_branch
        %143 = sbr.rel (%p140) target = $region12
      $region11: #{net_conpu_v7_forward.6} parent=5 // pred_region
        %s144 = ssub.s32 %s10, 1
        // Predicated region
        $region13: #{net_conpu_v7_forward.6} parent=11 // pred_check
          %p145 = pneg %p83
        $region14: #{net_conpu_v7_forward.6} parent=11 // pred_check_branch
          %147 = sbr.rel (%p145) target = $region16
        $region15: #{net_conpu_v7_forward.6} parent=11 // pred_region
          _
        $region16: #{net_conpu_v7_forward.6} parent=11 // pred_fallthru
          _
        // Predicated region
        $region17: #{net_conpu_v7_forward.6} parent=11 // pred_check
          %p148 = pneg %p104
        $region18: #{net_conpu_v7_forward.6} parent=11 // pred_check_branch
          %150 = sbr.rel (%p148) target = $region20
        $region19: #{net_conpu_v7_forward.6} parent=11 // pred_region
          _
        $region20: #{net_conpu_v7_forward.6} parent=11 // pred_fallthru
          _
      $region12: #{net_conpu_v7_forward.6} parent=5 // pred_fallthru
        _
      %p151 = scmp.lt.s32.totalorder %s10, 2
      // Predicated region
      $region21: #{net_conpu_v7_forward.6} parent=5 // pred_check
        %p152 = pneg %p151
      $region22: #{net_conpu_v7_forward.6} parent=5 // pred_check_branch
        %154 = sbr.rel (%p152) target = $region24
      $region23: #{net_conpu_v7_forward.6} parent=5 // pred_region
        // Predicated region
        $region25: #{net_conpu_v7_forward.6} parent=23 // pred_check
          %p155 = pneg %p30
        $region26: #{net_conpu_v7_forward.6} parent=23 // pred_check_branch
          %157 = sbr.rel (%p155) target = $region28
        $region27: #{net_conpu_v7_forward.6} parent=23 // pred_region
          %s158 = sand.u32 %s20, 1
          %s159 = sand.u32 %s20, 1
          %s160 = smul.addr %s159, 256
          %s161 = scalar_lea.vmem [#allocation2], %s160
          %s162 = smul.u32 16, %s10
          %s163 = smul.addr %s162, 4
          %s164 = scalar_lea.vmem %s0, %s163
          // Predicated region
          $region29: #{net_conpu_v7_forward.6} parent=27 // pred_check
            _
          $region30: #{net_conpu_v7_forward.6} parent=27 // pred_check_branch
            %166 = sbr.rel (0) target = $region32
          $region31: #{net_conpu_v7_forward.6} parent=27 // pred_region
            // Predicated region
            $region33: #{net_conpu_v7_forward.6} parent=31 // pred_check
              _
            $region34: #{net_conpu_v7_forward.6} parent=31 // pred_check_branch
              %168 = sbr.rel target = $region36
            $region35: #{net_conpu_v7_forward.6} parent=31 // pred_region
              // Predicated region
              $region48: #{net_conpu_v7_forward.6} parent=35 // pred_check
                _
              $region49: #{net_conpu_v7_forward.6} parent=35 // pred_check_branch
                %309 = sbr.rel (0) target = $region51
              $region50: #{net_conpu_v7_forward.6} parent=35 // pred_region
                loop: start=0, step=1, limit=1
                $region52: #{net_conpu_v7_forward.6} parent=50 // loop_pre_header
                  _
                $region53: #{net_conpu_v7_forward.6} parent=50 // loop_header
                  %s311 = sphi 0, %s315
                  %p312 = scmp.ge.s32.totalorder %s311, 1
                  %s316 = sphi %s164, %s164
                  %s317 = sphi %s161, %s161
                $region54: #{net_conpu_v7_forward.6} parent=50 // loop_header_branch
                  %314 = sbr.rel (%p312) target = $region58
                $region55: #{net_conpu_v7_forward.6} parent=50 // loop_body
                  _
                $region56: #{net_conpu_v7_forward.6} parent=50 // loop_footer
                  %s315 = sadd.s32 1, %s311
                $region57: #{net_conpu_v7_forward.6} parent=50 // loop_footer_branch
                  %310 = sbr.rel target = $region53
                $region58: #{net_conpu_v7_forward.6} parent=50 // loop_exit
                  _
                loop: start=0, step=1, limit=1
                $region59: #{net_conpu_v7_forward.6} parent=50 // loop_pre_header
                  _
                $region60: #{net_conpu_v7_forward.6} parent=50 // loop_header
                  %s320 = sphi 0, %s324
                  %p321 = scmp.ge.s32.totalorder %s320, 1
                  %s325 = sphi %s164, %s164
                  %s326 = sphi %s161, %s161
                $region61: #{net_conpu_v7_forward.6} parent=50 // loop_header_branch
                  %323 = sbr.rel (%p321) target = $region65
                $region62: #{net_conpu_v7_forward.6} parent=50 // loop_body
                  %v327 = vld [vmem:[%s325] sm:$0xf]
                  %328 = vst [vmem:[%s326] sm:$0xf] %v327
                  %v329 = vld [vmem:[%s325 + $0x4] sm:$0xf]
                  %330 = vst [vmem:[%s326 + $0x4] sm:$0xf] %v329
                  %v331 = vld [vmem:[%s325 + $0x8] sm:$0xf]
                  %332 = vst [vmem:[%s326 + $0x8] sm:$0xf] %v331
                  %v333 = vld [vmem:[%s325 + $0xc] sm:$0xf]
                  %334 = vst [vmem:[%s326 + $0xc] sm:$0xf] %v333
                  %v335 = vld [vmem:[%s325 + $0x10] sm:$0xf]
                  %336 = vst [vmem:[%s326 + $0x10] sm:$0xf] %v335
                  %v337 = vld [vmem:[%s325 + $0x14] sm:$0xf]
                  %338 = vst [vmem:[%s326 + $0x14] sm:$0xf] %v337
                  %v339 = vld [vmem:[%s325 + $0x18] sm:$0xf]
                  %340 = vst [vmem:[%s326 + $0x18] sm:$0xf] %v339
                  %v341 = vld [vmem:[%s325 + $0x1c] sm:$0xf]
                  %342 = vst [vmem:[%s326 + $0x1c] sm:$0xf] %v341
                  %v343 = vld [vmem:[%s325 + $0x20] sm:$0xf]
                  %344 = vst [vmem:[%s326 + $0x20] sm:$0xf] %v343
                  %v345 = vld [vmem:[%s325 + $0x24] sm:$0xf]
                  %346 = vst [vmem:[%s326 + $0x24] sm:$0xf] %v345
                  %v347 = vld [vmem:[%s325 + $0x28] sm:$0xf]
                  %348 = vst [vmem:[%s326 + $0x28] sm:$0xf] %v347
                  %v349 = vld [vmem:[%s325 + $0x2c] sm:$0xf]
                  %350 = vst [vmem:[%s326 + $0x2c] sm:$0xf] %v349
                  %v351 = vld [vmem:[%s325 + $0x30] sm:$0xf]
                  %352 = vst [vmem:[%s326 + $0x30] sm:$0xf] %v351
                  %v353 = vld [vmem:[%s325 + $0x34] sm:$0xf]
                  %354 = vst [vmem:[%s326 + $0x34] sm:$0xf] %v353
                  %v355 = vld [vmem:[%s325 + $0x38] sm:$0xf]
                  %356 = vst [vmem:[%s326 + $0x38] sm:$0xf] %v355
                  %v357 = vld [vmem:[%s325 + $0x3c] sm:$0xf]
                  %358 = vst [vmem:[%s326 + $0x3c] sm:$0xf] %v357
                  %v359 = vld [vmem:[%s325 + $0x80] sm:$0xf]
                  %360 = vst [vmem:[%s326 + $0x40] sm:$0xf] %v359
                  %v361 = vld [vmem:[%s325 + $0x84] sm:$0xf]
                  %362 = vst [vmem:[%s326 + $0x44] sm:$0xf] %v361
                  %v363 = vld [vmem:[%s325 + $0x88] sm:$0xf]
                  %364 = vst [vmem:[%s326 + $0x48] sm:$0xf] %v363
                  %v365 = vld [vmem:[%s325 + $0x8c] sm:$0xf]
                  %366 = vst [vmem:[%s326 + $0x4c] sm:$0xf] %v365
                  %v367 = vld [vmem:[%s325 + $0x90] sm:$0xf]
                  %368 = vst [vmem:[%s326 + $0x50] sm:$0xf] %v367
                  %v369 = vld [vmem:[%s325 + $0x94] sm:$0xf]
                  %370 = vst [vmem:[%s326 + $0x54] sm:$0xf] %v369
                  %v371 = vld [vmem:[%s325 + $0x98] sm:$0xf]
                  %372 = vst [vmem:[%s326 + $0x58] sm:$0xf] %v371
                  %v373 = vld [vmem:[%s325 + $0x9c] sm:$0xf]
                  %374 = vst [vmem:[%s326 + $0x5c] sm:$0xf] %v373
                  %v375 = vld [vmem:[%s325 + $0xa0] sm:$0xf]
                  %376 = vst [vmem:[%s326 + $0x60] sm:$0xf] %v375
                  %v377 = vld [vmem:[%s325 + $0xa4] sm:$0xf]
                  %378 = vst [vmem:[%s326 + $0x64] sm:$0xf] %v377
                  %v379 = vld [vmem:[%s325 + $0xa8] sm:$0xf]
                  %380 = vst [vmem:[%s326 + $0x68] sm:$0xf] %v379
                  %v381 = vld [vmem:[%s325 + $0xac] sm:$0xf]
                  %382 = vst [vmem:[%s326 + $0x6c] sm:$0xf] %v381
                  %v383 = vld [vmem:[%s325 + $0xb0] sm:$0xf]
                  %384 = vst [vmem:[%s326 + $0x70] sm:$0xf] %v383
                  %v385 = vld [vmem:[%s325 + $0xb4] sm:$0xf]
                  %386 = vst [vmem:[%s326 + $0x74] sm:$0xf] %v385
                  %v387 = vld [vmem:[%s325 + $0xb8] sm:$0xf]
                  %388 = vst [vmem:[%s326 + $0x78] sm:$0xf] %v387
                  %v389 = vld [vmem:[%s325 + $0xbc] sm:$0xf]
                  %390 = vst [vmem:[%s326 + $0x7c] sm:$0xf] %v389
                  %v391 = vld [vmem:[%s325 + $0x100] sm:$0xf]
                  %392 = vst [vmem:[%s326 + $0x80] sm:$0xf] %v391
                  %v393 = vld [vmem:[%s325 + $0x104] sm:$0xf]
                  %394 = vst [vmem:[%s326 + $0x84] sm:$0xf] %v393
                  %v395 = vld [vmem:[%s325 + $0x108] sm:$0xf]
                  %396 = vst [vmem:[%s326 + $0x88] sm:$0xf] %v395
                  %v397 = vld [vmem:[%s325 + $0x10c] sm:$0xf]
                  %398 = vst [vmem:[%s326 + $0x8c] sm:$0xf] %v397
                  %v399 = vld [vmem:[%s325 + $0x110] sm:$0xf]
                  %400 = vst [vmem:[%s326 + $0x90] sm:$0xf] %v399
                  %v401 = vld [vmem:[%s325 + $0x114] sm:$0xf]
                  %402 = vst [vmem:[%s326 + $0x94] sm:$0xf] %v401
                  %v403 = vld [vmem:[%s325 + $0x118] sm:$0xf]
                  %404 = vst [vmem:[%s326 + $0x98] sm:$0xf] %v403
                  %v405 = vld [vmem:[%s325 + $0x11c] sm:$0xf]
                  %406 = vst [vmem:[%s326 + $0x9c] sm:$0xf] %v405
                  %v407 = vld [vmem:[%s325 + $0x120] sm:$0xf]
                  %408 = vst [vmem:[%s326 + $0xa0] sm:$0xf] %v407
                  %v409 = vld [vmem:[%s325 + $0x124] sm:$0xf]
                  %410 = vst [vmem:[%s326 + $0xa4] sm:$0xf] %v409
                  %v411 = vld [vmem:[%s325 + $0x128] sm:$0xf]
                  %412 = vst [vmem:[%s326 + $0xa8] sm:$0xf] %v411
                  %v413 = vld [vmem:[%s325 + $0x12c] sm:$0xf]
                  %414 = vst [vmem:[%s326 + $0xac] sm:$0xf] %v413
                  %v415 = vld [vmem:[%s325 + $0x130] sm:$0xf]
                  %416 = vst [vmem:[%s326 + $0xb0] sm:$0xf] %v415
                  %v417 = vld [vmem:[%s325 + $0x134] sm:$0xf]
                  %418 = vst [vmem:[%s326 + $0xb4] sm:$0xf] %v417
                  %v419 = vld [vmem:[%s325 + $0x138] sm:$0xf]
                  %420 = vst [vmem:[%s326 + $0xb8] sm:$0xf] %v419
                  %v421 = vld [vmem:[%s325 + $0x13c] sm:$0xf]
                  %422 = vst [vmem:[%s326 + $0xbc] sm:$0xf] %v421
                  %v423 = vld [vmem:[%s325 + $0x180] sm:$0xf]
                  %424 = vst [vmem:[%s326 + $0xc0] sm:$0xf] %v423
                  %v425 = vld [vmem:[%s325 + $0x184] sm:$0xf]
                  %426 = vst [vmem:[%s326 + $0xc4] sm:$0xf] %v425
                  %v427 = vld [vmem:[%s325 + $0x188] sm:$0xf]
                  %428 = vst [vmem:[%s326 + $0xc8] sm:$0xf] %v427
                  %v429 = vld [vmem:[%s325 + $0x18c] sm:$0xf]
                  %430 = vst [vmem:[%s326 + $0xcc] sm:$0xf] %v429
                  %v431 = vld [vmem:[%s325 + $0x190] sm:$0xf]
                  %432 = vst [vmem:[%s326 + $0xd0] sm:$0xf] %v431
                  %v433 = vld [vmem:[%s325 + $0x194] sm:$0xf]
                  %434 = vst [vmem:[%s326 + $0xd4] sm:$0xf] %v433
                  %v435 = vld [vmem:[%s325 + $0x198] sm:$0xf]
                  %436 = vst [vmem:[%s326 + $0xd8] sm:$0xf] %v435
                  %v437 = vld [vmem:[%s325 + $0x19c] sm:$0xf]
                  %438 = vst [vmem:[%s326 + $0xdc] sm:$0xf] %v437
                  %v439 = vld [vmem:[%s325 + $0x1a0] sm:$0xf]
                  %440 = vst [vmem:[%s326 + $0xe0] sm:$0xf] %v439
                  %v441 = vld [vmem:[%s325 + $0x1a4] sm:$0xf]
                  %442 = vst [vmem:[%s326 + $0xe4] sm:$0xf] %v441
                  %v443 = vld [vmem:[%s325 + $0x1a8] sm:$0xf]
                  %444 = vst [vmem:[%s326 + $0xe8] sm:$0xf] %v443
                  %v445 = vld [vmem:[%s325 + $0x1ac] sm:$0xf]
                  %446 = vst [vmem:[%s326 + $0xec] sm:$0xf] %v445
                  %v447 = vld [vmem:[%s325 + $0x1b0] sm:$0xf]
                  %448 = vst [vmem:[%s326 + $0xf0] sm:$0xf] %v447
                  %v449 = vld [vmem:[%s325 + $0x1b4] sm:$0xf]
                  %450 = vst [vmem:[%s326 + $0xf4] sm:$0xf] %v449
                  %v451 = vld [vmem:[%s325 + $0x1b8] sm:$0xf]
                  %452 = vst [vmem:[%s326 + $0xf8] sm:$0xf] %v451
                  %v453 = vld [vmem:[%s325 + $0x1bc] sm:$0xf]
                  %454 = vst [vmem:[%s326 + $0xfc] sm:$0xf] %v453
                $region63: #{net_conpu_v7_forward.6} parent=50 // loop_footer
                  %s324 = sadd.s32 1, %s320
                $region64: #{net_conpu_v7_forward.6} parent=50 // loop_footer_branch
                  %319 = sbr.rel target = $region60
                $region65: #{net_conpu_v7_forward.6} parent=50 // loop_exit
                  _
              $region51: #{net_conpu_v7_forward.6} parent=35 // pred_fallthru
                _
            $region36: #{net_conpu_v7_forward.6} parent=31 // pred_fallthru
              _
            // Predicated region
            $region37: #{net_conpu_v7_forward.6} parent=31 // pred_check
              _
            $region38: #{net_conpu_v7_forward.6} parent=31 // pred_check_branch
              %170 = sbr.rel (0) target = $region40
            $region39: #{net_conpu_v7_forward.6} parent=31 // pred_region
              loop: start=0, step=1, limit=1
              $region41: #{net_conpu_v7_forward.6} parent=39 // loop_pre_header
                _
              $region42: #{net_conpu_v7_forward.6} parent=39 // loop_header
                %s173 = sphi 0, %s177
                %p174 = scmp.ge.s32.totalorder %s173, 1
                %s178 = sphi %s164, %s164
                %s179 = sphi %s161, %s161
              $region43: #{net_conpu_v7_forward.6} parent=39 // loop_header_branch
                %176 = sbr.rel (%p174) target = $region47
              $region44: #{net_conpu_v7_forward.6} parent=39 // loop_body
                %v180 = vld [vmem:[%s178] sm:$0xf]
                %181 = vst [vmem:[%s179] sm:$0xf] %v180
                %v182 = vld [vmem:[%s178 + $0x4] sm:$0xf]
                %183 = vst [vmem:[%s179 + $0x4] sm:$0xf] %v182
                %v184 = vld [vmem:[%s178 + $0x8] sm:$0xf]
                %185 = vst [vmem:[%s179 + $0x8] sm:$0xf] %v184
                %v186 = vld [vmem:[%s178 + $0xc] sm:$0xf]
                %187 = vst [vmem:[%s179 + $0xc] sm:$0xf] %v186
                %v188 = vld [vmem:[%s178 + $0x10] sm:$0xf]
                %189 = vst [vmem:[%s179 + $0x10] sm:$0xf] %v188
                %v190 = vld [vmem:[%s178 + $0x14] sm:$0xf]
                %191 = vst [vmem:[%s179 + $0x14] sm:$0xf] %v190
                %v192 = vld [vmem:[%s178 + $0x18] sm:$0xf]
                %193 = vst [vmem:[%s179 + $0x18] sm:$0xf] %v192
                %v194 = vld [vmem:[%s178 + $0x1c] sm:$0xf]
                %195 = vst [vmem:[%s179 + $0x1c] sm:$0xf] %v194
                %v196 = vld [vmem:[%s178 + $0x20] sm:$0xf]
                %197 = vst [vmem:[%s179 + $0x20] sm:$0xf] %v196
                %v198 = vld [vmem:[%s178 + $0x24] sm:$0xf]
                %199 = vst [vmem:[%s179 + $0x24] sm:$0xf] %v198
                %v200 = vld [vmem:[%s178 + $0x28] sm:$0xf]
                %201 = vst [vmem:[%s179 + $0x28] sm:$0xf] %v200
                %v202 = vld [vmem:[%s178 + $0x2c] sm:$0xf]
                %203 = vst [vmem:[%s179 + $0x2c] sm:$0xf] %v202
                %v204 = vld [vmem:[%s178 + $0x30] sm:$0xf]
                %205 = vst [vmem:[%s179 + $0x30] sm:$0xf] %v204
                %v206 = vld [vmem:[%s178 + $0x34] sm:$0xf]
                %207 = vst [vmem:[%s179 + $0x34] sm:$0xf] %v206
                %v208 = vld [vmem:[%s178 + $0x38] sm:$0xf]
                %209 = vst [vmem:[%s179 + $0x38] sm:$0xf] %v208
                %v210 = vld [vmem:[%s178 + $0x3c] sm:$0xf]
                %211 = vst [vmem:[%s179 + $0x3c] sm:$0xf] %v210
                %v212 = vld [vmem:[%s178 + $0x80] sm:$0xf]
                %213 = vst [vmem:[%s179 + $0x40] sm:$0xf] %v212
                %v214 = vld [vmem:[%s178 + $0x84] sm:$0xf]
                %215 = vst [vmem:[%s179 + $0x44] sm:$0xf] %v214
                %v216 = vld [vmem:[%s178 + $0x88] sm:$0xf]
                %217 = vst [vmem:[%s179 + $0x48] sm:$0xf] %v216
                %v218 = vld [vmem:[%s178 + $0x8c] sm:$0xf]
                %219 = vst [vmem:[%s179 + $0x4c] sm:$0xf] %v218
                %v220 = vld [vmem:[%s178 + $0x90] sm:$0xf]
                %221 = vst [vmem:[%s179 + $0x50] sm:$0xf] %v220
                %v222 = vld [vmem:[%s178 + $0x94] sm:$0xf]
                %223 = vst [vmem:[%s179 + $0x54] sm:$0xf] %v222
                %v224 = vld [vmem:[%s178 + $0x98] sm:$0xf]
                %225 = vst [vmem:[%s179 + $0x58] sm:$0xf] %v224
                %v226 = vld [vmem:[%s178 + $0x9c] sm:$0xf]
                %227 = vst [vmem:[%s179 + $0x5c] sm:$0xf] %v226
                %v228 = vld [vmem:[%s178 + $0xa0] sm:$0xf]
                %229 = vst [vmem:[%s179 + $0x60] sm:$0xf] %v228
                %v230 = vld [vmem:[%s178 + $0xa4] sm:$0xf]
                %231 = vst [vmem:[%s179 + $0x64] sm:$0xf] %v230
                %v232 = vld [vmem:[%s178 + $0xa8] sm:$0xf]
                %233 = vst [vmem:[%s179 + $0x68] sm:$0xf] %v232
                %v234 = vld [vmem:[%s178 + $0xac] sm:$0xf]
                %235 = vst [vmem:[%s179 + $0x6c] sm:$0xf] %v234
                %v236 = vld [vmem:[%s178 + $0xb0] sm:$0xf]
                %237 = vst [vmem:[%s179 + $0x70] sm:$0xf] %v236
                %v238 = vld [vmem:[%s178 + $0xb4] sm:$0xf]
                %239 = vst [vmem:[%s179 + $0x74] sm:$0xf] %v238
                %v240 = vld [vmem:[%s178 + $0xb8] sm:$0xf]
                %241 = vst [vmem:[%s179 + $0x78] sm:$0xf] %v240
                %v242 = vld [vmem:[%s178 + $0xbc] sm:$0xf]
                %243 = vst [vmem:[%s179 + $0x7c] sm:$0xf] %v242
                %v244 = vld [vmem:[%s178 + $0x100] sm:$0xf]
                %245 = vst [vmem:[%s179 + $0x80] sm:$0xf] %v244
                %v246 = vld [vmem:[%s178 + $0x104] sm:$0xf]
                %247 = vst [vmem:[%s179 + $0x84] sm:$0xf] %v246
                %v248 = vld [vmem:[%s178 + $0x108] sm:$0xf]
                %249 = vst [vmem:[%s179 + $0x88] sm:$0xf] %v248
                %v250 = vld [vmem:[%s178 + $0x10c] sm:$0xf]
                %251 = vst [vmem:[%s179 + $0x8c] sm:$0xf] %v250
                %v252 = vld [vmem:[%s178 + $0x110] sm:$0xf]
                %253 = vst [vmem:[%s179 + $0x90] sm:$0xf] %v252
                %v254 = vld [vmem:[%s178 + $0x114] sm:$0xf]
                %255 = vst [vmem:[%s179 + $0x94] sm:$0xf] %v254
                %v256 = vld [vmem:[%s178 + $0x118] sm:$0xf]
                %257 = vst [vmem:[%s179 + $0x98] sm:$0xf] %v256
                %v258 = vld [vmem:[%s178 + $0x11c] sm:$0xf]
                %259 = vst [vmem:[%s179 + $0x9c] sm:$0xf] %v258
                %v260 = vld [vmem:[%s178 + $0x120] sm:$0xf]
                %261 = vst [vmem:[%s179 + $0xa0] sm:$0xf] %v260
                %v262 = vld [vmem:[%s178 + $0x124] sm:$0xf]
                %263 = vst [vmem:[%s179 + $0xa4] sm:$0xf] %v262
                %v264 = vld [vmem:[%s178 + $0x128] sm:$0xf]
                %265 = vst [vmem:[%s179 + $0xa8] sm:$0xf] %v264
                %v266 = vld [vmem:[%s178 + $0x12c] sm:$0xf]
                %267 = vst [vmem:[%s179 + $0xac] sm:$0xf] %v266
                %v268 = vld [vmem:[%s178 + $0x130] sm:$0xf]
                %269 = vst [vmem:[%s179 + $0xb0] sm:$0xf] %v268
                %v270 = vld [vmem:[%s178 + $0x134] sm:$0xf]
                %271 = vst [vmem:[%s179 + $0xb4] sm:$0xf] %v270
                %v272 = vld [vmem:[%s178 + $0x138] sm:$0xf]
                %273 = vst [vmem:[%s179 + $0xb8] sm:$0xf] %v272
                %v274 = vld [vmem:[%s178 + $0x13c] sm:$0xf]
                %275 = vst [vmem:[%s179 + $0xbc] sm:$0xf] %v274
                %v276 = vld [vmem:[%s178 + $0x180] sm:$0xf]
                %277 = vst [vmem:[%s179 + $0xc0] sm:$0xf] %v276
                %v278 = vld [vmem:[%s178 + $0x184] sm:$0xf]
                %279 = vst [vmem:[%s179 + $0xc4] sm:$0xf] %v278
                %v280 = vld [vmem:[%s178 + $0x188] sm:$0xf]
                %281 = vst [vmem:[%s179 + $0xc8] sm:$0xf] %v280
                %v282 = vld [vmem:[%s178 + $0x18c] sm:$0xf]
                %283 = vst [vmem:[%s179 + $0xcc] sm:$0xf] %v282
                %v284 = vld [vmem:[%s178 + $0x190] sm:$0xf]
                %285 = vst [vmem:[%s179 + $0xd0] sm:$0xf] %v284
                %v286 = vld [vmem:[%s178 + $0x194] sm:$0xf]
                %287 = vst [vmem:[%s179 + $0xd4] sm:$0xf] %v286
                %v288 = vld [vmem:[%s178 + $0x198] sm:$0xf]
                %289 = vst [vmem:[%s179 + $0xd8] sm:$0xf] %v288
                %v290 = vld [vmem:[%s178 + $0x19c] sm:$0xf]
                %291 = vst [vmem:[%s179 + $0xdc] sm:$0xf] %v290
                %v292 = vld [vmem:[%s178 + $0x1a0] sm:$0xf]
                %293 = vst [vmem:[%s179 + $0xe0] sm:$0xf] %v292
                %v294 = vld [vmem:[%s178 + $0x1a4] sm:$0xf]
                %295 = vst [vmem:[%s179 + $0xe4] sm:$0xf] %v294
                %v296 = vld [vmem:[%s178 + $0x1a8] sm:$0xf]
                %297 = vst [vmem:[%s179 + $0xe8] sm:$0xf] %v296
                %v298 = vld [vmem:[%s178 + $0x1ac] sm:$0xf]
                %299 = vst [vmem:[%s179 + $0xec] sm:$0xf] %v298
                %v300 = vld [vmem:[%s178 + $0x1b0] sm:$0xf]
                %301 = vst [vmem:[%s179 + $0xf0] sm:$0xf] %v300
                %v302 = vld [vmem:[%s178 + $0x1b4] sm:$0xf]
                %303 = vst [vmem:[%s179 + $0xf4] sm:$0xf] %v302
                %v304 = vld [vmem:[%s178 + $0x1b8] sm:$0xf]
                %305 = vst [vmem:[%s179 + $0xf8] sm:$0xf] %v304
                %v306 = vld [vmem:[%s178 + $0x1bc] sm:$0xf]
                %307 = vst [vmem:[%s179 + $0xfc] sm:$0xf] %v306
              $region45: #{net_conpu_v7_forward.6} parent=39 // loop_footer
                %s177 = sadd.s32 1, %s173
              $region46: #{net_conpu_v7_forward.6} parent=39 // loop_footer_branch
                %172 = sbr.rel target = $region42
              $region47: #{net_conpu_v7_forward.6} parent=39 // loop_exit
                _
            $region40: #{net_conpu_v7_forward.6} parent=31 // pred_fallthru
              _
          $region32: #{net_conpu_v7_forward.6} parent=27 // pred_fallthru
            _
          %455 = vnop
        $region28: #{net_conpu_v7_forward.6} parent=23 // pred_fallthru
          _
        // Predicated region
        $region66: #{net_conpu_v7_forward.6} parent=23 // pred_check
          %p456 = pneg %p56
        $region67: #{net_conpu_v7_forward.6} parent=23 // pred_check_branch
          %458 = sbr.rel (%p456) target = $region69
        $region68: #{net_conpu_v7_forward.6} parent=23 // pred_region
          %s459 = smul.u32 16, %s10
          %p460 = scmp.lt.s32.totalorder %s459, 31
          %s461 = scalar_select %p460, %s459, 31
          %s462 = smul.addr %s461, 4
          %s463 = scalar_lea.vmem %s1, %s462
          %s464 = smul.u32 16, %s10
        $region69: #{net_conpu_v7_forward.6} parent=23 // pred_fallthru
          _
      $region24: #{net_conpu_v7_forward.6} parent=5 // pred_fallthru
        _
      %p465 = scmp.le.s32.totalorder 1, %s10
      %p466 = scmp.lt.s32.totalorder %s10, 3
      %p467 = pnand %p465, %p466
      %p468 = pneg %p467
      // Predicated region
      $region70: #{net_conpu_v7_forward.6} parent=5 // pred_check
        _
      $region71: #{net_conpu_v7_forward.6} parent=5 // pred_check_branch
        %470 = sbr.rel (%p467) target = $region73
      $region72: #{net_conpu_v7_forward.6} parent=5 // pred_region
        %s471 = ssub.s32 %s10, 1
        %s472 = sand.u32 %s23, 1
        %s473 = sand.u32 %s23, 1
        %s474 = smul.addr %s473, 256
        %s475 = scalar_lea.vmem [#allocation2], %s474
        // Predicated region
        $region74: #{net_conpu_v7_forward.6} parent=72 // pred_check
          %p476 = pneg %p36
        $region75: #{net_conpu_v7_forward.6} parent=72 // pred_check_branch
          %478 = sbr.rel (%p476) target = $region77
        $region76: #{net_conpu_v7_forward.6} parent=72 // pred_region
          _
        $region77: #{net_conpu_v7_forward.6} parent=72 // pred_fallthru
          _
        %s479 = sand.u32 %s23, 1
        %s480 = sand.u32 %s23, 1
        %s481 = smul.addr %s480, 256
        %s482 = scalar_lea.vmem [#allocation2], %s481
        %p483 = pneg %p36
        %p484 = pneg %p33
        %s485 = smul.u32 16, %s15
        %p486 = scmp.lt.s32.totalorder %s485, 31
        %s487 = scalar_select %p486, %s485, 31
        %s488 = smul.addr %s487, 4
        %s489 = scalar_lea.vmem %s1, %s488
        %p490 = pneg %p62
        %p491 = pneg %p59
        %p492 = pneg %p83
        %p493 = pneg %p80
        %p494 = pneg %p104
        %p495 = pneg %p101
        %p496 = pneg %p130
        %p497 = pneg %p127
        %s498 = smul.u32 16, %s15
        %p499 = scmp.lt.s32.totalorder %s498, 31
        %s500 = scalar_select %p499, %s498, 31
        %s501 = smul.addr %s500, 8
        %s502 = scalar_lea.vmem %s4, %s501
        %s503 = smul.u32 16, %s15
        %s504 = smul.u32 16, %s15
        %p505 = scmp.lt.s32.totalorder %s504, 31
        %s506 = scalar_select %p505, %s504, 31
        %s507 = smul.addr %s506, 4
        %s508 = scalar_lea.vmem %s1, %s507
        %s509 = smul.u32 16, %s15
        %s510 = smul.u32 16, %s15
        %p511 = scmp.lt.s32.totalorder %s510, 31
        %s512 = scalar_select %p511, %s510, 31
        %s513 = smul.addr %s512, 8
        %s514 = scalar_lea.vmem %s4, %s513
        %s515 = smul.u32 16, %s15
        %v517 = vld [vmem:[%s508] sm:$0xf]
        %v518 = vld [vmem:[%s508 + $0x4] sm:$0xf]
        %v519 = vld [vmem:[%s508 + $0x8] sm:$0xf]
        %v520 = vld [vmem:[%s508 + $0xc] sm:$0xf]
        %v521 = vld [vmem:[%s508 + $0x10] sm:$0xf]
        %v522 = vld [vmem:[%s508 + $0x14] sm:$0xf]
        %v523 = vld [vmem:[%s508 + $0x18] sm:$0xf]
        %v524 = vld [vmem:[%s508 + $0x1c] sm:$0xf]
        %v525 = vld [vmem:[%s508 + $0x20] sm:$0xf]
        %v526 = vld [vmem:[%s508 + $0x24] sm:$0xf]
        %v527 = vld [vmem:[%s508 + $0x28] sm:$0xf]
        %v528 = vld [vmem:[%s508 + $0x2c] sm:$0xf]
        %v529 = vld [vmem:[%s508 + $0x30] sm:$0xf]
        %v530 = vld [vmem:[%s508 + $0x34] sm:$0xf]
        %v531 = vld [vmem:[%s508 + $0x38] sm:$0xf]
        %v532 = vld [vmem:[%s508 + $0x3c] sm:$0xf]
        %v533 = vld [vmem:[%s3] sm:$0xf]
        %v550 = vunpack.c.l.b16 %v517
        %v551 = vunpack.c.l.b16 %v518
        %v552 = vunpack.c.l.b16 %v519
        %v553 = vunpack.c.l.b16 %v520
        %v554 = vunpack.c.l.b16 %v521
        %v555 = vunpack.c.l.b16 %v522
        %v556 = vunpack.c.l.b16 %v523
        %v557 = vunpack.c.l.b16 %v524
        %v558 = vunpack.c.l.b16 %v525
        %v559 = vunpack.c.l.b16 %v526
        %v560 = vunpack.c.l.b16 %v527
        %v561 = vunpack.c.l.b16 %v528
        %v562 = vunpack.c.l.b16 %v529
        %v563 = vunpack.c.l.b16 %v530
        %v564 = vunpack.c.l.b16 %v531
        %v565 = vunpack.c.l.b16 %v532
        %v566 = vpack.c.b16 %v551, %v550
        %v567 = vpack.c.b16 %v553, %v552
        %v568 = vpack.c.b16 %v555, %v554
        %v569 = vpack.c.b16 %v557, %v556
        %v570 = vpack.c.b16 %v559, %v558
        %v571 = vpack.c.b16 %v561, %v560
        %v572 = vpack.c.b16 %v563, %v562
        %v573 = vpack.c.b16 %v565, %v564
        %vm574 = vcmask 64512
        %v576 = vsel %vm574, %v566, 0
        %v579 = vsel %vm574, %v567, 0
        %v582 = vsel %vm574, %v568, 0
        %v585 = vsel %vm574, %v569, 0
        %v588 = vsel %vm574, %v570, 0
        %v591 = vsel %vm574, %v571, 0
        %v594 = vsel %vm574, %v572, 0
        %v597 = vsel %vm574, %v573, 0
        %vm599 = vcmask 1043456
        %v601 = vsel %vm599, %v533, 0
        %603 = vmatprep.subr.bf16.mxu0 0
        %604 = vmatpush1.bf16.msra.mxu0 %v601
        %605 = vmatprep.subr.bf16.mxu0 0
        %606 = vmatpush1.bf16.msra.mxu0 0
        %607 = vmatprep.subr.bf16.mxu0 0
        %608 = vmatpush1.bf16.msra.mxu0 0
        %609 = vmatprep.subr.bf16.mxu0 0
        %610 = vmatpush1.bf16.msra.mxu0 0
        %611 = vmatprep.subr.bf16.mxu0 0
        %612 = vmatpush1.bf16.msra.mxu0 0
        %613 = vmatprep.subr.bf16.mxu0 0
        %614 = vmatpush1.bf16.msra.mxu0 0
        %615 = vmatprep.subr.bf16.mxu0 0
        %616 = vmatpush1.bf16.msra.mxu0 0
        %617 = vmatprep.subr.bf16.mxu0 0
        %618 = vmatpush1.bf16.msra.mxu0 0
        %619 = vmatprep.subr.bf16.mxu0 0
        %620 = vmatpush1.bf16.msra.mxu0 0
        %621 = vmatprep.subr.bf16.mxu0 0
        %622 = vmatpush1.bf16.msra.mxu0 0
        %623 = vmatprep.subr.bf16.mxu0 0
        %624 = vmatpush1.bf16.msra.mxu0 0
        %625 = vmatprep.subr.bf16.mxu0 0
        %626 = vmatpush1.bf16.msra.mxu0 0
        %627 = vmatprep.subr.bf16.mxu0 0
        %628 = vmatpush1.bf16.msra.mxu0 0
        %629 = vmatprep.subr.bf16.mxu0 0
        %630 = vmatpush1.bf16.msra.mxu0 0
        %631 = vmatprep.subr.bf16.mxu0 0
        %632 = vmatpush1.bf16.msra.mxu0 0
        %633 = vmatprep.subr.bf16.mxu0 0
        %634 = vmatpush1.bf16.msra.mxu0 0
        %635 = vmatprep.mubr.bf16.mxu0 0
        %636 = vmatmul.mubr.bf16.gmra.mrb[0].mxu0 %v576
        %v637 = vpop.f32.mrb[0].mxu0
        %v638 = vadd.f32 0.0, %v637
        %v639 = vpop.f32.mrb[0].mxu0
        %v640 = vpop.f32.mrb[0].mxu0
        %v641 = vadd.f32 0.0, %v640
        %v642 = vpop.f32.mrb[0].mxu0
        %643 = vmatprep.mubr.bf16.mxu0 0
        %644 = vmatmul.mubr.bf16.gmra.mrb[0].mxu0 %v579
        %v645 = vpop.f32.mrb[0].mxu0
        %v646 = vadd.f32 0.0, %v645
        %v647 = vpop.f32.mrb[0].mxu0
        %v648 = vpop.f32.mrb[0].mxu0
        %v649 = vadd.f32 0.0, %v648
        %v650 = vpop.f32.mrb[0].mxu0
        %651 = vmatprep.mubr.bf16.mxu0 0
        %652 = vmatmul.mubr.bf16.gmra.mrb[0].mxu0 %v582
        %v653 = vpop.f32.mrb[0].mxu0
        %v654 = vadd.f32 0.0, %v653
        %v655 = vpop.f32.mrb[0].mxu0
        %v656 = vpop.f32.mrb[0].mxu0
        %v657 = vadd.f32 0.0, %v656
        %v658 = vpop.f32.mrb[0].mxu0
        %659 = vmatprep.mubr.bf16.mxu0 0
        %660 = vmatmul.mubr.bf16.gmra.mrb[0].mxu0 %v585
        %v661 = vpop.f32.mrb[0].mxu0
        %v662 = vadd.f32 0.0, %v661
        %v663 = vpop.f32.mrb[0].mxu0
        %v664 = vpop.f32.mrb[0].mxu0
        %v665 = vadd.f32 0.0, %v664
        %v666 = vpop.f32.mrb[0].mxu0
        %667 = vmatprep.mubr.bf16.mxu0 0
        %668 = vmatmul.mubr.bf16.gmra.mrb[0].mxu0 %v588
        %v669 = vpop.f32.mrb[0].mxu0
        %v670 = vadd.f32 0.0, %v669
        %v671 = vpop.f32.mrb[0].mxu0
        %v672 = vpop.f32.mrb[0].mxu0
        %v673 = vadd.f32 0.0, %v672
        %v674 = vpop.f32.mrb[0].mxu0
        %675 = vmatprep.mubr.bf16.mxu0 0
        %676 = vmatmul.mubr.bf16.gmra.mrb[0].mxu0 %v591
        %v677 = vpop.f32.mrb[0].mxu0
        %v678 = vadd.f32 0.0, %v677
        %v679 = vpop.f32.mrb[0].mxu0
        %v680 = vpop.f32.mrb[0].mxu0
        %v681 = vadd.f32 0.0, %v680
        %v682 = vpop.f32.mrb[0].mxu0
        %683 = vmatprep.mubr.bf16.mxu0 0
        %684 = vmatmul.mubr.bf16.gmra.mrb[0].mxu0 %v594
        %v685 = vpop.f32.mrb[0].mxu0
        %v686 = vadd.f32 0.0, %v685
        %v687 = vpop.f32.mrb[0].mxu0
        %v688 = vpop.f32.mrb[0].mxu0
        %v689 = vadd.f32 0.0, %v688
        %v690 = vpop.f32.mrb[0].mxu0
        %691 = vmatprep.mubr.bf16.mxu0 0
        %692 = vmatmul.mubr.bf16.gmra.mrb[0].mxu0 %v597
        %v693 = vpop.f32.mrb[0].mxu0
        %v694 = vadd.f32 0.0, %v693
        %v695 = vpop.f32.mrb[0].mxu0
        %v696 = vpop.f32.mrb[0].mxu0
        %v697 = vadd.f32 0.0, %v696
        %v698 = vpop.f32.mrb[0].mxu0
        %699 = vdwg.mxu0
        %v700 = vld [vmem:[%s475] sm:$0xf]
        %v701 = vld [vmem:[%s475 + $0x4] sm:$0xf]
        %v702 = vld [vmem:[%s475 + $0x8] sm:$0xf]
        %v703 = vld [vmem:[%s475 + $0xc] sm:$0xf]
        %v704 = vld [vmem:[%s475 + $0x10] sm:$0xf]
        %v705 = vld [vmem:[%s475 + $0x14] sm:$0xf]
        %v706 = vld [vmem:[%s475 + $0x18] sm:$0xf]
        %v707 = vld [vmem:[%s475 + $0x1c] sm:$0xf]
        %v708 = vld [vmem:[%s475 + $0x20] sm:$0xf]
        %v709 = vld [vmem:[%s475 + $0x24] sm:$0xf]
        %v710 = vld [vmem:[%s475 + $0x28] sm:$0xf]
        %v711 = vld [vmem:[%s475 + $0x2c] sm:$0xf]
        %v712 = vld [vmem:[%s475 + $0x30] sm:$0xf]
        %v713 = vld [vmem:[%s475 + $0x34] sm:$0xf]
        %v714 = vld [vmem:[%s475 + $0x38] sm:$0xf]
        %v715 = vld [vmem:[%s475 + $0x3c] sm:$0xf]
        %v716 = vld [vmem:[%s2] sm:$0xf]
        %v733 = vunpack.c.l.b16 %v700
        %v734 = vunpack.c.l.b16 %v701
        %v735 = vunpack.c.l.b16 %v702
        %v736 = vunpack.c.l.b16 %v703
        %v737 = vunpack.c.l.b16 %v704
        %v738 = vunpack.c.l.b16 %v705
        %v739 = vunpack.c.l.b16 %v706
        %v740 = vunpack.c.l.b16 %v707
        %v741 = vunpack.c.l.b16 %v708
        %v742 = vunpack.c.l.b16 %v709
        %v743 = vunpack.c.l.b16 %v710
        %v744 = vunpack.c.l.b16 %v711
        %v745 = vunpack.c.l.b16 %v712
        %v746 = vunpack.c.l.b16 %v713
        %v747 = vunpack.c.l.b16 %v714
        %v748 = vunpack.c.l.b16 %v715
        %v749 = vpack.c.b16 %v734, %v733
        %v750 = vpack.c.b16 %v736, %v735
        %v751 = vpack.c.b16 %v738, %v737
        %v752 = vpack.c.b16 %v740, %v739
        %v753 = vpack.c.b16 %v742, %v741
        %v754 = vpack.c.b16 %v744, %v743
        %v755 = vpack.c.b16 %v746, %v745
        %v756 = vpack.c.b16 %v748, %v747
        %v758 = vsel %vm574, %v749, 0
        %v761 = vsel %vm574, %v750, 0
        %v764 = vsel %vm574, %v751, 0
        %v767 = vsel %vm574, %v752, 0
        %v770 = vsel %vm574, %v753, 0
        %v773 = vsel %vm574, %v754, 0
        %v776 = vsel %vm574, %v755, 0
        %v779 = vsel %vm574, %v756, 0
        %v782 = vsel %vm599, %v716, 0
        %784 = vmatprep.subr.bf16.mxu0 0
        %785 = vmatpush1.bf16.msra.mxu0 %v782
        %786 = vmatprep.subr.bf16.mxu0 0
        %787 = vmatpush1.bf16.msra.mxu0 0
        %788 = vmatprep.subr.bf16.mxu0 0
        %789 = vmatpush1.bf16.msra.mxu0 0
        %790 = vmatprep.subr.bf16.mxu0 0
        %791 = vmatpush1.bf16.msra.mxu0 0
        %792 = vmatprep.subr.bf16.mxu0 0
        %793 = vmatpush1.bf16.msra.mxu0 0
        %794 = vmatprep.subr.bf16.mxu0 0
        %795 = vmatpush1.bf16.msra.mxu0 0
        %796 = vmatprep.subr.bf16.mxu0 0
        %797 = vmatpush1.bf16.msra.mxu0 0
        %798 = vmatprep.subr.bf16.mxu0 0
        %799 = vmatpush1.bf16.msra.mxu0 0
        %800 = vmatprep.subr.bf16.mxu0 0
        %801 = vmatpush1.bf16.msra.mxu0 0
        %802 = vmatprep.subr.bf16.mxu0 0
        %803 = vmatpush1.bf16.msra.mxu0 0
        %804 = vmatprep.subr.bf16.mxu0 0
        %805 = vmatpush1.bf16.msra.mxu0 0
        %806 = vmatprep.subr.bf16.mxu0 0
        %807 = vmatpush1.bf16.msra.mxu0 0
        %808 = vmatprep.subr.bf16.mxu0 0
        %809 = vmatpush1.bf16.msra.mxu0 0
        %810 = vmatprep.subr.bf16.mxu0 0
        %811 = vmatpush1.bf16.msra.mxu0 0
        %812 = vmatprep.subr.bf16.mxu0 0
        %813 = vmatpush1.bf16.msra.mxu0 0
        %814 = vmatprep.subr.bf16.mxu0 0
        %815 = vmatpush1.bf16.msra.mxu0 0
        %816 = vmatprep.mubr.bf16.mxu0 0
        %817 = vmatmul.mubr.bf16.gmra.mrb[0].mxu0 %v758
        %v818 = vpop.f32.mrb[0].mxu0
        %v819 = vadd.f32 0.0, %v818
        %v820 = vpop.f32.mrb[0].mxu0
        %v821 = vpop.f32.mrb[0].mxu0
        %v822 = vadd.f32 0.0, %v821
        %v823 = vpop.f32.mrb[0].mxu0
        %824 = vmatprep.mubr.bf16.mxu0 0
        %825 = vmatmul.mubr.bf16.gmra.mrb[0].mxu0 %v761
        %v826 = vpop.f32.mrb[0].mxu0
        %v827 = vadd.f32 0.0, %v826
        %v828 = vpop.f32.mrb[0].mxu0
        %v829 = vpop.f32.mrb[0].mxu0
        %v830 = vadd.f32 0.0, %v829
        %v831 = vpop.f32.mrb[0].mxu0
        %832 = vmatprep.mubr.bf16.mxu0 0
        %833 = vmatmul.mubr.bf16.gmra.mrb[0].mxu0 %v764
        %v834 = vpop.f32.mrb[0].mxu0
        %v835 = vadd.f32 0.0, %v834
        %v836 = vpop.f32.mrb[0].mxu0
        %v837 = vpop.f32.mrb[0].mxu0
        %v838 = vadd.f32 0.0, %v837
        %v839 = vpop.f32.mrb[0].mxu0
        %840 = vmatprep.mubr.bf16.mxu0 0
        %841 = vmatmul.mubr.bf16.gmra.mrb[0].mxu0 %v767
        %v842 = vpop.f32.mrb[0].mxu0
        %v843 = vadd.f32 0.0, %v842
        %v844 = vpop.f32.mrb[0].mxu0
        %v845 = vpop.f32.mrb[0].mxu0
        %v846 = vadd.f32 0.0, %v845
        %v847 = vpop.f32.mrb[0].mxu0
        %848 = vmatprep.mubr.bf16.mxu0 0
        %849 = vmatmul.mubr.bf16.gmra.mrb[0].mxu0 %v770
        %v850 = vpop.f32.mrb[0].mxu0
        %v851 = vadd.f32 0.0, %v850
        %v852 = vpop.f32.mrb[0].mxu0
        %v853 = vpop.f32.mrb[0].mxu0
        %v854 = vadd.f32 0.0, %v853
        %v855 = vpop.f32.mrb[0].mxu0
        %856 = vmatprep.mubr.bf16.mxu0 0
        %857 = vmatmul.mubr.bf16.gmra.mrb[0].mxu0 %v773
        %v858 = vpop.f32.mrb[0].mxu0
        %v859 = vadd.f32 0.0, %v858
        %v860 = vpop.f32.mrb[0].mxu0
        %v861 = vpop.f32.mrb[0].mxu0
        %v862 = vadd.f32 0.0, %v861
        %v863 = vpop.f32.mrb[0].mxu0
        %864 = vmatprep.mubr.bf16.mxu0 0
        %865 = vmatmul.mubr.bf16.gmra.mrb[0].mxu0 %v776
        %v866 = vpop.f32.mrb[0].mxu0
        %v867 = vadd.f32 0.0, %v866
        %v868 = vpop.f32.mrb[0].mxu0
        %v869 = vpop.f32.mrb[0].mxu0
        %v870 = vadd.f32 0.0, %v869
        %v871 = vpop.f32.mrb[0].mxu0
        %872 = vmatprep.mubr.bf16.mxu0 0
        %873 = vmatmul.mubr.bf16.gmra.mrb[0].mxu0 %v779
        %v874 = vpop.f32.mrb[0].mxu0
        %v875 = vadd.f32 0.0, %v874
        %v876 = vpop.f32.mrb[0].mxu0
        %v877 = vpop.f32.mrb[0].mxu0
        %v878 = vadd.f32 0.0, %v877
        %v879 = vpop.f32.mrb[0].mxu0
        %880 = vdwg.mxu0
        %s881 = scalar_lea.vmem %s475, 64 [#allocation2]
        %v882 = vld [vmem:[%s881] sm:$0xf]
        %v883 = vld [vmem:[%s881 + $0x4] sm:$0xf]
        %v884 = vld [vmem:[%s881 + $0x8] sm:$0xf]
        %v885 = vld [vmem:[%s881 + $0xc] sm:$0xf]
        %v886 = vld [vmem:[%s881 + $0x10] sm:$0xf]
        %v887 = vld [vmem:[%s881 + $0x14] sm:$0xf]
        %v888 = vld [vmem:[%s881 + $0x18] sm:$0xf]
        %v889 = vld [vmem:[%s881 + $0x1c] sm:$0xf]
        %v890 = vld [vmem:[%s881 + $0x20] sm:$0xf]
        %v891 = vld [vmem:[%s881 + $0x24] sm:$0xf]
        %v892 = vld [vmem:[%s881 + $0x28] sm:$0xf]
        %v893 = vld [vmem:[%s881 + $0x2c] sm:$0xf]
        %v894 = vld [vmem:[%s881 + $0x30] sm:$0xf]
        %v895 = vld [vmem:[%s881 + $0x34] sm:$0xf]
        %v896 = vld [vmem:[%s881 + $0x38] sm:$0xf]
        %v897 = vld [vmem:[%s881 + $0x3c] sm:$0xf]
        %v914 = vunpack.c.l.b16 %v882
        %v915 = vunpack.c.l.b16 %v883
        %v916 = vunpack.c.l.b16 %v884
        %v917 = vunpack.c.l.b16 %v885
        %v918 = vunpack.c.l.b16 %v886
        %v919 = vunpack.c.l.b16 %v887
        %v920 = vunpack.c.l.b16 %v888
        %v921 = vunpack.c.l.b16 %v889
        %v922 = vunpack.c.l.b16 %v890
        %v923 = vunpack.c.l.b16 %v891
        %v924 = vunpack.c.l.b16 %v892
        %v925 = vunpack.c.l.b16 %v893
        %v926 = vunpack.c.l.b16 %v894
        %v927 = vunpack.c.l.b16 %v895
        %v928 = vunpack.c.l.b16 %v896
        %v929 = vunpack.c.l.b16 %v897
        %v930 = vpack.c.b16 %v915, %v914
        %v931 = vpack.c.b16 %v917, %v916
        %v932 = vpack.c.b16 %v919, %v918
        %v933 = vpack.c.b16 %v921, %v920
        %v934 = vpack.c.b16 %v923, %v922
        %v935 = vpack.c.b16 %v925, %v924
        %v936 = vpack.c.b16 %v927, %v926
        %v937 = vpack.c.b16 %v929, %v928
        %v939 = vsel %vm574, %v930, 0
        %v942 = vsel %vm574, %v931, 0
        %v945 = vsel %vm574, %v932, 0
        %v948 = vsel %vm574, %v933, 0
        %v951 = vsel %vm574, %v934, 0
        %v954 = vsel %vm574, %v935, 0
        %v957 = vsel %vm574, %v936, 0
        %v960 = vsel %vm574, %v937, 0
        %962 = vmatprep.subr.bf16.mxu0 0
        %963 = vmatpush1.bf16.msra.mxu0 %v782
        %964 = vmatprep.subr.bf16.mxu0 0
        %965 = vmatpush1.bf16.msra.mxu0 0
        %966 = vmatprep.subr.bf16.mxu0 0
        %967 = vmatpush1.bf16.msra.mxu0 0
        %968 = vmatprep.subr.bf16.mxu0 0
        %969 = vmatpush1.bf16.msra.mxu0 0
        %970 = vmatprep.subr.bf16.mxu0 0
        %971 = vmatpush1.bf16.msra.mxu0 0
        %972 = vmatprep.subr.bf16.mxu0 0
        %973 = vmatpush1.bf16.msra.mxu0 0
        %974 = vmatprep.subr.bf16.mxu0 0
        %975 = vmatpush1.bf16.msra.mxu0 0
        %976 = vmatprep.subr.bf16.mxu0 0
        %977 = vmatpush1.bf16.msra.mxu0 0
        %978 = vmatprep.subr.bf16.mxu0 0
        %979 = vmatpush1.bf16.msra.mxu0 0
        %980 = vmatprep.subr.bf16.mxu0 0
        %981 = vmatpush1.bf16.msra.mxu0 0
        %982 = vmatprep.subr.bf16.mxu0 0
        %983 = vmatpush1.bf16.msra.mxu0 0
        %984 = vmatprep.subr.bf16.mxu0 0
        %985 = vmatpush1.bf16.msra.mxu0 0
        %986 = vmatprep.subr.bf16.mxu0 0
        %987 = vmatpush1.bf16.msra.mxu0 0
        %988 = vmatprep.subr.bf16.mxu0 0
        %989 = vmatpush1.bf16.msra.mxu0 0
        %990 = vmatprep.subr.bf16.mxu0 0
        %991 = vmatpush1.bf16.msra.mxu0 0
        %992 = vmatprep.subr.bf16.mxu0 0
        %993 = vmatpush1.bf16.msra.mxu0 0
        %994 = vmatprep.mubr.bf16.mxu0 0
        %995 = vmatmul.mubr.bf16.gmra.mrb[0].mxu0 %v939
        %v996 = vpop.f32.mrb[0].mxu0
        %v997 = vadd.f32 0.0, %v996
        %v998 = vpop.f32.mrb[0].mxu0
        %v999 = vpop.f32.mrb[0].mxu0
        %v1000 = vadd.f32 0.0, %v999
        %v1001 = vpop.f32.mrb[0].mxu0
        %1002 = vmatprep.mubr.bf16.mxu0 0
        %1003 = vmatmul.mubr.bf16.gmra.mrb[0].mxu0 %v942
        %v1004 = vpop.f32.mrb[0].mxu0
        %v1005 = vadd.f32 0.0, %v1004
        %v1006 = vpop.f32.mrb[0].mxu0
        %v1007 = vpop.f32.mrb[0].mxu0
        %v1008 = vadd.f32 0.0, %v1007
        %v1009 = vpop.f32.mrb[0].mxu0
        %1010 = vmatprep.mubr.bf16.mxu0 0
        %1011 = vmatmul.mubr.bf16.gmra.mrb[0].mxu0 %v945
        %v1012 = vpop.f32.mrb[0].mxu0
        %v1013 = vadd.f32 0.0, %v1012
        %v1014 = vpop.f32.mrb[0].mxu0
        %v1015 = vpop.f32.mrb[0].mxu0
        %v1016 = vadd.f32 0.0, %v1015
        %v1017 = vpop.f32.mrb[0].mxu0
        %1018 = vmatprep.mubr.bf16.mxu0 0
        %1019 = vmatmul.mubr.bf16.gmra.mrb[0].mxu0 %v948
        %v1020 = vpop.f32.mrb[0].mxu0
        %v1021 = vadd.f32 0.0, %v1020
        %v1022 = vpop.f32.mrb[0].mxu0
        %v1023 = vpop.f32.mrb[0].mxu0
        %v1024 = vadd.f32 0.0, %v1023
        %v1025 = vpop.f32.mrb[0].mxu0
        %1026 = vmatprep.mubr.bf16.mxu0 0
        %1027 = vmatmul.mubr.bf16.gmra.mrb[0].mxu0 %v951
        %v1028 = vpop.f32.mrb[0].mxu0
        %v1029 = vadd.f32 0.0, %v1028
        %v1030 = vpop.f32.mrb[0].mxu0
        %v1031 = vpop.f32.mrb[0].mxu0
        %v1032 = vadd.f32 0.0, %v1031
        %v1033 = vpop.f32.mrb[0].mxu0
        %1034 = vmatprep.mubr.bf16.mxu0 0
        %1035 = vmatmul.mubr.bf16.gmra.mrb[0].mxu0 %v954
        %v1036 = vpop.f32.mrb[0].mxu0
        %v1037 = vadd.f32 0.0, %v1036
        %v1038 = vpop.f32.mrb[0].mxu0
        %v1039 = vpop.f32.mrb[0].mxu0
        %v1040 = vadd.f32 0.0, %v1039
        %v1041 = vpop.f32.mrb[0].mxu0
        %1042 = vmatprep.mubr.bf16.mxu0 0
        %1043 = vmatmul.mubr.bf16.gmra.mrb[0].mxu0 %v957
        %v1044 = vpop.f32.mrb[0].mxu0
        %v1045 = vadd.f32 0.0, %v1044
        %v1046 = vpop.f32.mrb[0].mxu0
        %v1047 = vpop.f32.mrb[0].mxu0
        %v1048 = vadd.f32 0.0, %v1047
        %v1049 = vpop.f32.mrb[0].mxu0
        %1050 = vmatprep.mubr.bf16.mxu0 0
        %1051 = vmatmul.mubr.bf16.gmra.mrb[0].mxu0 %v960
        %v1052 = vpop.f32.mrb[0].mxu0
        %v1053 = vadd.f32 0.0, %v1052
        %v1054 = vpop.f32.mrb[0].mxu0
        %v1055 = vpop.f32.mrb[0].mxu0
        %v1056 = vadd.f32 0.0, %v1055
        %v1057 = vpop.f32.mrb[0].mxu0
        %1058 = vdwg.mxu0
        %v1059 = vmax.f32 %v819, %v997
        %v1060 = vmax.f32 %v822, %v1000
        %v1061 = vmax.f32 %v827, %v1005
        %v1062 = vmax.f32 %v830, %v1008
        %v1063 = vmax.f32 %v835, %v1013
        %v1064 = vmax.f32 %v838, %v1016
        %v1065 = vmax.f32 %v843, %v1021
        %v1066 = vmax.f32 %v846, %v1024
        %v1067 = vmax.f32 %v851, %v1029
        %v1068 = vmax.f32 %v854, %v1032
        %v1069 = vmax.f32 %v859, %v1037
        %v1070 = vmax.f32 %v862, %v1040
        %v1071 = vmax.f32 %v867, %v1045
        %v1072 = vmax.f32 %v870, %v1048
        %v1073 = vmax.f32 %v875, %v1053
        %v1074 = vmax.f32 %v878, %v1056
        %s1075 = scalar_lea.vmem %s475, 128 [#allocation2]
        %v1076 = vld [vmem:[%s1075] sm:$0xf]
        %v1077 = vld [vmem:[%s1075 + $0x4] sm:$0xf]
        %v1078 = vld [vmem:[%s1075 + $0x8] sm:$0xf]
        %v1079 = vld [vmem:[%s1075 + $0xc] sm:$0xf]
        %v1080 = vld [vmem:[%s1075 + $0x10] sm:$0xf]
        %v1081 = vld [vmem:[%s1075 + $0x14] sm:$0xf]
        %v1082 = vld [vmem:[%s1075 + $0x18] sm:$0xf]
        %v1083 = vld [vmem:[%s1075 + $0x1c] sm:$0xf]
        %v1084 = vld [vmem:[%s1075 + $0x20] sm:$0xf]
        %v1085 = vld [vmem:[%s1075 + $0x24] sm:$0xf]
        %v1086 = vld [vmem:[%s1075 + $0x28] sm:$0xf]
        %v1087 = vld [vmem:[%s1075 + $0x2c] sm:$0xf]
        %v1088 = vld [vmem:[%s1075 + $0x30] sm:$0xf]
        %v1089 = vld [vmem:[%s1075 + $0x34] sm:$0xf]
        %v1090 = vld [vmem:[%s1075 + $0x38] sm:$0xf]
        %v1091 = vld [vmem:[%s1075 + $0x3c] sm:$0xf]
        %v1108 = vunpack.c.l.b16 %v1076
        %v1109 = vunpack.c.l.b16 %v1077
        %v1110 = vunpack.c.l.b16 %v1078
        %v1111 = vunpack.c.l.b16 %v1079
        %v1112 = vunpack.c.l.b16 %v1080
        %v1113 = vunpack.c.l.b16 %v1081
        %v1114 = vunpack.c.l.b16 %v1082
        %v1115 = vunpack.c.l.b16 %v1083
        %v1116 = vunpack.c.l.b16 %v1084
        %v1117 = vunpack.c.l.b16 %v1085
        %v1118 = vunpack.c.l.b16 %v1086
        %v1119 = vunpack.c.l.b16 %v1087
        %v1120 = vunpack.c.l.b16 %v1088
        %v1121 = vunpack.c.l.b16 %v1089
        %v1122 = vunpack.c.l.b16 %v1090
        %v1123 = vunpack.c.l.b16 %v1091
        %v1124 = vpack.c.b16 %v1109, %v1108
        %v1125 = vpack.c.b16 %v1111, %v1110
        %v1126 = vpack.c.b16 %v1113, %v1112
        %v1127 = vpack.c.b16 %v1115, %v1114
        %v1128 = vpack.c.b16 %v1117, %v1116
        %v1129 = vpack.c.b16 %v1119, %v1118
        %v1130 = vpack.c.b16 %v1121, %v1120
        %v1131 = vpack.c.b16 %v1123, %v1122
        %v1133 = vsel %vm574, %v1124, 0
        %v1136 = vsel %vm574, %v1125, 0
        %v1139 = vsel %vm574, %v1126, 0
        %v1142 = vsel %vm574, %v1127, 0
        %v1145 = vsel %vm574, %v1128, 0
        %v1148 = vsel %vm574, %v1129, 0
        %v1151 = vsel %vm574, %v1130, 0
        %v1154 = vsel %vm574, %v1131, 0
        %1156 = vmatprep.subr.bf16.mxu0 0
        %1157 = vmatpush1.bf16.msra.mxu0 %v782
        %1158 = vmatprep.subr.bf16.mxu0 0
        %1159 = vmatpush1.bf16.msra.mxu0 0
        %1160 = vmatprep.subr.bf16.mxu0 0
        %1161 = vmatpush1.bf16.msra.mxu0 0
        %1162 = vmatprep.subr.bf16.mxu0 0
        %1163 = vmatpush1.bf16.msra.mxu0 0
        %1164 = vmatprep.subr.bf16.mxu0 0
        %1165 = vmatpush1.bf16.msra.mxu0 0
        %1166 = vmatprep.subr.bf16.mxu0 0
        %1167 = vmatpush1.bf16.msra.mxu0 0
        %1168 = vmatprep.subr.bf16.mxu0 0
        %1169 = vmatpush1.bf16.msra.mxu0 0
        %1170 = vmatprep.subr.bf16.mxu0 0
        %1171 = vmatpush1.bf16.msra.mxu0 0
        %1172 = vmatprep.subr.bf16.mxu0 0
        %1173 = vmatpush1.bf16.msra.mxu0 0
        %1174 = vmatprep.subr.bf16.mxu0 0
        %1175 = vmatpush1.bf16.msra.mxu0 0
        %1176 = vmatprep.subr.bf16.mxu0 0
        %1177 = vmatpush1.bf16.msra.mxu0 0
        %1178 = vmatprep.subr.bf16.mxu0 0
        %1179 = vmatpush1.bf16.msra.mxu0 0
        %1180 = vmatprep.subr.bf16.mxu0 0
        %1181 = vmatpush1.bf16.msra.mxu0 0
        %1182 = vmatprep.subr.bf16.mxu0 0
        %1183 = vmatpush1.bf16.msra.mxu0 0
        %1184 = vmatprep.subr.bf16.mxu0 0
        %1185 = vmatpush1.bf16.msra.mxu0 0
        %1186 = vmatprep.subr.bf16.mxu0 0
        %1187 = vmatpush1.bf16.msra.mxu0 0
        %1188 = vmatprep.mubr.bf16.mxu0 0
        %1189 = vmatmul.mubr.bf16.gmra.mrb[0].mxu0 %v1133
        %v1190 = vpop.f32.mrb[0].mxu0
        %v1191 = vadd.f32 0.0, %v1190
        %v1192 = vpop.f32.mrb[0].mxu0
        %v1193 = vpop.f32.mrb[0].mxu0
        %v1194 = vadd.f32 0.0, %v1193
        %v1195 = vpop.f32.mrb[0].mxu0
        %1196 = vmatprep.mubr.bf16.mxu0 0
        %1197 = vmatmul.mubr.bf16.gmra.mrb[0].mxu0 %v1136
        %v1198 = vpop.f32.mrb[0].mxu0
        %v1199 = vadd.f32 0.0, %v1198
        %v1200 = vpop.f32.mrb[0].mxu0
        %v1201 = vpop.f32.mrb[0].mxu0
        %v1202 = vadd.f32 0.0, %v1201
        %v1203 = vpop.f32.mrb[0].mxu0
        %1204 = vmatprep.mubr.bf16.mxu0 0
        %1205 = vmatmul.mubr.bf16.gmra.mrb[0].mxu0 %v1139
        %v1206 = vpop.f32.mrb[0].mxu0
        %v1207 = vadd.f32 0.0, %v1206
        %v1208 = vpop.f32.mrb[0].mxu0
        %v1209 = vpop.f32.mrb[0].mxu0
        %v1210 = vadd.f32 0.0, %v1209
        %v1211 = vpop.f32.mrb[0].mxu0
        %1212 = vmatprep.mubr.bf16.mxu0 0
        %1213 = vmatmul.mubr.bf16.gmra.mrb[0].mxu0 %v1142
        %v1214 = vpop.f32.mrb[0].mxu0
        %v1215 = vadd.f32 0.0, %v1214
        %v1216 = vpop.f32.mrb[0].mxu0
        %v1217 = vpop.f32.mrb[0].mxu0
        %v1218 = vadd.f32 0.0, %v1217
        %v1219 = vpop.f32.mrb[0].mxu0
        %1220 = vmatprep.mubr.bf16.mxu0 0
        %1221 = vmatmul.mubr.bf16.gmra.mrb[0].mxu0 %v1145
        %v1222 = vpop.f32.mrb[0].mxu0
        %v1223 = vadd.f32 0.0, %v1222
        %v1224 = vpop.f32.mrb[0].mxu0
        %v1225 = vpop.f32.mrb[0].mxu0
        %v1226 = vadd.f32 0.0, %v1225
        %v1227 = vpop.f32.mrb[0].mxu0
        %1228 = vmatprep.mubr.bf16.mxu0 0
        %1229 = vmatmul.mubr.bf16.gmra.mrb[0].mxu0 %v1148
        %v1230 = vpop.f32.mrb[0].mxu0
        %v1231 = vadd.f32 0.0, %v1230
        %v1232 = vpop.f32.mrb[0].mxu0
        %v1233 = vpop.f32.mrb[0].mxu0
        %v1234 = vadd.f32 0.0, %v1233
        %v1235 = vpop.f32.mrb[0].mxu0
        %1236 = vmatprep.mubr.bf16.mxu0 0
        %1237 = vmatmul.mubr.bf16.gmra.mrb[0].mxu0 %v1151
        %v1238 = vpop.f32.mrb[0].mxu0
        %v1239 = vadd.f32 0.0, %v1238
        %v1240 = vpop.f32.mrb[0].mxu0
        %v1241 = vpop.f32.mrb[0].mxu0
        %v1242 = vadd.f32 0.0, %v1241
        %v1243 = vpop.f32.mrb[0].mxu0
        %1244 = vmatprep.mubr.bf16.mxu0 0
        %1245 = vmatmul.mubr.bf16.gmra.mrb[0].mxu0 %v1154
        %v1246 = vpop.f32.mrb[0].mxu0
        %v1247 = vadd.f32 0.0, %v1246
        %v1248 = vpop.f32.mrb[0].mxu0
        %v1249 = vpop.f32.mrb[0].mxu0
        %v1250 = vadd.f32 0.0, %v1249
        %v1251 = vpop.f32.mrb[0].mxu0
        %1252 = vdwg.mxu0
        %v1253 = vmax.f32 %v1059, %v1191
        %v1254 = vmax.f32 %v1060, %v1194
        %v1255 = vmax.f32 %v1061, %v1199
        %v1256 = vmax.f32 %v1062, %v1202
        %v1257 = vmax.f32 %v1063, %v1207
        %v1258 = vmax.f32 %v1064, %v1210
        %v1259 = vmax.f32 %v1065, %v1215
        %v1260 = vmax.f32 %v1066, %v1218
        %v1261 = vmax.f32 %v1067, %v1223
        %v1262 = vmax.f32 %v1068, %v1226
        %v1263 = vmax.f32 %v1069, %v1231
        %v1264 = vmax.f32 %v1070, %v1234
        %v1265 = vmax.f32 %v1071, %v1239
        %v1266 = vmax.f32 %v1072, %v1242
        %v1267 = vmax.f32 %v1073, %v1247
        %v1268 = vmax.f32 %v1074, %v1250
        %s1269 = scalar_lea.vmem %s475, 192 [#allocation2]
        %v1270 = vld [vmem:[%s1269] sm:$0xf]
        %v1271 = vld [vmem:[%s1269 + $0x4] sm:$0xf]
        %v1272 = vld [vmem:[%s1269 + $0x8] sm:$0xf]
        %v1273 = vld [vmem:[%s1269 + $0xc] sm:$0xf]
        %v1274 = vld [vmem:[%s1269 + $0x10] sm:$0xf]
        %v1275 = vld [vmem:[%s1269 + $0x14] sm:$0xf]
        %v1276 = vld [vmem:[%s1269 + $0x18] sm:$0xf]
        %v1277 = vld [vmem:[%s1269 + $0x1c] sm:$0xf]
        %v1278 = vld [vmem:[%s1269 + $0x20] sm:$0xf]
        %v1279 = vld [vmem:[%s1269 + $0x24] sm:$0xf]
        %v1280 = vld [vmem:[%s1269 + $0x28] sm:$0xf]
        %v1281 = vld [vmem:[%s1269 + $0x2c] sm:$0xf]
        %v1282 = vld [vmem:[%s1269 + $0x30] sm:$0xf]
        %v1283 = vld [vmem:[%s1269 + $0x34] sm:$0xf]
        %v1284 = vld [vmem:[%s1269 + $0x38] sm:$0xf]
        %v1285 = vld [vmem:[%s1269 + $0x3c] sm:$0xf]
        %v1302 = vunpack.c.l.b16 %v1270
        %v1303 = vunpack.c.l.b16 %v1271
        %v1304 = vunpack.c.l.b16 %v1272
        %v1305 = vunpack.c.l.b16 %v1273
        %v1306 = vunpack.c.l.b16 %v1274
        %v1307 = vunpack.c.l.b16 %v1275
        %v1308 = vunpack.c.l.b16 %v1276
        %v1309 = vunpack.c.l.b16 %v1277
        %v1310 = vunpack.c.l.b16 %v1278
        %v1311 = vunpack.c.l.b16 %v1279
        %v1312 = vunpack.c.l.b16 %v1280
        %v1313 = vunpack.c.l.b16 %v1281
        %v1314 = vunpack.c.l.b16 %v1282
        %v1315 = vunpack.c.l.b16 %v1283
        %v1316 = vunpack.c.l.b16 %v1284
        %v1317 = vunpack.c.l.b16 %v1285
        %v1318 = vpack.c.b16 %v1303, %v1302
        %v1319 = vpack.c.b16 %v1305, %v1304
        %v1320 = vpack.c.b16 %v1307, %v1306
        %v1321 = vpack.c.b16 %v1309, %v1308
        %v1322 = vpack.c.b16 %v1311, %v1310
        %v1323 = vpack.c.b16 %v1313, %v1312
        %v1324 = vpack.c.b16 %v1315, %v1314
        %v1325 = vpack.c.b16 %v1317, %v1316
        %v1327 = vsel %vm574, %v1318, 0
        %v1330 = vsel %vm574, %v1319, 0
        %v1333 = vsel %vm574, %v1320, 0
        %v1336 = vsel %vm574, %v1321, 0
        %v1339 = vsel %vm574, %v1322, 0
        %v1342 = vsel %vm574, %v1323, 0
        %v1345 = vsel %vm574, %v1324, 0
        %v1348 = vsel %vm574, %v1325, 0
        %1350 = vmatprep.subr.bf16.mxu0 0
        %1351 = vmatpush1.bf16.msra.mxu0 %v782
        %1352 = vmatprep.subr.bf16.mxu0 0
        %1353 = vmatpush1.bf16.msra.mxu0 0
        %1354 = vmatprep.subr.bf16.mxu0 0
        %1355 = vmatpush1.bf16.msra.mxu0 0
        %1356 = vmatprep.subr.bf16.mxu0 0
        %1357 = vmatpush1.bf16.msra.mxu0 0
        %1358 = vmatprep.subr.bf16.mxu0 0
        %1359 = vmatpush1.bf16.msra.mxu0 0
        %1360 = vmatprep.subr.bf16.mxu0 0
        %1361 = vmatpush1.bf16.msra.mxu0 0
        %1362 = vmatprep.subr.bf16.mxu0 0
        %1363 = vmatpush1.bf16.msra.mxu0 0
        %1364 = vmatprep.subr.bf16.mxu0 0
        %1365 = vmatpush1.bf16.msra.mxu0 0
        %1366 = vmatprep.subr.bf16.mxu0 0
        %1367 = vmatpush1.bf16.msra.mxu0 0
        %1368 = vmatprep.subr.bf16.mxu0 0
        %1369 = vmatpush1.bf16.msra.mxu0 0
        %1370 = vmatprep.subr.bf16.mxu0 0
        %1371 = vmatpush1.bf16.msra.mxu0 0
        %1372 = vmatprep.subr.bf16.mxu0 0
        %1373 = vmatpush1.bf16.msra.mxu0 0
        %1374 = vmatprep.subr.bf16.mxu0 0
        %1375 = vmatpush1.bf16.msra.mxu0 0
        %1376 = vmatprep.subr.bf16.mxu0 0
        %1377 = vmatpush1.bf16.msra.mxu0 0
        %1378 = vmatprep.subr.bf16.mxu0 0
        %1379 = vmatpush1.bf16.msra.mxu0 0
        %1380 = vmatprep.subr.bf16.mxu0 0
        %1381 = vmatpush1.bf16.msra.mxu0 0
        %1382 = vmatprep.mubr.bf16.mxu0 0
        %1383 = vmatmul.mubr.bf16.gmra.mrb[0].mxu0 %v1327
        %v1384 = vpop.f32.mrb[0].mxu0
        %v1385 = vadd.f32 0.0, %v1384
        %v1386 = vpop.f32.mrb[0].mxu0
        %v1387 = vpop.f32.mrb[0].mxu0
        %v1388 = vadd.f32 0.0, %v1387
        %v1389 = vpop.f32.mrb[0].mxu0
        %1390 = vmatprep.mubr.bf16.mxu0 0
        %1391 = vmatmul.mubr.bf16.gmra.mrb[0].mxu0 %v1330
        %v1392 = vpop.f32.mrb[0].mxu0
        %v1393 = vadd.f32 0.0, %v1392
        %v1394 = vpop.f32.mrb[0].mxu0
        %v1395 = vpop.f32.mrb[0].mxu0
        %v1396 = vadd.f32 0.0, %v1395
        %v1397 = vpop.f32.mrb[0].mxu0
        %1398 = vmatprep.mubr.bf16.mxu0 0
        %1399 = vmatmul.mubr.bf16.gmra.mrb[0].mxu0 %v1333
        %v1400 = vpop.f32.mrb[0].mxu0
        %v1401 = vadd.f32 0.0, %v1400
        %v1402 = vpop.f32.mrb[0].mxu0
        %v1403 = vpop.f32.mrb[0].mxu0
        %v1404 = vadd.f32 0.0, %v1403
        %v1405 = vpop.f32.mrb[0].mxu0
        %1406 = vmatprep.mubr.bf16.mxu0 0
        %1407 = vmatmul.mubr.bf16.gmra.mrb[0].mxu0 %v1336
        %v1408 = vpop.f32.mrb[0].mxu0
        %v1409 = vadd.f32 0.0, %v1408
        %v1410 = vpop.f32.mrb[0].mxu0
        %v1411 = vpop.f32.mrb[0].mxu0
        %v1412 = vadd.f32 0.0, %v1411
        %v1413 = vpop.f32.mrb[0].mxu0
        %1414 = vmatprep.mubr.bf16.mxu0 0
        %1415 = vmatmul.mubr.bf16.gmra.mrb[0].mxu0 %v1339
        %v1416 = vpop.f32.mrb[0].mxu0
        %v1417 = vadd.f32 0.0, %v1416
        %v1418 = vpop.f32.mrb[0].mxu0
        %v1419 = vpop.f32.mrb[0].mxu0
        %v1420 = vadd.f32 0.0, %v1419
        %v1421 = vpop.f32.mrb[0].mxu0
        %1422 = vmatprep.mubr.bf16.mxu0 0
        %1423 = vmatmul.mubr.bf16.gmra.mrb[0].mxu0 %v1342
        %v1424 = vpop.f32.mrb[0].mxu0
        %v1425 = vadd.f32 0.0, %v1424
        %v1426 = vpop.f32.mrb[0].mxu0
        %v1427 = vpop.f32.mrb[0].mxu0
        %v1428 = vadd.f32 0.0, %v1427
        %v1429 = vpop.f32.mrb[0].mxu0
        %1430 = vmatprep.mubr.bf16.mxu0 0
        %1431 = vmatmul.mubr.bf16.gmra.mrb[0].mxu0 %v1345
        %v1432 = vpop.f32.mrb[0].mxu0
        %v1433 = vadd.f32 0.0, %v1432
        %v1434 = vpop.f32.mrb[0].mxu0
        %v1435 = vpop.f32.mrb[0].mxu0
        %v1436 = vadd.f32 0.0, %v1435
        %v1437 = vpop.f32.mrb[0].mxu0
        %1438 = vmatprep.mubr.bf16.mxu0 0
        %1439 = vmatmul.mubr.bf16.gmra.mrb[0].mxu0 %v1348
        %v1440 = vpop.f32.mrb[0].mxu0
        %v1441 = vadd.f32 0.0, %v1440
        %v1442 = vpop.f32.mrb[0].mxu0
        %v1443 = vpop.f32.mrb[0].mxu0
        %v1444 = vadd.f32 0.0, %v1443
        %v1445 = vpop.f32.mrb[0].mxu0
        %1446 = vdwg.mxu0
        %v1447 = vmax.f32 %v1253, %v1385
        %v1448 = vmax.f32 %v1254, %v1388
        %v1449 = vmax.f32 %v1255, %v1393
        %v1450 = vmax.f32 %v1256, %v1396
        %v1451 = vmax.f32 %v1257, %v1401
        %v1452 = vmax.f32 %v1258, %v1404
        %v1453 = vmax.f32 %v1259, %v1409
        %v1454 = vmax.f32 %v1260, %v1412
        %v1455 = vmax.f32 %v1261, %v1417
        %v1456 = vmax.f32 %v1262, %v1420
        %v1457 = vmax.f32 %v1263, %v1425
        %v1458 = vmax.f32 %v1264, %v1428
        %v1459 = vmax.f32 %v1265, %v1433
        %v1460 = vmax.f32 %v1266, %v1436
        %v1461 = vmax.f32 %v1267, %v1441
        %v1462 = vmax.f32 %v1268, %v1444
        %v1463 = vadd.f32 %v1447, %v638
        %v1464 = vadd.f32 %v1448, %v641
        %v1465 = vadd.f32 %v1449, %v646
        %v1466 = vadd.f32 %v1450, %v649
        %v1467 = vadd.f32 %v1451, %v654
        %v1468 = vadd.f32 %v1452, %v657
        %v1469 = vadd.f32 %v1453, %v662
        %v1470 = vadd.f32 %v1454, %v665
        %v1471 = vadd.f32 %v1455, %v670
        %v1472 = vadd.f32 %v1456, %v673
        %v1473 = vadd.f32 %v1457, %v678
        %v1474 = vadd.f32 %v1458, %v681
        %v1475 = vadd.f32 %v1459, %v686
        %v1476 = vadd.f32 %v1460, %v689
        %v1477 = vadd.f32 %v1461, %v694
        %v1478 = vadd.f32 %v1462, %v697
        %v1479 = vmax.f32 %v1463, 0.0
        %v1480 = vmax.f32 %v1464, 0.0
        %v1481 = vmax.f32 %v1465, 0.0
        %v1482 = vmax.f32 %v1466, 0.0
        %v1483 = vmax.f32 %v1467, 0.0
        %v1484 = vmax.f32 %v1468, 0.0
        %v1485 = vmax.f32 %v1469, 0.0
        %v1486 = vmax.f32 %v1470, 0.0
        %v1487 = vmax.f32 %v1471, 0.0
        %v1488 = vmax.f32 %v1472, 0.0
        %v1489 = vmax.f32 %v1473, 0.0
        %v1490 = vmax.f32 %v1474, 0.0
        %v1491 = vmax.f32 %v1475, 0.0
        %v1492 = vmax.f32 %v1476, 0.0
        %v1493 = vmax.f32 %v1477, 0.0
        %v1494 = vmax.f32 %v1478, 0.0
        %vm1495 = vcmask 523264
        %1496 = vst.msk [vmem:[%s514] sm:$0xff] %vm1495, %v1479
        %1497 = vst.msk [vmem:[%s514 + $0x8] sm:$0xff] %vm1495, %v1480
        %1498 = vst.msk [vmem:[%s514 + $0x10] sm:$0xff] %vm1495, %v1481
        %1499 = vst.msk [vmem:[%s514 + $0x18] sm:$0xff] %vm1495, %v1482
        %1500 = vst.msk [vmem:[%s514 + $0x20] sm:$0xff] %vm1495, %v1483
        %1501 = vst.msk [vmem:[%s514 + $0x28] sm:$0xff] %vm1495, %v1484
        %1502 = vst.msk [vmem:[%s514 + $0x30] sm:$0xff] %vm1495, %v1485
        %1503 = vst.msk [vmem:[%s514 + $0x38] sm:$0xff] %vm1495, %v1486
        %1504 = vst.msk [vmem:[%s514 + $0x40] sm:$0xff] %vm1495, %v1487
        %1505 = vst.msk [vmem:[%s514 + $0x48] sm:$0xff] %vm1495, %v1488
        %1506 = vst.msk [vmem:[%s514 + $0x50] sm:$0xff] %vm1495, %v1489
        %1507 = vst.msk [vmem:[%s514 + $0x58] sm:$0xff] %vm1495, %v1490
        %1508 = vst.msk [vmem:[%s514 + $0x60] sm:$0xff] %vm1495, %v1491
        %1509 = vst.msk [vmem:[%s514 + $0x68] sm:$0xff] %vm1495, %v1492
        %1510 = vst.msk [vmem:[%s514 + $0x70] sm:$0xff] %vm1495, %v1493
        %1511 = vst.msk [vmem:[%s514 + $0x78] sm:$0xff] %vm1495, %v1494
        %s1512 = smul.u32 16, %s15
        %p1513 = scmp.lt.s32.totalorder %s1512, 31
        %s1514 = scalar_select %p1513, %s1512, 31
        %s1515 = smul.addr %s1514, 8
        %s1516 = scalar_lea.vmem %s4, %s1515
        // Predicated region
        $region78: #{net_conpu_v7_forward.6} parent=72 // pred_check
          %p1517 = pneg %p127
        $region79: #{net_conpu_v7_forward.6} parent=72 // pred_check_branch
          %1519 = sbr.rel (%p1517) target = $region81
        $region80: #{net_conpu_v7_forward.6} parent=72 // pred_region
          %s1520 = smul.u32 16, %s15
        $region81: #{net_conpu_v7_forward.6} parent=72 // pred_fallthru
          _
      $region73: #{net_conpu_v7_forward.6} parent=5 // pred_fallthru
        _
      %p1521 = scmp.le.s32.totalorder 2, %s10
      // Predicated region
      $region82: #{net_conpu_v7_forward.6} parent=5 // pred_check
        %p1522 = pneg %p1521
      $region83: #{net_conpu_v7_forward.6} parent=5 // pred_check_branch
        %1524 = sbr.rel (%p1522) target = $region85
      $region84: #{net_conpu_v7_forward.6} parent=5 // pred_region
        %s1525 = ssub.s32 %s10, 2
        // Predicated region
        $region86: #{net_conpu_v7_forward.6} parent=84 // pred_check
          %p1526 = pneg %p133
        $region87: #{net_conpu_v7_forward.6} parent=84 // pred_check_branch
          %1528 = sbr.rel (%p1526) target = $region89
        $region88: #{net_conpu_v7_forward.6} parent=84 // pred_region
          %s1529 = smul.u32 16, %s16
          %p1530 = scmp.lt.s32.totalorder %s1529, 31
          %s1531 = scalar_select %p1530, %s1529, 31
          %s1532 = smul.addr %s1531, 8
          %s1533 = scalar_lea.vmem %s4, %s1532
        $region89: #{net_conpu_v7_forward.6} parent=84 // pred_fallthru
          _
      $region85: #{net_conpu_v7_forward.6} parent=5 // pred_fallthru
        _
    $region6: #{net_conpu_v7_forward.6} parent=1 // loop_footer
      %s14 = sadd.s32 1, %s10
    $region7: #{net_conpu_v7_forward.6} parent=1 // loop_footer_branch
      %9 = sbr.rel target = $region3
    $region8: #{net_conpu_v7_forward.6} parent=1 // loop_exit
      _

// kernel: net_conpu_v7_forward.7
$region0: #{net_conpu_v7_forward.7}
  #allocation0 [shape = 'u32[]', space=smem, size = 0x4, offset = 0x4, fixed_abs, tag = 'smem constant byte address 0x4 - core index']
  #allocation1 [shape = 'u32[144,128]{1,0:T(1,128)}', space=vmem, size = 0x12000, scoped, tag = 'internal scratch']
  %s0 = inlined_call_operand.vmem [shape: bf16[4,256,64], index: 0, kind: input, shape index: {}]
  %s1 = inlined_call_operand.vmem [shape: bf16[256,64], index: 1, kind: input, shape index: {}]
  %s2 = inlined_call_operand.vmem [shape: bf16[64,64], index: 2, kind: input, shape index: {}]
  %s3 = inlined_call_operand.vmem [shape: bf16[64,64], index: 3, kind: input, shape index: {}]
  %s4 = inlined_call_operand.vmem [shape: f32[256,64], index: 4, kind: output, shape index: {}]
  %s5 = sld [smem:[#allocation0]]
  $region90: #{net_conpu_v7_forward.7} parent=0
    _
  %s7 = ssub.s32 1, %s5
  %s8 = scalar_select 0, %s7, %s5
  $region1: #{net_conpu_v7_forward.7} parent=0
    #allocation2 [shape = 'u8[262144]{0}', space=vmem, size = 0x40000, scoped, tag = 'input window, operand 0']
    loop: start=0, step=1, limit=4
    $region2: #{net_conpu_v7_forward.7} parent=1 // loop_pre_header
      _
    $region3: #{net_conpu_v7_forward.7} parent=1 // loop_header
      %s10 = sphi 0, %s14
      %p11 = scmp.ge.s32.totalorder %s10, 4
      %s20 = sphi 0, %s22
      %s23 = sphi 0, %s20
      %s24 = sphi 0, %s23
      %s40 = sphi 0, %s24
      %s46 = sphi 0, %s48
      %s49 = sphi 0, %s46
      %s50 = sphi 0, %s49
      %s66 = sphi 0, %s50
      %s70 = sphi 0, %s70
      %s72 = sphi 0, %s70
      %s73 = sphi 0, %s72
      %s87 = sphi 0, %s73
      %s91 = sphi 0, %s91
      %s93 = sphi 0, %s91
      %s94 = sphi 0, %s93
      %s108 = sphi 0, %s94
      %s114 = sphi 0, %s116
      %s117 = sphi 0, %s114
      %s118 = sphi 0, %s117
      %s134 = sphi 0, %s118
    $region4: #{net_conpu_v7_forward.7} parent=1 // loop_header_branch
      %13 = sbr.rel (%p11) target = $region8
    $region5: #{net_conpu_v7_forward.7} parent=1 // loop_body
      %s15 = ssub.s32 %s10, 1
      %s16 = ssub.s32 %s10, 2
      %s17 = sadd.s32 %s10, 1
      %s18 = ssub.s32 %s10, %s17
      %p19 = scmp.eq.s32.totalorder %s18, 0
      %s21 = sadd.s32 %s20, 1
      %s22 = scalar_select %p19, %s20, %s21
      %p25 = pneg %p19
      %p26 = scmp.eq.s32.totalorder %s10, 1
      %p27 = por %p25, %p26
      %p28 = scmp.ne.s32.totalorder %s20, %s23
      %p29 = scmp.eq.s32.totalorder %s10, 0
      %p30 = por %p28, %p29
      %p31 = scmp.ne.s32.totalorder %s20, %s23
      %p32 = scmp.eq.s32.totalorder %s15, 1
      %p33 = por %p31, %p32
      %p34 = scmp.ne.s32.totalorder %s23, %s24
      %p35 = scmp.eq.s32.totalorder %s15, 0
      %p36 = por %p34, %p35
      %p37 = scmp.ne.s32.totalorder %s23, %s24
      %p38 = scmp.eq.s32.totalorder %s16, 1
      %p39 = por %p37, %p38
      %p41 = scmp.ne.s32.totalorder %s24, %s40
      %p42 = scmp.eq.s32.totalorder %s16, 0
      %p43 = por %p41, %p42
      %s44 = ssub.s32 %s10, %s17
      %p45 = scmp.eq.s32.totalorder %s44, 0
      %s47 = sadd.s32 %s46, 1
      %s48 = scalar_select %p45, %s46, %s47
      %p51 = pneg %p45
      %p52 = scmp.eq.s32.totalorder %s10, 1
      %p53 = por %p51, %p52
      %p54 = scmp.ne.s32.totalorder %s46, %s49
      %p55 = scmp.eq.s32.totalorder %s10, 0
      %p56 = por %p54, %p55
      %p57 = scmp.ne.s32.totalorder %s46, %s49
      %p58 = scmp.eq.s32.totalorder %s15, 1
      %p59 = por %p57, %p58
      %p60 = scmp.ne.s32.totalorder %s49, %s50
      %p61 = scmp.eq.s32.totalorder %s15, 0
      %p62 = por %p60, %p61
      %p63 = scmp.ne.s32.totalorder %s49, %s50
      %p64 = scmp.eq.s32.totalorder %s16, 1
      %p65 = por %p63, %p64
      %p67 = scmp.ne.s32.totalorder %s50, %s66
      %p68 = scmp.eq.s32.totalorder %s16, 0
      %p69 = por %p67, %p68
      %s71 = sadd.s32 %s70, 1
      %p74 = scmp.eq.s32.totalorder %s10, 1
      %p75 = scmp.ne.s32.totalorder %s70, %s72
      %p76 = scmp.eq.s32.totalorder %s10, 0
      %p77 = por %p75, %p76
      %p78 = scmp.ne.s32.totalorder %s70, %s72
      %p79 = scmp.eq.s32.totalorder %s15, 1
      %p80 = por %p78, %p79
      %p81 = scmp.ne.s32.totalorder %s72, %s73
      %p82 = scmp.eq.s32.totalorder %s15, 0
      %p83 = por %p81, %p82
      %p84 = scmp.ne.s32.totalorder %s72, %s73
      %p85 = scmp.eq.s32.totalorder %s16, 1
      %p86 = por %p84, %p85
      %p88 = scmp.ne.s32.totalorder %s73, %s87
      %p89 = scmp.eq.s32.totalorder %s16, 0
      %p90 = por %p88, %p89
      %s92 = sadd.s32 %s91, 1
      %p95 = scmp.eq.s32.totalorder %s10, 1
      %p96 = scmp.ne.s32.totalorder %s91, %s93
      %p97 = scmp.eq.s32.totalorder %s10, 0
      %p98 = por %p96, %p97
      %p99 = scmp.ne.s32.totalorder %s91, %s93
      %p100 = scmp.eq.s32.totalorder %s15, 1
      %p101 = por %p99, %p100
      %p102 = scmp.ne.s32.totalorder %s93, %s94
      %p103 = scmp.eq.s32.totalorder %s15, 0
      %p104 = por %p102, %p103
      %p105 = scmp.ne.s32.totalorder %s93, %s94
      %p106 = scmp.eq.s32.totalorder %s16, 1
      %p107 = por %p105, %p106
      %p109 = scmp.ne.s32.totalorder %s94, %s108
      %p110 = scmp.eq.s32.totalorder %s16, 0
      %p111 = por %p109, %p110
      %s112 = ssub.s32 %s10, %s17
      %p113 = scmp.eq.s32.totalorder %s112, 0
      %s115 = sadd.s32 %s114, 1
      %s116 = scalar_select %p113, %s114, %s115
      %p119 = pneg %p113
      %p120 = scmp.eq.s32.totalorder %s10, 1
      %p121 = por %p119, %p120
      %p122 = scmp.ne.s32.totalorder %s114, %s117
      %p123 = scmp.eq.s32.totalorder %s10, 0
      %p124 = por %p122, %p123
      %p125 = scmp.ne.s32.totalorder %s114, %s117
      %p126 = scmp.eq.s32.totalorder %s15, 1
      %p127 = por %p125, %p126
      %p128 = scmp.ne.s32.totalorder %s117, %s118
      %p129 = scmp.eq.s32.totalorder %s15, 0
      %p130 = por %p128, %p129
      %p131 = scmp.ne.s32.totalorder %s117, %s118
      %p132 = scmp.eq.s32.totalorder %s16, 1
      %p133 = por %p131, %p132
      %p135 = scmp.ne.s32.totalorder %s118, %s134
      %p136 = scmp.eq.s32.totalorder %s16, 0
      %p137 = por %p135, %p136
      %p138 = scmp.le.s32.totalorder 1, %s10
      %p139 = scmp.lt.s32.totalorder %s10, 3
      %p140 = pnand %p138, %p139
      %p141 = pneg %p140
      // Predicated region
      $region9: #{net_conpu_v7_forward.7} parent=5 // pred_check
        _
      $region10: #{net_conpu_v7_forward.7} parent=5 // pred_check_branch
        %143 = sbr.rel (%p140) target = $region12
      $region11: #{net_conpu_v7_forward.7} parent=5 // pred_region
        %s144 = ssub.s32 %s10, 1
        // Predicated region
        $region13: #{net_conpu_v7_forward.7} parent=11 // pred_check
          %p145 = pneg %p83
        $region14: #{net_conpu_v7_forward.7} parent=11 // pred_check_branch
          %147 = sbr.rel (%p145) target = $region16
        $region15: #{net_conpu_v7_forward.7} parent=11 // pred_region
          _
        $region16: #{net_conpu_v7_forward.7} parent=11 // pred_fallthru
          _
        // Predicated region
        $region17: #{net_conpu_v7_forward.7} parent=11 // pred_check
          %p148 = pneg %p104
        $region18: #{net_conpu_v7_forward.7} parent=11 // pred_check_branch
          %150 = sbr.rel (%p148) target = $region20
        $region19: #{net_conpu_v7_forward.7} parent=11 // pred_region
          _
        $region20: #{net_conpu_v7_forward.7} parent=11 // pred_fallthru
          _
      $region12: #{net_conpu_v7_forward.7} parent=5 // pred_fallthru
        _
      %p151 = scmp.lt.s32.totalorder %s10, 2
      // Predicated region
      $region21: #{net_conpu_v7_forward.7} parent=5 // pred_check
        %p152 = pneg %p151
      $region22: #{net_conpu_v7_forward.7} parent=5 // pred_check_branch
        %154 = sbr.rel (%p152) target = $region24
      $region23: #{net_conpu_v7_forward.7} parent=5 // pred_region
        // Predicated region
        $region25: #{net_conpu_v7_forward.7} parent=23 // pred_check
          %p155 = pneg %p30
        $region26: #{net_conpu_v7_forward.7} parent=23 // pred_check_branch
          %157 = sbr.rel (%p155) target = $region28
        $region27: #{net_conpu_v7_forward.7} parent=23 // pred_region
          %s158 = sand.u32 %s20, 1
          %s159 = sand.u32 %s20, 1
          %s160 = smul.addr %s159, 256
          %s161 = scalar_lea.vmem [#allocation2], %s160
          %s162 = smul.u32 16, %s10
          %s163 = smul.addr %s162, 4
          %s164 = scalar_lea.vmem %s0, %s163
          // Predicated region
          $region29: #{net_conpu_v7_forward.7} parent=27 // pred_check
            _
          $region30: #{net_conpu_v7_forward.7} parent=27 // pred_check_branch
            %166 = sbr.rel (0) target = $region32
          $region31: #{net_conpu_v7_forward.7} parent=27 // pred_region
            // Predicated region
            $region33: #{net_conpu_v7_forward.7} parent=31 // pred_check
              _
            $region34: #{net_conpu_v7_forward.7} parent=31 // pred_check_branch
              %168 = sbr.rel target = $region36
            $region35: #{net_conpu_v7_forward.7} parent=31 // pred_region
              // Predicated region
              $region48: #{net_conpu_v7_forward.7} parent=35 // pred_check
                _
              $region49: #{net_conpu_v7_forward.7} parent=35 // pred_check_branch
                %309 = sbr.rel (0) target = $region51
              $region50: #{net_conpu_v7_forward.7} parent=35 // pred_region
                loop: start=0, step=1, limit=1
                $region52: #{net_conpu_v7_forward.7} parent=50 // loop_pre_header
                  _
                $region53: #{net_conpu_v7_forward.7} parent=50 // loop_header
                  %s311 = sphi 0, %s315
                  %p312 = scmp.ge.s32.totalorder %s311, 1
                  %s316 = sphi %s164, %s164
                  %s317 = sphi %s161, %s161
                $region54: #{net_conpu_v7_forward.7} parent=50 // loop_header_branch
                  %314 = sbr.rel (%p312) target = $region58
                $region55: #{net_conpu_v7_forward.7} parent=50 // loop_body
                  _
                $region56: #{net_conpu_v7_forward.7} parent=50 // loop_footer
                  %s315 = sadd.s32 1, %s311
                $region57: #{net_conpu_v7_forward.7} parent=50 // loop_footer_branch
                  %310 = sbr.rel target = $region53
                $region58: #{net_conpu_v7_forward.7} parent=50 // loop_exit
                  _
                loop: start=0, step=1, limit=1
                $region59: #{net_conpu_v7_forward.7} parent=50 // loop_pre_header
                  _
                $region60: #{net_conpu_v7_forward.7} parent=50 // loop_header
                  %s320 = sphi 0, %s324
                  %p321 = scmp.ge.s32.totalorder %s320, 1
                  %s325 = sphi %s164, %s164
                  %s326 = sphi %s161, %s161
                $region61: #{net_conpu_v7_forward.7} parent=50 // loop_header_branch
                  %323 = sbr.rel (%p321) target = $region65
                $region62: #{net_conpu_v7_forward.7} parent=50 // loop_body
                  %v327 = vld [vmem:[%s325] sm:$0xf]
                  %328 = vst [vmem:[%s326] sm:$0xf] %v327
                  %v329 = vld [vmem:[%s325 + $0x4] sm:$0xf]
                  %330 = vst [vmem:[%s326 + $0x4] sm:$0xf] %v329
                  %v331 = vld [vmem:[%s325 + $0x8] sm:$0xf]
                  %332 = vst [vmem:[%s326 + $0x8] sm:$0xf] %v331
                  %v333 = vld [vmem:[%s325 + $0xc] sm:$0xf]
                  %334 = vst [vmem:[%s326 + $0xc] sm:$0xf] %v333
                  %v335 = vld [vmem:[%s325 + $0x10] sm:$0xf]
                  %336 = vst [vmem:[%s326 + $0x10] sm:$0xf] %v335
                  %v337 = vld [vmem:[%s325 + $0x14] sm:$0xf]
                  %338 = vst [vmem:[%s326 + $0x14] sm:$0xf] %v337
                  %v339 = vld [vmem:[%s325 + $0x18] sm:$0xf]
                  %340 = vst [vmem:[%s326 + $0x18] sm:$0xf] %v339
                  %v341 = vld [vmem:[%s325 + $0x1c] sm:$0xf]
                  %342 = vst [vmem:[%s326 + $0x1c] sm:$0xf] %v341
                  %v343 = vld [vmem:[%s325 + $0x20] sm:$0xf]
                  %344 = vst [vmem:[%s326 + $0x20] sm:$0xf] %v343
                  %v345 = vld [vmem:[%s325 + $0x24] sm:$0xf]
                  %346 = vst [vmem:[%s326 + $0x24] sm:$0xf] %v345
                  %v347 = vld [vmem:[%s325 + $0x28] sm:$0xf]
                  %348 = vst [vmem:[%s326 + $0x28] sm:$0xf] %v347
                  %v349 = vld [vmem:[%s325 + $0x2c] sm:$0xf]
                  %350 = vst [vmem:[%s326 + $0x2c] sm:$0xf] %v349
                  %v351 = vld [vmem:[%s325 + $0x30] sm:$0xf]
                  %352 = vst [vmem:[%s326 + $0x30] sm:$0xf] %v351
                  %v353 = vld [vmem:[%s325 + $0x34] sm:$0xf]
                  %354 = vst [vmem:[%s326 + $0x34] sm:$0xf] %v353
                  %v355 = vld [vmem:[%s325 + $0x38] sm:$0xf]
                  %356 = vst [vmem:[%s326 + $0x38] sm:$0xf] %v355
                  %v357 = vld [vmem:[%s325 + $0x3c] sm:$0xf]
                  %358 = vst [vmem:[%s326 + $0x3c] sm:$0xf] %v357
                  %v359 = vld [vmem:[%s325 + $0x80] sm:$0xf]
                  %360 = vst [vmem:[%s326 + $0x40] sm:$0xf] %v359
                  %v361 = vld [vmem:[%s325 + $0x84] sm:$0xf]
                  %362 = vst [vmem:[%s326 + $0x44] sm:$0xf] %v361
                  %v363 = vld [vmem:[%s325 + $0x88] sm:$0xf]
                  %364 = vst [vmem:[%s326 + $0x48] sm:$0xf] %v363
                  %v365 = vld [vmem:[%s325 + $0x8c] sm:$0xf]
                  %366 = vst [vmem:[%s326 + $0x4c] sm:$0xf] %v365
                  %v367 = vld [vmem:[%s325 + $0x90] sm:$0xf]
                  %368 = vst [vmem:[%s326 + $0x50] sm:$0xf] %v367
                  %v369 = vld [vmem:[%s325 + $0x94] sm:$0xf]
                  %370 = vst [vmem:[%s326 + $0x54] sm:$0xf] %v369
                  %v371 = vld [vmem:[%s325 + $0x98] sm:$0xf]
                  %372 = vst [vmem:[%s326 + $0x58] sm:$0xf] %v371
                  %v373 = vld [vmem:[%s325 + $0x9c] sm:$0xf]
                  %374 = vst [vmem:[%s326 + $0x5c] sm:$0xf] %v373
                  %v375 = vld [vmem:[%s325 + $0xa0] sm:$0xf]
                  %376 = vst [vmem:[%s326 + $0x60] sm:$0xf] %v375
                  %v377 = vld [vmem:[%s325 + $0xa4] sm:$0xf]
                  %378 = vst [vmem:[%s326 + $0x64] sm:$0xf] %v377
                  %v379 = vld [vmem:[%s325 + $0xa8] sm:$0xf]
                  %380 = vst [vmem:[%s326 + $0x68] sm:$0xf] %v379
                  %v381 = vld [vmem:[%s325 + $0xac] sm:$0xf]
                  %382 = vst [vmem:[%s326 + $0x6c] sm:$0xf] %v381
                  %v383 = vld [vmem:[%s325 + $0xb0] sm:$0xf]
                  %384 = vst [vmem:[%s326 + $0x70] sm:$0xf] %v383
                  %v385 = vld [vmem:[%s325 + $0xb4] sm:$0xf]
                  %386 = vst [vmem:[%s326 + $0x74] sm:$0xf] %v385
                  %v387 = vld [vmem:[%s325 + $0xb8] sm:$0xf]
                  %388 = vst [vmem:[%s326 + $0x78] sm:$0xf] %v387
                  %v389 = vld [vmem:[%s325 + $0xbc] sm:$0xf]
                  %390 = vst [vmem:[%s326 + $0x7c] sm:$0xf] %v389
                  %v391 = vld [vmem:[%s325 + $0x100] sm:$0xf]
                  %392 = vst [vmem:[%s326 + $0x80] sm:$0xf] %v391
                  %v393 = vld [vmem:[%s325 + $0x104] sm:$0xf]
                  %394 = vst [vmem:[%s326 + $0x84] sm:$0xf] %v393
                  %v395 = vld [vmem:[%s325 + $0x108] sm:$0xf]
                  %396 = vst [vmem:[%s326 + $0x88] sm:$0xf] %v395
                  %v397 = vld [vmem:[%s325 + $0x10c] sm:$0xf]
                  %398 = vst [vmem:[%s326 + $0x8c] sm:$0xf] %v397
                  %v399 = vld [vmem:[%s325 + $0x110] sm:$0xf]
                  %400 = vst [vmem:[%s326 + $0x90] sm:$0xf] %v399
                  %v401 = vld [vmem:[%s325 + $0x114] sm:$0xf]
                  %402 = vst [vmem:[%s326 + $0x94] sm:$0xf] %v401
                  %v403 = vld [vmem:[%s325 + $0x118] sm:$0xf]
                  %404 = vst [vmem:[%s326 + $0x98] sm:$0xf] %v403
                  %v405 = vld [vmem:[%s325 + $0x11c] sm:$0xf]
                  %406 = vst [vmem:[%s326 + $0x9c] sm:$0xf] %v405
                  %v407 = vld [vmem:[%s325 + $0x120] sm:$0xf]
                  %408 = vst [vmem:[%s326 + $0xa0] sm:$0xf] %v407
                  %v409 = vld [vmem:[%s325 + $0x124] sm:$0xf]
                  %410 = vst [vmem:[%s326 + $0xa4] sm:$0xf] %v409
                  %v411 = vld [vmem:[%s325 + $0x128] sm:$0xf]
                  %412 = vst [vmem:[%s326 + $0xa8] sm:$0xf] %v411
                  %v413 = vld [vmem:[%s325 + $0x12c] sm:$0xf]
                  %414 = vst [vmem:[%s326 + $0xac] sm:$0xf] %v413
                  %v415 = vld [vmem:[%s325 + $0x130] sm:$0xf]
                  %416 = vst [vmem:[%s326 + $0xb0] sm:$0xf] %v415
                  %v417 = vld [vmem:[%s325 + $0x134] sm:$0xf]
                  %418 = vst [vmem:[%s326 + $0xb4] sm:$0xf] %v417
                  %v419 = vld [vmem:[%s325 + $0x138] sm:$0xf]
                  %420 = vst [vmem:[%s326 + $0xb8] sm:$0xf] %v419
                  %v421 = vld [vmem:[%s325 + $0x13c] sm:$0xf]
                  %422 = vst [vmem:[%s326 + $0xbc] sm:$0xf] %v421
                  %v423 = vld [vmem:[%s325 + $0x180] sm:$0xf]
                  %424 = vst [vmem:[%s326 + $0xc0] sm:$0xf] %v423
                  %v425 = vld [vmem:[%s325 + $0x184] sm:$0xf]
                  %426 = vst [vmem:[%s326 + $0xc4] sm:$0xf] %v425
                  %v427 = vld [vmem:[%s325 + $0x188] sm:$0xf]
                  %428 = vst [vmem:[%s326 + $0xc8] sm:$0xf] %v427
                  %v429 = vld [vmem:[%s325 + $0x18c] sm:$0xf]
                  %430 = vst [vmem:[%s326 + $0xcc] sm:$0xf] %v429
                  %v431 = vld [vmem:[%s325 + $0x190] sm:$0xf]
                  %432 = vst [vmem:[%s326 + $0xd0] sm:$0xf] %v431
                  %v433 = vld [vmem:[%s325 + $0x194] sm:$0xf]
                  %434 = vst [vmem:[%s326 + $0xd4] sm:$0xf] %v433
                  %v435 = vld [vmem:[%s325 + $0x198] sm:$0xf]
                  %436 = vst [vmem:[%s326 + $0xd8] sm:$0xf] %v435
                  %v437 = vld [vmem:[%s325 + $0x19c] sm:$0xf]
                  %438 = vst [vmem:[%s326 + $0xdc] sm:$0xf] %v437
                  %v439 = vld [vmem:[%s325 + $0x1a0] sm:$0xf]
                  %440 = vst [vmem:[%s326 + $0xe0] sm:$0xf] %v439
                  %v441 = vld [vmem:[%s325 + $0x1a4] sm:$0xf]
                  %442 = vst [vmem:[%s326 + $0xe4] sm:$0xf] %v441
                  %v443 = vld [vmem:[%s325 + $0x1a8] sm:$0xf]
                  %444 = vst [vmem:[%s326 + $0xe8] sm:$0xf] %v443
                  %v445 = vld [vmem:[%s325 + $0x1ac] sm:$0xf]
                  %446 = vst [vmem:[%s326 + $0xec] sm:$0xf] %v445
                  %v447 = vld [vmem:[%s325 + $0x1b0] sm:$0xf]
                  %448 = vst [vmem:[%s326 + $0xf0] sm:$0xf] %v447
                  %v449 = vld [vmem:[%s325 + $0x1b4] sm:$0xf]
                  %450 = vst [vmem:[%s326 + $0xf4] sm:$0xf] %v449
                  %v451 = vld [vmem:[%s325 + $0x1b8] sm:$0xf]
                  %452 = vst [vmem:[%s326 + $0xf8] sm:$0xf] %v451
                  %v453 = vld [vmem:[%s325 + $0x1bc] sm:$0xf]
                  %454 = vst [vmem:[%s326 + $0xfc] sm:$0xf] %v453
                $region63: #{net_conpu_v7_forward.7} parent=50 // loop_footer
                  %s324 = sadd.s32 1, %s320
                $region64: #{net_conpu_v7_forward.7} parent=50 // loop_footer_branch
                  %319 = sbr.rel target = $region60
                $region65: #{net_conpu_v7_forward.7} parent=50 // loop_exit
                  _
              $region51: #{net_conpu_v7_forward.7} parent=35 // pred_fallthru
                _
            $region36: #{net_conpu_v7_forward.7} parent=31 // pred_fallthru
              _
            // Predicated region
            $region37: #{net_conpu_v7_forward.7} parent=31 // pred_check
              _
            $region38: #{net_conpu_v7_forward.7} parent=31 // pred_check_branch
              %170 = sbr.rel (0) target = $region40
            $region39: #{net_conpu_v7_forward.7} parent=31 // pred_region
              loop: start=0, step=1, limit=1
              $region41: #{net_conpu_v7_forward.7} parent=39 // loop_pre_header
                _
              $region42: #{net_conpu_v7_forward.7} parent=39 // loop_header
                %s173 = sphi 0, %s177
                %p174 = scmp.ge.s32.totalorder %s173, 1
                %s178 = sphi %s164, %s164
                %s179 = sphi %s161, %s161
              $region43: #{net_conpu_v7_forward.7} parent=39 // loop_header_branch
                %176 = sbr.rel (%p174) target = $region47
              $region44: #{net_conpu_v7_forward.7} parent=39 // loop_body
                %v180 = vld [vmem:[%s178] sm:$0xf]
                %181 = vst [vmem:[%s179] sm:$0xf] %v180
                %v182 = vld [vmem:[%s178 + $0x4] sm:$0xf]
                %183 = vst [vmem:[%s179 + $0x4] sm:$0xf] %v182
                %v184 = vld [vmem:[%s178 + $0x8] sm:$0xf]
                %185 = vst [vmem:[%s179 + $0x8] sm:$0xf] %v184
                %v186 = vld [vmem:[%s178 + $0xc] sm:$0xf]
                %187 = vst [vmem:[%s179 + $0xc] sm:$0xf] %v186
                %v188 = vld [vmem:[%s178 + $0x10] sm:$0xf]
                %189 = vst [vmem:[%s179 + $0x10] sm:$0xf] %v188
                %v190 = vld [vmem:[%s178 + $0x14] sm:$0xf]
                %191 = vst [vmem:[%s179 + $0x14] sm:$0xf] %v190
                %v192 = vld [vmem:[%s178 + $0x18] sm:$0xf]
                %193 = vst [vmem:[%s179 + $0x18] sm:$0xf] %v192
                %v194 = vld [vmem:[%s178 + $0x1c] sm:$0xf]
                %195 = vst [vmem:[%s179 + $0x1c] sm:$0xf] %v194
                %v196 = vld [vmem:[%s178 + $0x20] sm:$0xf]
                %197 = vst [vmem:[%s179 + $0x20] sm:$0xf] %v196
                %v198 = vld [vmem:[%s178 + $0x24] sm:$0xf]
                %199 = vst [vmem:[%s179 + $0x24] sm:$0xf] %v198
                %v200 = vld [vmem:[%s178 + $0x28] sm:$0xf]
                %201 = vst [vmem:[%s179 + $0x28] sm:$0xf] %v200
                %v202 = vld [vmem:[%s178 + $0x2c] sm:$0xf]
                %203 = vst [vmem:[%s179 + $0x2c] sm:$0xf] %v202
                %v204 = vld [vmem:[%s178 + $0x30] sm:$0xf]
                %205 = vst [vmem:[%s179 + $0x30] sm:$0xf] %v204
                %v206 = vld [vmem:[%s178 + $0x34] sm:$0xf]
                %207 = vst [vmem:[%s179 + $0x34] sm:$0xf] %v206
                %v208 = vld [vmem:[%s178 + $0x38] sm:$0xf]
                %209 = vst [vmem:[%s179 + $0x38] sm:$0xf] %v208
                %v210 = vld [vmem:[%s178 + $0x3c] sm:$0xf]
                %211 = vst [vmem:[%s179 + $0x3c] sm:$0xf] %v210
                %v212 = vld [vmem:[%s178 + $0x80] sm:$0xf]
                %213 = vst [vmem:[%s179 + $0x40] sm:$0xf] %v212
                %v214 = vld [vmem:[%s178 + $0x84] sm:$0xf]
                %215 = vst [vmem:[%s179 + $0x44] sm:$0xf] %v214
                %v216 = vld [vmem:[%s178 + $0x88] sm:$0xf]
                %217 = vst [vmem:[%s179 + $0x48] sm:$0xf] %v216
                %v218 = vld [vmem:[%s178 + $0x8c] sm:$0xf]
                %219 = vst [vmem:[%s179 + $0x4c] sm:$0xf] %v218
                %v220 = vld [vmem:[%s178 + $0x90] sm:$0xf]
                %221 = vst [vmem:[%s179 + $0x50] sm:$0xf] %v220
                %v222 = vld [vmem:[%s178 + $0x94] sm:$0xf]
                %223 = vst [vmem:[%s179 + $0x54] sm:$0xf] %v222
                %v224 = vld [vmem:[%s178 + $0x98] sm:$0xf]
                %225 = vst [vmem:[%s179 + $0x58] sm:$0xf] %v224
                %v226 = vld [vmem:[%s178 + $0x9c] sm:$0xf]
                %227 = vst [vmem:[%s179 + $0x5c] sm:$0xf] %v226
                %v228 = vld [vmem:[%s178 + $0xa0] sm:$0xf]
                %229 = vst [vmem:[%s179 + $0x60] sm:$0xf] %v228
                %v230 = vld [vmem:[%s178 + $0xa4] sm:$0xf]
                %231 = vst [vmem:[%s179 + $0x64] sm:$0xf] %v230
                %v232 = vld [vmem:[%s178 + $0xa8] sm:$0xf]
                %233 = vst [vmem:[%s179 + $0x68] sm:$0xf] %v232
                %v234 = vld [vmem:[%s178 + $0xac] sm:$0xf]
                %235 = vst [vmem:[%s179 + $0x6c] sm:$0xf] %v234
                %v236 = vld [vmem:[%s178 + $0xb0] sm:$0xf]
                %237 = vst [vmem:[%s179 + $0x70] sm:$0xf] %v236
                %v238 = vld [vmem:[%s178 + $0xb4] sm:$0xf]
                %239 = vst [vmem:[%s179 + $0x74] sm:$0xf] %v238
                %v240 = vld [vmem:[%s178 + $0xb8] sm:$0xf]
                %241 = vst [vmem:[%s179 + $0x78] sm:$0xf] %v240
                %v242 = vld [vmem:[%s178 + $0xbc] sm:$0xf]
                %243 = vst [vmem:[%s179 + $0x7c] sm:$0xf] %v242
                %v244 = vld [vmem:[%s178 + $0x100] sm:$0xf]
                %245 = vst [vmem:[%s179 + $0x80] sm:$0xf] %v244
                %v246 = vld [vmem:[%s178 + $0x104] sm:$0xf]
                %247 = vst [vmem:[%s179 + $0x84] sm:$0xf] %v246
                %v248 = vld [vmem:[%s178 + $0x108] sm:$0xf]
                %249 = vst [vmem:[%s179 + $0x88] sm:$0xf] %v248
                %v250 = vld [vmem:[%s178 + $0x10c] sm:$0xf]
                %251 = vst [vmem:[%s179 + $0x8c] sm:$0xf] %v250
                %v252 = vld [vmem:[%s178 + $0x110] sm:$0xf]
                %253 = vst [vmem:[%s179 + $0x90] sm:$0xf] %v252
                %v254 = vld [vmem:[%s178 + $0x114] sm:$0xf]
                %255 = vst [vmem:[%s179 + $0x94] sm:$0xf] %v254
                %v256 = vld [vmem:[%s178 + $0x118] sm:$0xf]
                %257 = vst [vmem:[%s179 + $0x98] sm:$0xf] %v256
                %v258 = vld [vmem:[%s178 + $0x11c] sm:$0xf]
                %259 = vst [vmem:[%s179 + $0x9c] sm:$0xf] %v258
                %v260 = vld [vmem:[%s178 + $0x120] sm:$0xf]
                %261 = vst [vmem:[%s179 + $0xa0] sm:$0xf] %v260
                %v262 = vld [vmem:[%s178 + $0x124] sm:$0xf]
                %263 = vst [vmem:[%s179 + $0xa4] sm:$0xf] %v262
                %v264 = vld [vmem:[%s178 + $0x128] sm:$0xf]
                %265 = vst [vmem:[%s179 + $0xa8] sm:$0xf] %v264
                %v266 = vld [vmem:[%s178 + $0x12c] sm:$0xf]
                %267 = vst [vmem:[%s179 + $0xac] sm:$0xf] %v266
                %v268 = vld [vmem:[%s178 + $0x130] sm:$0xf]
                %269 = vst [vmem:[%s179 + $0xb0] sm:$0xf] %v268
                %v270 = vld [vmem:[%s178 + $0x134] sm:$0xf]
                %271 = vst [vmem:[%s179 + $0xb4] sm:$0xf] %v270
                %v272 = vld [vmem:[%s178 + $0x138] sm:$0xf]
                %273 = vst [vmem:[%s179 + $0xb8] sm:$0xf] %v272
                %v274 = vld [vmem:[%s178 + $0x13c] sm:$0xf]
                %275 = vst [vmem:[%s179 + $0xbc] sm:$0xf] %v274
                %v276 = vld [vmem:[%s178 + $0x180] sm:$0xf]
                %277 = vst [vmem:[%s179 + $0xc0] sm:$0xf] %v276
                %v278 = vld [vmem:[%s178 + $0x184] sm:$0xf]
                %279 = vst [vmem:[%s179 + $0xc4] sm:$0xf] %v278
                %v280 = vld [vmem:[%s178 + $0x188] sm:$0xf]
                %281 = vst [vmem:[%s179 + $0xc8] sm:$0xf] %v280
                %v282 = vld [vmem:[%s178 + $0x18c] sm:$0xf]
                %283 = vst [vmem:[%s179 + $0xcc] sm:$0xf] %v282
                %v284 = vld [vmem:[%s178 + $0x190] sm:$0xf]
                %285 = vst [vmem:[%s179 + $0xd0] sm:$0xf] %v284
                %v286 = vld [vmem:[%s178 + $0x194] sm:$0xf]
                %287 = vst [vmem:[%s179 + $0xd4] sm:$0xf] %v286
                %v288 = vld [vmem:[%s178 + $0x198] sm:$0xf]
                %289 = vst [vmem:[%s179 + $0xd8] sm:$0xf] %v288
                %v290 = vld [vmem:[%s178 + $0x19c] sm:$0xf]
                %291 = vst [vmem:[%s179 + $0xdc] sm:$0xf] %v290
                %v292 = vld [vmem:[%s178 + $0x1a0] sm:$0xf]
                %293 = vst [vmem:[%s179 + $0xe0] sm:$0xf] %v292
                %v294 = vld [vmem:[%s178 + $0x1a4] sm:$0xf]
                %295 = vst [vmem:[%s179 + $0xe4] sm:$0xf] %v294
                %v296 = vld [vmem:[%s178 + $0x1a8] sm:$0xf]
                %297 = vst [vmem:[%s179 + $0xe8] sm:$0xf] %v296
                %v298 = vld [vmem:[%s178 + $0x1ac] sm:$0xf]
                %299 = vst [vmem:[%s179 + $0xec] sm:$0xf] %v298
                %v300 = vld [vmem:[%s178 + $0x1b0] sm:$0xf]
                %301 = vst [vmem:[%s179 + $0xf0] sm:$0xf] %v300
                %v302 = vld [vmem:[%s178 + $0x1b4] sm:$0xf]
                %303 = vst [vmem:[%s179 + $0xf4] sm:$0xf] %v302
                %v304 = vld [vmem:[%s178 + $0x1b8] sm:$0xf]
                %305 = vst [vmem:[%s179 + $0xf8] sm:$0xf] %v304
                %v306 = vld [vmem:[%s178 + $0x1bc] sm:$0xf]
                %307 = vst [vmem:[%s179 + $0xfc] sm:$0xf] %v306
              $region45: #{net_conpu_v7_forward.7} parent=39 // loop_footer
                %s177 = sadd.s32 1, %s173
              $region46: #{net_conpu_v7_forward.7} parent=39 // loop_footer_branch
                %172 = sbr.rel target = $region42
              $region47: #{net_conpu_v7_forward.7} parent=39 // loop_exit
                _
            $region40: #{net_conpu_v7_forward.7} parent=31 // pred_fallthru
              _
          $region32: #{net_conpu_v7_forward.7} parent=27 // pred_fallthru
            _
          %455 = vnop
        $region28: #{net_conpu_v7_forward.7} parent=23 // pred_fallthru
          _
        // Predicated region
        $region66: #{net_conpu_v7_forward.7} parent=23 // pred_check
          %p456 = pneg %p56
        $region67: #{net_conpu_v7_forward.7} parent=23 // pred_check_branch
          %458 = sbr.rel (%p456) target = $region69
        $region68: #{net_conpu_v7_forward.7} parent=23 // pred_region
          %s459 = smul.u32 16, %s10
          %p460 = scmp.lt.s32.totalorder %s459, 31
          %s461 = scalar_select %p460, %s459, 31
          %s462 = smul.addr %s461, 4
          %s463 = scalar_lea.vmem %s1, %s462
          %s464 = smul.u32 16, %s10
        $region69: #{net_conpu_v7_forward.7} parent=23 // pred_fallthru
          _
      $region24: #{net_conpu_v7_forward.7} parent=5 // pred_fallthru
        _
      %p465 = scmp.le.s32.totalorder 1, %s10
      %p466 = scmp.lt.s32.totalorder %s10, 3
      %p467 = pnand %p465, %p466
      %p468 = pneg %p467
      // Predicated region
      $region70: #{net_conpu_v7_forward.7} parent=5 // pred_check
        _
      $region71: #{net_conpu_v7_forward.7} parent=5 // pred_check_branch
        %470 = sbr.rel (%p467) target = $region73
      $region72: #{net_conpu_v7_forward.7} parent=5 // pred_region
        %s471 = ssub.s32 %s10, 1
        %s472 = sand.u32 %s23, 1
        %s473 = sand.u32 %s23, 1
        %s474 = smul.addr %s473, 256
        %s475 = scalar_lea.vmem [#allocation2], %s474
        // Predicated region
        $region74: #{net_conpu_v7_forward.7} parent=72 // pred_check
          %p476 = pneg %p36
        $region75: #{net_conpu_v7_forward.7} parent=72 // pred_check_branch
          %478 = sbr.rel (%p476) target = $region77
        $region76: #{net_conpu_v7_forward.7} parent=72 // pred_region
          _
        $region77: #{net_conpu_v7_forward.7} parent=72 // pred_fallthru
          _
        %s479 = sand.u32 %s23, 1
        %s480 = sand.u32 %s23, 1
        %s481 = smul.addr %s480, 256
        %s482 = scalar_lea.vmem [#allocation2], %s481
        %p483 = pneg %p36
        %p484 = pneg %p33
        %s485 = smul.u32 16, %s15
        %p486 = scmp.lt.s32.totalorder %s485, 31
        %s487 = scalar_select %p486, %s485, 31
        %s488 = smul.addr %s487, 4
        %s489 = scalar_lea.vmem %s1, %s488
        %p490 = pneg %p62
        %p491 = pneg %p59
        %p492 = pneg %p83
        %p493 = pneg %p80
        %p494 = pneg %p104
        %p495 = pneg %p101
        %p496 = pneg %p130
        %p497 = pneg %p127
        %s498 = smul.u32 16, %s15
        %p499 = scmp.lt.s32.totalorder %s498, 31
        %s500 = scalar_select %p499, %s498, 31
        %s501 = smul.addr %s500, 8
        %s502 = scalar_lea.vmem %s4, %s501
        %s503 = smul.u32 16, %s15
        %s504 = smul.u32 16, %s15
        %p505 = scmp.lt.s32.totalorder %s504, 31
        %s506 = scalar_select %p505, %s504, 31
        %s507 = smul.addr %s506, 4
        %s508 = scalar_lea.vmem %s1, %s507
        %s509 = smul.u32 16, %s15
        %s510 = smul.u32 16, %s15
        %p511 = scmp.lt.s32.totalorder %s510, 31
        %s512 = scalar_select %p511, %s510, 31
        %s513 = smul.addr %s512, 8
        %s514 = scalar_lea.vmem %s4, %s513
        %s515 = smul.u32 16, %s15
        %v517 = vld [vmem:[%s508] sm:$0xf]
        %v518 = vld [vmem:[%s508 + $0x4] sm:$0xf]
        %v519 = vld [vmem:[%s508 + $0x8] sm:$0xf]
        %v520 = vld [vmem:[%s508 + $0xc] sm:$0xf]
        %v521 = vld [vmem:[%s508 + $0x10] sm:$0xf]
        %v522 = vld [vmem:[%s508 + $0x14] sm:$0xf]
        %v523 = vld [vmem:[%s508 + $0x18] sm:$0xf]
        %v524 = vld [vmem:[%s508 + $0x1c] sm:$0xf]
        %v525 = vld [vmem:[%s508 + $0x20] sm:$0xf]
        %v526 = vld [vmem:[%s508 + $0x24] sm:$0xf]
        %v527 = vld [vmem:[%s508 + $0x28] sm:$0xf]
        %v528 = vld [vmem:[%s508 + $0x2c] sm:$0xf]
        %v529 = vld [vmem:[%s508 + $0x30] sm:$0xf]
        %v530 = vld [vmem:[%s508 + $0x34] sm:$0xf]
        %v531 = vld [vmem:[%s508 + $0x38] sm:$0xf]
        %v532 = vld [vmem:[%s508 + $0x3c] sm:$0xf]
        %v533 = vld [vmem:[%s3] sm:$0xf]
        %v534 = vld [vmem:[%s3 + $0x4] sm:$0xf]
        %v535 = vld [vmem:[%s3 + $0x8] sm:$0xf]
        %v536 = vld [vmem:[%s3 + $0xc] sm:$0xf]
        %v537 = vld [vmem:[%s3 + $0x10] sm:$0xf]
        %v538 = vld [vmem:[%s3 + $0x14] sm:$0xf]
        %v539 = vld [vmem:[%s3 + $0x18] sm:$0xf]
        %v540 = vld [vmem:[%s3 + $0x1c] sm:$0xf]
        %v557 = vunpack.c.l.b16 %v517
        %v558 = vunpack.c.l.b16 %v518
        %v559 = vunpack.c.l.b16 %v519
        %v560 = vunpack.c.l.b16 %v520
        %v561 = vunpack.c.l.b16 %v521
        %v562 = vunpack.c.l.b16 %v522
        %v563 = vunpack.c.l.b16 %v523
        %v564 = vunpack.c.l.b16 %v524
        %v565 = vunpack.c.l.b16 %v525
        %v566 = vunpack.c.l.b16 %v526
        %v567 = vunpack.c.l.b16 %v527
        %v568 = vunpack.c.l.b16 %v528
        %v569 = vunpack.c.l.b16 %v529
        %v570 = vunpack.c.l.b16 %v530
        %v571 = vunpack.c.l.b16 %v531
        %v572 = vunpack.c.l.b16 %v532
        %v573 = vpack.c.b16 %v558, %v557
        %v574 = vpack.c.b16 %v560, %v559
        %v575 = vpack.c.b16 %v562, %v561
        %v576 = vpack.c.b16 %v564, %v563
        %v577 = vpack.c.b16 %v566, %v565
        %v578 = vpack.c.b16 %v568, %v567
        %v579 = vpack.c.b16 %v570, %v569
        %v580 = vpack.c.b16 %v572, %v571
        %v589 = vunpack.c.l.b16 %v533
        %v590 = vunpack.c.l.b16 %v534
        %v591 = vunpack.c.l.b16 %v535
        %v592 = vunpack.c.l.b16 %v536
        %v593 = vunpack.c.l.b16 %v537
        %v594 = vunpack.c.l.b16 %v538
        %v595 = vunpack.c.l.b16 %v539
        %v596 = vunpack.c.l.b16 %v540
        %v597 = vpack.c.b16 %v590, %v589
        %v598 = vpack.c.b16 %v592, %v591
        %v599 = vpack.c.b16 %v594, %v593
        %v600 = vpack.c.b16 %v596, %v595
        %vm605 = vcmask 523264
        %v607 = vsel %vm605, %v573, 0
        %v610 = vsel %vm605, %v574, 0
        %v613 = vsel %vm605, %v575, 0
        %v616 = vsel %vm605, %v576, 0
        %v619 = vsel %vm605, %v577, 0
        %v622 = vsel %vm605, %v578, 0
        %v625 = vsel %vm605, %v579, 0
        %v628 = vsel %vm605, %v580, 0
        %630 = vmatprep.subr.bf16.mxu0 0
        %631 = vmatpush1.bf16.msra.mxu0 %v597
        %632 = vmatprep.subr.bf16.mxu0 0
        %633 = vmatpush1.bf16.msra.mxu0 %v598
        %634 = vmatprep.subr.bf16.mxu0 0
        %635 = vmatpush1.bf16.msra.mxu0 %v599
        %636 = vmatprep.subr.bf16.mxu0 0
        %637 = vmatpush1.bf16.msra.mxu0 %v600
        %638 = vmatprep.subr.bf16.mxu0 0
        %639 = vmatpush1.bf16.msra.mxu0 0
        %640 = vmatprep.subr.bf16.mxu0 0
        %641 = vmatpush1.bf16.msra.mxu0 0
        %642 = vmatprep.subr.bf16.mxu0 0
        %643 = vmatpush1.bf16.msra.mxu0 0
        %644 = vmatprep.subr.bf16.mxu0 0
        %645 = vmatpush1.bf16.msra.mxu0 0
        %646 = vmatprep.subr.bf16.mxu0 0
        %647 = vmatpush1.bf16.msra.mxu0 0
        %648 = vmatprep.subr.bf16.mxu0 0
        %649 = vmatpush1.bf16.msra.mxu0 0
        %650 = vmatprep.subr.bf16.mxu0 0
        %651 = vmatpush1.bf16.msra.mxu0 0
        %652 = vmatprep.subr.bf16.mxu0 0
        %653 = vmatpush1.bf16.msra.mxu0 0
        %654 = vmatprep.subr.bf16.mxu0 0
        %655 = vmatpush1.bf16.msra.mxu0 0
        %656 = vmatprep.subr.bf16.mxu0 0
        %657 = vmatpush1.bf16.msra.mxu0 0
        %658 = vmatprep.subr.bf16.mxu0 0
        %659 = vmatpush1.bf16.msra.mxu0 0
        %660 = vmatprep.subr.bf16.mxu0 0
        %661 = vmatpush1.bf16.msra.mxu0 0
        %662 = vmatprep.mubr.bf16.mxu0 0
        %663 = vmatmul.mubr.bf16.gmra.mrb[0].mxu0 %v607
        %v664 = vpop.f32.mrb[0].mxu0
        %v665 = vadd.f32 0.0, %v664
        %v666 = vpop.f32.mrb[0].mxu0
        %v667 = vpop.f32.mrb[0].mxu0
        %v668 = vadd.f32 0.0, %v667
        %v669 = vpop.f32.mrb[0].mxu0
        %670 = vmatprep.mubr.bf16.mxu0 0
        %671 = vmatmul.mubr.bf16.gmra.mrb[0].mxu0 %v610
        %v672 = vpop.f32.mrb[0].mxu0
        %v673 = vadd.f32 0.0, %v672
        %v674 = vpop.f32.mrb[0].mxu0
        %v675 = vpop.f32.mrb[0].mxu0
        %v676 = vadd.f32 0.0, %v675
        %v677 = vpop.f32.mrb[0].mxu0
        %678 = vmatprep.mubr.bf16.mxu0 0
        %679 = vmatmul.mubr.bf16.gmra.mrb[0].mxu0 %v613
        %v680 = vpop.f32.mrb[0].mxu0
        %v681 = vadd.f32 0.0, %v680
        %v682 = vpop.f32.mrb[0].mxu0
        %v683 = vpop.f32.mrb[0].mxu0
        %v684 = vadd.f32 0.0, %v683
        %v685 = vpop.f32.mrb[0].mxu0
        %686 = vmatprep.mubr.bf16.mxu0 0
        %687 = vmatmul.mubr.bf16.gmra.mrb[0].mxu0 %v616
        %v688 = vpop.f32.mrb[0].mxu0
        %v689 = vadd.f32 0.0, %v688
        %v690 = vpop.f32.mrb[0].mxu0
        %v691 = vpop.f32.mrb[0].mxu0
        %v692 = vadd.f32 0.0, %v691
        %v693 = vpop.f32.mrb[0].mxu0
        %694 = vmatprep.mubr.bf16.mxu0 0
        %695 = vmatmul.mubr.bf16.gmra.mrb[0].mxu0 %v619
        %v696 = vpop.f32.mrb[0].mxu0
        %v697 = vadd.f32 0.0, %v696
        %v698 = vpop.f32.mrb[0].mxu0
        %v699 = vpop.f32.mrb[0].mxu0
        %v700 = vadd.f32 0.0, %v699
        %v701 = vpop.f32.mrb[0].mxu0
        %702 = vmatprep.mubr.bf16.mxu0 0
        %703 = vmatmul.mubr.bf16.gmra.mrb[0].mxu0 %v622
        %v704 = vpop.f32.mrb[0].mxu0
        %v705 = vadd.f32 0.0, %v704
        %v706 = vpop.f32.mrb[0].mxu0
        %v707 = vpop.f32.mrb[0].mxu0
        %v708 = vadd.f32 0.0, %v707
        %v709 = vpop.f32.mrb[0].mxu0
        %710 = vmatprep.mubr.bf16.mxu0 0
        %711 = vmatmul.mubr.bf16.gmra.mrb[0].mxu0 %v625
        %v712 = vpop.f32.mrb[0].mxu0
        %v713 = vadd.f32 0.0, %v712
        %v714 = vpop.f32.mrb[0].mxu0
        %v715 = vpop.f32.mrb[0].mxu0
        %v716 = vadd.f32 0.0, %v715
        %v717 = vpop.f32.mrb[0].mxu0
        %718 = vmatprep.mubr.bf16.mxu0 0
        %719 = vmatmul.mubr.bf16.gmra.mrb[0].mxu0 %v628
        %v720 = vpop.f32.mrb[0].mxu0
        %v721 = vadd.f32 0.0, %v720
        %v722 = vpop.f32.mrb[0].mxu0
        %v723 = vpop.f32.mrb[0].mxu0
        %v724 = vadd.f32 0.0, %v723
        %v725 = vpop.f32.mrb[0].mxu0
        %726 = vdwg.mxu0
        %v727 = vld [vmem:[%s475] sm:$0xf]
        %v728 = vld [vmem:[%s475 + $0x4] sm:$0xf]
        %v729 = vld [vmem:[%s475 + $0x8] sm:$0xf]
        %v730 = vld [vmem:[%s475 + $0xc] sm:$0xf]
        %v731 = vld [vmem:[%s475 + $0x10] sm:$0xf]
        %v732 = vld [vmem:[%s475 + $0x14] sm:$0xf]
        %v733 = vld [vmem:[%s475 + $0x18] sm:$0xf]
        %v734 = vld [vmem:[%s475 + $0x1c] sm:$0xf]
        %v735 = vld [vmem:[%s475 + $0x20] sm:$0xf]
        %v736 = vld [vmem:[%s475 + $0x24] sm:$0xf]
        %v737 = vld [vmem:[%s475 + $0x28] sm:$0xf]
        %v738 = vld [vmem:[%s475 + $0x2c] sm:$0xf]
        %v739 = vld [vmem:[%s475 + $0x30] sm:$0xf]
        %v740 = vld [vmem:[%s475 + $0x34] sm:$0xf]
        %v741 = vld [vmem:[%s475 + $0x38] sm:$0xf]
        %v742 = vld [vmem:[%s475 + $0x3c] sm:$0xf]
        %v743 = vld [vmem:[%s2] sm:$0xf]
        %v744 = vld [vmem:[%s2 + $0x4] sm:$0xf]
        %v745 = vld [vmem:[%s2 + $0x8] sm:$0xf]
        %v746 = vld [vmem:[%s2 + $0xc] sm:$0xf]
        %v747 = vld [vmem:[%s2 + $0x10] sm:$0xf]
        %v748 = vld [vmem:[%s2 + $0x14] sm:$0xf]
        %v749 = vld [vmem:[%s2 + $0x18] sm:$0xf]
        %v750 = vld [vmem:[%s2 + $0x1c] sm:$0xf]
        %v767 = vunpack.c.l.b16 %v727
        %v768 = vunpack.c.l.b16 %v728
        %v769 = vunpack.c.l.b16 %v729
        %v770 = vunpack.c.l.b16 %v730
        %v771 = vunpack.c.l.b16 %v731
        %v772 = vunpack.c.l.b16 %v732
        %v773 = vunpack.c.l.b16 %v733
        %v774 = vunpack.c.l.b16 %v734
        %v775 = vunpack.c.l.b16 %v735
        %v776 = vunpack.c.l.b16 %v736
        %v777 = vunpack.c.l.b16 %v737
        %v778 = vunpack.c.l.b16 %v738
        %v779 = vunpack.c.l.b16 %v739
        %v780 = vunpack.c.l.b16 %v740
        %v781 = vunpack.c.l.b16 %v741
        %v782 = vunpack.c.l.b16 %v742
        %v783 = vpack.c.b16 %v768, %v767
        %v784 = vpack.c.b16 %v770, %v769
        %v785 = vpack.c.b16 %v772, %v771
        %v786 = vpack.c.b16 %v774, %v773
        %v787 = vpack.c.b16 %v776, %v775
        %v788 = vpack.c.b16 %v778, %v777
        %v789 = vpack.c.b16 %v780, %v779
        %v790 = vpack.c.b16 %v782, %v781
        %v799 = vunpack.c.l.b16 %v743
        %v800 = vunpack.c.l.b16 %v744
        %v801 = vunpack.c.l.b16 %v745
        %v802 = vunpack.c.l.b16 %v746
        %v803 = vunpack.c.l.b16 %v747
        %v804 = vunpack.c.l.b16 %v748
        %v805 = vunpack.c.l.b16 %v749
        %v806 = vunpack.c.l.b16 %v750
        %v807 = vpack.c.b16 %v800, %v799
        %v808 = vpack.c.b16 %v802, %v801
        %v809 = vpack.c.b16 %v804, %v803
        %v810 = vpack.c.b16 %v806, %v805
        %v816 = vsel %vm605, %v783, 0
        %v819 = vsel %vm605, %v784, 0
        %v822 = vsel %vm605, %v785, 0
        %v825 = vsel %vm605, %v786, 0
        %v828 = vsel %vm605, %v787, 0
        %v831 = vsel %vm605, %v788, 0
        %v834 = vsel %vm605, %v789, 0
        %v837 = vsel %vm605, %v790, 0
        %839 = vmatprep.subr.bf16.mxu0 0
        %840 = vmatpush1.bf16.msra.mxu0 %v807
        %841 = vmatprep.subr.bf16.mxu0 0
        %842 = vmatpush1.bf16.msra.mxu0 %v808
        %843 = vmatprep.subr.bf16.mxu0 0
        %844 = vmatpush1.bf16.msra.mxu0 %v809
        %845 = vmatprep.subr.bf16.mxu0 0
        %846 = vmatpush1.bf16.msra.mxu0 %v810
        %847 = vmatprep.subr.bf16.mxu0 0
        %848 = vmatpush1.bf16.msra.mxu0 0
        %849 = vmatprep.subr.bf16.mxu0 0
        %850 = vmatpush1.bf16.msra.mxu0 0
        %851 = vmatprep.subr.bf16.mxu0 0
        %852 = vmatpush1.bf16.msra.mxu0 0
        %853 = vmatprep.subr.bf16.mxu0 0
        %854 = vmatpush1.bf16.msra.mxu0 0
        %855 = vmatprep.subr.bf16.mxu0 0
        %856 = vmatpush1.bf16.msra.mxu0 0
        %857 = vmatprep.subr.bf16.mxu0 0
        %858 = vmatpush1.bf16.msra.mxu0 0
        %859 = vmatprep.subr.bf16.mxu0 0
        %860 = vmatpush1.bf16.msra.mxu0 0
        %861 = vmatprep.subr.bf16.mxu0 0
        %862 = vmatpush1.bf16.msra.mxu0 0
        %863 = vmatprep.subr.bf16.mxu0 0
        %864 = vmatpush1.bf16.msra.mxu0 0
        %865 = vmatprep.subr.bf16.mxu0 0
        %866 = vmatpush1.bf16.msra.mxu0 0
        %867 = vmatprep.subr.bf16.mxu0 0
        %868 = vmatpush1.bf16.msra.mxu0 0
        %869 = vmatprep.subr.bf16.mxu0 0
        %870 = vmatpush1.bf16.msra.mxu0 0
        %871 = vmatprep.mubr.bf16.mxu0 0
        %872 = vmatmul.mubr.bf16.gmra.mrb[0].mxu0 %v816
        %v873 = vpop.f32.mrb[0].mxu0
        %v874 = vadd.f32 0.0, %v873
        %v875 = vpop.f32.mrb[0].mxu0
        %v876 = vpop.f32.mrb[0].mxu0
        %v877 = vadd.f32 0.0, %v876
        %v878 = vpop.f32.mrb[0].mxu0
        %879 = vmatprep.mubr.bf16.mxu0 0
        %880 = vmatmul.mubr.bf16.gmra.mrb[0].mxu0 %v819
        %v881 = vpop.f32.mrb[0].mxu0
        %v882 = vadd.f32 0.0, %v881
        %v883 = vpop.f32.mrb[0].mxu0
        %v884 = vpop.f32.mrb[0].mxu0
        %v885 = vadd.f32 0.0, %v884
        %v886 = vpop.f32.mrb[0].mxu0
        %887 = vmatprep.mubr.bf16.mxu0 0
        %888 = vmatmul.mubr.bf16.gmra.mrb[0].mxu0 %v822
        %v889 = vpop.f32.mrb[0].mxu0
        %v890 = vadd.f32 0.0, %v889
        %v891 = vpop.f32.mrb[0].mxu0
        %v892 = vpop.f32.mrb[0].mxu0
        %v893 = vadd.f32 0.0, %v892
        %v894 = vpop.f32.mrb[0].mxu0
        %895 = vmatprep.mubr.bf16.mxu0 0
        %896 = vmatmul.mubr.bf16.gmra.mrb[0].mxu0 %v825
        %v897 = vpop.f32.mrb[0].mxu0
        %v898 = vadd.f32 0.0, %v897
        %v899 = vpop.f32.mrb[0].mxu0
        %v900 = vpop.f32.mrb[0].mxu0
        %v901 = vadd.f32 0.0, %v900
        %v902 = vpop.f32.mrb[0].mxu0
        %903 = vmatprep.mubr.bf16.mxu0 0
        %904 = vmatmul.mubr.bf16.gmra.mrb[0].mxu0 %v828
        %v905 = vpop.f32.mrb[0].mxu0
        %v906 = vadd.f32 0.0, %v905
        %v907 = vpop.f32.mrb[0].mxu0
        %v908 = vpop.f32.mrb[0].mxu0
        %v909 = vadd.f32 0.0, %v908
        %v910 = vpop.f32.mrb[0].mxu0
        %911 = vmatprep.mubr.bf16.mxu0 0
        %912 = vmatmul.mubr.bf16.gmra.mrb[0].mxu0 %v831
        %v913 = vpop.f32.mrb[0].mxu0
        %v914 = vadd.f32 0.0, %v913
        %v915 = vpop.f32.mrb[0].mxu0
        %v916 = vpop.f32.mrb[0].mxu0
        %v917 = vadd.f32 0.0, %v916
        %v918 = vpop.f32.mrb[0].mxu0
        %919 = vmatprep.mubr.bf16.mxu0 0
        %920 = vmatmul.mubr.bf16.gmra.mrb[0].mxu0 %v834
        %v921 = vpop.f32.mrb[0].mxu0
        %v922 = vadd.f32 0.0, %v921
        %v923 = vpop.f32.mrb[0].mxu0
        %v924 = vpop.f32.mrb[0].mxu0
        %v925 = vadd.f32 0.0, %v924
        %v926 = vpop.f32.mrb[0].mxu0
        %927 = vmatprep.mubr.bf16.mxu0 0
        %928 = vmatmul.mubr.bf16.gmra.mrb[0].mxu0 %v837
        %v929 = vpop.f32.mrb[0].mxu0
        %v930 = vadd.f32 0.0, %v929
        %v931 = vpop.f32.mrb[0].mxu0
        %v932 = vpop.f32.mrb[0].mxu0
        %v933 = vadd.f32 0.0, %v932
        %v934 = vpop.f32.mrb[0].mxu0
        %935 = vdwg.mxu0
        %s936 = scalar_lea.vmem %s475, 64 [#allocation2]
        %v937 = vld [vmem:[%s936] sm:$0xf]
        %v938 = vld [vmem:[%s936 + $0x4] sm:$0xf]
        %v939 = vld [vmem:[%s936 + $0x8] sm:$0xf]
        %v940 = vld [vmem:[%s936 + $0xc] sm:$0xf]
        %v941 = vld [vmem:[%s936 + $0x10] sm:$0xf]
        %v942 = vld [vmem:[%s936 + $0x14] sm:$0xf]
        %v943 = vld [vmem:[%s936 + $0x18] sm:$0xf]
        %v944 = vld [vmem:[%s936 + $0x1c] sm:$0xf]
        %v945 = vld [vmem:[%s936 + $0x20] sm:$0xf]
        %v946 = vld [vmem:[%s936 + $0x24] sm:$0xf]
        %v947 = vld [vmem:[%s936 + $0x28] sm:$0xf]
        %v948 = vld [vmem:[%s936 + $0x2c] sm:$0xf]
        %v949 = vld [vmem:[%s936 + $0x30] sm:$0xf]
        %v950 = vld [vmem:[%s936 + $0x34] sm:$0xf]
        %v951 = vld [vmem:[%s936 + $0x38] sm:$0xf]
        %v952 = vld [vmem:[%s936 + $0x3c] sm:$0xf]
        %v969 = vunpack.c.l.b16 %v937
        %v970 = vunpack.c.l.b16 %v938
        %v971 = vunpack.c.l.b16 %v939
        %v972 = vunpack.c.l.b16 %v940
        %v973 = vunpack.c.l.b16 %v941
        %v974 = vunpack.c.l.b16 %v942
        %v975 = vunpack.c.l.b16 %v943
        %v976 = vunpack.c.l.b16 %v944
        %v977 = vunpack.c.l.b16 %v945
        %v978 = vunpack.c.l.b16 %v946
        %v979 = vunpack.c.l.b16 %v947
        %v980 = vunpack.c.l.b16 %v948
        %v981 = vunpack.c.l.b16 %v949
        %v982 = vunpack.c.l.b16 %v950
        %v983 = vunpack.c.l.b16 %v951
        %v984 = vunpack.c.l.b16 %v952
        %v985 = vpack.c.b16 %v970, %v969
        %v986 = vpack.c.b16 %v972, %v971
        %v987 = vpack.c.b16 %v974, %v973
        %v988 = vpack.c.b16 %v976, %v975
        %v989 = vpack.c.b16 %v978, %v977
        %v990 = vpack.c.b16 %v980, %v979
        %v991 = vpack.c.b16 %v982, %v981
        %v992 = vpack.c.b16 %v984, %v983
        %v994 = vsel %vm605, %v985, 0
        %v997 = vsel %vm605, %v986, 0
        %v1000 = vsel %vm605, %v987, 0
        %v1003 = vsel %vm605, %v988, 0
        %v1006 = vsel %vm605, %v989, 0
        %v1009 = vsel %vm605, %v990, 0
        %v1012 = vsel %vm605, %v991, 0
        %v1015 = vsel %vm605, %v992, 0
        %1017 = vmatprep.subr.bf16.mxu0 0
        %1018 = vmatpush1.bf16.msra.mxu0 %v807
        %1019 = vmatprep.subr.bf16.mxu0 0
        %1020 = vmatpush1.bf16.msra.mxu0 %v808
        %1021 = vmatprep.subr.bf16.mxu0 0
        %1022 = vmatpush1.bf16.msra.mxu0 %v809
        %1023 = vmatprep.subr.bf16.mxu0 0
        %1024 = vmatpush1.bf16.msra.mxu0 %v810
        %1025 = vmatprep.subr.bf16.mxu0 0
        %1026 = vmatpush1.bf16.msra.mxu0 0
        %1027 = vmatprep.subr.bf16.mxu0 0
        %1028 = vmatpush1.bf16.msra.mxu0 0
        %1029 = vmatprep.subr.bf16.mxu0 0
        %1030 = vmatpush1.bf16.msra.mxu0 0
        %1031 = vmatprep.subr.bf16.mxu0 0
        %1032 = vmatpush1.bf16.msra.mxu0 0
        %1033 = vmatprep.subr.bf16.mxu0 0
        %1034 = vmatpush1.bf16.msra.mxu0 0
        %1035 = vmatprep.subr.bf16.mxu0 0
        %1036 = vmatpush1.bf16.msra.mxu0 0
        %1037 = vmatprep.subr.bf16.mxu0 0
        %1038 = vmatpush1.bf16.msra.mxu0 0
        %1039 = vmatprep.subr.bf16.mxu0 0
        %1040 = vmatpush1.bf16.msra.mxu0 0
        %1041 = vmatprep.subr.bf16.mxu0 0
        %1042 = vmatpush1.bf16.msra.mxu0 0
        %1043 = vmatprep.subr.bf16.mxu0 0
        %1044 = vmatpush1.bf16.msra.mxu0 0
        %1045 = vmatprep.subr.bf16.mxu0 0
        %1046 = vmatpush1.bf16.msra.mxu0 0
        %1047 = vmatprep.subr.bf16.mxu0 0
        %1048 = vmatpush1.bf16.msra.mxu0 0
        %1049 = vmatprep.mubr.bf16.mxu0 0
        %1050 = vmatmul.mubr.bf16.gmra.mrb[0].mxu0 %v994
        %v1051 = vpop.f32.mrb[0].mxu0
        %v1052 = vadd.f32 0.0, %v1051
        %v1053 = vpop.f32.mrb[0].mxu0
        %v1054 = vpop.f32.mrb[0].mxu0
        %v1055 = vadd.f32 0.0, %v1054
        %v1056 = vpop.f32.mrb[0].mxu0
        %1057 = vmatprep.mubr.bf16.mxu0 0
        %1058 = vmatmul.mubr.bf16.gmra.mrb[0].mxu0 %v997
        %v1059 = vpop.f32.mrb[0].mxu0
        %v1060 = vadd.f32 0.0, %v1059
        %v1061 = vpop.f32.mrb[0].mxu0
        %v1062 = vpop.f32.mrb[0].mxu0
        %v1063 = vadd.f32 0.0, %v1062
        %v1064 = vpop.f32.mrb[0].mxu0
        %1065 = vmatprep.mubr.bf16.mxu0 0
        %1066 = vmatmul.mubr.bf16.gmra.mrb[0].mxu0 %v1000
        %v1067 = vpop.f32.mrb[0].mxu0
        %v1068 = vadd.f32 0.0, %v1067
        %v1069 = vpop.f32.mrb[0].mxu0
        %v1070 = vpop.f32.mrb[0].mxu0
        %v1071 = vadd.f32 0.0, %v1070
        %v1072 = vpop.f32.mrb[0].mxu0
        %1073 = vmatprep.mubr.bf16.mxu0 0
        %1074 = vmatmul.mubr.bf16.gmra.mrb[0].mxu0 %v1003
        %v1075 = vpop.f32.mrb[0].mxu0
        %v1076 = vadd.f32 0.0, %v1075
        %v1077 = vpop.f32.mrb[0].mxu0
        %v1078 = vpop.f32.mrb[0].mxu0
        %v1079 = vadd.f32 0.0, %v1078
        %v1080 = vpop.f32.mrb[0].mxu0
        %1081 = vmatprep.mubr.bf16.mxu0 0
        %1082 = vmatmul.mubr.bf16.gmra.mrb[0].mxu0 %v1006
        %v1083 = vpop.f32.mrb[0].mxu0
        %v1084 = vadd.f32 0.0, %v1083
        %v1085 = vpop.f32.mrb[0].mxu0
        %v1086 = vpop.f32.mrb[0].mxu0
        %v1087 = vadd.f32 0.0, %v1086
        %v1088 = vpop.f32.mrb[0].mxu0
        %1089 = vmatprep.mubr.bf16.mxu0 0
        %1090 = vmatmul.mubr.bf16.gmra.mrb[0].mxu0 %v1009
        %v1091 = vpop.f32.mrb[0].mxu0
        %v1092 = vadd.f32 0.0, %v1091
        %v1093 = vpop.f32.mrb[0].mxu0
        %v1094 = vpop.f32.mrb[0].mxu0
        %v1095 = vadd.f32 0.0, %v1094
        %v1096 = vpop.f32.mrb[0].mxu0
        %1097 = vmatprep.mubr.bf16.mxu0 0
        %1098 = vmatmul.mubr.bf16.gmra.mrb[0].mxu0 %v1012
        %v1099 = vpop.f32.mrb[0].mxu0
        %v1100 = vadd.f32 0.0, %v1099
        %v1101 = vpop.f32.mrb[0].mxu0
        %v1102 = vpop.f32.mrb[0].mxu0
        %v1103 = vadd.f32 0.0, %v1102
        %v1104 = vpop.f32.mrb[0].mxu0
        %1105 = vmatprep.mubr.bf16.mxu0 0
        %1106 = vmatmul.mubr.bf16.gmra.mrb[0].mxu0 %v1015
        %v1107 = vpop.f32.mrb[0].mxu0
        %v1108 = vadd.f32 0.0, %v1107
        %v1109 = vpop.f32.mrb[0].mxu0
        %v1110 = vpop.f32.mrb[0].mxu0
        %v1111 = vadd.f32 0.0, %v1110
        %v1112 = vpop.f32.mrb[0].mxu0
        %1113 = vdwg.mxu0
        %v1114 = vmax.f32 %v874, %v1052
        %v1115 = vmax.f32 %v877, %v1055
        %v1116 = vmax.f32 %v882, %v1060
        %v1117 = vmax.f32 %v885, %v1063
        %v1118 = vmax.f32 %v890, %v1068
        %v1119 = vmax.f32 %v893, %v1071
        %v1120 = vmax.f32 %v898, %v1076
        %v1121 = vmax.f32 %v901, %v1079
        %v1122 = vmax.f32 %v906, %v1084
        %v1123 = vmax.f32 %v909, %v1087
        %v1124 = vmax.f32 %v914, %v1092
        %v1125 = vmax.f32 %v917, %v1095
        %v1126 = vmax.f32 %v922, %v1100
        %v1127 = vmax.f32 %v925, %v1103
        %v1128 = vmax.f32 %v930, %v1108
        %v1129 = vmax.f32 %v933, %v1111
        %s1130 = scalar_lea.vmem %s475, 128 [#allocation2]
        %v1131 = vld [vmem:[%s1130] sm:$0xf]
        %v1132 = vld [vmem:[%s1130 + $0x4] sm:$0xf]
        %v1133 = vld [vmem:[%s1130 + $0x8] sm:$0xf]
        %v1134 = vld [vmem:[%s1130 + $0xc] sm:$0xf]
        %v1135 = vld [vmem:[%s1130 + $0x10] sm:$0xf]
        %v1136 = vld [vmem:[%s1130 + $0x14] sm:$0xf]
        %v1137 = vld [vmem:[%s1130 + $0x18] sm:$0xf]
        %v1138 = vld [vmem:[%s1130 + $0x1c] sm:$0xf]
        %v1139 = vld [vmem:[%s1130 + $0x20] sm:$0xf]
        %v1140 = vld [vmem:[%s1130 + $0x24] sm:$0xf]
        %v1141 = vld [vmem:[%s1130 + $0x28] sm:$0xf]
        %v1142 = vld [vmem:[%s1130 + $0x2c] sm:$0xf]
        %v1143 = vld [vmem:[%s1130 + $0x30] sm:$0xf]
        %v1144 = vld [vmem:[%s1130 + $0x34] sm:$0xf]
        %v1145 = vld [vmem:[%s1130 + $0x38] sm:$0xf]
        %v1146 = vld [vmem:[%s1130 + $0x3c] sm:$0xf]
        %v1163 = vunpack.c.l.b16 %v1131
        %v1164 = vunpack.c.l.b16 %v1132
        %v1165 = vunpack.c.l.b16 %v1133
        %v1166 = vunpack.c.l.b16 %v1134
        %v1167 = vunpack.c.l.b16 %v1135
        %v1168 = vunpack.c.l.b16 %v1136
        %v1169 = vunpack.c.l.b16 %v1137
        %v1170 = vunpack.c.l.b16 %v1138
        %v1171 = vunpack.c.l.b16 %v1139
        %v1172 = vunpack.c.l.b16 %v1140
        %v1173 = vunpack.c.l.b16 %v1141
        %v1174 = vunpack.c.l.b16 %v1142
        %v1175 = vunpack.c.l.b16 %v1143
        %v1176 = vunpack.c.l.b16 %v1144
        %v1177 = vunpack.c.l.b16 %v1145
        %v1178 = vunpack.c.l.b16 %v1146
        %v1179 = vpack.c.b16 %v1164, %v1163
        %v1180 = vpack.c.b16 %v1166, %v1165
        %v1181 = vpack.c.b16 %v1168, %v1167
        %v1182 = vpack.c.b16 %v1170, %v1169
        %v1183 = vpack.c.b16 %v1172, %v1171
        %v1184 = vpack.c.b16 %v1174, %v1173
        %v1185 = vpack.c.b16 %v1176, %v1175
        %v1186 = vpack.c.b16 %v1178, %v1177
        %v1188 = vsel %vm605, %v1179, 0
        %v1191 = vsel %vm605, %v1180, 0
        %v1194 = vsel %vm605, %v1181, 0
        %v1197 = vsel %vm605, %v1182, 0
        %v1200 = vsel %vm605, %v1183, 0
        %v1203 = vsel %vm605, %v1184, 0
        %v1206 = vsel %vm605, %v1185, 0
        %v1209 = vsel %vm605, %v1186, 0
        %1211 = vmatprep.subr.bf16.mxu0 0
        %1212 = vmatpush1.bf16.msra.mxu0 %v807
        %1213 = vmatprep.subr.bf16.mxu0 0
        %1214 = vmatpush1.bf16.msra.mxu0 %v808
        %1215 = vmatprep.subr.bf16.mxu0 0
        %1216 = vmatpush1.bf16.msra.mxu0 %v809
        %1217 = vmatprep.subr.bf16.mxu0 0
        %1218 = vmatpush1.bf16.msra.mxu0 %v810
        %1219 = vmatprep.subr.bf16.mxu0 0
        %1220 = vmatpush1.bf16.msra.mxu0 0
        %1221 = vmatprep.subr.bf16.mxu0 0
        %1222 = vmatpush1.bf16.msra.mxu0 0
        %1223 = vmatprep.subr.bf16.mxu0 0
        %1224 = vmatpush1.bf16.msra.mxu0 0
        %1225 = vmatprep.subr.bf16.mxu0 0
        %1226 = vmatpush1.bf16.msra.mxu0 0
        %1227 = vmatprep.subr.bf16.mxu0 0
        %1228 = vmatpush1.bf16.msra.mxu0 0
        %1229 = vmatprep.subr.bf16.mxu0 0
        %1230 = vmatpush1.bf16.msra.mxu0 0
        %1231 = vmatprep.subr.bf16.mxu0 0
        %1232 = vmatpush1.bf16.msra.mxu0 0
        %1233 = vmatprep.subr.bf16.mxu0 0
        %1234 = vmatpush1.bf16.msra.mxu0 0
        %1235 = vmatprep.subr.bf16.mxu0 0
        %1236 = vmatpush1.bf16.msra.mxu0 0
        %1237 = vmatprep.subr.bf16.mxu0 0
        %1238 = vmatpush1.bf16.msra.mxu0 0
        %1239 = vmatprep.subr.bf16.mxu0 0
        %1240 = vmatpush1.bf16.msra.mxu0 0
        %1241 = vmatprep.subr.bf16.mxu0 0
        %1242 = vmatpush1.bf16.msra.mxu0 0
        %1243 = vmatprep.mubr.bf16.mxu0 0
        %1244 = vmatmul.mubr.bf16.gmra.mrb[0].mxu0 %v1188
        %v1245 = vpop.f32.mrb[0].mxu0
        %v1246 = vadd.f32 0.0, %v1245
        %v1247 = vpop.f32.mrb[0].mxu0
        %v1248 = vpop.f32.mrb[0].mxu0
        %v1249 = vadd.f32 0.0, %v1248
        %v1250 = vpop.f32.mrb[0].mxu0
        %1251 = vmatprep.mubr.bf16.mxu0 0
        %1252 = vmatmul.mubr.bf16.gmra.mrb[0].mxu0 %v1191
        %v1253 = vpop.f32.mrb[0].mxu0
        %v1254 = vadd.f32 0.0, %v1253
        %v1255 = vpop.f32.mrb[0].mxu0
        %v1256 = vpop.f32.mrb[0].mxu0
        %v1257 = vadd.f32 0.0, %v1256
        %v1258 = vpop.f32.mrb[0].mxu0
        %1259 = vmatprep.mubr.bf16.mxu0 0
        %1260 = vmatmul.mubr.bf16.gmra.mrb[0].mxu0 %v1194
        %v1261 = vpop.f32.mrb[0].mxu0
        %v1262 = vadd.f32 0.0, %v1261
        %v1263 = vpop.f32.mrb[0].mxu0
        %v1264 = vpop.f32.mrb[0].mxu0
        %v1265 = vadd.f32 0.0, %v1264
        %v1266 = vpop.f32.mrb[0].mxu0
        %1267 = vmatprep.mubr.bf16.mxu0 0
        %1268 = vmatmul.mubr.bf16.gmra.mrb[0].mxu0 %v1197
        %v1269 = vpop.f32.mrb[0].mxu0
        %v1270 = vadd.f32 0.0, %v1269
        %v1271 = vpop.f32.mrb[0].mxu0
        %v1272 = vpop.f32.mrb[0].mxu0
        %v1273 = vadd.f32 0.0, %v1272
        %v1274 = vpop.f32.mrb[0].mxu0
        %1275 = vmatprep.mubr.bf16.mxu0 0
        %1276 = vmatmul.mubr.bf16.gmra.mrb[0].mxu0 %v1200
        %v1277 = vpop.f32.mrb[0].mxu0
        %v1278 = vadd.f32 0.0, %v1277
        %v1279 = vpop.f32.mrb[0].mxu0
        %v1280 = vpop.f32.mrb[0].mxu0
        %v1281 = vadd.f32 0.0, %v1280
        %v1282 = vpop.f32.mrb[0].mxu0
        %1283 = vmatprep.mubr.bf16.mxu0 0
        %1284 = vmatmul.mubr.bf16.gmra.mrb[0].mxu0 %v1203
        %v1285 = vpop.f32.mrb[0].mxu0
        %v1286 = vadd.f32 0.0, %v1285
        %v1287 = vpop.f32.mrb[0].mxu0
        %v1288 = vpop.f32.mrb[0].mxu0
        %v1289 = vadd.f32 0.0, %v1288
        %v1290 = vpop.f32.mrb[0].mxu0
        %1291 = vmatprep.mubr.bf16.mxu0 0
        %1292 = vmatmul.mubr.bf16.gmra.mrb[0].mxu0 %v1206
        %v1293 = vpop.f32.mrb[0].mxu0
        %v1294 = vadd.f32 0.0, %v1293
        %v1295 = vpop.f32.mrb[0].mxu0
        %v1296 = vpop.f32.mrb[0].mxu0
        %v1297 = vadd.f32 0.0, %v1296
        %v1298 = vpop.f32.mrb[0].mxu0
        %1299 = vmatprep.mubr.bf16.mxu0 0
        %1300 = vmatmul.mubr.bf16.gmra.mrb[0].mxu0 %v1209
        %v1301 = vpop.f32.mrb[0].mxu0
        %v1302 = vadd.f32 0.0, %v1301
        %v1303 = vpop.f32.mrb[0].mxu0
        %v1304 = vpop.f32.mrb[0].mxu0
        %v1305 = vadd.f32 0.0, %v1304
        %v1306 = vpop.f32.mrb[0].mxu0
        %1307 = vdwg.mxu0
        %v1308 = vmax.f32 %v1114, %v1246
        %v1309 = vmax.f32 %v1115, %v1249
        %v1310 = vmax.f32 %v1116, %v1254
        %v1311 = vmax.f32 %v1117, %v1257
        %v1312 = vmax.f32 %v1118, %v1262
        %v1313 = vmax.f32 %v1119, %v1265
        %v1314 = vmax.f32 %v1120, %v1270
        %v1315 = vmax.f32 %v1121, %v1273
        %v1316 = vmax.f32 %v1122, %v1278
        %v1317 = vmax.f32 %v1123, %v1281
        %v1318 = vmax.f32 %v1124, %v1286
        %v1319 = vmax.f32 %v1125, %v1289
        %v1320 = vmax.f32 %v1126, %v1294
        %v1321 = vmax.f32 %v1127, %v1297
        %v1322 = vmax.f32 %v1128, %v1302
        %v1323 = vmax.f32 %v1129, %v1305
        %s1324 = scalar_lea.vmem %s475, 192 [#allocation2]
        %v1325 = vld [vmem:[%s1324] sm:$0xf]
        %v1326 = vld [vmem:[%s1324 + $0x4] sm:$0xf]
        %v1327 = vld [vmem:[%s1324 + $0x8] sm:$0xf]
        %v1328 = vld [vmem:[%s1324 + $0xc] sm:$0xf]
        %v1329 = vld [vmem:[%s1324 + $0x10] sm:$0xf]
        %v1330 = vld [vmem:[%s1324 + $0x14] sm:$0xf]
        %v1331 = vld [vmem:[%s1324 + $0x18] sm:$0xf]
        %v1332 = vld [vmem:[%s1324 + $0x1c] sm:$0xf]
        %v1333 = vld [vmem:[%s1324 + $0x20] sm:$0xf]
        %v1334 = vld [vmem:[%s1324 + $0x24] sm:$0xf]
        %v1335 = vld [vmem:[%s1324 + $0x28] sm:$0xf]
        %v1336 = vld [vmem:[%s1324 + $0x2c] sm:$0xf]
        %v1337 = vld [vmem:[%s1324 + $0x30] sm:$0xf]
        %v1338 = vld [vmem:[%s1324 + $0x34] sm:$0xf]
        %v1339 = vld [vmem:[%s1324 + $0x38] sm:$0xf]
        %v1340 = vld [vmem:[%s1324 + $0x3c] sm:$0xf]
        %v1357 = vunpack.c.l.b16 %v1325
        %v1358 = vunpack.c.l.b16 %v1326
        %v1359 = vunpack.c.l.b16 %v1327
        %v1360 = vunpack.c.l.b16 %v1328
        %v1361 = vunpack.c.l.b16 %v1329
        %v1362 = vunpack.c.l.b16 %v1330
        %v1363 = vunpack.c.l.b16 %v1331
        %v1364 = vunpack.c.l.b16 %v1332
        %v1365 = vunpack.c.l.b16 %v1333
        %v1366 = vunpack.c.l.b16 %v1334
        %v1367 = vunpack.c.l.b16 %v1335
        %v1368 = vunpack.c.l.b16 %v1336
        %v1369 = vunpack.c.l.b16 %v1337
        %v1370 = vunpack.c.l.b16 %v1338
        %v1371 = vunpack.c.l.b16 %v1339
        %v1372 = vunpack.c.l.b16 %v1340
        %v1373 = vpack.c.b16 %v1358, %v1357
        %v1374 = vpack.c.b16 %v1360, %v1359
        %v1375 = vpack.c.b16 %v1362, %v1361
        %v1376 = vpack.c.b16 %v1364, %v1363
        %v1377 = vpack.c.b16 %v1366, %v1365
        %v1378 = vpack.c.b16 %v1368, %v1367
        %v1379 = vpack.c.b16 %v1370, %v1369
        %v1380 = vpack.c.b16 %v1372, %v1371
        %v1382 = vsel %vm605, %v1373, 0
        %v1385 = vsel %vm605, %v1374, 0
        %v1388 = vsel %vm605, %v1375, 0
        %v1391 = vsel %vm605, %v1376, 0
        %v1394 = vsel %vm605, %v1377, 0
        %v1397 = vsel %vm605, %v1378, 0
        %v1400 = vsel %vm605, %v1379, 0
        %v1403 = vsel %vm605, %v1380, 0
        %1405 = vmatprep.subr.bf16.mxu0 0
        %1406 = vmatpush1.bf16.msra.mxu0 %v807
        %1407 = vmatprep.subr.bf16.mxu0 0
        %1408 = vmatpush1.bf16.msra.mxu0 %v808
        %1409 = vmatprep.subr.bf16.mxu0 0
        %1410 = vmatpush1.bf16.msra.mxu0 %v809
        %1411 = vmatprep.subr.bf16.mxu0 0
        %1412 = vmatpush1.bf16.msra.mxu0 %v810
        %1413 = vmatprep.subr.bf16.mxu0 0
        %1414 = vmatpush1.bf16.msra.mxu0 0
        %1415 = vmatprep.subr.bf16.mxu0 0
        %1416 = vmatpush1.bf16.msra.mxu0 0
        %1417 = vmatprep.subr.bf16.mxu0 0
        %1418 = vmatpush1.bf16.msra.mxu0 0
        %1419 = vmatprep.subr.bf16.mxu0 0
        %1420 = vmatpush1.bf16.msra.mxu0 0
        %1421 = vmatprep.subr.bf16.mxu0 0
        %1422 = vmatpush1.bf16.msra.mxu0 0
        %1423 = vmatprep.subr.bf16.mxu0 0
        %1424 = vmatpush1.bf16.msra.mxu0 0
        %1425 = vmatprep.subr.bf16.mxu0 0
        %1426 = vmatpush1.bf16.msra.mxu0 0
        %1427 = vmatprep.subr.bf16.mxu0 0
        %1428 = vmatpush1.bf16.msra.mxu0 0
        %1429 = vmatprep.subr.bf16.mxu0 0
        %1430 = vmatpush1.bf16.msra.mxu0 0
        %1431 = vmatprep.subr.bf16.mxu0 0
        %1432 = vmatpush1.bf16.msra.mxu0 0
        %1433 = vmatprep.subr.bf16.mxu0 0
        %1434 = vmatpush1.bf16.msra.mxu0 0
        %1435 = vmatprep.subr.bf16.mxu0 0
        %1436 = vmatpush1.bf16.msra.mxu0 0
        %1437 = vmatprep.mubr.bf16.mxu0 0
        %1438 = vmatmul.mubr.bf16.gmra.mrb[0].mxu0 %v1382
        %v1439 = vpop.f32.mrb[0].mxu0
        %v1440 = vadd.f32 0.0, %v1439
        %v1441 = vpop.f32.mrb[0].mxu0
        %v1442 = vpop.f32.mrb[0].mxu0
        %v1443 = vadd.f32 0.0, %v1442
        %v1444 = vpop.f32.mrb[0].mxu0
        %1445 = vmatprep.mubr.bf16.mxu0 0
        %1446 = vmatmul.mubr.bf16.gmra.mrb[0].mxu0 %v1385
        %v1447 = vpop.f32.mrb[0].mxu0
        %v1448 = vadd.f32 0.0, %v1447
        %v1449 = vpop.f32.mrb[0].mxu0
        %v1450 = vpop.f32.mrb[0].mxu0
        %v1451 = vadd.f32 0.0, %v1450
        %v1452 = vpop.f32.mrb[0].mxu0
        %1453 = vmatprep.mubr.bf16.mxu0 0
        %1454 = vmatmul.mubr.bf16.gmra.mrb[0].mxu0 %v1388
        %v1455 = vpop.f32.mrb[0].mxu0
        %v1456 = vadd.f32 0.0, %v1455
        %v1457 = vpop.f32.mrb[0].mxu0
        %v1458 = vpop.f32.mrb[0].mxu0
        %v1459 = vadd.f32 0.0, %v1458
        %v1460 = vpop.f32.mrb[0].mxu0
        %1461 = vmatprep.mubr.bf16.mxu0 0
        %1462 = vmatmul.mubr.bf16.gmra.mrb[0].mxu0 %v1391
        %v1463 = vpop.f32.mrb[0].mxu0
        %v1464 = vadd.f32 0.0, %v1463
        %v1465 = vpop.f32.mrb[0].mxu0
        %v1466 = vpop.f32.mrb[0].mxu0
        %v1467 = vadd.f32 0.0, %v1466
        %v1468 = vpop.f32.mrb[0].mxu0
        %1469 = vmatprep.mubr.bf16.mxu0 0
        %1470 = vmatmul.mubr.bf16.gmra.mrb[0].mxu0 %v1394
        %v1471 = vpop.f32.mrb[0].mxu0
        %v1472 = vadd.f32 0.0, %v1471
        %v1473 = vpop.f32.mrb[0].mxu0
        %v1474 = vpop.f32.mrb[0].mxu0
        %v1475 = vadd.f32 0.0, %v1474
        %v1476 = vpop.f32.mrb[0].mxu0
        %1477 = vmatprep.mubr.bf16.mxu0 0
        %1478 = vmatmul.mubr.bf16.gmra.mrb[0].mxu0 %v1397
        %v1479 = vpop.f32.mrb[0].mxu0
        %v1480 = vadd.f32 0.0, %v1479
        %v1481 = vpop.f32.mrb[0].mxu0
        %v1482 = vpop.f32.mrb[0].mxu0
        %v1483 = vadd.f32 0.0, %v1482
        %v1484 = vpop.f32.mrb[0].mxu0
        %1485 = vmatprep.mubr.bf16.mxu0 0
        %1486 = vmatmul.mubr.bf16.gmra.mrb[0].mxu0 %v1400
        %v1487 = vpop.f32.mrb[0].mxu0
        %v1488 = vadd.f32 0.0, %v1487
        %v1489 = vpop.f32.mrb[0].mxu0
        %v1490 = vpop.f32.mrb[0].mxu0
        %v1491 = vadd.f32 0.0, %v1490
        %v1492 = vpop.f32.mrb[0].mxu0
        %1493 = vmatprep.mubr.bf16.mxu0 0
        %1494 = vmatmul.mubr.bf16.gmra.mrb[0].mxu0 %v1403
        %v1495 = vpop.f32.mrb[0].mxu0
        %v1496 = vadd.f32 0.0, %v1495
        %v1497 = vpop.f32.mrb[0].mxu0
        %v1498 = vpop.f32.mrb[0].mxu0
        %v1499 = vadd.f32 0.0, %v1498
        %v1500 = vpop.f32.mrb[0].mxu0
        %1501 = vdwg.mxu0
        %v1502 = vmax.f32 %v1308, %v1440
        %v1503 = vmax.f32 %v1309, %v1443
        %v1504 = vmax.f32 %v1310, %v1448
        %v1505 = vmax.f32 %v1311, %v1451
        %v1506 = vmax.f32 %v1312, %v1456
        %v1507 = vmax.f32 %v1313, %v1459
        %v1508 = vmax.f32 %v1314, %v1464
        %v1509 = vmax.f32 %v1315, %v1467
        %v1510 = vmax.f32 %v1316, %v1472
        %v1511 = vmax.f32 %v1317, %v1475
        %v1512 = vmax.f32 %v1318, %v1480
        %v1513 = vmax.f32 %v1319, %v1483
        %v1514 = vmax.f32 %v1320, %v1488
        %v1515 = vmax.f32 %v1321, %v1491
        %v1516 = vmax.f32 %v1322, %v1496
        %v1517 = vmax.f32 %v1323, %v1499
        %v1518 = vadd.f32 %v1502, %v665
        %v1519 = vadd.f32 %v1503, %v668
        %v1520 = vadd.f32 %v1504, %v673
        %v1521 = vadd.f32 %v1505, %v676
        %v1522 = vadd.f32 %v1506, %v681
        %v1523 = vadd.f32 %v1507, %v684
        %v1524 = vadd.f32 %v1508, %v689
        %v1525 = vadd.f32 %v1509, %v692
        %v1526 = vadd.f32 %v1510, %v697
        %v1527 = vadd.f32 %v1511, %v700
        %v1528 = vadd.f32 %v1512, %v705
        %v1529 = vadd.f32 %v1513, %v708
        %v1530 = vadd.f32 %v1514, %v713
        %v1531 = vadd.f32 %v1515, %v716
        %v1532 = vadd.f32 %v1516, %v721
        %v1533 = vadd.f32 %v1517, %v724
        %v1534 = vmax.f32 %v1518, 0.0
        %v1535 = vmax.f32 %v1519, 0.0
        %v1536 = vmax.f32 %v1520, 0.0
        %v1537 = vmax.f32 %v1521, 0.0
        %v1538 = vmax.f32 %v1522, 0.0
        %v1539 = vmax.f32 %v1523, 0.0
        %v1540 = vmax.f32 %v1524, 0.0
        %v1541 = vmax.f32 %v1525, 0.0
        %v1542 = vmax.f32 %v1526, 0.0
        %v1543 = vmax.f32 %v1527, 0.0
        %v1544 = vmax.f32 %v1528, 0.0
        %v1545 = vmax.f32 %v1529, 0.0
        %v1546 = vmax.f32 %v1530, 0.0
        %v1547 = vmax.f32 %v1531, 0.0
        %v1548 = vmax.f32 %v1532, 0.0
        %v1549 = vmax.f32 %v1533, 0.0
        %1550 = vst.msk [vmem:[%s514] sm:$0xff] %vm605, %v1534
        %1551 = vst.msk [vmem:[%s514 + $0x8] sm:$0xff] %vm605, %v1535
        %1552 = vst.msk [vmem:[%s514 + $0x10] sm:$0xff] %vm605, %v1536
        %1553 = vst.msk [vmem:[%s514 + $0x18] sm:$0xff] %vm605, %v1537
        %1554 = vst.msk [vmem:[%s514 + $0x20] sm:$0xff] %vm605, %v1538
        %1555 = vst.msk [vmem:[%s514 + $0x28] sm:$0xff] %vm605, %v1539
        %1556 = vst.msk [vmem:[%s514 + $0x30] sm:$0xff] %vm605, %v1540
        %1557 = vst.msk [vmem:[%s514 + $0x38] sm:$0xff] %vm605, %v1541
        %1558 = vst.msk [vmem:[%s514 + $0x40] sm:$0xff] %vm605, %v1542
        %1559 = vst.msk [vmem:[%s514 + $0x48] sm:$0xff] %vm605, %v1543
        %1560 = vst.msk [vmem:[%s514 + $0x50] sm:$0xff] %vm605, %v1544
        %1561 = vst.msk [vmem:[%s514 + $0x58] sm:$0xff] %vm605, %v1545
        %1562 = vst.msk [vmem:[%s514 + $0x60] sm:$0xff] %vm605, %v1546
        %1563 = vst.msk [vmem:[%s514 + $0x68] sm:$0xff] %vm605, %v1547
        %1564 = vst.msk [vmem:[%s514 + $0x70] sm:$0xff] %vm605, %v1548
        %1565 = vst.msk [vmem:[%s514 + $0x78] sm:$0xff] %vm605, %v1549
        %s1566 = smul.u32 16, %s15
        %p1567 = scmp.lt.s32.totalorder %s1566, 31
        %s1568 = scalar_select %p1567, %s1566, 31
        %s1569 = smul.addr %s1568, 8
        %s1570 = scalar_lea.vmem %s4, %s1569
        // Predicated region
        $region78: #{net_conpu_v7_forward.7} parent=72 // pred_check
          %p1571 = pneg %p127
        $region79: #{net_conpu_v7_forward.7} parent=72 // pred_check_branch
          %1573 = sbr.rel (%p1571) target = $region81
        $region80: #{net_conpu_v7_forward.7} parent=72 // pred_region
          %s1574 = smul.u32 16, %s15
        $region81: #{net_conpu_v7_forward.7} parent=72 // pred_fallthru
          _
      $region73: #{net_conpu_v7_forward.7} parent=5 // pred_fallthru
        _
      %p1575 = scmp.le.s32.totalorder 2, %s10
      // Predicated region
      $region82: #{net_conpu_v7_forward.7} parent=5 // pred_check
        %p1576 = pneg %p1575
      $region83: #{net_conpu_v7_forward.7} parent=5 // pred_check_branch
        %1578 = sbr.rel (%p1576) target = $region85
      $region84: #{net_conpu_v7_forward.7} parent=5 // pred_region
        %s1579 = ssub.s32 %s10, 2
        // Predicated region
        $region86: #{net_conpu_v7_forward.7} parent=84 // pred_check
          %p1580 = pneg %p133
        $region87: #{net_conpu_v7_forward.7} parent=84 // pred_check_branch
          %1582 = sbr.rel (%p1580) target = $region89
        $region88: #{net_conpu_v7_forward.7} parent=84 // pred_region
          %s1583 = smul.u32 16, %s16
          %p1584 = scmp.lt.s32.totalorder %s1583, 31
          %s1585 = scalar_select %p1584, %s1583, 31
          %s1586 = smul.addr %s1585, 8
          %s1587 = scalar_lea.vmem %s4, %s1586
        $region89: #{net_conpu_v7_forward.7} parent=84 // pred_fallthru
          _
      $region85: #{net_conpu_v7_forward.7} parent=5 // pred_fallthru
        _
    $region6: #{net_conpu_v7_forward.7} parent=1 // loop_footer
      %s14 = sadd.s32 1, %s10
    $region7: #{net_conpu_v7_forward.7} parent=1 // loop_footer_branch
      %9 = sbr.rel target = $region3
    $region8: #{net_conpu_v7_forward.7} parent=1 // loop_exit
      _

// kernel: net_conpu_v7_forward.8
$region0: #{net_conpu_v7_forward.8}
  #allocation0 [shape = 'u32[]', space=smem, size = 0x4, offset = 0x4, fixed_abs, tag = 'smem constant byte address 0x4 - core index']
  #allocation1 [shape = 'u32[144,128]{1,0:T(1,128)}', space=vmem, size = 0x12000, scoped, tag = 'internal scratch']
  %s0 = inlined_call_operand.vmem [shape: bf16[4,256,64], index: 0, kind: input, shape index: {}]
  %s1 = inlined_call_operand.vmem [shape: bf16[256,64], index: 1, kind: input, shape index: {}]
  %s2 = inlined_call_operand.vmem [shape: bf16[64,128], index: 2, kind: input, shape index: {}]
  %s3 = inlined_call_operand.vmem [shape: bf16[64,128], index: 3, kind: input, shape index: {}]
  %s4 = inlined_call_operand.vmem [shape: f32[256,128], index: 4, kind: output, shape index: {}]
  %s5 = sld [smem:[#allocation0]]
  $region90: #{net_conpu_v7_forward.8} parent=0
    _
  %s7 = ssub.s32 1, %s5
  %s8 = scalar_select 0, %s7, %s5
  $region1: #{net_conpu_v7_forward.8} parent=0
    #allocation2 [shape = 'u8[262144]{0}', space=vmem, size = 0x40000, scoped, tag = 'input window, operand 0']
    loop: start=0, step=1, limit=4
    $region2: #{net_conpu_v7_forward.8} parent=1 // loop_pre_header
      _
    $region3: #{net_conpu_v7_forward.8} parent=1 // loop_header
      %s10 = sphi 0, %s14
      %p11 = scmp.ge.s32.totalorder %s10, 4
      %s20 = sphi 0, %s22
      %s23 = sphi 0, %s20
      %s24 = sphi 0, %s23
      %s40 = sphi 0, %s24
      %s46 = sphi 0, %s48
      %s49 = sphi 0, %s46
      %s50 = sphi 0, %s49
      %s66 = sphi 0, %s50
      %s70 = sphi 0, %s70
      %s72 = sphi 0, %s70
      %s73 = sphi 0, %s72
      %s87 = sphi 0, %s73
      %s91 = sphi 0, %s91
      %s93 = sphi 0, %s91
      %s94 = sphi 0, %s93
      %s108 = sphi 0, %s94
      %s114 = sphi 0, %s116
      %s117 = sphi 0, %s114
      %s118 = sphi 0, %s117
      %s134 = sphi 0, %s118
    $region4: #{net_conpu_v7_forward.8} parent=1 // loop_header_branch
      %13 = sbr.rel (%p11) target = $region8
    $region5: #{net_conpu_v7_forward.8} parent=1 // loop_body
      %s15 = ssub.s32 %s10, 1
      %s16 = ssub.s32 %s10, 2
      %s17 = sadd.s32 %s10, 1
      %s18 = ssub.s32 %s10, %s17
      %p19 = scmp.eq.s32.totalorder %s18, 0
      %s21 = sadd.s32 %s20, 1
      %s22 = scalar_select %p19, %s20, %s21
      %p25 = pneg %p19
      %p26 = scmp.eq.s32.totalorder %s10, 1
      %p27 = por %p25, %p26
      %p28 = scmp.ne.s32.totalorder %s20, %s23
      %p29 = scmp.eq.s32.totalorder %s10, 0
      %p30 = por %p28, %p29
      %p31 = scmp.ne.s32.totalorder %s20, %s23
      %p32 = scmp.eq.s32.totalorder %s15, 1
      %p33 = por %p31, %p32
      %p34 = scmp.ne.s32.totalorder %s23, %s24
      %p35 = scmp.eq.s32.totalorder %s15, 0
      %p36 = por %p34, %p35
      %p37 = scmp.ne.s32.totalorder %s23, %s24
      %p38 = scmp.eq.s32.totalorder %s16, 1
      %p39 = por %p37, %p38
      %p41 = scmp.ne.s32.totalorder %s24, %s40
      %p42 = scmp.eq.s32.totalorder %s16, 0
      %p43 = por %p41, %p42
      %s44 = ssub.s32 %s10, %s17
      %p45 = scmp.eq.s32.totalorder %s44, 0
      %s47 = sadd.s32 %s46, 1
      %s48 = scalar_select %p45, %s46, %s47
      %p51 = pneg %p45
      %p52 = scmp.eq.s32.totalorder %s10, 1
      %p53 = por %p51, %p52
      %p54 = scmp.ne.s32.totalorder %s46, %s49
      %p55 = scmp.eq.s32.totalorder %s10, 0
      %p56 = por %p54, %p55
      %p57 = scmp.ne.s32.totalorder %s46, %s49
      %p58 = scmp.eq.s32.totalorder %s15, 1
      %p59 = por %p57, %p58
      %p60 = scmp.ne.s32.totalorder %s49, %s50
      %p61 = scmp.eq.s32.totalorder %s15, 0
      %p62 = por %p60, %p61
      %p63 = scmp.ne.s32.totalorder %s49, %s50
      %p64 = scmp.eq.s32.totalorder %s16, 1
      %p65 = por %p63, %p64
      %p67 = scmp.ne.s32.totalorder %s50, %s66
      %p68 = scmp.eq.s32.totalorder %s16, 0
      %p69 = por %p67, %p68
      %s71 = sadd.s32 %s70, 1
      %p74 = scmp.eq.s32.totalorder %s10, 1
      %p75 = scmp.ne.s32.totalorder %s70, %s72
      %p76 = scmp.eq.s32.totalorder %s10, 0
      %p77 = por %p75, %p76
      %p78 = scmp.ne.s32.totalorder %s70, %s72
      %p79 = scmp.eq.s32.totalorder %s15, 1
      %p80 = por %p78, %p79
      %p81 = scmp.ne.s32.totalorder %s72, %s73
      %p82 = scmp.eq.s32.totalorder %s15, 0
      %p83 = por %p81, %p82
      %p84 = scmp.ne.s32.totalorder %s72, %s73
      %p85 = scmp.eq.s32.totalorder %s16, 1
      %p86 = por %p84, %p85
      %p88 = scmp.ne.s32.totalorder %s73, %s87
      %p89 = scmp.eq.s32.totalorder %s16, 0
      %p90 = por %p88, %p89
      %s92 = sadd.s32 %s91, 1
      %p95 = scmp.eq.s32.totalorder %s10, 1
      %p96 = scmp.ne.s32.totalorder %s91, %s93
      %p97 = scmp.eq.s32.totalorder %s10, 0
      %p98 = por %p96, %p97
      %p99 = scmp.ne.s32.totalorder %s91, %s93
      %p100 = scmp.eq.s32.totalorder %s15, 1
      %p101 = por %p99, %p100
      %p102 = scmp.ne.s32.totalorder %s93, %s94
      %p103 = scmp.eq.s32.totalorder %s15, 0
      %p104 = por %p102, %p103
      %p105 = scmp.ne.s32.totalorder %s93, %s94
      %p106 = scmp.eq.s32.totalorder %s16, 1
      %p107 = por %p105, %p106
      %p109 = scmp.ne.s32.totalorder %s94, %s108
      %p110 = scmp.eq.s32.totalorder %s16, 0
      %p111 = por %p109, %p110
      %s112 = ssub.s32 %s10, %s17
      %p113 = scmp.eq.s32.totalorder %s112, 0
      %s115 = sadd.s32 %s114, 1
      %s116 = scalar_select %p113, %s114, %s115
      %p119 = pneg %p113
      %p120 = scmp.eq.s32.totalorder %s10, 1
      %p121 = por %p119, %p120
      %p122 = scmp.ne.s32.totalorder %s114, %s117
      %p123 = scmp.eq.s32.totalorder %s10, 0
      %p124 = por %p122, %p123
      %p125 = scmp.ne.s32.totalorder %s114, %s117
      %p126 = scmp.eq.s32.totalorder %s15, 1
      %p127 = por %p125, %p126
      %p128 = scmp.ne.s32.totalorder %s117, %s118
      %p129 = scmp.eq.s32.totalorder %s15, 0
      %p130 = por %p128, %p129
      %p131 = scmp.ne.s32.totalorder %s117, %s118
      %p132 = scmp.eq.s32.totalorder %s16, 1
      %p133 = por %p131, %p132
      %p135 = scmp.ne.s32.totalorder %s118, %s134
      %p136 = scmp.eq.s32.totalorder %s16, 0
      %p137 = por %p135, %p136
      %p138 = scmp.le.s32.totalorder 1, %s10
      %p139 = scmp.lt.s32.totalorder %s10, 3
      %p140 = pnand %p138, %p139
      %p141 = pneg %p140
      // Predicated region
      $region9: #{net_conpu_v7_forward.8} parent=5 // pred_check
        _
      $region10: #{net_conpu_v7_forward.8} parent=5 // pred_check_branch
        %143 = sbr.rel (%p140) target = $region12
      $region11: #{net_conpu_v7_forward.8} parent=5 // pred_region
        %s144 = ssub.s32 %s10, 1
        // Predicated region
        $region13: #{net_conpu_v7_forward.8} parent=11 // pred_check
          %p145 = pneg %p83
        $region14: #{net_conpu_v7_forward.8} parent=11 // pred_check_branch
          %147 = sbr.rel (%p145) target = $region16
        $region15: #{net_conpu_v7_forward.8} parent=11 // pred_region
          _
        $region16: #{net_conpu_v7_forward.8} parent=11 // pred_fallthru
          _
        // Predicated region
        $region17: #{net_conpu_v7_forward.8} parent=11 // pred_check
          %p148 = pneg %p104
        $region18: #{net_conpu_v7_forward.8} parent=11 // pred_check_branch
          %150 = sbr.rel (%p148) target = $region20
        $region19: #{net_conpu_v7_forward.8} parent=11 // pred_region
          _
        $region20: #{net_conpu_v7_forward.8} parent=11 // pred_fallthru
          _
      $region12: #{net_conpu_v7_forward.8} parent=5 // pred_fallthru
        _
      %p151 = scmp.lt.s32.totalorder %s10, 2
      // Predicated region
      $region21: #{net_conpu_v7_forward.8} parent=5 // pred_check
        %p152 = pneg %p151
      $region22: #{net_conpu_v7_forward.8} parent=5 // pred_check_branch
        %154 = sbr.rel (%p152) target = $region24
      $region23: #{net_conpu_v7_forward.8} parent=5 // pred_region
        // Predicated region
        $region25: #{net_conpu_v7_forward.8} parent=23 // pred_check
          %p155 = pneg %p30
        $region26: #{net_conpu_v7_forward.8} parent=23 // pred_check_branch
          %157 = sbr.rel (%p155) target = $region28
        $region27: #{net_conpu_v7_forward.8} parent=23 // pred_region
          %s158 = sand.u32 %s20, 1
          %s159 = sand.u32 %s20, 1
          %s160 = smul.addr %s159, 256
          %s161 = scalar_lea.vmem [#allocation2], %s160
          %s162 = smul.u32 16, %s10
          %s163 = smul.addr %s162, 4
          %s164 = scalar_lea.vmem %s0, %s163
          // Predicated region
          $region29: #{net_conpu_v7_forward.8} parent=27 // pred_check
            _
          $region30: #{net_conpu_v7_forward.8} parent=27 // pred_check_branch
            %166 = sbr.rel (0) target = $region32
          $region31: #{net_conpu_v7_forward.8} parent=27 // pred_region
            // Predicated region
            $region33: #{net_conpu_v7_forward.8} parent=31 // pred_check
              _
            $region34: #{net_conpu_v7_forward.8} parent=31 // pred_check_branch
              %168 = sbr.rel target = $region36
            $region35: #{net_conpu_v7_forward.8} parent=31 // pred_region
              // Predicated region
              $region48: #{net_conpu_v7_forward.8} parent=35 // pred_check
                _
              $region49: #{net_conpu_v7_forward.8} parent=35 // pred_check_branch
                %309 = sbr.rel (0) target = $region51
              $region50: #{net_conpu_v7_forward.8} parent=35 // pred_region
                loop: start=0, step=1, limit=1
                $region52: #{net_conpu_v7_forward.8} parent=50 // loop_pre_header
                  _
                $region53: #{net_conpu_v7_forward.8} parent=50 // loop_header
                  %s311 = sphi 0, %s315
                  %p312 = scmp.ge.s32.totalorder %s311, 1
                  %s316 = sphi %s164, %s164
                  %s317 = sphi %s161, %s161
                $region54: #{net_conpu_v7_forward.8} parent=50 // loop_header_branch
                  %314 = sbr.rel (%p312) target = $region58
                $region55: #{net_conpu_v7_forward.8} parent=50 // loop_body
                  _
                $region56: #{net_conpu_v7_forward.8} parent=50 // loop_footer
                  %s315 = sadd.s32 1, %s311
                $region57: #{net_conpu_v7_forward.8} parent=50 // loop_footer_branch
                  %310 = sbr.rel target = $region53
                $region58: #{net_conpu_v7_forward.8} parent=50 // loop_exit
                  _
                loop: start=0, step=1, limit=1
                $region59: #{net_conpu_v7_forward.8} parent=50 // loop_pre_header
                  _
                $region60: #{net_conpu_v7_forward.8} parent=50 // loop_header
                  %s320 = sphi 0, %s324
                  %p321 = scmp.ge.s32.totalorder %s320, 1
                  %s325 = sphi %s164, %s164
                  %s326 = sphi %s161, %s161
                $region61: #{net_conpu_v7_forward.8} parent=50 // loop_header_branch
                  %323 = sbr.rel (%p321) target = $region65
                $region62: #{net_conpu_v7_forward.8} parent=50 // loop_body
                  %v327 = vld [vmem:[%s325] sm:$0xf]
                  %328 = vst [vmem:[%s326] sm:$0xf] %v327
                  %v329 = vld [vmem:[%s325 + $0x4] sm:$0xf]
                  %330 = vst [vmem:[%s326 + $0x4] sm:$0xf] %v329
                  %v331 = vld [vmem:[%s325 + $0x8] sm:$0xf]
                  %332 = vst [vmem:[%s326 + $0x8] sm:$0xf] %v331
                  %v333 = vld [vmem:[%s325 + $0xc] sm:$0xf]
                  %334 = vst [vmem:[%s326 + $0xc] sm:$0xf] %v333
                  %v335 = vld [vmem:[%s325 + $0x10] sm:$0xf]
                  %336 = vst [vmem:[%s326 + $0x10] sm:$0xf] %v335
                  %v337 = vld [vmem:[%s325 + $0x14] sm:$0xf]
                  %338 = vst [vmem:[%s326 + $0x14] sm:$0xf] %v337
                  %v339 = vld [vmem:[%s325 + $0x18] sm:$0xf]
                  %340 = vst [vmem:[%s326 + $0x18] sm:$0xf] %v339
                  %v341 = vld [vmem:[%s325 + $0x1c] sm:$0xf]
                  %342 = vst [vmem:[%s326 + $0x1c] sm:$0xf] %v341
                  %v343 = vld [vmem:[%s325 + $0x20] sm:$0xf]
                  %344 = vst [vmem:[%s326 + $0x20] sm:$0xf] %v343
                  %v345 = vld [vmem:[%s325 + $0x24] sm:$0xf]
                  %346 = vst [vmem:[%s326 + $0x24] sm:$0xf] %v345
                  %v347 = vld [vmem:[%s325 + $0x28] sm:$0xf]
                  %348 = vst [vmem:[%s326 + $0x28] sm:$0xf] %v347
                  %v349 = vld [vmem:[%s325 + $0x2c] sm:$0xf]
                  %350 = vst [vmem:[%s326 + $0x2c] sm:$0xf] %v349
                  %v351 = vld [vmem:[%s325 + $0x30] sm:$0xf]
                  %352 = vst [vmem:[%s326 + $0x30] sm:$0xf] %v351
                  %v353 = vld [vmem:[%s325 + $0x34] sm:$0xf]
                  %354 = vst [vmem:[%s326 + $0x34] sm:$0xf] %v353
                  %v355 = vld [vmem:[%s325 + $0x38] sm:$0xf]
                  %356 = vst [vmem:[%s326 + $0x38] sm:$0xf] %v355
                  %v357 = vld [vmem:[%s325 + $0x3c] sm:$0xf]
                  %358 = vst [vmem:[%s326 + $0x3c] sm:$0xf] %v357
                  %v359 = vld [vmem:[%s325 + $0x80] sm:$0xf]
                  %360 = vst [vmem:[%s326 + $0x40] sm:$0xf] %v359
                  %v361 = vld [vmem:[%s325 + $0x84] sm:$0xf]
                  %362 = vst [vmem:[%s326 + $0x44] sm:$0xf] %v361
                  %v363 = vld [vmem:[%s325 + $0x88] sm:$0xf]
                  %364 = vst [vmem:[%s326 + $0x48] sm:$0xf] %v363
                  %v365 = vld [vmem:[%s325 + $0x8c] sm:$0xf]
                  %366 = vst [vmem:[%s326 + $0x4c] sm:$0xf] %v365
                  %v367 = vld [vmem:[%s325 + $0x90] sm:$0xf]
                  %368 = vst [vmem:[%s326 + $0x50] sm:$0xf] %v367
                  %v369 = vld [vmem:[%s325 + $0x94] sm:$0xf]
                  %370 = vst [vmem:[%s326 + $0x54] sm:$0xf] %v369
                  %v371 = vld [vmem:[%s325 + $0x98] sm:$0xf]
                  %372 = vst [vmem:[%s326 + $0x58] sm:$0xf] %v371
                  %v373 = vld [vmem:[%s325 + $0x9c] sm:$0xf]
                  %374 = vst [vmem:[%s326 + $0x5c] sm:$0xf] %v373
                  %v375 = vld [vmem:[%s325 + $0xa0] sm:$0xf]
                  %376 = vst [vmem:[%s326 + $0x60] sm:$0xf] %v375
                  %v377 = vld [vmem:[%s325 + $0xa4] sm:$0xf]
                  %378 = vst [vmem:[%s326 + $0x64] sm:$0xf] %v377
                  %v379 = vld [vmem:[%s325 + $0xa8] sm:$0xf]
                  %380 = vst [vmem:[%s326 + $0x68] sm:$0xf] %v379
                  %v381 = vld [vmem:[%s325 + $0xac] sm:$0xf]
                  %382 = vst [vmem:[%s326 + $0x6c] sm:$0xf] %v381
                  %v383 = vld [vmem:[%s325 + $0xb0] sm:$0xf]
                  %384 = vst [vmem:[%s326 + $0x70] sm:$0xf] %v383
                  %v385 = vld [vmem:[%s325 + $0xb4] sm:$0xf]
                  %386 = vst [vmem:[%s326 + $0x74] sm:$0xf] %v385
                  %v387 = vld [vmem:[%s325 + $0xb8] sm:$0xf]
                  %388 = vst [vmem:[%s326 + $0x78] sm:$0xf] %v387
                  %v389 = vld [vmem:[%s325 + $0xbc] sm:$0xf]
                  %390 = vst [vmem:[%s326 + $0x7c] sm:$0xf] %v389
                  %v391 = vld [vmem:[%s325 + $0x100] sm:$0xf]
                  %392 = vst [vmem:[%s326 + $0x80] sm:$0xf] %v391
                  %v393 = vld [vmem:[%s325 + $0x104] sm:$0xf]
                  %394 = vst [vmem:[%s326 + $0x84] sm:$0xf] %v393
                  %v395 = vld [vmem:[%s325 + $0x108] sm:$0xf]
                  %396 = vst [vmem:[%s326 + $0x88] sm:$0xf] %v395
                  %v397 = vld [vmem:[%s325 + $0x10c] sm:$0xf]
                  %398 = vst [vmem:[%s326 + $0x8c] sm:$0xf] %v397
                  %v399 = vld [vmem:[%s325 + $0x110] sm:$0xf]
                  %400 = vst [vmem:[%s326 + $0x90] sm:$0xf] %v399
                  %v401 = vld [vmem:[%s325 + $0x114] sm:$0xf]
                  %402 = vst [vmem:[%s326 + $0x94] sm:$0xf] %v401
                  %v403 = vld [vmem:[%s325 + $0x118] sm:$0xf]
                  %404 = vst [vmem:[%s326 + $0x98] sm:$0xf] %v403
                  %v405 = vld [vmem:[%s325 + $0x11c] sm:$0xf]
                  %406 = vst [vmem:[%s326 + $0x9c] sm:$0xf] %v405
                  %v407 = vld [vmem:[%s325 + $0x120] sm:$0xf]
                  %408 = vst [vmem:[%s326 + $0xa0] sm:$0xf] %v407
                  %v409 = vld [vmem:[%s325 + $0x124] sm:$0xf]
                  %410 = vst [vmem:[%s326 + $0xa4] sm:$0xf] %v409
                  %v411 = vld [vmem:[%s325 + $0x128] sm:$0xf]
                  %412 = vst [vmem:[%s326 + $0xa8] sm:$0xf] %v411
                  %v413 = vld [vmem:[%s325 + $0x12c] sm:$0xf]
                  %414 = vst [vmem:[%s326 + $0xac] sm:$0xf] %v413
                  %v415 = vld [vmem:[%s325 + $0x130] sm:$0xf]
                  %416 = vst [vmem:[%s326 + $0xb0] sm:$0xf] %v415
                  %v417 = vld [vmem:[%s325 + $0x134] sm:$0xf]
                  %418 = vst [vmem:[%s326 + $0xb4] sm:$0xf] %v417
                  %v419 = vld [vmem:[%s325 + $0x138] sm:$0xf]
                  %420 = vst [vmem:[%s326 + $0xb8] sm:$0xf] %v419
                  %v421 = vld [vmem:[%s325 + $0x13c] sm:$0xf]
                  %422 = vst [vmem:[%s326 + $0xbc] sm:$0xf] %v421
                  %v423 = vld [vmem:[%s325 + $0x180] sm:$0xf]
                  %424 = vst [vmem:[%s326 + $0xc0] sm:$0xf] %v423
                  %v425 = vld [vmem:[%s325 + $0x184] sm:$0xf]
                  %426 = vst [vmem:[%s326 + $0xc4] sm:$0xf] %v425
                  %v427 = vld [vmem:[%s325 + $0x188] sm:$0xf]
                  %428 = vst [vmem:[%s326 + $0xc8] sm:$0xf] %v427
                  %v429 = vld [vmem:[%s325 + $0x18c] sm:$0xf]
                  %430 = vst [vmem:[%s326 + $0xcc] sm:$0xf] %v429
                  %v431 = vld [vmem:[%s325 + $0x190] sm:$0xf]
                  %432 = vst [vmem:[%s326 + $0xd0] sm:$0xf] %v431
                  %v433 = vld [vmem:[%s325 + $0x194] sm:$0xf]
                  %434 = vst [vmem:[%s326 + $0xd4] sm:$0xf] %v433
                  %v435 = vld [vmem:[%s325 + $0x198] sm:$0xf]
                  %436 = vst [vmem:[%s326 + $0xd8] sm:$0xf] %v435
                  %v437 = vld [vmem:[%s325 + $0x19c] sm:$0xf]
                  %438 = vst [vmem:[%s326 + $0xdc] sm:$0xf] %v437
                  %v439 = vld [vmem:[%s325 + $0x1a0] sm:$0xf]
                  %440 = vst [vmem:[%s326 + $0xe0] sm:$0xf] %v439
                  %v441 = vld [vmem:[%s325 + $0x1a4] sm:$0xf]
                  %442 = vst [vmem:[%s326 + $0xe4] sm:$0xf] %v441
                  %v443 = vld [vmem:[%s325 + $0x1a8] sm:$0xf]
                  %444 = vst [vmem:[%s326 + $0xe8] sm:$0xf] %v443
                  %v445 = vld [vmem:[%s325 + $0x1ac] sm:$0xf]
                  %446 = vst [vmem:[%s326 + $0xec] sm:$0xf] %v445
                  %v447 = vld [vmem:[%s325 + $0x1b0] sm:$0xf]
                  %448 = vst [vmem:[%s326 + $0xf0] sm:$0xf] %v447
                  %v449 = vld [vmem:[%s325 + $0x1b4] sm:$0xf]
                  %450 = vst [vmem:[%s326 + $0xf4] sm:$0xf] %v449
                  %v451 = vld [vmem:[%s325 + $0x1b8] sm:$0xf]
                  %452 = vst [vmem:[%s326 + $0xf8] sm:$0xf] %v451
                  %v453 = vld [vmem:[%s325 + $0x1bc] sm:$0xf]
                  %454 = vst [vmem:[%s326 + $0xfc] sm:$0xf] %v453
                $region63: #{net_conpu_v7_forward.8} parent=50 // loop_footer
                  %s324 = sadd.s32 1, %s320
                $region64: #{net_conpu_v7_forward.8} parent=50 // loop_footer_branch
                  %319 = sbr.rel target = $region60
                $region65: #{net_conpu_v7_forward.8} parent=50 // loop_exit
                  _
              $region51: #{net_conpu_v7_forward.8} parent=35 // pred_fallthru
                _
            $region36: #{net_conpu_v7_forward.8} parent=31 // pred_fallthru
              _
            // Predicated region
            $region37: #{net_conpu_v7_forward.8} parent=31 // pred_check
              _
            $region38: #{net_conpu_v7_forward.8} parent=31 // pred_check_branch
              %170 = sbr.rel (0) target = $region40
            $region39: #{net_conpu_v7_forward.8} parent=31 // pred_region
              loop: start=0, step=1, limit=1
              $region41: #{net_conpu_v7_forward.8} parent=39 // loop_pre_header
                _
              $region42: #{net_conpu_v7_forward.8} parent=39 // loop_header
                %s173 = sphi 0, %s177
                %p174 = scmp.ge.s32.totalorder %s173, 1
                %s178 = sphi %s164, %s164
                %s179 = sphi %s161, %s161
              $region43: #{net_conpu_v7_forward.8} parent=39 // loop_header_branch
                %176 = sbr.rel (%p174) target = $region47
              $region44: #{net_conpu_v7_forward.8} parent=39 // loop_body
                %v180 = vld [vmem:[%s178] sm:$0xf]
                %181 = vst [vmem:[%s179] sm:$0xf] %v180
                %v182 = vld [vmem:[%s178 + $0x4] sm:$0xf]
                %183 = vst [vmem:[%s179 + $0x4] sm:$0xf] %v182
                %v184 = vld [vmem:[%s178 + $0x8] sm:$0xf]
                %185 = vst [vmem:[%s179 + $0x8] sm:$0xf] %v184
                %v186 = vld [vmem:[%s178 + $0xc] sm:$0xf]
                %187 = vst [vmem:[%s179 + $0xc] sm:$0xf] %v186
                %v188 = vld [vmem:[%s178 + $0x10] sm:$0xf]
                %189 = vst [vmem:[%s179 + $0x10] sm:$0xf] %v188
                %v190 = vld [vmem:[%s178 + $0x14] sm:$0xf]
                %191 = vst [vmem:[%s179 + $0x14] sm:$0xf] %v190
                %v192 = vld [vmem:[%s178 + $0x18] sm:$0xf]
                %193 = vst [vmem:[%s179 + $0x18] sm:$0xf] %v192
                %v194 = vld [vmem:[%s178 + $0x1c] sm:$0xf]
                %195 = vst [vmem:[%s179 + $0x1c] sm:$0xf] %v194
                %v196 = vld [vmem:[%s178 + $0x20] sm:$0xf]
                %197 = vst [vmem:[%s179 + $0x20] sm:$0xf] %v196
                %v198 = vld [vmem:[%s178 + $0x24] sm:$0xf]
                %199 = vst [vmem:[%s179 + $0x24] sm:$0xf] %v198
                %v200 = vld [vmem:[%s178 + $0x28] sm:$0xf]
                %201 = vst [vmem:[%s179 + $0x28] sm:$0xf] %v200
                %v202 = vld [vmem:[%s178 + $0x2c] sm:$0xf]
                %203 = vst [vmem:[%s179 + $0x2c] sm:$0xf] %v202
                %v204 = vld [vmem:[%s178 + $0x30] sm:$0xf]
                %205 = vst [vmem:[%s179 + $0x30] sm:$0xf] %v204
                %v206 = vld [vmem:[%s178 + $0x34] sm:$0xf]
                %207 = vst [vmem:[%s179 + $0x34] sm:$0xf] %v206
                %v208 = vld [vmem:[%s178 + $0x38] sm:$0xf]
                %209 = vst [vmem:[%s179 + $0x38] sm:$0xf] %v208
                %v210 = vld [vmem:[%s178 + $0x3c] sm:$0xf]
                %211 = vst [vmem:[%s179 + $0x3c] sm:$0xf] %v210
                %v212 = vld [vmem:[%s178 + $0x80] sm:$0xf]
                %213 = vst [vmem:[%s179 + $0x40] sm:$0xf] %v212
                %v214 = vld [vmem:[%s178 + $0x84] sm:$0xf]
                %215 = vst [vmem:[%s179 + $0x44] sm:$0xf] %v214
                %v216 = vld [vmem:[%s178 + $0x88] sm:$0xf]
                %217 = vst [vmem:[%s179 + $0x48] sm:$0xf] %v216
                %v218 = vld [vmem:[%s178 + $0x8c] sm:$0xf]
                %219 = vst [vmem:[%s179 + $0x4c] sm:$0xf] %v218
                %v220 = vld [vmem:[%s178 + $0x90] sm:$0xf]
                %221 = vst [vmem:[%s179 + $0x50] sm:$0xf] %v220
                %v222 = vld [vmem:[%s178 + $0x94] sm:$0xf]
                %223 = vst [vmem:[%s179 + $0x54] sm:$0xf] %v222
                %v224 = vld [vmem:[%s178 + $0x98] sm:$0xf]
                %225 = vst [vmem:[%s179 + $0x58] sm:$0xf] %v224
                %v226 = vld [vmem:[%s178 + $0x9c] sm:$0xf]
                %227 = vst [vmem:[%s179 + $0x5c] sm:$0xf] %v226
                %v228 = vld [vmem:[%s178 + $0xa0] sm:$0xf]
                %229 = vst [vmem:[%s179 + $0x60] sm:$0xf] %v228
                %v230 = vld [vmem:[%s178 + $0xa4] sm:$0xf]
                %231 = vst [vmem:[%s179 + $0x64] sm:$0xf] %v230
                %v232 = vld [vmem:[%s178 + $0xa8] sm:$0xf]
                %233 = vst [vmem:[%s179 + $0x68] sm:$0xf] %v232
                %v234 = vld [vmem:[%s178 + $0xac] sm:$0xf]
                %235 = vst [vmem:[%s179 + $0x6c] sm:$0xf] %v234
                %v236 = vld [vmem:[%s178 + $0xb0] sm:$0xf]
                %237 = vst [vmem:[%s179 + $0x70] sm:$0xf] %v236
                %v238 = vld [vmem:[%s178 + $0xb4] sm:$0xf]
                %239 = vst [vmem:[%s179 + $0x74] sm:$0xf] %v238
                %v240 = vld [vmem:[%s178 + $0xb8] sm:$0xf]
                %241 = vst [vmem:[%s179 + $0x78] sm:$0xf] %v240
                %v242 = vld [vmem:[%s178 + $0xbc] sm:$0xf]
                %243 = vst [vmem:[%s179 + $0x7c] sm:$0xf] %v242
                %v244 = vld [vmem:[%s178 + $0x100] sm:$0xf]
                %245 = vst [vmem:[%s179 + $0x80] sm:$0xf] %v244
                %v246 = vld [vmem:[%s178 + $0x104] sm:$0xf]
                %247 = vst [vmem:[%s179 + $0x84] sm:$0xf] %v246
                %v248 = vld [vmem:[%s178 + $0x108] sm:$0xf]
                %249 = vst [vmem:[%s179 + $0x88] sm:$0xf] %v248
                %v250 = vld [vmem:[%s178 + $0x10c] sm:$0xf]
                %251 = vst [vmem:[%s179 + $0x8c] sm:$0xf] %v250
                %v252 = vld [vmem:[%s178 + $0x110] sm:$0xf]
                %253 = vst [vmem:[%s179 + $0x90] sm:$0xf] %v252
                %v254 = vld [vmem:[%s178 + $0x114] sm:$0xf]
                %255 = vst [vmem:[%s179 + $0x94] sm:$0xf] %v254
                %v256 = vld [vmem:[%s178 + $0x118] sm:$0xf]
                %257 = vst [vmem:[%s179 + $0x98] sm:$0xf] %v256
                %v258 = vld [vmem:[%s178 + $0x11c] sm:$0xf]
                %259 = vst [vmem:[%s179 + $0x9c] sm:$0xf] %v258
                %v260 = vld [vmem:[%s178 + $0x120] sm:$0xf]
                %261 = vst [vmem:[%s179 + $0xa0] sm:$0xf] %v260
                %v262 = vld [vmem:[%s178 + $0x124] sm:$0xf]
                %263 = vst [vmem:[%s179 + $0xa4] sm:$0xf] %v262
                %v264 = vld [vmem:[%s178 + $0x128] sm:$0xf]
                %265 = vst [vmem:[%s179 + $0xa8] sm:$0xf] %v264
                %v266 = vld [vmem:[%s178 + $0x12c] sm:$0xf]
                %267 = vst [vmem:[%s179 + $0xac] sm:$0xf] %v266
                %v268 = vld [vmem:[%s178 + $0x130] sm:$0xf]
                %269 = vst [vmem:[%s179 + $0xb0] sm:$0xf] %v268
                %v270 = vld [vmem:[%s178 + $0x134] sm:$0xf]
                %271 = vst [vmem:[%s179 + $0xb4] sm:$0xf] %v270
                %v272 = vld [vmem:[%s178 + $0x138] sm:$0xf]
                %273 = vst [vmem:[%s179 + $0xb8] sm:$0xf] %v272
                %v274 = vld [vmem:[%s178 + $0x13c] sm:$0xf]
                %275 = vst [vmem:[%s179 + $0xbc] sm:$0xf] %v274
                %v276 = vld [vmem:[%s178 + $0x180] sm:$0xf]
                %277 = vst [vmem:[%s179 + $0xc0] sm:$0xf] %v276
                %v278 = vld [vmem:[%s178 + $0x184] sm:$0xf]
                %279 = vst [vmem:[%s179 + $0xc4] sm:$0xf] %v278
                %v280 = vld [vmem:[%s178 + $0x188] sm:$0xf]
                %281 = vst [vmem:[%s179 + $0xc8] sm:$0xf] %v280
                %v282 = vld [vmem:[%s178 + $0x18c] sm:$0xf]
                %283 = vst [vmem:[%s179 + $0xcc] sm:$0xf] %v282
                %v284 = vld [vmem:[%s178 + $0x190] sm:$0xf]
                %285 = vst [vmem:[%s179 + $0xd0] sm:$0xf] %v284
                %v286 = vld [vmem:[%s178 + $0x194] sm:$0xf]
                %287 = vst [vmem:[%s179 + $0xd4] sm:$0xf] %v286
                %v288 = vld [vmem:[%s178 + $0x198] sm:$0xf]
                %289 = vst [vmem:[%s179 + $0xd8] sm:$0xf] %v288
                %v290 = vld [vmem:[%s178 + $0x19c] sm:$0xf]
                %291 = vst [vmem:[%s179 + $0xdc] sm:$0xf] %v290
                %v292 = vld [vmem:[%s178 + $0x1a0] sm:$0xf]
                %293 = vst [vmem:[%s179 + $0xe0] sm:$0xf] %v292
                %v294 = vld [vmem:[%s178 + $0x1a4] sm:$0xf]
                %295 = vst [vmem:[%s179 + $0xe4] sm:$0xf] %v294
                %v296 = vld [vmem:[%s178 + $0x1a8] sm:$0xf]
                %297 = vst [vmem:[%s179 + $0xe8] sm:$0xf] %v296
                %v298 = vld [vmem:[%s178 + $0x1ac] sm:$0xf]
                %299 = vst [vmem:[%s179 + $0xec] sm:$0xf] %v298
                %v300 = vld [vmem:[%s178 + $0x1b0] sm:$0xf]
                %301 = vst [vmem:[%s179 + $0xf0] sm:$0xf] %v300
                %v302 = vld [vmem:[%s178 + $0x1b4] sm:$0xf]
                %303 = vst [vmem:[%s179 + $0xf4] sm:$0xf] %v302
                %v304 = vld [vmem:[%s178 + $0x1b8] sm:$0xf]
                %305 = vst [vmem:[%s179 + $0xf8] sm:$0xf] %v304
                %v306 = vld [vmem:[%s178 + $0x1bc] sm:$0xf]
                %307 = vst [vmem:[%s179 + $0xfc] sm:$0xf] %v306
              $region45: #{net_conpu_v7_forward.8} parent=39 // loop_footer
                %s177 = sadd.s32 1, %s173
              $region46: #{net_conpu_v7_forward.8} parent=39 // loop_footer_branch
                %172 = sbr.rel target = $region42
              $region47: #{net_conpu_v7_forward.8} parent=39 // loop_exit
                _
            $region40: #{net_conpu_v7_forward.8} parent=31 // pred_fallthru
              _
          $region32: #{net_conpu_v7_forward.8} parent=27 // pred_fallthru
            _
          %455 = vnop
        $region28: #{net_conpu_v7_forward.8} parent=23 // pred_fallthru
          _
        // Predicated region
        $region66: #{net_conpu_v7_forward.8} parent=23 // pred_check
          %p456 = pneg %p56
        $region67: #{net_conpu_v7_forward.8} parent=23 // pred_check_branch
          %458 = sbr.rel (%p456) target = $region69
        $region68: #{net_conpu_v7_forward.8} parent=23 // pred_region
          %s459 = smul.u32 16, %s10
          %p460 = scmp.lt.s32.totalorder %s459, 31
          %s461 = scalar_select %p460, %s459, 31
          %s462 = smul.addr %s461, 4
          %s463 = scalar_lea.vmem %s1, %s462
          %s464 = smul.u32 16, %s10
        $region69: #{net_conpu_v7_forward.8} parent=23 // pred_fallthru
          _
      $region24: #{net_conpu_v7_forward.8} parent=5 // pred_fallthru
        _
      %p465 = scmp.le.s32.totalorder 1, %s10
      %p466 = scmp.lt.s32.totalorder %s10, 3
      %p467 = pnand %p465, %p466
      %p468 = pneg %p467
      // Predicated region
      $region70: #{net_conpu_v7_forward.8} parent=5 // pred_check
        _
      $region71: #{net_conpu_v7_forward.8} parent=5 // pred_check_branch
        %470 = sbr.rel (%p467) target = $region73
      $region72: #{net_conpu_v7_forward.8} parent=5 // pred_region
        %s471 = ssub.s32 %s10, 1
        %s472 = sand.u32 %s23, 1
        %s473 = sand.u32 %s23, 1
        %s474 = smul.addr %s473, 256
        %s475 = scalar_lea.vmem [#allocation2], %s474
        // Predicated region
        $region74: #{net_conpu_v7_forward.8} parent=72 // pred_check
          %p476 = pneg %p36
        $region75: #{net_conpu_v7_forward.8} parent=72 // pred_check_branch
          %478 = sbr.rel (%p476) target = $region77
        $region76: #{net_conpu_v7_forward.8} parent=72 // pred_region
          _
        $region77: #{net_conpu_v7_forward.8} parent=72 // pred_fallthru
          _
        %s479 = sand.u32 %s23, 1
        %s480 = sand.u32 %s23, 1
        %s481 = smul.addr %s480, 256
        %s482 = scalar_lea.vmem [#allocation2], %s481
        %p483 = pneg %p36
        %p484 = pneg %p33
        %s485 = smul.u32 16, %s15
        %p486 = scmp.lt.s32.totalorder %s485, 31
        %s487 = scalar_select %p486, %s485, 31
        %s488 = smul.addr %s487, 4
        %s489 = scalar_lea.vmem %s1, %s488
        %p490 = pneg %p62
        %p491 = pneg %p59
        %p492 = pneg %p83
        %p493 = pneg %p80
        %p494 = pneg %p104
        %p495 = pneg %p101
        %p496 = pneg %p130
        %p497 = pneg %p127
        %s498 = smul.u32 16, %s15
        %p499 = scmp.lt.s32.totalorder %s498, 31
        %s500 = scalar_select %p499, %s498, 31
        %s501 = smul.addr %s500, 8
        %s502 = scalar_lea.vmem %s4, %s501
        %s503 = smul.u32 16, %s15
        %s504 = smul.u32 16, %s15
        %p505 = scmp.lt.s32.totalorder %s504, 31
        %s506 = scalar_select %p505, %s504, 31
        %s507 = smul.addr %s506, 4
        %s508 = scalar_lea.vmem %s1, %s507
        %s509 = smul.u32 16, %s15
        %s510 = smul.u32 16, %s15
        %p511 = scmp.lt.s32.totalorder %s510, 31
        %s512 = scalar_select %p511, %s510, 31
        %s513 = smul.addr %s512, 8
        %s514 = scalar_lea.vmem %s4, %s513
        %s515 = smul.u32 16, %s15
        %v517 = vld [vmem:[%s508] sm:$0xf]
        %v518 = vld [vmem:[%s508 + $0x4] sm:$0xf]
        %v519 = vld [vmem:[%s508 + $0x8] sm:$0xf]
        %v520 = vld [vmem:[%s508 + $0xc] sm:$0xf]
        %v521 = vld [vmem:[%s508 + $0x10] sm:$0xf]
        %v522 = vld [vmem:[%s508 + $0x14] sm:$0xf]
        %v523 = vld [vmem:[%s508 + $0x18] sm:$0xf]
        %v524 = vld [vmem:[%s508 + $0x1c] sm:$0xf]
        %v525 = vld [vmem:[%s508 + $0x20] sm:$0xf]
        %v526 = vld [vmem:[%s508 + $0x24] sm:$0xf]
        %v527 = vld [vmem:[%s508 + $0x28] sm:$0xf]
        %v528 = vld [vmem:[%s508 + $0x2c] sm:$0xf]
        %v529 = vld [vmem:[%s508 + $0x30] sm:$0xf]
        %v530 = vld [vmem:[%s508 + $0x34] sm:$0xf]
        %v531 = vld [vmem:[%s508 + $0x38] sm:$0xf]
        %v532 = vld [vmem:[%s508 + $0x3c] sm:$0xf]
        %v533 = vld [vmem:[%s3] sm:$0xf]
        %v534 = vld [vmem:[%s3 + $0x4] sm:$0xf]
        %v535 = vld [vmem:[%s3 + $0x8] sm:$0xf]
        %v536 = vld [vmem:[%s3 + $0xc] sm:$0xf]
        %v537 = vld [vmem:[%s3 + $0x10] sm:$0xf]
        %v538 = vld [vmem:[%s3 + $0x14] sm:$0xf]
        %v539 = vld [vmem:[%s3 + $0x18] sm:$0xf]
        %v540 = vld [vmem:[%s3 + $0x1c] sm:$0xf]
        %v557 = vunpack.c.l.b16 %v517
        %v558 = vunpack.c.l.b16 %v518
        %v559 = vunpack.c.l.b16 %v519
        %v560 = vunpack.c.l.b16 %v520
        %v561 = vunpack.c.l.b16 %v521
        %v562 = vunpack.c.l.b16 %v522
        %v563 = vunpack.c.l.b16 %v523
        %v564 = vunpack.c.l.b16 %v524
        %v565 = vunpack.c.l.b16 %v525
        %v566 = vunpack.c.l.b16 %v526
        %v567 = vunpack.c.l.b16 %v527
        %v568 = vunpack.c.l.b16 %v528
        %v569 = vunpack.c.l.b16 %v529
        %v570 = vunpack.c.l.b16 %v530
        %v571 = vunpack.c.l.b16 %v531
        %v572 = vunpack.c.l.b16 %v532
        %v573 = vpack.c.b16 %v558, %v557
        %v574 = vpack.c.b16 %v560, %v559
        %v575 = vpack.c.b16 %v562, %v561
        %v576 = vpack.c.b16 %v564, %v563
        %v577 = vpack.c.b16 %v566, %v565
        %v578 = vpack.c.b16 %v568, %v567
        %v579 = vpack.c.b16 %v570, %v569
        %v580 = vpack.c.b16 %v572, %v571
        %v589 = vunpack.c.l.b16 %v533
        %v590 = vunpack.c.l.b16 %v534
        %v591 = vunpack.c.l.b16 %v535
        %v592 = vunpack.c.l.b16 %v536
        %v593 = vunpack.c.l.b16 %v537
        %v594 = vunpack.c.l.b16 %v538
        %v595 = vunpack.c.l.b16 %v539
        %v596 = vunpack.c.l.b16 %v540
        %v597 = vpack.c.b16 %v590, %v589
        %v598 = vpack.c.b16 %v592, %v591
        %v599 = vpack.c.b16 %v594, %v593
        %v600 = vpack.c.b16 %v596, %v595
        %vm605 = vcmask 523264
        %v607 = vsel %vm605, %v573, 0
        %v610 = vsel %vm605, %v574, 0
        %v613 = vsel %vm605, %v575, 0
        %v616 = vsel %vm605, %v576, 0
        %v619 = vsel %vm605, %v577, 0
        %v622 = vsel %vm605, %v578, 0
        %v625 = vsel %vm605, %v579, 0
        %v628 = vsel %vm605, %v580, 0
        %630 = vmatprep.subr.bf16.mxu0 0
        %631 = vmatpush1.bf16.msra.mxu0 %v597
        %632 = vmatprep.subr.bf16.mxu0 0
        %633 = vmatpush1.bf16.msra.mxu0 %v598
        %634 = vmatprep.subr.bf16.mxu0 0
        %635 = vmatpush1.bf16.msra.mxu0 %v599
        %636 = vmatprep.subr.bf16.mxu0 0
        %637 = vmatpush1.bf16.msra.mxu0 %v600
        %638 = vmatprep.subr.bf16.mxu0 0
        %639 = vmatpush1.bf16.msra.mxu0 0
        %640 = vmatprep.subr.bf16.mxu0 0
        %641 = vmatpush1.bf16.msra.mxu0 0
        %642 = vmatprep.subr.bf16.mxu0 0
        %643 = vmatpush1.bf16.msra.mxu0 0
        %644 = vmatprep.subr.bf16.mxu0 0
        %645 = vmatpush1.bf16.msra.mxu0 0
        %646 = vmatprep.subr.bf16.mxu0 0
        %647 = vmatpush1.bf16.msra.mxu0 0
        %648 = vmatprep.subr.bf16.mxu0 0
        %649 = vmatpush1.bf16.msra.mxu0 0
        %650 = vmatprep.subr.bf16.mxu0 0
        %651 = vmatpush1.bf16.msra.mxu0 0
        %652 = vmatprep.subr.bf16.mxu0 0
        %653 = vmatpush1.bf16.msra.mxu0 0
        %654 = vmatprep.subr.bf16.mxu0 0
        %655 = vmatpush1.bf16.msra.mxu0 0
        %656 = vmatprep.subr.bf16.mxu0 0
        %657 = vmatpush1.bf16.msra.mxu0 0
        %658 = vmatprep.subr.bf16.mxu0 0
        %659 = vmatpush1.bf16.msra.mxu0 0
        %660 = vmatprep.subr.bf16.mxu0 0
        %661 = vmatpush1.bf16.msra.mxu0 0
        %662 = vmatprep.mubr.bf16.mxu0 0
        %663 = vmatmul.mubr.bf16.gmra.mrb[0].mxu0 %v607
        %v664 = vpop.f32.mrb[0].mxu0
        %v665 = vadd.f32 0.0, %v664
        %v666 = vpop.f32.mrb[0].mxu0
        %v667 = vpop.f32.mrb[0].mxu0
        %v668 = vadd.f32 0.0, %v667
        %v669 = vpop.f32.mrb[0].mxu0
        %670 = vmatprep.mubr.bf16.mxu0 0
        %671 = vmatmul.mubr.bf16.gmra.mrb[0].mxu0 %v610
        %v672 = vpop.f32.mrb[0].mxu0
        %v673 = vadd.f32 0.0, %v672
        %v674 = vpop.f32.mrb[0].mxu0
        %v675 = vpop.f32.mrb[0].mxu0
        %v676 = vadd.f32 0.0, %v675
        %v677 = vpop.f32.mrb[0].mxu0
        %678 = vmatprep.mubr.bf16.mxu0 0
        %679 = vmatmul.mubr.bf16.gmra.mrb[0].mxu0 %v613
        %v680 = vpop.f32.mrb[0].mxu0
        %v681 = vadd.f32 0.0, %v680
        %v682 = vpop.f32.mrb[0].mxu0
        %v683 = vpop.f32.mrb[0].mxu0
        %v684 = vadd.f32 0.0, %v683
        %v685 = vpop.f32.mrb[0].mxu0
        %686 = vmatprep.mubr.bf16.mxu0 0
        %687 = vmatmul.mubr.bf16.gmra.mrb[0].mxu0 %v616
        %v688 = vpop.f32.mrb[0].mxu0
        %v689 = vadd.f32 0.0, %v688
        %v690 = vpop.f32.mrb[0].mxu0
        %v691 = vpop.f32.mrb[0].mxu0
        %v692 = vadd.f32 0.0, %v691
        %v693 = vpop.f32.mrb[0].mxu0
        %694 = vmatprep.mubr.bf16.mxu0 0
        %695 = vmatmul.mubr.bf16.gmra.mrb[0].mxu0 %v619
        %v696 = vpop.f32.mrb[0].mxu0
        %v697 = vadd.f32 0.0, %v696
        %v698 = vpop.f32.mrb[0].mxu0
        %v699 = vpop.f32.mrb[0].mxu0
        %v700 = vadd.f32 0.0, %v699
        %v701 = vpop.f32.mrb[0].mxu0
        %702 = vmatprep.mubr.bf16.mxu0 0
        %703 = vmatmul.mubr.bf16.gmra.mrb[0].mxu0 %v622
        %v704 = vpop.f32.mrb[0].mxu0
        %v705 = vadd.f32 0.0, %v704
        %v706 = vpop.f32.mrb[0].mxu0
        %v707 = vpop.f32.mrb[0].mxu0
        %v708 = vadd.f32 0.0, %v707
        %v709 = vpop.f32.mrb[0].mxu0
        %710 = vmatprep.mubr.bf16.mxu0 0
        %711 = vmatmul.mubr.bf16.gmra.mrb[0].mxu0 %v625
        %v712 = vpop.f32.mrb[0].mxu0
        %v713 = vadd.f32 0.0, %v712
        %v714 = vpop.f32.mrb[0].mxu0
        %v715 = vpop.f32.mrb[0].mxu0
        %v716 = vadd.f32 0.0, %v715
        %v717 = vpop.f32.mrb[0].mxu0
        %718 = vmatprep.mubr.bf16.mxu0 0
        %719 = vmatmul.mubr.bf16.gmra.mrb[0].mxu0 %v628
        %v720 = vpop.f32.mrb[0].mxu0
        %v721 = vadd.f32 0.0, %v720
        %v722 = vpop.f32.mrb[0].mxu0
        %v723 = vpop.f32.mrb[0].mxu0
        %v724 = vadd.f32 0.0, %v723
        %v725 = vpop.f32.mrb[0].mxu0
        %726 = vdwg.mxu0
        %v727 = vld [vmem:[%s475] sm:$0xf]
        %v728 = vld [vmem:[%s475 + $0x4] sm:$0xf]
        %v729 = vld [vmem:[%s475 + $0x8] sm:$0xf]
        %v730 = vld [vmem:[%s475 + $0xc] sm:$0xf]
        %v731 = vld [vmem:[%s475 + $0x10] sm:$0xf]
        %v732 = vld [vmem:[%s475 + $0x14] sm:$0xf]
        %v733 = vld [vmem:[%s475 + $0x18] sm:$0xf]
        %v734 = vld [vmem:[%s475 + $0x1c] sm:$0xf]
        %v735 = vld [vmem:[%s475 + $0x20] sm:$0xf]
        %v736 = vld [vmem:[%s475 + $0x24] sm:$0xf]
        %v737 = vld [vmem:[%s475 + $0x28] sm:$0xf]
        %v738 = vld [vmem:[%s475 + $0x2c] sm:$0xf]
        %v739 = vld [vmem:[%s475 + $0x30] sm:$0xf]
        %v740 = vld [vmem:[%s475 + $0x34] sm:$0xf]
        %v741 = vld [vmem:[%s475 + $0x38] sm:$0xf]
        %v742 = vld [vmem:[%s475 + $0x3c] sm:$0xf]
        %v743 = vld [vmem:[%s2] sm:$0xf]
        %v744 = vld [vmem:[%s2 + $0x4] sm:$0xf]
        %v745 = vld [vmem:[%s2 + $0x8] sm:$0xf]
        %v746 = vld [vmem:[%s2 + $0xc] sm:$0xf]
        %v747 = vld [vmem:[%s2 + $0x10] sm:$0xf]
        %v748 = vld [vmem:[%s2 + $0x14] sm:$0xf]
        %v749 = vld [vmem:[%s2 + $0x18] sm:$0xf]
        %v750 = vld [vmem:[%s2 + $0x1c] sm:$0xf]
        %v767 = vunpack.c.l.b16 %v727
        %v768 = vunpack.c.l.b16 %v728
        %v769 = vunpack.c.l.b16 %v729
        %v770 = vunpack.c.l.b16 %v730
        %v771 = vunpack.c.l.b16 %v731
        %v772 = vunpack.c.l.b16 %v732
        %v773 = vunpack.c.l.b16 %v733
        %v774 = vunpack.c.l.b16 %v734
        %v775 = vunpack.c.l.b16 %v735
        %v776 = vunpack.c.l.b16 %v736
        %v777 = vunpack.c.l.b16 %v737
        %v778 = vunpack.c.l.b16 %v738
        %v779 = vunpack.c.l.b16 %v739
        %v780 = vunpack.c.l.b16 %v740
        %v781 = vunpack.c.l.b16 %v741
        %v782 = vunpack.c.l.b16 %v742
        %v783 = vpack.c.b16 %v768, %v767
        %v784 = vpack.c.b16 %v770, %v769
        %v785 = vpack.c.b16 %v772, %v771
        %v786 = vpack.c.b16 %v774, %v773
        %v787 = vpack.c.b16 %v776, %v775
        %v788 = vpack.c.b16 %v778, %v777
        %v789 = vpack.c.b16 %v780, %v779
        %v790 = vpack.c.b16 %v782, %v781
        %v799 = vunpack.c.l.b16 %v743
        %v800 = vunpack.c.l.b16 %v744
        %v801 = vunpack.c.l.b16 %v745
        %v802 = vunpack.c.l.b16 %v746
        %v803 = vunpack.c.l.b16 %v747
        %v804 = vunpack.c.l.b16 %v748
        %v805 = vunpack.c.l.b16 %v749
        %v806 = vunpack.c.l.b16 %v750
        %v807 = vpack.c.b16 %v800, %v799
        %v808 = vpack.c.b16 %v802, %v801
        %v809 = vpack.c.b16 %v804, %v803
        %v810 = vpack.c.b16 %v806, %v805
        %v816 = vsel %vm605, %v783, 0
        %v819 = vsel %vm605, %v784, 0
        %v822 = vsel %vm605, %v785, 0
        %v825 = vsel %vm605, %v786, 0
        %v828 = vsel %vm605, %v787, 0
        %v831 = vsel %vm605, %v788, 0
        %v834 = vsel %vm605, %v789, 0
        %v837 = vsel %vm605, %v790, 0
        %839 = vmatprep.subr.bf16.mxu0 0
        %840 = vmatpush1.bf16.msra.mxu0 %v807
        %841 = vmatprep.subr.bf16.mxu0 0
        %842 = vmatpush1.bf16.msra.mxu0 %v808
        %843 = vmatprep.subr.bf16.mxu0 0
        %844 = vmatpush1.bf16.msra.mxu0 %v809
        %845 = vmatprep.subr.bf16.mxu0 0
        %846 = vmatpush1.bf16.msra.mxu0 %v810
        %847 = vmatprep.subr.bf16.mxu0 0
        %848 = vmatpush1.bf16.msra.mxu0 0
        %849 = vmatprep.subr.bf16.mxu0 0
        %850 = vmatpush1.bf16.msra.mxu0 0
        %851 = vmatprep.subr.bf16.mxu0 0
        %852 = vmatpush1.bf16.msra.mxu0 0
        %853 = vmatprep.subr.bf16.mxu0 0
        %854 = vmatpush1.bf16.msra.mxu0 0
        %855 = vmatprep.subr.bf16.mxu0 0
        %856 = vmatpush1.bf16.msra.mxu0 0
        %857 = vmatprep.subr.bf16.mxu0 0
        %858 = vmatpush1.bf16.msra.mxu0 0
        %859 = vmatprep.subr.bf16.mxu0 0
        %860 = vmatpush1.bf16.msra.mxu0 0
        %861 = vmatprep.subr.bf16.mxu0 0
        %862 = vmatpush1.bf16.msra.mxu0 0
        %863 = vmatprep.subr.bf16.mxu0 0
        %864 = vmatpush1.bf16.msra.mxu0 0
        %865 = vmatprep.subr.bf16.mxu0 0
        %866 = vmatpush1.bf16.msra.mxu0 0
        %867 = vmatprep.subr.bf16.mxu0 0
        %868 = vmatpush1.bf16.msra.mxu0 0
        %869 = vmatprep.subr.bf16.mxu0 0
        %870 = vmatpush1.bf16.msra.mxu0 0
        %871 = vmatprep.mubr.bf16.mxu0 0
        %872 = vmatmul.mubr.bf16.gmra.mrb[0].mxu0 %v816
        %v873 = vpop.f32.mrb[0].mxu0
        %v874 = vadd.f32 0.0, %v873
        %v875 = vpop.f32.mrb[0].mxu0
        %v876 = vpop.f32.mrb[0].mxu0
        %v877 = vadd.f32 0.0, %v876
        %v878 = vpop.f32.mrb[0].mxu0
        %879 = vmatprep.mubr.bf16.mxu0 0
        %880 = vmatmul.mubr.bf16.gmra.mrb[0].mxu0 %v819
        %v881 = vpop.f32.mrb[0].mxu0
        %v882 = vadd.f32 0.0, %v881
        %v883 = vpop.f32.mrb[0].mxu0
        %v884 = vpop.f32.mrb[0].mxu0
        %v885 = vadd.f32 0.0, %v884
        %v886 = vpop.f32.mrb[0].mxu0
        %887 = vmatprep.mubr.bf16.mxu0 0
        %888 = vmatmul.mubr.bf16.gmra.mrb[0].mxu0 %v822
        %v889 = vpop.f32.mrb[0].mxu0
        %v890 = vadd.f32 0.0, %v889
        %v891 = vpop.f32.mrb[0].mxu0
        %v892 = vpop.f32.mrb[0].mxu0
        %v893 = vadd.f32 0.0, %v892
        %v894 = vpop.f32.mrb[0].mxu0
        %895 = vmatprep.mubr.bf16.mxu0 0
        %896 = vmatmul.mubr.bf16.gmra.mrb[0].mxu0 %v825
        %v897 = vpop.f32.mrb[0].mxu0
        %v898 = vadd.f32 0.0, %v897
        %v899 = vpop.f32.mrb[0].mxu0
        %v900 = vpop.f32.mrb[0].mxu0
        %v901 = vadd.f32 0.0, %v900
        %v902 = vpop.f32.mrb[0].mxu0
        %903 = vmatprep.mubr.bf16.mxu0 0
        %904 = vmatmul.mubr.bf16.gmra.mrb[0].mxu0 %v828
        %v905 = vpop.f32.mrb[0].mxu0
        %v906 = vadd.f32 0.0, %v905
        %v907 = vpop.f32.mrb[0].mxu0
        %v908 = vpop.f32.mrb[0].mxu0
        %v909 = vadd.f32 0.0, %v908
        %v910 = vpop.f32.mrb[0].mxu0
        %911 = vmatprep.mubr.bf16.mxu0 0
        %912 = vmatmul.mubr.bf16.gmra.mrb[0].mxu0 %v831
        %v913 = vpop.f32.mrb[0].mxu0
        %v914 = vadd.f32 0.0, %v913
        %v915 = vpop.f32.mrb[0].mxu0
        %v916 = vpop.f32.mrb[0].mxu0
        %v917 = vadd.f32 0.0, %v916
        %v918 = vpop.f32.mrb[0].mxu0
        %919 = vmatprep.mubr.bf16.mxu0 0
        %920 = vmatmul.mubr.bf16.gmra.mrb[0].mxu0 %v834
        %v921 = vpop.f32.mrb[0].mxu0
        %v922 = vadd.f32 0.0, %v921
        %v923 = vpop.f32.mrb[0].mxu0
        %v924 = vpop.f32.mrb[0].mxu0
        %v925 = vadd.f32 0.0, %v924
        %v926 = vpop.f32.mrb[0].mxu0
        %927 = vmatprep.mubr.bf16.mxu0 0
        %928 = vmatmul.mubr.bf16.gmra.mrb[0].mxu0 %v837
        %v929 = vpop.f32.mrb[0].mxu0
        %v930 = vadd.f32 0.0, %v929
        %v931 = vpop.f32.mrb[0].mxu0
        %v932 = vpop.f32.mrb[0].mxu0
        %v933 = vadd.f32 0.0, %v932
        %v934 = vpop.f32.mrb[0].mxu0
        %935 = vdwg.mxu0
        %s936 = scalar_lea.vmem %s475, 64 [#allocation2]
        %v937 = vld [vmem:[%s936] sm:$0xf]
        %v938 = vld [vmem:[%s936 + $0x4] sm:$0xf]
        %v939 = vld [vmem:[%s936 + $0x8] sm:$0xf]
        %v940 = vld [vmem:[%s936 + $0xc] sm:$0xf]
        %v941 = vld [vmem:[%s936 + $0x10] sm:$0xf]
        %v942 = vld [vmem:[%s936 + $0x14] sm:$0xf]
        %v943 = vld [vmem:[%s936 + $0x18] sm:$0xf]
        %v944 = vld [vmem:[%s936 + $0x1c] sm:$0xf]
        %v945 = vld [vmem:[%s936 + $0x20] sm:$0xf]
        %v946 = vld [vmem:[%s936 + $0x24] sm:$0xf]
        %v947 = vld [vmem:[%s936 + $0x28] sm:$0xf]
        %v948 = vld [vmem:[%s936 + $0x2c] sm:$0xf]
        %v949 = vld [vmem:[%s936 + $0x30] sm:$0xf]
        %v950 = vld [vmem:[%s936 + $0x34] sm:$0xf]
        %v951 = vld [vmem:[%s936 + $0x38] sm:$0xf]
        %v952 = vld [vmem:[%s936 + $0x3c] sm:$0xf]
        %v969 = vunpack.c.l.b16 %v937
        %v970 = vunpack.c.l.b16 %v938
        %v971 = vunpack.c.l.b16 %v939
        %v972 = vunpack.c.l.b16 %v940
        %v973 = vunpack.c.l.b16 %v941
        %v974 = vunpack.c.l.b16 %v942
        %v975 = vunpack.c.l.b16 %v943
        %v976 = vunpack.c.l.b16 %v944
        %v977 = vunpack.c.l.b16 %v945
        %v978 = vunpack.c.l.b16 %v946
        %v979 = vunpack.c.l.b16 %v947
        %v980 = vunpack.c.l.b16 %v948
        %v981 = vunpack.c.l.b16 %v949
        %v982 = vunpack.c.l.b16 %v950
        %v983 = vunpack.c.l.b16 %v951
        %v984 = vunpack.c.l.b16 %v952
        %v985 = vpack.c.b16 %v970, %v969
        %v986 = vpack.c.b16 %v972, %v971
        %v987 = vpack.c.b16 %v974, %v973
        %v988 = vpack.c.b16 %v976, %v975
        %v989 = vpack.c.b16 %v978, %v977
        %v990 = vpack.c.b16 %v980, %v979
        %v991 = vpack.c.b16 %v982, %v981
        %v992 = vpack.c.b16 %v984, %v983
        %v994 = vsel %vm605, %v985, 0
        %v997 = vsel %vm605, %v986, 0
        %v1000 = vsel %vm605, %v987, 0
        %v1003 = vsel %vm605, %v988, 0
        %v1006 = vsel %vm605, %v989, 0
        %v1009 = vsel %vm605, %v990, 0
        %v1012 = vsel %vm605, %v991, 0
        %v1015 = vsel %vm605, %v992, 0
        %1017 = vmatprep.subr.bf16.mxu0 0
        %1018 = vmatpush1.bf16.msra.mxu0 %v807
        %1019 = vmatprep.subr.bf16.mxu0 0
        %1020 = vmatpush1.bf16.msra.mxu0 %v808
        %1021 = vmatprep.subr.bf16.mxu0 0
        %1022 = vmatpush1.bf16.msra.mxu0 %v809
        %1023 = vmatprep.subr.bf16.mxu0 0
        %1024 = vmatpush1.bf16.msra.mxu0 %v810
        %1025 = vmatprep.subr.bf16.mxu0 0
        %1026 = vmatpush1.bf16.msra.mxu0 0
        %1027 = vmatprep.subr.bf16.mxu0 0
        %1028 = vmatpush1.bf16.msra.mxu0 0
        %1029 = vmatprep.subr.bf16.mxu0 0
        %1030 = vmatpush1.bf16.msra.mxu0 0
        %1031 = vmatprep.subr.bf16.mxu0 0
        %1032 = vmatpush1.bf16.msra.mxu0 0
        %1033 = vmatprep.subr.bf16.mxu0 0
        %1034 = vmatpush1.bf16.msra.mxu0 0
        %1035 = vmatprep.subr.bf16.mxu0 0
        %1036 = vmatpush1.bf16.msra.mxu0 0
        %1037 = vmatprep.subr.bf16.mxu0 0
        %1038 = vmatpush1.bf16.msra.mxu0 0
        %1039 = vmatprep.subr.bf16.mxu0 0
        %1040 = vmatpush1.bf16.msra.mxu0 0
        %1041 = vmatprep.subr.bf16.mxu0 0
        %1042 = vmatpush1.bf16.msra.mxu0 0
        %1043 = vmatprep.subr.bf16.mxu0 0
        %1044 = vmatpush1.bf16.msra.mxu0 0
        %1045 = vmatprep.subr.bf16.mxu0 0
        %1046 = vmatpush1.bf16.msra.mxu0 0
        %1047 = vmatprep.subr.bf16.mxu0 0
        %1048 = vmatpush1.bf16.msra.mxu0 0
        %1049 = vmatprep.mubr.bf16.mxu0 0
        %1050 = vmatmul.mubr.bf16.gmra.mrb[0].mxu0 %v994
        %v1051 = vpop.f32.mrb[0].mxu0
        %v1052 = vadd.f32 0.0, %v1051
        %v1053 = vpop.f32.mrb[0].mxu0
        %v1054 = vpop.f32.mrb[0].mxu0
        %v1055 = vadd.f32 0.0, %v1054
        %v1056 = vpop.f32.mrb[0].mxu0
        %1057 = vmatprep.mubr.bf16.mxu0 0
        %1058 = vmatmul.mubr.bf16.gmra.mrb[0].mxu0 %v997
        %v1059 = vpop.f32.mrb[0].mxu0
        %v1060 = vadd.f32 0.0, %v1059
        %v1061 = vpop.f32.mrb[0].mxu0
        %v1062 = vpop.f32.mrb[0].mxu0
        %v1063 = vadd.f32 0.0, %v1062
        %v1064 = vpop.f32.mrb[0].mxu0
        %1065 = vmatprep.mubr.bf16.mxu0 0
        %1066 = vmatmul.mubr.bf16.gmra.mrb[0].mxu0 %v1000
        %v1067 = vpop.f32.mrb[0].mxu0
        %v1068 = vadd.f32 0.0, %v1067
        %v1069 = vpop.f32.mrb[0].mxu0
        %v1070 = vpop.f32.mrb[0].mxu0
        %v1071 = vadd.f32 0.0, %v1070
        %v1072 = vpop.f32.mrb[0].mxu0
        %1073 = vmatprep.mubr.bf16.mxu0 0
        %1074 = vmatmul.mubr.bf16.gmra.mrb[0].mxu0 %v1003
        %v1075 = vpop.f32.mrb[0].mxu0
        %v1076 = vadd.f32 0.0, %v1075
        %v1077 = vpop.f32.mrb[0].mxu0
        %v1078 = vpop.f32.mrb[0].mxu0
        %v1079 = vadd.f32 0.0, %v1078
        %v1080 = vpop.f32.mrb[0].mxu0
        %1081 = vmatprep.mubr.bf16.mxu0 0
        %1082 = vmatmul.mubr.bf16.gmra.mrb[0].mxu0 %v1006
        %v1083 = vpop.f32.mrb[0].mxu0
        %v1084 = vadd.f32 0.0, %v1083
        %v1085 = vpop.f32.mrb[0].mxu0
        %v1086 = vpop.f32.mrb[0].mxu0
        %v1087 = vadd.f32 0.0, %v1086
        %v1088 = vpop.f32.mrb[0].mxu0
        %1089 = vmatprep.mubr.bf16.mxu0 0
        %1090 = vmatmul.mubr.bf16.gmra.mrb[0].mxu0 %v1009
        %v1091 = vpop.f32.mrb[0].mxu0
        %v1092 = vadd.f32 0.0, %v1091
        %v1093 = vpop.f32.mrb[0].mxu0
        %v1094 = vpop.f32.mrb[0].mxu0
        %v1095 = vadd.f32 0.0, %v1094
        %v1096 = vpop.f32.mrb[0].mxu0
        %1097 = vmatprep.mubr.bf16.mxu0 0
        %1098 = vmatmul.mubr.bf16.gmra.mrb[0].mxu0 %v1012
        %v1099 = vpop.f32.mrb[0].mxu0
        %v1100 = vadd.f32 0.0, %v1099
        %v1101 = vpop.f32.mrb[0].mxu0
        %v1102 = vpop.f32.mrb[0].mxu0
        %v1103 = vadd.f32 0.0, %v1102
        %v1104 = vpop.f32.mrb[0].mxu0
        %1105 = vmatprep.mubr.bf16.mxu0 0
        %1106 = vmatmul.mubr.bf16.gmra.mrb[0].mxu0 %v1015
        %v1107 = vpop.f32.mrb[0].mxu0
        %v1108 = vadd.f32 0.0, %v1107
        %v1109 = vpop.f32.mrb[0].mxu0
        %v1110 = vpop.f32.mrb[0].mxu0
        %v1111 = vadd.f32 0.0, %v1110
        %v1112 = vpop.f32.mrb[0].mxu0
        %1113 = vdwg.mxu0
        %v1114 = vmax.f32 %v874, %v1052
        %v1115 = vmax.f32 %v877, %v1055
        %v1116 = vmax.f32 %v882, %v1060
        %v1117 = vmax.f32 %v885, %v1063
        %v1118 = vmax.f32 %v890, %v1068
        %v1119 = vmax.f32 %v893, %v1071
        %v1120 = vmax.f32 %v898, %v1076
        %v1121 = vmax.f32 %v901, %v1079
        %v1122 = vmax.f32 %v906, %v1084
        %v1123 = vmax.f32 %v909, %v1087
        %v1124 = vmax.f32 %v914, %v1092
        %v1125 = vmax.f32 %v917, %v1095
        %v1126 = vmax.f32 %v922, %v1100
        %v1127 = vmax.f32 %v925, %v1103
        %v1128 = vmax.f32 %v930, %v1108
        %v1129 = vmax.f32 %v933, %v1111
        %s1130 = scalar_lea.vmem %s475, 128 [#allocation2]
        %v1131 = vld [vmem:[%s1130] sm:$0xf]
        %v1132 = vld [vmem:[%s1130 + $0x4] sm:$0xf]
        %v1133 = vld [vmem:[%s1130 + $0x8] sm:$0xf]
        %v1134 = vld [vmem:[%s1130 + $0xc] sm:$0xf]
        %v1135 = vld [vmem:[%s1130 + $0x10] sm:$0xf]
        %v1136 = vld [vmem:[%s1130 + $0x14] sm:$0xf]
        %v1137 = vld [vmem:[%s1130 + $0x18] sm:$0xf]
        %v1138 = vld [vmem:[%s1130 + $0x1c] sm:$0xf]
        %v1139 = vld [vmem:[%s1130 + $0x20] sm:$0xf]
        %v1140 = vld [vmem:[%s1130 + $0x24] sm:$0xf]
        %v1141 = vld [vmem:[%s1130 + $0x28] sm:$0xf]
        %v1142 = vld [vmem:[%s1130 + $0x2c] sm:$0xf]
        %v1143 = vld [vmem:[%s1130 + $0x30] sm:$0xf]
        %v1144 = vld [vmem:[%s1130 + $0x34] sm:$0xf]
        %v1145 = vld [vmem:[%s1130 + $0x38] sm:$0xf]
        %v1146 = vld [vmem:[%s1130 + $0x3c] sm:$0xf]
        %v1163 = vunpack.c.l.b16 %v1131
        %v1164 = vunpack.c.l.b16 %v1132
        %v1165 = vunpack.c.l.b16 %v1133
        %v1166 = vunpack.c.l.b16 %v1134
        %v1167 = vunpack.c.l.b16 %v1135
        %v1168 = vunpack.c.l.b16 %v1136
        %v1169 = vunpack.c.l.b16 %v1137
        %v1170 = vunpack.c.l.b16 %v1138
        %v1171 = vunpack.c.l.b16 %v1139
        %v1172 = vunpack.c.l.b16 %v1140
        %v1173 = vunpack.c.l.b16 %v1141
        %v1174 = vunpack.c.l.b16 %v1142
        %v1175 = vunpack.c.l.b16 %v1143
        %v1176 = vunpack.c.l.b16 %v1144
        %v1177 = vunpack.c.l.b16 %v1145
        %v1178 = vunpack.c.l.b16 %v1146
        %v1179 = vpack.c.b16 %v1164, %v1163
        %v1180 = vpack.c.b16 %v1166, %v1165
        %v1181 = vpack.c.b16 %v1168, %v1167
        %v1182 = vpack.c.b16 %v1170, %v1169
        %v1183 = vpack.c.b16 %v1172, %v1171
        %v1184 = vpack.c.b16 %v1174, %v1173
        %v1185 = vpack.c.b16 %v1176, %v1175
        %v1186 = vpack.c.b16 %v1178, %v1177
        %v1188 = vsel %vm605, %v1179, 0
        %v1191 = vsel %vm605, %v1180, 0
        %v1194 = vsel %vm605, %v1181, 0
        %v1197 = vsel %vm605, %v1182, 0
        %v1200 = vsel %vm605, %v1183, 0
        %v1203 = vsel %vm605, %v1184, 0
        %v1206 = vsel %vm605, %v1185, 0
        %v1209 = vsel %vm605, %v1186, 0
        %1211 = vmatprep.subr.bf16.mxu0 0
        %1212 = vmatpush1.bf16.msra.mxu0 %v807
        %1213 = vmatprep.subr.bf16.mxu0 0
        %1214 = vmatpush1.bf16.msra.mxu0 %v808
        %1215 = vmatprep.subr.bf16.mxu0 0
        %1216 = vmatpush1.bf16.msra.mxu0 %v809
        %1217 = vmatprep.subr.bf16.mxu0 0
        %1218 = vmatpush1.bf16.msra.mxu0 %v810
        %1219 = vmatprep.subr.bf16.mxu0 0
        %1220 = vmatpush1.bf16.msra.mxu0 0
        %1221 = vmatprep.subr.bf16.mxu0 0
        %1222 = vmatpush1.bf16.msra.mxu0 0
        %1223 = vmatprep.subr.bf16.mxu0 0
        %1224 = vmatpush1.bf16.msra.mxu0 0
        %1225 = vmatprep.subr.bf16.mxu0 0
        %1226 = vmatpush1.bf16.msra.mxu0 0
        %1227 = vmatprep.subr.bf16.mxu0 0
        %1228 = vmatpush1.bf16.msra.mxu0 0
        %1229 = vmatprep.subr.bf16.mxu0 0
        %1230 = vmatpush1.bf16.msra.mxu0 0
        %1231 = vmatprep.subr.bf16.mxu0 0
        %1232 = vmatpush1.bf16.msra.mxu0 0
        %1233 = vmatprep.subr.bf16.mxu0 0
        %1234 = vmatpush1.bf16.msra.mxu0 0
        %1235 = vmatprep.subr.bf16.mxu0 0
        %1236 = vmatpush1.bf16.msra.mxu0 0
        %1237 = vmatprep.subr.bf16.mxu0 0
        %1238 = vmatpush1.bf16.msra.mxu0 0
        %1239 = vmatprep.subr.bf16.mxu0 0
        %1240 = vmatpush1.bf16.msra.mxu0 0
        %1241 = vmatprep.subr.bf16.mxu0 0
        %1242 = vmatpush1.bf16.msra.mxu0 0
        %1243 = vmatprep.mubr.bf16.mxu0 0
        %1244 = vmatmul.mubr.bf16.gmra.mrb[0].mxu0 %v1188
        %v1245 = vpop.f32.mrb[0].mxu0
        %v1246 = vadd.f32 0.0, %v1245
        %v1247 = vpop.f32.mrb[0].mxu0
        %v1248 = vpop.f32.mrb[0].mxu0
        %v1249 = vadd.f32 0.0, %v1248
        %v1250 = vpop.f32.mrb[0].mxu0
        %1251 = vmatprep.mubr.bf16.mxu0 0
        %1252 = vmatmul.mubr.bf16.gmra.mrb[0].mxu0 %v1191
        %v1253 = vpop.f32.mrb[0].mxu0
        %v1254 = vadd.f32 0.0, %v1253
        %v1255 = vpop.f32.mrb[0].mxu0
        %v1256 = vpop.f32.mrb[0].mxu0
        %v1257 = vadd.f32 0.0, %v1256
        %v1258 = vpop.f32.mrb[0].mxu0
        %1259 = vmatprep.mubr.bf16.mxu0 0
        %1260 = vmatmul.mubr.bf16.gmra.mrb[0].mxu0 %v1194
        %v1261 = vpop.f32.mrb[0].mxu0
        %v1262 = vadd.f32 0.0, %v1261
        %v1263 = vpop.f32.mrb[0].mxu0
        %v1264 = vpop.f32.mrb[0].mxu0
        %v1265 = vadd.f32 0.0, %v1264
        %v1266 = vpop.f32.mrb[0].mxu0
        %1267 = vmatprep.mubr.bf16.mxu0 0
        %1268 = vmatmul.mubr.bf16.gmra.mrb[0].mxu0 %v1197
        %v1269 = vpop.f32.mrb[0].mxu0
        %v1270 = vadd.f32 0.0, %v1269
        %v1271 = vpop.f32.mrb[0].mxu0
        %v1272 = vpop.f32.mrb[0].mxu0
        %v1273 = vadd.f32 0.0, %v1272
        %v1274 = vpop.f32.mrb[0].mxu0
        %1275 = vmatprep.mubr.bf16.mxu0 0
        %1276 = vmatmul.mubr.bf16.gmra.mrb[0].mxu0 %v1200
        %v1277 = vpop.f32.mrb[0].mxu0
        %v1278 = vadd.f32 0.0, %v1277
        %v1279 = vpop.f32.mrb[0].mxu0
        %v1280 = vpop.f32.mrb[0].mxu0
        %v1281 = vadd.f32 0.0, %v1280
        %v1282 = vpop.f32.mrb[0].mxu0
        %1283 = vmatprep.mubr.bf16.mxu0 0
        %1284 = vmatmul.mubr.bf16.gmra.mrb[0].mxu0 %v1203
        %v1285 = vpop.f32.mrb[0].mxu0
        %v1286 = vadd.f32 0.0, %v1285
        %v1287 = vpop.f32.mrb[0].mxu0
        %v1288 = vpop.f32.mrb[0].mxu0
        %v1289 = vadd.f32 0.0, %v1288
        %v1290 = vpop.f32.mrb[0].mxu0
        %1291 = vmatprep.mubr.bf16.mxu0 0
        %1292 = vmatmul.mubr.bf16.gmra.mrb[0].mxu0 %v1206
        %v1293 = vpop.f32.mrb[0].mxu0
        %v1294 = vadd.f32 0.0, %v1293
        %v1295 = vpop.f32.mrb[0].mxu0
        %v1296 = vpop.f32.mrb[0].mxu0
        %v1297 = vadd.f32 0.0, %v1296
        %v1298 = vpop.f32.mrb[0].mxu0
        %1299 = vmatprep.mubr.bf16.mxu0 0
        %1300 = vmatmul.mubr.bf16.gmra.mrb[0].mxu0 %v1209
        %v1301 = vpop.f32.mrb[0].mxu0
        %v1302 = vadd.f32 0.0, %v1301
        %v1303 = vpop.f32.mrb[0].mxu0
        %v1304 = vpop.f32.mrb[0].mxu0
        %v1305 = vadd.f32 0.0, %v1304
        %v1306 = vpop.f32.mrb[0].mxu0
        %1307 = vdwg.mxu0
        %v1308 = vmax.f32 %v1114, %v1246
        %v1309 = vmax.f32 %v1115, %v1249
        %v1310 = vmax.f32 %v1116, %v1254
        %v1311 = vmax.f32 %v1117, %v1257
        %v1312 = vmax.f32 %v1118, %v1262
        %v1313 = vmax.f32 %v1119, %v1265
        %v1314 = vmax.f32 %v1120, %v1270
        %v1315 = vmax.f32 %v1121, %v1273
        %v1316 = vmax.f32 %v1122, %v1278
        %v1317 = vmax.f32 %v1123, %v1281
        %v1318 = vmax.f32 %v1124, %v1286
        %v1319 = vmax.f32 %v1125, %v1289
        %v1320 = vmax.f32 %v1126, %v1294
        %v1321 = vmax.f32 %v1127, %v1297
        %v1322 = vmax.f32 %v1128, %v1302
        %v1323 = vmax.f32 %v1129, %v1305
        %s1324 = scalar_lea.vmem %s475, 192 [#allocation2]
        %v1325 = vld [vmem:[%s1324] sm:$0xf]
        %v1326 = vld [vmem:[%s1324 + $0x4] sm:$0xf]
        %v1327 = vld [vmem:[%s1324 + $0x8] sm:$0xf]
        %v1328 = vld [vmem:[%s1324 + $0xc] sm:$0xf]
        %v1329 = vld [vmem:[%s1324 + $0x10] sm:$0xf]
        %v1330 = vld [vmem:[%s1324 + $0x14] sm:$0xf]
        %v1331 = vld [vmem:[%s1324 + $0x18] sm:$0xf]
        %v1332 = vld [vmem:[%s1324 + $0x1c] sm:$0xf]
        %v1333 = vld [vmem:[%s1324 + $0x20] sm:$0xf]
        %v1334 = vld [vmem:[%s1324 + $0x24] sm:$0xf]
        %v1335 = vld [vmem:[%s1324 + $0x28] sm:$0xf]
        %v1336 = vld [vmem:[%s1324 + $0x2c] sm:$0xf]
        %v1337 = vld [vmem:[%s1324 + $0x30] sm:$0xf]
        %v1338 = vld [vmem:[%s1324 + $0x34] sm:$0xf]
        %v1339 = vld [vmem:[%s1324 + $0x38] sm:$0xf]
        %v1340 = vld [vmem:[%s1324 + $0x3c] sm:$0xf]
        %v1357 = vunpack.c.l.b16 %v1325
        %v1358 = vunpack.c.l.b16 %v1326
        %v1359 = vunpack.c.l.b16 %v1327
        %v1360 = vunpack.c.l.b16 %v1328
        %v1361 = vunpack.c.l.b16 %v1329
        %v1362 = vunpack.c.l.b16 %v1330
        %v1363 = vunpack.c.l.b16 %v1331
        %v1364 = vunpack.c.l.b16 %v1332
        %v1365 = vunpack.c.l.b16 %v1333
        %v1366 = vunpack.c.l.b16 %v1334
        %v1367 = vunpack.c.l.b16 %v1335
        %v1368 = vunpack.c.l.b16 %v1336
        %v1369 = vunpack.c.l.b16 %v1337
        %v1370 = vunpack.c.l.b16 %v1338
        %v1371 = vunpack.c.l.b16 %v1339
        %v1372 = vunpack.c.l.b16 %v1340
        %v1373 = vpack.c.b16 %v1358, %v1357
        %v1374 = vpack.c.b16 %v1360, %v1359
        %v1375 = vpack.c.b16 %v1362, %v1361
        %v1376 = vpack.c.b16 %v1364, %v1363
        %v1377 = vpack.c.b16 %v1366, %v1365
        %v1378 = vpack.c.b16 %v1368, %v1367
        %v1379 = vpack.c.b16 %v1370, %v1369
        %v1380 = vpack.c.b16 %v1372, %v1371
        %v1382 = vsel %vm605, %v1373, 0
        %v1385 = vsel %vm605, %v1374, 0
        %v1388 = vsel %vm605, %v1375, 0
        %v1391 = vsel %vm605, %v1376, 0
        %v1394 = vsel %vm605, %v1377, 0
        %v1397 = vsel %vm605, %v1378, 0
        %v1400 = vsel %vm605, %v1379, 0
        %v1403 = vsel %vm605, %v1380, 0
        %1405 = vmatprep.subr.bf16.mxu0 0
        %1406 = vmatpush1.bf16.msra.mxu0 %v807
        %1407 = vmatprep.subr.bf16.mxu0 0
        %1408 = vmatpush1.bf16.msra.mxu0 %v808
        %1409 = vmatprep.subr.bf16.mxu0 0
        %1410 = vmatpush1.bf16.msra.mxu0 %v809
        %1411 = vmatprep.subr.bf16.mxu0 0
        %1412 = vmatpush1.bf16.msra.mxu0 %v810
        %1413 = vmatprep.subr.bf16.mxu0 0
        %1414 = vmatpush1.bf16.msra.mxu0 0
        %1415 = vmatprep.subr.bf16.mxu0 0
        %1416 = vmatpush1.bf16.msra.mxu0 0
        %1417 = vmatprep.subr.bf16.mxu0 0
        %1418 = vmatpush1.bf16.msra.mxu0 0
        %1419 = vmatprep.subr.bf16.mxu0 0
        %1420 = vmatpush1.bf16.msra.mxu0 0
        %1421 = vmatprep.subr.bf16.mxu0 0
        %1422 = vmatpush1.bf16.msra.mxu0 0
        %1423 = vmatprep.subr.bf16.mxu0 0
        %1424 = vmatpush1.bf16.msra.mxu0 0
        %1425 = vmatprep.subr.bf16.mxu0 0
        %1426 = vmatpush1.bf16.msra.mxu0 0
        %1427 = vmatprep.subr.bf16.mxu0 0
        %1428 = vmatpush1.bf16.msra.mxu0 0
        %1429 = vmatprep.subr.bf16.mxu0 0
        %1430 = vmatpush1.bf16.msra.mxu0 0
        %1431 = vmatprep.subr.bf16.mxu0 0
        %1432 = vmatpush1.bf16.msra.mxu0 0
        %1433 = vmatprep.subr.bf16.mxu0 0
        %1434 = vmatpush1.bf16.msra.mxu0 0
        %1435 = vmatprep.subr.bf16.mxu0 0
        %1436 = vmatpush1.bf16.msra.mxu0 0
        %1437 = vmatprep.mubr.bf16.mxu0 0
        %1438 = vmatmul.mubr.bf16.gmra.mrb[0].mxu0 %v1382
        %v1439 = vpop.f32.mrb[0].mxu0
        %v1440 = vadd.f32 0.0, %v1439
        %v1441 = vpop.f32.mrb[0].mxu0
        %v1442 = vpop.f32.mrb[0].mxu0
        %v1443 = vadd.f32 0.0, %v1442
        %v1444 = vpop.f32.mrb[0].mxu0
        %1445 = vmatprep.mubr.bf16.mxu0 0
        %1446 = vmatmul.mubr.bf16.gmra.mrb[0].mxu0 %v1385
        %v1447 = vpop.f32.mrb[0].mxu0
        %v1448 = vadd.f32 0.0, %v1447
        %v1449 = vpop.f32.mrb[0].mxu0
        %v1450 = vpop.f32.mrb[0].mxu0
        %v1451 = vadd.f32 0.0, %v1450
        %v1452 = vpop.f32.mrb[0].mxu0
        %1453 = vmatprep.mubr.bf16.mxu0 0
        %1454 = vmatmul.mubr.bf16.gmra.mrb[0].mxu0 %v1388
        %v1455 = vpop.f32.mrb[0].mxu0
        %v1456 = vadd.f32 0.0, %v1455
        %v1457 = vpop.f32.mrb[0].mxu0
        %v1458 = vpop.f32.mrb[0].mxu0
        %v1459 = vadd.f32 0.0, %v1458
        %v1460 = vpop.f32.mrb[0].mxu0
        %1461 = vmatprep.mubr.bf16.mxu0 0
        %1462 = vmatmul.mubr.bf16.gmra.mrb[0].mxu0 %v1391
        %v1463 = vpop.f32.mrb[0].mxu0
        %v1464 = vadd.f32 0.0, %v1463
        %v1465 = vpop.f32.mrb[0].mxu0
        %v1466 = vpop.f32.mrb[0].mxu0
        %v1467 = vadd.f32 0.0, %v1466
        %v1468 = vpop.f32.mrb[0].mxu0
        %1469 = vmatprep.mubr.bf16.mxu0 0
        %1470 = vmatmul.mubr.bf16.gmra.mrb[0].mxu0 %v1394
        %v1471 = vpop.f32.mrb[0].mxu0
        %v1472 = vadd.f32 0.0, %v1471
        %v1473 = vpop.f32.mrb[0].mxu0
        %v1474 = vpop.f32.mrb[0].mxu0
        %v1475 = vadd.f32 0.0, %v1474
        %v1476 = vpop.f32.mrb[0].mxu0
        %1477 = vmatprep.mubr.bf16.mxu0 0
        %1478 = vmatmul.mubr.bf16.gmra.mrb[0].mxu0 %v1397
        %v1479 = vpop.f32.mrb[0].mxu0
        %v1480 = vadd.f32 0.0, %v1479
        %v1481 = vpop.f32.mrb[0].mxu0
        %v1482 = vpop.f32.mrb[0].mxu0
        %v1483 = vadd.f32 0.0, %v1482
        %v1484 = vpop.f32.mrb[0].mxu0
        %1485 = vmatprep.mubr.bf16.mxu0 0
        %1486 = vmatmul.mubr.bf16.gmra.mrb[0].mxu0 %v1400
        %v1487 = vpop.f32.mrb[0].mxu0
        %v1488 = vadd.f32 0.0, %v1487
        %v1489 = vpop.f32.mrb[0].mxu0
        %v1490 = vpop.f32.mrb[0].mxu0
        %v1491 = vadd.f32 0.0, %v1490
        %v1492 = vpop.f32.mrb[0].mxu0
        %1493 = vmatprep.mubr.bf16.mxu0 0
        %1494 = vmatmul.mubr.bf16.gmra.mrb[0].mxu0 %v1403
        %v1495 = vpop.f32.mrb[0].mxu0
        %v1496 = vadd.f32 0.0, %v1495
        %v1497 = vpop.f32.mrb[0].mxu0
        %v1498 = vpop.f32.mrb[0].mxu0
        %v1499 = vadd.f32 0.0, %v1498
        %v1500 = vpop.f32.mrb[0].mxu0
        %1501 = vdwg.mxu0
        %v1502 = vmax.f32 %v1308, %v1440
        %v1503 = vmax.f32 %v1309, %v1443
        %v1504 = vmax.f32 %v1310, %v1448
        %v1505 = vmax.f32 %v1311, %v1451
        %v1506 = vmax.f32 %v1312, %v1456
        %v1507 = vmax.f32 %v1313, %v1459
        %v1508 = vmax.f32 %v1314, %v1464
        %v1509 = vmax.f32 %v1315, %v1467
        %v1510 = vmax.f32 %v1316, %v1472
        %v1511 = vmax.f32 %v1317, %v1475
        %v1512 = vmax.f32 %v1318, %v1480
        %v1513 = vmax.f32 %v1319, %v1483
        %v1514 = vmax.f32 %v1320, %v1488
        %v1515 = vmax.f32 %v1321, %v1491
        %v1516 = vmax.f32 %v1322, %v1496
        %v1517 = vmax.f32 %v1323, %v1499
        %v1518 = vadd.f32 %v1502, %v665
        %v1519 = vadd.f32 %v1503, %v668
        %v1520 = vadd.f32 %v1504, %v673
        %v1521 = vadd.f32 %v1505, %v676
        %v1522 = vadd.f32 %v1506, %v681
        %v1523 = vadd.f32 %v1507, %v684
        %v1524 = vadd.f32 %v1508, %v689
        %v1525 = vadd.f32 %v1509, %v692
        %v1526 = vadd.f32 %v1510, %v697
        %v1527 = vadd.f32 %v1511, %v700
        %v1528 = vadd.f32 %v1512, %v705
        %v1529 = vadd.f32 %v1513, %v708
        %v1530 = vadd.f32 %v1514, %v713
        %v1531 = vadd.f32 %v1515, %v716
        %v1532 = vadd.f32 %v1516, %v721
        %v1533 = vadd.f32 %v1517, %v724
        %v1534 = vmax.f32 %v1518, 0.0
        %v1535 = vmax.f32 %v1519, 0.0
        %v1536 = vmax.f32 %v1520, 0.0
        %v1537 = vmax.f32 %v1521, 0.0
        %v1538 = vmax.f32 %v1522, 0.0
        %v1539 = vmax.f32 %v1523, 0.0
        %v1540 = vmax.f32 %v1524, 0.0
        %v1541 = vmax.f32 %v1525, 0.0
        %v1542 = vmax.f32 %v1526, 0.0
        %v1543 = vmax.f32 %v1527, 0.0
        %v1544 = vmax.f32 %v1528, 0.0
        %v1545 = vmax.f32 %v1529, 0.0
        %v1546 = vmax.f32 %v1530, 0.0
        %v1547 = vmax.f32 %v1531, 0.0
        %v1548 = vmax.f32 %v1532, 0.0
        %v1549 = vmax.f32 %v1533, 0.0
        %1550 = vst [vmem:[%s514] sm:$0xff] %v1534
        %1551 = vst [vmem:[%s514 + $0x8] sm:$0xff] %v1535
        %1552 = vst [vmem:[%s514 + $0x10] sm:$0xff] %v1536
        %1553 = vst [vmem:[%s514 + $0x18] sm:$0xff] %v1537
        %1554 = vst [vmem:[%s514 + $0x20] sm:$0xff] %v1538
        %1555 = vst [vmem:[%s514 + $0x28] sm:$0xff] %v1539
        %1556 = vst [vmem:[%s514 + $0x30] sm:$0xff] %v1540
        %1557 = vst [vmem:[%s514 + $0x38] sm:$0xff] %v1541
        %1558 = vst [vmem:[%s514 + $0x40] sm:$0xff] %v1542
        %1559 = vst [vmem:[%s514 + $0x48] sm:$0xff] %v1543
        %1560 = vst [vmem:[%s514 + $0x50] sm:$0xff] %v1544
        %1561 = vst [vmem:[%s514 + $0x58] sm:$0xff] %v1545
        %1562 = vst [vmem:[%s514 + $0x60] sm:$0xff] %v1546
        %1563 = vst [vmem:[%s514 + $0x68] sm:$0xff] %v1547
        %1564 = vst [vmem:[%s514 + $0x70] sm:$0xff] %v1548
        %1565 = vst [vmem:[%s514 + $0x78] sm:$0xff] %v1549
        %s1566 = smul.u32 16, %s15
        %p1567 = scmp.lt.s32.totalorder %s1566, 31
        %s1568 = scalar_select %p1567, %s1566, 31
        %s1569 = smul.addr %s1568, 8
        %s1570 = scalar_lea.vmem %s4, %s1569
        // Predicated region
        $region78: #{net_conpu_v7_forward.8} parent=72 // pred_check
          %p1571 = pneg %p127
        $region79: #{net_conpu_v7_forward.8} parent=72 // pred_check_branch
          %1573 = sbr.rel (%p1571) target = $region81
        $region80: #{net_conpu_v7_forward.8} parent=72 // pred_region
          %s1574 = smul.u32 16, %s15
        $region81: #{net_conpu_v7_forward.8} parent=72 // pred_fallthru
          _
      $region73: #{net_conpu_v7_forward.8} parent=5 // pred_fallthru
        _
      %p1575 = scmp.le.s32.totalorder 2, %s10
      // Predicated region
      $region82: #{net_conpu_v7_forward.8} parent=5 // pred_check
        %p1576 = pneg %p1575
      $region83: #{net_conpu_v7_forward.8} parent=5 // pred_check_branch
        %1578 = sbr.rel (%p1576) target = $region85
      $region84: #{net_conpu_v7_forward.8} parent=5 // pred_region
        %s1579 = ssub.s32 %s10, 2
        // Predicated region
        $region86: #{net_conpu_v7_forward.8} parent=84 // pred_check
          %p1580 = pneg %p133
        $region87: #{net_conpu_v7_forward.8} parent=84 // pred_check_branch
          %1582 = sbr.rel (%p1580) target = $region89
        $region88: #{net_conpu_v7_forward.8} parent=84 // pred_region
          %s1583 = smul.u32 16, %s16
          %p1584 = scmp.lt.s32.totalorder %s1583, 31
          %s1585 = scalar_select %p1584, %s1583, 31
          %s1586 = smul.addr %s1585, 8
          %s1587 = scalar_lea.vmem %s4, %s1586
        $region89: #{net_conpu_v7_forward.8} parent=84 // pred_fallthru
          _
      $region85: #{net_conpu_v7_forward.8} parent=5 // pred_fallthru
        _
    $region6: #{net_conpu_v7_forward.8} parent=1 // loop_footer
      %s14 = sadd.s32 1, %s10
    $region7: #{net_conpu_v7_forward.8} parent=1 // loop_footer_branch
      %9 = sbr.rel target = $region3
    $region8: #{net_conpu_v7_forward.8} parent=1 // loop_exit
      _

// kernel: net_conpu_v7_forward.9
$region0: #{net_conpu_v7_forward.9}
  #allocation0 [shape = 'u32[]', space=smem, size = 0x4, offset = 0x4, fixed_abs, tag = 'smem constant byte address 0x4 - core index']
  #allocation1 [shape = 'u32[144,128]{1,0:T(1,128)}', space=vmem, size = 0x12000, scoped, tag = 'internal scratch']
  %s0 = inlined_call_operand.vmem [shape: bf16[4,256,128], index: 0, kind: input, shape index: {}]
  %s1 = inlined_call_operand.vmem [shape: bf16[256,128], index: 1, kind: input, shape index: {}]
  %s2 = inlined_call_operand.vmem [shape: bf16[128,256], index: 2, kind: input, shape index: {}]
  %s3 = inlined_call_operand.vmem [shape: bf16[128,256], index: 3, kind: input, shape index: {}]
  %s4 = inlined_call_operand.vmem [shape: f32[256,256], index: 4, kind: output, shape index: {}]
  %s5 = sld [smem:[#allocation0]]
  $region90: #{net_conpu_v7_forward.9} parent=0
    _
  %s7 = ssub.s32 1, %s5
  %s8 = scalar_select 0, %s7, %s5
  $region1: #{net_conpu_v7_forward.9} parent=0
    #allocation2 [shape = 'u8[262144]{0}', space=vmem, size = 0x40000, scoped, tag = 'input window, operand 0']
    loop: start=0, step=1, limit=4
    $region2: #{net_conpu_v7_forward.9} parent=1 // loop_pre_header
      _
    $region3: #{net_conpu_v7_forward.9} parent=1 // loop_header
      %s10 = sphi 0, %s14
      %p11 = scmp.ge.s32.totalorder %s10, 4
      %s20 = sphi 0, %s22
      %s23 = sphi 0, %s20
      %s24 = sphi 0, %s23
      %s40 = sphi 0, %s24
      %s46 = sphi 0, %s48
      %s49 = sphi 0, %s46
      %s50 = sphi 0, %s49
      %s66 = sphi 0, %s50
      %s70 = sphi 0, %s70
      %s72 = sphi 0, %s70
      %s73 = sphi 0, %s72
      %s87 = sphi 0, %s73
      %s91 = sphi 0, %s91
      %s93 = sphi 0, %s91
      %s94 = sphi 0, %s93
      %s108 = sphi 0, %s94
      %s114 = sphi 0, %s116
      %s117 = sphi 0, %s114
      %s118 = sphi 0, %s117
      %s134 = sphi 0, %s118
    $region4: #{net_conpu_v7_forward.9} parent=1 // loop_header_branch
      %13 = sbr.rel (%p11) target = $region8
    $region5: #{net_conpu_v7_forward.9} parent=1 // loop_body
      %s15 = ssub.s32 %s10, 1
      %s16 = ssub.s32 %s10, 2
      %s17 = sadd.s32 %s10, 1
      %s18 = ssub.s32 %s10, %s17
      %p19 = scmp.eq.s32.totalorder %s18, 0
      %s21 = sadd.s32 %s20, 1
      %s22 = scalar_select %p19, %s20, %s21
      %p25 = pneg %p19
      %p26 = scmp.eq.s32.totalorder %s10, 1
      %p27 = por %p25, %p26
      %p28 = scmp.ne.s32.totalorder %s20, %s23
      %p29 = scmp.eq.s32.totalorder %s10, 0
      %p30 = por %p28, %p29
      %p31 = scmp.ne.s32.totalorder %s20, %s23
      %p32 = scmp.eq.s32.totalorder %s15, 1
      %p33 = por %p31, %p32
      %p34 = scmp.ne.s32.totalorder %s23, %s24
      %p35 = scmp.eq.s32.totalorder %s15, 0
      %p36 = por %p34, %p35
      %p37 = scmp.ne.s32.totalorder %s23, %s24
      %p38 = scmp.eq.s32.totalorder %s16, 1
      %p39 = por %p37, %p38
      %p41 = scmp.ne.s32.totalorder %s24, %s40
      %p42 = scmp.eq.s32.totalorder %s16, 0
      %p43 = por %p41, %p42
      %s44 = ssub.s32 %s10, %s17
      %p45 = scmp.eq.s32.totalorder %s44, 0
      %s47 = sadd.s32 %s46, 1
      %s48 = scalar_select %p45, %s46, %s47
      %p51 = pneg %p45
      %p52 = scmp.eq.s32.totalorder %s10, 1
      %p53 = por %p51, %p52
      %p54 = scmp.ne.s32.totalorder %s46, %s49
      %p55 = scmp.eq.s32.totalorder %s10, 0
      %p56 = por %p54, %p55
      %p57 = scmp.ne.s32.totalorder %s46, %s49
      %p58 = scmp.eq.s32.totalorder %s15, 1
      %p59 = por %p57, %p58
      %p60 = scmp.ne.s32.totalorder %s49, %s50
      %p61 = scmp.eq.s32.totalorder %s15, 0
      %p62 = por %p60, %p61
      %p63 = scmp.ne.s32.totalorder %s49, %s50
      %p64 = scmp.eq.s32.totalorder %s16, 1
      %p65 = por %p63, %p64
      %p67 = scmp.ne.s32.totalorder %s50, %s66
      %p68 = scmp.eq.s32.totalorder %s16, 0
      %p69 = por %p67, %p68
      %s71 = sadd.s32 %s70, 1
      %p74 = scmp.eq.s32.totalorder %s10, 1
      %p75 = scmp.ne.s32.totalorder %s70, %s72
      %p76 = scmp.eq.s32.totalorder %s10, 0
      %p77 = por %p75, %p76
      %p78 = scmp.ne.s32.totalorder %s70, %s72
      %p79 = scmp.eq.s32.totalorder %s15, 1
      %p80 = por %p78, %p79
      %p81 = scmp.ne.s32.totalorder %s72, %s73
      %p82 = scmp.eq.s32.totalorder %s15, 0
      %p83 = por %p81, %p82
      %p84 = scmp.ne.s32.totalorder %s72, %s73
      %p85 = scmp.eq.s32.totalorder %s16, 1
      %p86 = por %p84, %p85
      %p88 = scmp.ne.s32.totalorder %s73, %s87
      %p89 = scmp.eq.s32.totalorder %s16, 0
      %p90 = por %p88, %p89
      %s92 = sadd.s32 %s91, 1
      %p95 = scmp.eq.s32.totalorder %s10, 1
      %p96 = scmp.ne.s32.totalorder %s91, %s93
      %p97 = scmp.eq.s32.totalorder %s10, 0
      %p98 = por %p96, %p97
      %p99 = scmp.ne.s32.totalorder %s91, %s93
      %p100 = scmp.eq.s32.totalorder %s15, 1
      %p101 = por %p99, %p100
      %p102 = scmp.ne.s32.totalorder %s93, %s94
      %p103 = scmp.eq.s32.totalorder %s15, 0
      %p104 = por %p102, %p103
      %p105 = scmp.ne.s32.totalorder %s93, %s94
      %p106 = scmp.eq.s32.totalorder %s16, 1
      %p107 = por %p105, %p106
      %p109 = scmp.ne.s32.totalorder %s94, %s108
      %p110 = scmp.eq.s32.totalorder %s16, 0
      %p111 = por %p109, %p110
      %s112 = ssub.s32 %s10, %s17
      %p113 = scmp.eq.s32.totalorder %s112, 0
      %s115 = sadd.s32 %s114, 1
      %s116 = scalar_select %p113, %s114, %s115
      %p119 = pneg %p113
      %p120 = scmp.eq.s32.totalorder %s10, 1
      %p121 = por %p119, %p120
      %p122 = scmp.ne.s32.totalorder %s114, %s117
      %p123 = scmp.eq.s32.totalorder %s10, 0
      %p124 = por %p122, %p123
      %p125 = scmp.ne.s32.totalorder %s114, %s117
      %p126 = scmp.eq.s32.totalorder %s15, 1
      %p127 = por %p125, %p126
      %p128 = scmp.ne.s32.totalorder %s117, %s118
      %p129 = scmp.eq.s32.totalorder %s15, 0
      %p130 = por %p128, %p129
      %p131 = scmp.ne.s32.totalorder %s117, %s118
      %p132 = scmp.eq.s32.totalorder %s16, 1
      %p133 = por %p131, %p132
      %p135 = scmp.ne.s32.totalorder %s118, %s134
      %p136 = scmp.eq.s32.totalorder %s16, 0
      %p137 = por %p135, %p136
      %p138 = scmp.le.s32.totalorder 1, %s10
      %p139 = scmp.lt.s32.totalorder %s10, 3
      %p140 = pnand %p138, %p139
      %p141 = pneg %p140
      // Predicated region
      $region9: #{net_conpu_v7_forward.9} parent=5 // pred_check
        _
      $region10: #{net_conpu_v7_forward.9} parent=5 // pred_check_branch
        %143 = sbr.rel (%p140) target = $region12
      $region11: #{net_conpu_v7_forward.9} parent=5 // pred_region
        %s144 = ssub.s32 %s10, 1
        // Predicated region
        $region13: #{net_conpu_v7_forward.9} parent=11 // pred_check
          %p145 = pneg %p83
        $region14: #{net_conpu_v7_forward.9} parent=11 // pred_check_branch
          %147 = sbr.rel (%p145) target = $region16
        $region15: #{net_conpu_v7_forward.9} parent=11 // pred_region
          _
        $region16: #{net_conpu_v7_forward.9} parent=11 // pred_fallthru
          _
        // Predicated region
        $region17: #{net_conpu_v7_forward.9} parent=11 // pred_check
          %p148 = pneg %p104
        $region18: #{net_conpu_v7_forward.9} parent=11 // pred_check_branch
          %150 = sbr.rel (%p148) target = $region20
        $region19: #{net_conpu_v7_forward.9} parent=11 // pred_region
          _
        $region20: #{net_conpu_v7_forward.9} parent=11 // pred_fallthru
          _
      $region12: #{net_conpu_v7_forward.9} parent=5 // pred_fallthru
        _
      %p151 = scmp.lt.s32.totalorder %s10, 2
      // Predicated region
      $region21: #{net_conpu_v7_forward.9} parent=5 // pred_check
        %p152 = pneg %p151
      $region22: #{net_conpu_v7_forward.9} parent=5 // pred_check_branch
        %154 = sbr.rel (%p152) target = $region24
      $region23: #{net_conpu_v7_forward.9} parent=5 // pred_region
        // Predicated region
        $region25: #{net_conpu_v7_forward.9} parent=23 // pred_check
          %p155 = pneg %p30
        $region26: #{net_conpu_v7_forward.9} parent=23 // pred_check_branch
          %157 = sbr.rel (%p155) target = $region28
        $region27: #{net_conpu_v7_forward.9} parent=23 // pred_region
          %s158 = sand.u32 %s20, 1
          %s159 = sand.u32 %s20, 1
          %s160 = smul.addr %s159, 256
          %s161 = scalar_lea.vmem [#allocation2], %s160
          %s162 = smul.u32 16, %s10
          %s163 = smul.addr %s162, 4
          %s164 = scalar_lea.vmem %s0, %s163
          // Predicated region
          $region29: #{net_conpu_v7_forward.9} parent=27 // pred_check
            _
          $region30: #{net_conpu_v7_forward.9} parent=27 // pred_check_branch
            %166 = sbr.rel (0) target = $region32
          $region31: #{net_conpu_v7_forward.9} parent=27 // pred_region
            // Predicated region
            $region33: #{net_conpu_v7_forward.9} parent=31 // pred_check
              _
            $region34: #{net_conpu_v7_forward.9} parent=31 // pred_check_branch
              %168 = sbr.rel target = $region36
            $region35: #{net_conpu_v7_forward.9} parent=31 // pred_region
              // Predicated region
              $region48: #{net_conpu_v7_forward.9} parent=35 // pred_check
                _
              $region49: #{net_conpu_v7_forward.9} parent=35 // pred_check_branch
                %309 = sbr.rel (0) target = $region51
              $region50: #{net_conpu_v7_forward.9} parent=35 // pred_region
                loop: start=0, step=1, limit=1
                $region52: #{net_conpu_v7_forward.9} parent=50 // loop_pre_header
                  _
                $region53: #{net_conpu_v7_forward.9} parent=50 // loop_header
                  %s311 = sphi 0, %s315
                  %p312 = scmp.ge.s32.totalorder %s311, 1
                  %s316 = sphi %s164, %s164
                  %s317 = sphi %s161, %s161
                $region54: #{net_conpu_v7_forward.9} parent=50 // loop_header_branch
                  %314 = sbr.rel (%p312) target = $region58
                $region55: #{net_conpu_v7_forward.9} parent=50 // loop_body
                  _
                $region56: #{net_conpu_v7_forward.9} parent=50 // loop_footer
                  %s315 = sadd.s32 1, %s311
                $region57: #{net_conpu_v7_forward.9} parent=50 // loop_footer_branch
                  %310 = sbr.rel target = $region53
                $region58: #{net_conpu_v7_forward.9} parent=50 // loop_exit
                  _
                loop: start=0, step=1, limit=1
                $region59: #{net_conpu_v7_forward.9} parent=50 // loop_pre_header
                  _
                $region60: #{net_conpu_v7_forward.9} parent=50 // loop_header
                  %s320 = sphi 0, %s324
                  %p321 = scmp.ge.s32.totalorder %s320, 1
                  %s325 = sphi %s164, %s164
                  %s326 = sphi %s161, %s161
                $region61: #{net_conpu_v7_forward.9} parent=50 // loop_header_branch
                  %323 = sbr.rel (%p321) target = $region65
                $region62: #{net_conpu_v7_forward.9} parent=50 // loop_body
                  %v327 = vld [vmem:[%s325] sm:$0xf]
                  %328 = vst [vmem:[%s326] sm:$0xf] %v327
                  %v329 = vld [vmem:[%s325 + $0x4] sm:$0xf]
                  %330 = vst [vmem:[%s326 + $0x4] sm:$0xf] %v329
                  %v331 = vld [vmem:[%s325 + $0x8] sm:$0xf]
                  %332 = vst [vmem:[%s326 + $0x8] sm:$0xf] %v331
                  %v333 = vld [vmem:[%s325 + $0xc] sm:$0xf]
                  %334 = vst [vmem:[%s326 + $0xc] sm:$0xf] %v333
                  %v335 = vld [vmem:[%s325 + $0x10] sm:$0xf]
                  %336 = vst [vmem:[%s326 + $0x10] sm:$0xf] %v335
                  %v337 = vld [vmem:[%s325 + $0x14] sm:$0xf]
                  %338 = vst [vmem:[%s326 + $0x14] sm:$0xf] %v337
                  %v339 = vld [vmem:[%s325 + $0x18] sm:$0xf]
                  %340 = vst [vmem:[%s326 + $0x18] sm:$0xf] %v339
                  %v341 = vld [vmem:[%s325 + $0x1c] sm:$0xf]
                  %342 = vst [vmem:[%s326 + $0x1c] sm:$0xf] %v341
                  %v343 = vld [vmem:[%s325 + $0x20] sm:$0xf]
                  %344 = vst [vmem:[%s326 + $0x20] sm:$0xf] %v343
                  %v345 = vld [vmem:[%s325 + $0x24] sm:$0xf]
                  %346 = vst [vmem:[%s326 + $0x24] sm:$0xf] %v345
                  %v347 = vld [vmem:[%s325 + $0x28] sm:$0xf]
                  %348 = vst [vmem:[%s326 + $0x28] sm:$0xf] %v347
                  %v349 = vld [vmem:[%s325 + $0x2c] sm:$0xf]
                  %350 = vst [vmem:[%s326 + $0x2c] sm:$0xf] %v349
                  %v351 = vld [vmem:[%s325 + $0x30] sm:$0xf]
                  %352 = vst [vmem:[%s326 + $0x30] sm:$0xf] %v351
                  %v353 = vld [vmem:[%s325 + $0x34] sm:$0xf]
                  %354 = vst [vmem:[%s326 + $0x34] sm:$0xf] %v353
                  %v355 = vld [vmem:[%s325 + $0x38] sm:$0xf]
                  %356 = vst [vmem:[%s326 + $0x38] sm:$0xf] %v355
                  %v357 = vld [vmem:[%s325 + $0x3c] sm:$0xf]
                  %358 = vst [vmem:[%s326 + $0x3c] sm:$0xf] %v357
                  %v359 = vld [vmem:[%s325 + $0x80] sm:$0xf]
                  %360 = vst [vmem:[%s326 + $0x40] sm:$0xf] %v359
                  %v361 = vld [vmem:[%s325 + $0x84] sm:$0xf]
                  %362 = vst [vmem:[%s326 + $0x44] sm:$0xf] %v361
                  %v363 = vld [vmem:[%s325 + $0x88] sm:$0xf]
                  %364 = vst [vmem:[%s326 + $0x48] sm:$0xf] %v363
                  %v365 = vld [vmem:[%s325 + $0x8c] sm:$0xf]
                  %366 = vst [vmem:[%s326 + $0x4c] sm:$0xf] %v365
                  %v367 = vld [vmem:[%s325 + $0x90] sm:$0xf]
                  %368 = vst [vmem:[%s326 + $0x50] sm:$0xf] %v367
                  %v369 = vld [vmem:[%s325 + $0x94] sm:$0xf]
                  %370 = vst [vmem:[%s326 + $0x54] sm:$0xf] %v369
                  %v371 = vld [vmem:[%s325 + $0x98] sm:$0xf]
                  %372 = vst [vmem:[%s326 + $0x58] sm:$0xf] %v371
                  %v373 = vld [vmem:[%s325 + $0x9c] sm:$0xf]
                  %374 = vst [vmem:[%s326 + $0x5c] sm:$0xf] %v373
                  %v375 = vld [vmem:[%s325 + $0xa0] sm:$0xf]
                  %376 = vst [vmem:[%s326 + $0x60] sm:$0xf] %v375
                  %v377 = vld [vmem:[%s325 + $0xa4] sm:$0xf]
                  %378 = vst [vmem:[%s326 + $0x64] sm:$0xf] %v377
                  %v379 = vld [vmem:[%s325 + $0xa8] sm:$0xf]
                  %380 = vst [vmem:[%s326 + $0x68] sm:$0xf] %v379
                  %v381 = vld [vmem:[%s325 + $0xac] sm:$0xf]
                  %382 = vst [vmem:[%s326 + $0x6c] sm:$0xf] %v381
                  %v383 = vld [vmem:[%s325 + $0xb0] sm:$0xf]
                  %384 = vst [vmem:[%s326 + $0x70] sm:$0xf] %v383
                  %v385 = vld [vmem:[%s325 + $0xb4] sm:$0xf]
                  %386 = vst [vmem:[%s326 + $0x74] sm:$0xf] %v385
                  %v387 = vld [vmem:[%s325 + $0xb8] sm:$0xf]
                  %388 = vst [vmem:[%s326 + $0x78] sm:$0xf] %v387
                  %v389 = vld [vmem:[%s325 + $0xbc] sm:$0xf]
                  %390 = vst [vmem:[%s326 + $0x7c] sm:$0xf] %v389
                  %v391 = vld [vmem:[%s325 + $0x100] sm:$0xf]
                  %392 = vst [vmem:[%s326 + $0x80] sm:$0xf] %v391
                  %v393 = vld [vmem:[%s325 + $0x104] sm:$0xf]
                  %394 = vst [vmem:[%s326 + $0x84] sm:$0xf] %v393
                  %v395 = vld [vmem:[%s325 + $0x108] sm:$0xf]
                  %396 = vst [vmem:[%s326 + $0x88] sm:$0xf] %v395
                  %v397 = vld [vmem:[%s325 + $0x10c] sm:$0xf]
                  %398 = vst [vmem:[%s326 + $0x8c] sm:$0xf] %v397
                  %v399 = vld [vmem:[%s325 + $0x110] sm:$0xf]
                  %400 = vst [vmem:[%s326 + $0x90] sm:$0xf] %v399
                  %v401 = vld [vmem:[%s325 + $0x114] sm:$0xf]
                  %402 = vst [vmem:[%s326 + $0x94] sm:$0xf] %v401
                  %v403 = vld [vmem:[%s325 + $0x118] sm:$0xf]
                  %404 = vst [vmem:[%s326 + $0x98] sm:$0xf] %v403
                  %v405 = vld [vmem:[%s325 + $0x11c] sm:$0xf]
                  %406 = vst [vmem:[%s326 + $0x9c] sm:$0xf] %v405
                  %v407 = vld [vmem:[%s325 + $0x120] sm:$0xf]
                  %408 = vst [vmem:[%s326 + $0xa0] sm:$0xf] %v407
                  %v409 = vld [vmem:[%s325 + $0x124] sm:$0xf]
                  %410 = vst [vmem:[%s326 + $0xa4] sm:$0xf] %v409
                  %v411 = vld [vmem:[%s325 + $0x128] sm:$0xf]
                  %412 = vst [vmem:[%s326 + $0xa8] sm:$0xf] %v411
                  %v413 = vld [vmem:[%s325 + $0x12c] sm:$0xf]
                  %414 = vst [vmem:[%s326 + $0xac] sm:$0xf] %v413
                  %v415 = vld [vmem:[%s325 + $0x130] sm:$0xf]
                  %416 = vst [vmem:[%s326 + $0xb0] sm:$0xf] %v415
                  %v417 = vld [vmem:[%s325 + $0x134] sm:$0xf]
                  %418 = vst [vmem:[%s326 + $0xb4] sm:$0xf] %v417
                  %v419 = vld [vmem:[%s325 + $0x138] sm:$0xf]
                  %420 = vst [vmem:[%s326 + $0xb8] sm:$0xf] %v419
                  %v421 = vld [vmem:[%s325 + $0x13c] sm:$0xf]
                  %422 = vst [vmem:[%s326 + $0xbc] sm:$0xf] %v421
                  %v423 = vld [vmem:[%s325 + $0x180] sm:$0xf]
                  %424 = vst [vmem:[%s326 + $0xc0] sm:$0xf] %v423
                  %v425 = vld [vmem:[%s325 + $0x184] sm:$0xf]
                  %426 = vst [vmem:[%s326 + $0xc4] sm:$0xf] %v425
                  %v427 = vld [vmem:[%s325 + $0x188] sm:$0xf]
                  %428 = vst [vmem:[%s326 + $0xc8] sm:$0xf] %v427
                  %v429 = vld [vmem:[%s325 + $0x18c] sm:$0xf]
                  %430 = vst [vmem:[%s326 + $0xcc] sm:$0xf] %v429
                  %v431 = vld [vmem:[%s325 + $0x190] sm:$0xf]
                  %432 = vst [vmem:[%s326 + $0xd0] sm:$0xf] %v431
                  %v433 = vld [vmem:[%s325 + $0x194] sm:$0xf]
                  %434 = vst [vmem:[%s326 + $0xd4] sm:$0xf] %v433
                  %v435 = vld [vmem:[%s325 + $0x198] sm:$0xf]
                  %436 = vst [vmem:[%s326 + $0xd8] sm:$0xf] %v435
                  %v437 = vld [vmem:[%s325 + $0x19c] sm:$0xf]
                  %438 = vst [vmem:[%s326 + $0xdc] sm:$0xf] %v437
                  %v439 = vld [vmem:[%s325 + $0x1a0] sm:$0xf]
                  %440 = vst [vmem:[%s326 + $0xe0] sm:$0xf] %v439
                  %v441 = vld [vmem:[%s325 + $0x1a4] sm:$0xf]
                  %442 = vst [vmem:[%s326 + $0xe4] sm:$0xf] %v441
                  %v443 = vld [vmem:[%s325 + $0x1a8] sm:$0xf]
                  %444 = vst [vmem:[%s326 + $0xe8] sm:$0xf] %v443
                  %v445 = vld [vmem:[%s325 + $0x1ac] sm:$0xf]
                  %446 = vst [vmem:[%s326 + $0xec] sm:$0xf] %v445
                  %v447 = vld [vmem:[%s325 + $0x1b0] sm:$0xf]
                  %448 = vst [vmem:[%s326 + $0xf0] sm:$0xf] %v447
                  %v449 = vld [vmem:[%s325 + $0x1b4] sm:$0xf]
                  %450 = vst [vmem:[%s326 + $0xf4] sm:$0xf] %v449
                  %v451 = vld [vmem:[%s325 + $0x1b8] sm:$0xf]
                  %452 = vst [vmem:[%s326 + $0xf8] sm:$0xf] %v451
                  %v453 = vld [vmem:[%s325 + $0x1bc] sm:$0xf]
                  %454 = vst [vmem:[%s326 + $0xfc] sm:$0xf] %v453
                $region63: #{net_conpu_v7_forward.9} parent=50 // loop_footer
                  %s324 = sadd.s32 1, %s320
                $region64: #{net_conpu_v7_forward.9} parent=50 // loop_footer_branch
                  %319 = sbr.rel target = $region60
                $region65: #{net_conpu_v7_forward.9} parent=50 // loop_exit
                  _
              $region51: #{net_conpu_v7_forward.9} parent=35 // pred_fallthru
                _
            $region36: #{net_conpu_v7_forward.9} parent=31 // pred_fallthru
              _
            // Predicated region
            $region37: #{net_conpu_v7_forward.9} parent=31 // pred_check
              _
            $region38: #{net_conpu_v7_forward.9} parent=31 // pred_check_branch
              %170 = sbr.rel (0) target = $region40
            $region39: #{net_conpu_v7_forward.9} parent=31 // pred_region
              loop: start=0, step=1, limit=1
              $region41: #{net_conpu_v7_forward.9} parent=39 // loop_pre_header
                _
              $region42: #{net_conpu_v7_forward.9} parent=39 // loop_header
                %s173 = sphi 0, %s177
                %p174 = scmp.ge.s32.totalorder %s173, 1
                %s178 = sphi %s164, %s164
                %s179 = sphi %s161, %s161
              $region43: #{net_conpu_v7_forward.9} parent=39 // loop_header_branch
                %176 = sbr.rel (%p174) target = $region47
              $region44: #{net_conpu_v7_forward.9} parent=39 // loop_body
                %v180 = vld [vmem:[%s178] sm:$0xf]
                %181 = vst [vmem:[%s179] sm:$0xf] %v180
                %v182 = vld [vmem:[%s178 + $0x4] sm:$0xf]
                %183 = vst [vmem:[%s179 + $0x4] sm:$0xf] %v182
                %v184 = vld [vmem:[%s178 + $0x8] sm:$0xf]
                %185 = vst [vmem:[%s179 + $0x8] sm:$0xf] %v184
                %v186 = vld [vmem:[%s178 + $0xc] sm:$0xf]
                %187 = vst [vmem:[%s179 + $0xc] sm:$0xf] %v186
                %v188 = vld [vmem:[%s178 + $0x10] sm:$0xf]
                %189 = vst [vmem:[%s179 + $0x10] sm:$0xf] %v188
                %v190 = vld [vmem:[%s178 + $0x14] sm:$0xf]
                %191 = vst [vmem:[%s179 + $0x14] sm:$0xf] %v190
                %v192 = vld [vmem:[%s178 + $0x18] sm:$0xf]
                %193 = vst [vmem:[%s179 + $0x18] sm:$0xf] %v192
                %v194 = vld [vmem:[%s178 + $0x1c] sm:$0xf]
                %195 = vst [vmem:[%s179 + $0x1c] sm:$0xf] %v194
                %v196 = vld [vmem:[%s178 + $0x20] sm:$0xf]
                %197 = vst [vmem:[%s179 + $0x20] sm:$0xf] %v196
                %v198 = vld [vmem:[%s178 + $0x24] sm:$0xf]
                %199 = vst [vmem:[%s179 + $0x24] sm:$0xf] %v198
                %v200 = vld [vmem:[%s178 + $0x28] sm:$0xf]
                %201 = vst [vmem:[%s179 + $0x28] sm:$0xf] %v200
                %v202 = vld [vmem:[%s178 + $0x2c] sm:$0xf]
                %203 = vst [vmem:[%s179 + $0x2c] sm:$0xf] %v202
                %v204 = vld [vmem:[%s178 + $0x30] sm:$0xf]
                %205 = vst [vmem:[%s179 + $0x30] sm:$0xf] %v204
                %v206 = vld [vmem:[%s178 + $0x34] sm:$0xf]
                %207 = vst [vmem:[%s179 + $0x34] sm:$0xf] %v206
                %v208 = vld [vmem:[%s178 + $0x38] sm:$0xf]
                %209 = vst [vmem:[%s179 + $0x38] sm:$0xf] %v208
                %v210 = vld [vmem:[%s178 + $0x3c] sm:$0xf]
                %211 = vst [vmem:[%s179 + $0x3c] sm:$0xf] %v210
                %v212 = vld [vmem:[%s178 + $0x80] sm:$0xf]
                %213 = vst [vmem:[%s179 + $0x40] sm:$0xf] %v212
                %v214 = vld [vmem:[%s178 + $0x84] sm:$0xf]
                %215 = vst [vmem:[%s179 + $0x44] sm:$0xf] %v214
                %v216 = vld [vmem:[%s178 + $0x88] sm:$0xf]
                %217 = vst [vmem:[%s179 + $0x48] sm:$0xf] %v216
                %v218 = vld [vmem:[%s178 + $0x8c] sm:$0xf]
                %219 = vst [vmem:[%s179 + $0x4c] sm:$0xf] %v218
                %v220 = vld [vmem:[%s178 + $0x90] sm:$0xf]
                %221 = vst [vmem:[%s179 + $0x50] sm:$0xf] %v220
                %v222 = vld [vmem:[%s178 + $0x94] sm:$0xf]
                %223 = vst [vmem:[%s179 + $0x54] sm:$0xf] %v222
                %v224 = vld [vmem:[%s178 + $0x98] sm:$0xf]
                %225 = vst [vmem:[%s179 + $0x58] sm:$0xf] %v224
                %v226 = vld [vmem:[%s178 + $0x9c] sm:$0xf]
                %227 = vst [vmem:[%s179 + $0x5c] sm:$0xf] %v226
                %v228 = vld [vmem:[%s178 + $0xa0] sm:$0xf]
                %229 = vst [vmem:[%s179 + $0x60] sm:$0xf] %v228
                %v230 = vld [vmem:[%s178 + $0xa4] sm:$0xf]
                %231 = vst [vmem:[%s179 + $0x64] sm:$0xf] %v230
                %v232 = vld [vmem:[%s178 + $0xa8] sm:$0xf]
                %233 = vst [vmem:[%s179 + $0x68] sm:$0xf] %v232
                %v234 = vld [vmem:[%s178 + $0xac] sm:$0xf]
                %235 = vst [vmem:[%s179 + $0x6c] sm:$0xf] %v234
                %v236 = vld [vmem:[%s178 + $0xb0] sm:$0xf]
                %237 = vst [vmem:[%s179 + $0x70] sm:$0xf] %v236
                %v238 = vld [vmem:[%s178 + $0xb4] sm:$0xf]
                %239 = vst [vmem:[%s179 + $0x74] sm:$0xf] %v238
                %v240 = vld [vmem:[%s178 + $0xb8] sm:$0xf]
                %241 = vst [vmem:[%s179 + $0x78] sm:$0xf] %v240
                %v242 = vld [vmem:[%s178 + $0xbc] sm:$0xf]
                %243 = vst [vmem:[%s179 + $0x7c] sm:$0xf] %v242
                %v244 = vld [vmem:[%s178 + $0x100] sm:$0xf]
                %245 = vst [vmem:[%s179 + $0x80] sm:$0xf] %v244
                %v246 = vld [vmem:[%s178 + $0x104] sm:$0xf]
                %247 = vst [vmem:[%s179 + $0x84] sm:$0xf] %v246
                %v248 = vld [vmem:[%s178 + $0x108] sm:$0xf]
                %249 = vst [vmem:[%s179 + $0x88] sm:$0xf] %v248
                %v250 = vld [vmem:[%s178 + $0x10c] sm:$0xf]
                %251 = vst [vmem:[%s179 + $0x8c] sm:$0xf] %v250
                %v252 = vld [vmem:[%s178 + $0x110] sm:$0xf]
                %253 = vst [vmem:[%s179 + $0x90] sm:$0xf] %v252
                %v254 = vld [vmem:[%s178 + $0x114] sm:$0xf]
                %255 = vst [vmem:[%s179 + $0x94] sm:$0xf] %v254
                %v256 = vld [vmem:[%s178 + $0x118] sm:$0xf]
                %257 = vst [vmem:[%s179 + $0x98] sm:$0xf] %v256
                %v258 = vld [vmem:[%s178 + $0x11c] sm:$0xf]
                %259 = vst [vmem:[%s179 + $0x9c] sm:$0xf] %v258
                %v260 = vld [vmem:[%s178 + $0x120] sm:$0xf]
                %261 = vst [vmem:[%s179 + $0xa0] sm:$0xf] %v260
                %v262 = vld [vmem:[%s178 + $0x124] sm:$0xf]
                %263 = vst [vmem:[%s179 + $0xa4] sm:$0xf] %v262
                %v264 = vld [vmem:[%s178 + $0x128] sm:$0xf]
                %265 = vst [vmem:[%s179 + $0xa8] sm:$0xf] %v264
                %v266 = vld [vmem:[%s178 + $0x12c] sm:$0xf]
                %267 = vst [vmem:[%s179 + $0xac] sm:$0xf] %v266
                %v268 = vld [vmem:[%s178 + $0x130] sm:$0xf]
                %269 = vst [vmem:[%s179 + $0xb0] sm:$0xf] %v268
                %v270 = vld [vmem:[%s178 + $0x134] sm:$0xf]
                %271 = vst [vmem:[%s179 + $0xb4] sm:$0xf] %v270
                %v272 = vld [vmem:[%s178 + $0x138] sm:$0xf]
                %273 = vst [vmem:[%s179 + $0xb8] sm:$0xf] %v272
                %v274 = vld [vmem:[%s178 + $0x13c] sm:$0xf]
                %275 = vst [vmem:[%s179 + $0xbc] sm:$0xf] %v274
                %v276 = vld [vmem:[%s178 + $0x180] sm:$0xf]
                %277 = vst [vmem:[%s179 + $0xc0] sm:$0xf] %v276
                %v278 = vld [vmem:[%s178 + $0x184] sm:$0xf]
                %279 = vst [vmem:[%s179 + $0xc4] sm:$0xf] %v278
                %v280 = vld [vmem:[%s178 + $0x188] sm:$0xf]
                %281 = vst [vmem:[%s179 + $0xc8] sm:$0xf] %v280
                %v282 = vld [vmem:[%s178 + $0x18c] sm:$0xf]
                %283 = vst [vmem:[%s179 + $0xcc] sm:$0xf] %v282
                %v284 = vld [vmem:[%s178 + $0x190] sm:$0xf]
                %285 = vst [vmem:[%s179 + $0xd0] sm:$0xf] %v284
                %v286 = vld [vmem:[%s178 + $0x194] sm:$0xf]
                %287 = vst [vmem:[%s179 + $0xd4] sm:$0xf] %v286
                %v288 = vld [vmem:[%s178 + $0x198] sm:$0xf]
                %289 = vst [vmem:[%s179 + $0xd8] sm:$0xf] %v288
                %v290 = vld [vmem:[%s178 + $0x19c] sm:$0xf]
                %291 = vst [vmem:[%s179 + $0xdc] sm:$0xf] %v290
                %v292 = vld [vmem:[%s178 + $0x1a0] sm:$0xf]
                %293 = vst [vmem:[%s179 + $0xe0] sm:$0xf] %v292
                %v294 = vld [vmem:[%s178 + $0x1a4] sm:$0xf]
                %295 = vst [vmem:[%s179 + $0xe4] sm:$0xf] %v294
                %v296 = vld [vmem:[%s178 + $0x1a8] sm:$0xf]
                %297 = vst [vmem:[%s179 + $0xe8] sm:$0xf] %v296
                %v298 = vld [vmem:[%s178 + $0x1ac] sm:$0xf]
                %299 = vst [vmem:[%s179 + $0xec] sm:$0xf] %v298
                %v300 = vld [vmem:[%s178 + $0x1b0] sm:$0xf]
                %301 = vst [vmem:[%s179 + $0xf0] sm:$0xf] %v300
                %v302 = vld [vmem:[%s178 + $0x1b4] sm:$0xf]
                %303 = vst [vmem:[%s179 + $0xf4] sm:$0xf] %v302
                %v304 = vld [vmem:[%s178 + $0x1b8] sm:$0xf]
                %305 = vst [vmem:[%s179 + $0xf8] sm:$0xf] %v304
                %v306 = vld [vmem:[%s178 + $0x1bc] sm:$0xf]
                %307 = vst [vmem:[%s179 + $0xfc] sm:$0xf] %v306
              $region45: #{net_conpu_v7_forward.9} parent=39 // loop_footer
                %s177 = sadd.s32 1, %s173
              $region46: #{net_conpu_v7_forward.9} parent=39 // loop_footer_branch
                %172 = sbr.rel target = $region42
              $region47: #{net_conpu_v7_forward.9} parent=39 // loop_exit
                _
            $region40: #{net_conpu_v7_forward.9} parent=31 // pred_fallthru
              _
          $region32: #{net_conpu_v7_forward.9} parent=27 // pred_fallthru
            _
          %455 = vnop
        $region28: #{net_conpu_v7_forward.9} parent=23 // pred_fallthru
          _
        // Predicated region
        $region66: #{net_conpu_v7_forward.9} parent=23 // pred_check
          %p456 = pneg %p56
        $region67: #{net_conpu_v7_forward.9} parent=23 // pred_check_branch
          %458 = sbr.rel (%p456) target = $region69
        $region68: #{net_conpu_v7_forward.9} parent=23 // pred_region
          %s459 = smul.u32 16, %s10
          %p460 = scmp.lt.s32.totalorder %s459, 31
          %s461 = scalar_select %p460, %s459, 31
          %s462 = smul.addr %s461, 4
          %s463 = scalar_lea.vmem %s1, %s462
          %s464 = smul.u32 16, %s10
        $region69: #{net_conpu_v7_forward.9} parent=23 // pred_fallthru
          _
      $region24: #{net_conpu_v7_forward.9} parent=5 // pred_fallthru
        _
      %p465 = scmp.le.s32.totalorder 1, %s10
      %p466 = scmp.lt.s32.totalorder %s10, 3
      %p467 = pnand %p465, %p466
      %p468 = pneg %p467
      // Predicated region
      $region70: #{net_conpu_v7_forward.9} parent=5 // pred_check
        _
      $region71: #{net_conpu_v7_forward.9} parent=5 // pred_check_branch
        %470 = sbr.rel (%p467) target = $region73
      $region72: #{net_conpu_v7_forward.9} parent=5 // pred_region
        %s471 = ssub.s32 %s10, 1
        %s472 = sand.u32 %s23, 1
        %s473 = sand.u32 %s23, 1
        %s474 = smul.addr %s473, 256
        %s475 = scalar_lea.vmem [#allocation2], %s474
        // Predicated region
        $region74: #{net_conpu_v7_forward.9} parent=72 // pred_check
          %p476 = pneg %p36
        $region75: #{net_conpu_v7_forward.9} parent=72 // pred_check_branch
          %478 = sbr.rel (%p476) target = $region77
        $region76: #{net_conpu_v7_forward.9} parent=72 // pred_region
          _
        $region77: #{net_conpu_v7_forward.9} parent=72 // pred_fallthru
          _
        %s479 = sand.u32 %s23, 1
        %s480 = sand.u32 %s23, 1
        %s481 = smul.addr %s480, 256
        %s482 = scalar_lea.vmem [#allocation2], %s481
        %p483 = pneg %p36
        %p484 = pneg %p33
        %s485 = smul.u32 16, %s15
        %p486 = scmp.lt.s32.totalorder %s485, 31
        %s487 = scalar_select %p486, %s485, 31
        %s488 = smul.addr %s487, 4
        %s489 = scalar_lea.vmem %s1, %s488
        %p490 = pneg %p62
        %p491 = pneg %p59
        %p492 = pneg %p83
        %p493 = pneg %p80
        %p494 = pneg %p104
        %p495 = pneg %p101
        %p496 = pneg %p130
        %p497 = pneg %p127
        %s498 = smul.u32 16, %s15
        %p499 = scmp.lt.s32.totalorder %s498, 31
        %s500 = scalar_select %p499, %s498, 31
        %s501 = smul.addr %s500, 2
        %s502 = smul.addr %s501, 8
        %s503 = scalar_lea.vmem %s4, %s502
        %s504 = smul.u32 16, %s15
        %s505 = smul.u32 16, %s15
        %p506 = scmp.lt.s32.totalorder %s505, 31
        %s507 = scalar_select %p506, %s505, 31
        %s508 = smul.addr %s507, 4
        %s509 = scalar_lea.vmem %s1, %s508
        %s510 = smul.u32 16, %s15
        %s511 = smul.u32 16, %s15
        %p512 = scmp.lt.s32.totalorder %s511, 31
        %s513 = scalar_select %p512, %s511, 31
        %s514 = smul.addr %s513, 2
        %s515 = smul.addr %s514, 8
        %s516 = scalar_lea.vmem %s4, %s515
        %s517 = smul.u32 16, %s15
        %v519 = vld [vmem:[%s509] sm:$0xf]
        %v520 = vld [vmem:[%s509 + $0x4] sm:$0xf]
        %v521 = vld [vmem:[%s509 + $0x8] sm:$0xf]
        %v522 = vld [vmem:[%s509 + $0xc] sm:$0xf]
        %v523 = vld [vmem:[%s509 + $0x10] sm:$0xf]
        %v524 = vld [vmem:[%s509 + $0x14] sm:$0xf]
        %v525 = vld [vmem:[%s509 + $0x18] sm:$0xf]
        %v526 = vld [vmem:[%s509 + $0x1c] sm:$0xf]
        %v527 = vld [vmem:[%s509 + $0x20] sm:$0xf]
        %v528 = vld [vmem:[%s509 + $0x24] sm:$0xf]
        %v529 = vld [vmem:[%s509 + $0x28] sm:$0xf]
        %v530 = vld [vmem:[%s509 + $0x2c] sm:$0xf]
        %v531 = vld [vmem:[%s509 + $0x30] sm:$0xf]
        %v532 = vld [vmem:[%s509 + $0x34] sm:$0xf]
        %v533 = vld [vmem:[%s509 + $0x38] sm:$0xf]
        %v534 = vld [vmem:[%s509 + $0x3c] sm:$0xf]
        %v535 = vld [vmem:[%s3] sm:$0xff]
        %v536 = vld [vmem:[%s3 + $0x8] sm:$0xff]
        %v537 = vld [vmem:[%s3 + $0x10] sm:$0xff]
        %v538 = vld [vmem:[%s3 + $0x18] sm:$0xff]
        %v539 = vld [vmem:[%s3 + $0x20] sm:$0xff]
        %v540 = vld [vmem:[%s3 + $0x28] sm:$0xff]
        %v541 = vld [vmem:[%s3 + $0x30] sm:$0xff]
        %v542 = vld [vmem:[%s3 + $0x38] sm:$0xff]
        %v543 = vld [vmem:[%s3 + $0x40] sm:$0xff]
        %v544 = vld [vmem:[%s3 + $0x48] sm:$0xff]
        %v545 = vld [vmem:[%s3 + $0x50] sm:$0xff]
        %v546 = vld [vmem:[%s3 + $0x58] sm:$0xff]
        %v547 = vld [vmem:[%s3 + $0x60] sm:$0xff]
        %v548 = vld [vmem:[%s3 + $0x68] sm:$0xff]
        %v549 = vld [vmem:[%s3 + $0x70] sm:$0xff]
        %v550 = vld [vmem:[%s3 + $0x78] sm:$0xff]
        %v567 = vunpack.c.l.b16 %v519
        %v568 = vunpack.c.l.b16 %v520
        %v569 = vunpack.c.l.b16 %v521
        %v570 = vunpack.c.l.b16 %v522
        %v571 = vunpack.c.l.b16 %v523
        %v572 = vunpack.c.l.b16 %v524
        %v573 = vunpack.c.l.b16 %v525
        %v574 = vunpack.c.l.b16 %v526
        %v575 = vunpack.c.l.b16 %v527
        %v576 = vunpack.c.l.b16 %v528
        %v577 = vunpack.c.l.b16 %v529
        %v578 = vunpack.c.l.b16 %v530
        %v579 = vunpack.c.l.b16 %v531
        %v580 = vunpack.c.l.b16 %v532
        %v581 = vunpack.c.l.b16 %v533
        %v582 = vunpack.c.l.b16 %v534
        %v583 = vpack.c.b16 %v568, %v567
        %v584 = vpack.c.b16 %v570, %v569
        %v585 = vpack.c.b16 %v572, %v571
        %v586 = vpack.c.b16 %v574, %v573
        %v587 = vpack.c.b16 %v576, %v575
        %v588 = vpack.c.b16 %v578, %v577
        %v589 = vpack.c.b16 %v580, %v579
        %v590 = vpack.c.b16 %v582, %v581
        %v615 = vunpack.c.l.b16 %v535
        %v616 = vunpack.c.h.b16 %v535
        %v617 = vunpack.c.l.b16 %v536
        %v618 = vunpack.c.h.b16 %v536
        %v619 = vunpack.c.l.b16 %v537
        %v620 = vunpack.c.h.b16 %v537
        %v621 = vunpack.c.l.b16 %v538
        %v622 = vunpack.c.h.b16 %v538
        %v623 = vunpack.c.l.b16 %v539
        %v624 = vunpack.c.h.b16 %v539
        %v625 = vunpack.c.l.b16 %v540
        %v626 = vunpack.c.h.b16 %v540
        %v627 = vunpack.c.l.b16 %v541
        %v628 = vunpack.c.h.b16 %v541
        %v629 = vunpack.c.l.b16 %v542
        %v630 = vunpack.c.h.b16 %v542
        %v631 = vunpack.c.l.b16 %v543
        %v632 = vunpack.c.h.b16 %v543
        %v633 = vunpack.c.l.b16 %v544
        %v634 = vunpack.c.h.b16 %v544
        %v635 = vunpack.c.l.b16 %v545
        %v636 = vunpack.c.h.b16 %v545
        %v637 = vunpack.c.l.b16 %v546
        %v638 = vunpack.c.h.b16 %v546
        %v639 = vunpack.c.l.b16 %v547
        %v640 = vunpack.c.h.b16 %v547
        %v641 = vunpack.c.l.b16 %v548
        %v642 = vunpack.c.h.b16 %v548
        %v643 = vunpack.c.l.b16 %v549
        %v644 = vunpack.c.h.b16 %v549
        %v645 = vunpack.c.l.b16 %v550
        %v646 = vunpack.c.h.b16 %v550
        %v647 = vpack.c.b16 %v617, %v615
        %v648 = vpack.c.b16 %v618, %v616
        %v649 = vpack.c.b16 %v621, %v619
        %v650 = vpack.c.b16 %v622, %v620
        %v651 = vpack.c.b16 %v625, %v623
        %v652 = vpack.c.b16 %v626, %v624
        %v653 = vpack.c.b16 %v629, %v627
        %v654 = vpack.c.b16 %v630, %v628
        %v655 = vpack.c.b16 %v633, %v631
        %v656 = vpack.c.b16 %v634, %v632
        %v657 = vpack.c.b16 %v637, %v635
        %v658 = vpack.c.b16 %v638, %v636
        %v659 = vpack.c.b16 %v641, %v639
        %v660 = vpack.c.b16 %v642, %v640
        %v661 = vpack.c.b16 %v645, %v643
        %v662 = vpack.c.b16 %v646, %v644
        %679 = vmatprep.subr.bf16.mxu0 %v648
        %680 = vmatpush1.bf16.msra.mxu0 %v647
        %681 = vmatprep.subr.bf16.mxu0 %v650
        %682 = vmatpush1.bf16.msra.mxu0 %v649
        %683 = vmatprep.subr.bf16.mxu0 %v652
        %684 = vmatpush1.bf16.msra.mxu0 %v651
        %685 = vmatprep.subr.bf16.mxu0 %v654
        %686 = vmatpush1.bf16.msra.mxu0 %v653
        %687 = vmatprep.subr.bf16.mxu0 %v656
        %688 = vmatpush1.bf16.msra.mxu0 %v655
        %689 = vmatprep.subr.bf16.mxu0 %v658
        %690 = vmatpush1.bf16.msra.mxu0 %v657
        %691 = vmatprep.subr.bf16.mxu0 %v660
        %692 = vmatpush1.bf16.msra.mxu0 %v659
        %693 = vmatprep.subr.bf16.mxu0 %v662
        %694 = vmatpush1.bf16.msra.mxu0 %v661
        %695 = vmatprep.subr.bf16.mxu0 0
        %696 = vmatpush1.bf16.msra.mxu0 0
        %697 = vmatprep.subr.bf16.mxu0 0
        %698 = vmatpush1.bf16.msra.mxu0 0
        %699 = vmatprep.subr.bf16.mxu0 0
        %700 = vmatpush1.bf16.msra.mxu0 0
        %701 = vmatprep.subr.bf16.mxu0 0
        %702 = vmatpush1.bf16.msra.mxu0 0
        %703 = vmatprep.subr.bf16.mxu0 0
        %704 = vmatpush1.bf16.msra.mxu0 0
        %705 = vmatprep.subr.bf16.mxu0 0
        %706 = vmatpush1.bf16.msra.mxu0 0
        %707 = vmatprep.subr.bf16.mxu0 0
        %708 = vmatpush1.bf16.msra.mxu0 0
        %709 = vmatprep.subr.bf16.mxu0 0
        %710 = vmatpush1.bf16.msra.mxu0 0
        %711 = vmatprep.mubr.bf16.mxu0 0
        %712 = vmatmul.mubr.bf16.gmra.mrb[0].mxu0 %v583
        %v713 = vpop.f32.mrb[0].mxu0
        %v714 = vadd.f32 0.0, %v713
        %v715 = vpop.f32.mrb[0].mxu0
        %v716 = vadd.f32 0.0, %v715
        %v717 = vpop.f32.mrb[0].mxu0
        %v718 = vadd.f32 0.0, %v717
        %v719 = vpop.f32.mrb[0].mxu0
        %v720 = vadd.f32 0.0, %v719
        %721 = vmatprep.mubr.bf16.mxu0 0
        %722 = vmatmul.mubr.bf16.gmra.mrb[0].mxu0 %v584
        %v723 = vpop.f32.mrb[0].mxu0
        %v724 = vadd.f32 0.0, %v723
        %v725 = vpop.f32.mrb[0].mxu0
        %v726 = vadd.f32 0.0, %v725
        %v727 = vpop.f32.mrb[0].mxu0
        %v728 = vadd.f32 0.0, %v727
        %v729 = vpop.f32.mrb[0].mxu0
        %v730 = vadd.f32 0.0, %v729
        %731 = vmatprep.mubr.bf16.mxu0 0
        %732 = vmatmul.mubr.bf16.gmra.mrb[0].mxu0 %v585
        %v733 = vpop.f32.mrb[0].mxu0
        %v734 = vadd.f32 0.0, %v733
        %v735 = vpop.f32.mrb[0].mxu0
        %v736 = vadd.f32 0.0, %v735
        %v737 = vpop.f32.mrb[0].mxu0
        %v738 = vadd.f32 0.0, %v737
        %v739 = vpop.f32.mrb[0].mxu0
        %v740 = vadd.f32 0.0, %v739
        %741 = vmatprep.mubr.bf16.mxu0 0
        %742 = vmatmul.mubr.bf16.gmra.mrb[0].mxu0 %v586
        %v743 = vpop.f32.mrb[0].mxu0
        %v744 = vadd.f32 0.0, %v743
        %v745 = vpop.f32.mrb[0].mxu0
        %v746 = vadd.f32 0.0, %v745
        %v747 = vpop.f32.mrb[0].mxu0
        %v748 = vadd.f32 0.0, %v747
        %v749 = vpop.f32.mrb[0].mxu0
        %v750 = vadd.f32 0.0, %v749
        %751 = vmatprep.mubr.bf16.mxu0 0
        %752 = vmatmul.mubr.bf16.gmra.mrb[0].mxu0 %v587
        %v753 = vpop.f32.mrb[0].mxu0
        %v754 = vadd.f32 0.0, %v753
        %v755 = vpop.f32.mrb[0].mxu0
        %v756 = vadd.f32 0.0, %v755
        %v757 = vpop.f32.mrb[0].mxu0
        %v758 = vadd.f32 0.0, %v757
        %v759 = vpop.f32.mrb[0].mxu0
        %v760 = vadd.f32 0.0, %v759
        %761 = vmatprep.mubr.bf16.mxu0 0
        %762 = vmatmul.mubr.bf16.gmra.mrb[0].mxu0 %v588
        %v763 = vpop.f32.mrb[0].mxu0
        %v764 = vadd.f32 0.0, %v763
        %v765 = vpop.f32.mrb[0].mxu0
        %v766 = vadd.f32 0.0, %v765
        %v767 = vpop.f32.mrb[0].mxu0
        %v768 = vadd.f32 0.0, %v767
        %v769 = vpop.f32.mrb[0].mxu0
        %v770 = vadd.f32 0.0, %v769
        %771 = vmatprep.mubr.bf16.mxu0 0
        %772 = vmatmul.mubr.bf16.gmra.mrb[0].mxu0 %v589
        %v773 = vpop.f32.mrb[0].mxu0
        %v774 = vadd.f32 0.0, %v773
        %v775 = vpop.f32.mrb[0].mxu0
        %v776 = vadd.f32 0.0, %v775
        %v777 = vpop.f32.mrb[0].mxu0
        %v778 = vadd.f32 0.0, %v777
        %v779 = vpop.f32.mrb[0].mxu0
        %v780 = vadd.f32 0.0, %v779
        %781 = vmatprep.mubr.bf16.mxu0 0
        %782 = vmatmul.mubr.bf16.gmra.mrb[0].mxu0 %v590
        %v783 = vpop.f32.mrb[0].mxu0
        %v784 = vadd.f32 0.0, %v783
        %v785 = vpop.f32.mrb[0].mxu0
        %v786 = vadd.f32 0.0, %v785
        %v787 = vpop.f32.mrb[0].mxu0
        %v788 = vadd.f32 0.0, %v787
        %v789 = vpop.f32.mrb[0].mxu0
        %v790 = vadd.f32 0.0, %v789
        %791 = vdwg.mxu0
        %v792 = vld [vmem:[%s475] sm:$0xf]
        %v793 = vld [vmem:[%s475 + $0x4] sm:$0xf]
        %v794 = vld [vmem:[%s475 + $0x8] sm:$0xf]
        %v795 = vld [vmem:[%s475 + $0xc] sm:$0xf]
        %v796 = vld [vmem:[%s475 + $0x10] sm:$0xf]
        %v797 = vld [vmem:[%s475 + $0x14] sm:$0xf]
        %v798 = vld [vmem:[%s475 + $0x18] sm:$0xf]
        %v799 = vld [vmem:[%s475 + $0x1c] sm:$0xf]
        %v800 = vld [vmem:[%s475 + $0x20] sm:$0xf]
        %v801 = vld [vmem:[%s475 + $0x24] sm:$0xf]
        %v802 = vld [vmem:[%s475 + $0x28] sm:$0xf]
        %v803 = vld [vmem:[%s475 + $0x2c] sm:$0xf]
        %v804 = vld [vmem:[%s475 + $0x30] sm:$0xf]
        %v805 = vld [vmem:[%s475 + $0x34] sm:$0xf]
        %v806 = vld [vmem:[%s475 + $0x38] sm:$0xf]
        %v807 = vld [vmem:[%s475 + $0x3c] sm:$0xf]
        %v808 = vld [vmem:[%s2] sm:$0xff]
        %v809 = vld [vmem:[%s2 + $0x8] sm:$0xff]
        %v810 = vld [vmem:[%s2 + $0x10] sm:$0xff]
        %v811 = vld [vmem:[%s2 + $0x18] sm:$0xff]
        %v812 = vld [vmem:[%s2 + $0x20] sm:$0xff]
        %v813 = vld [vmem:[%s2 + $0x28] sm:$0xff]
        %v814 = vld [vmem:[%s2 + $0x30] sm:$0xff]
        %v815 = vld [vmem:[%s2 + $0x38] sm:$0xff]
        %v816 = vld [vmem:[%s2 + $0x40] sm:$0xff]
        %v817 = vld [vmem:[%s2 + $0x48] sm:$0xff]
        %v818 = vld [vmem:[%s2 + $0x50] sm:$0xff]
        %v819 = vld [vmem:[%s2 + $0x58] sm:$0xff]
        %v820 = vld [vmem:[%s2 + $0x60] sm:$0xff]
        %v821 = vld [vmem:[%s2 + $0x68] sm:$0xff]
        %v822 = vld [vmem:[%s2 + $0x70] sm:$0xff]
        %v823 = vld [vmem:[%s2 + $0x78] sm:$0xff]
        %v840 = vunpack.c.l.b16 %v792
        %v841 = vunpack.c.l.b16 %v793
        %v842 = vunpack.c.l.b16 %v794
        %v843 = vunpack.c.l.b16 %v795
        %v844 = vunpack.c.l.b16 %v796
        %v845 = vunpack.c.l.b16 %v797
        %v846 = vunpack.c.l.b16 %v798
        %v847 = vunpack.c.l.b16 %v799
        %v848 = vunpack.c.l.b16 %v800
        %v849 = vunpack.c.l.b16 %v801
        %v850 = vunpack.c.l.b16 %v802
        %v851 = vunpack.c.l.b16 %v803
        %v852 = vunpack.c.l.b16 %v804
        %v853 = vunpack.c.l.b16 %v805
        %v854 = vunpack.c.l.b16 %v806
        %v855 = vunpack.c.l.b16 %v807
        %v856 = vpack.c.b16 %v841, %v840
        %v857 = vpack.c.b16 %v843, %v842
        %v858 = vpack.c.b16 %v845, %v844
        %v859 = vpack.c.b16 %v847, %v846
        %v860 = vpack.c.b16 %v849, %v848
        %v861 = vpack.c.b16 %v851, %v850
        %v862 = vpack.c.b16 %v853, %v852
        %v863 = vpack.c.b16 %v855, %v854
        %v888 = vunpack.c.l.b16 %v808
        %v889 = vunpack.c.h.b16 %v808
        %v890 = vunpack.c.l.b16 %v809
        %v891 = vunpack.c.h.b16 %v809
        %v892 = vunpack.c.l.b16 %v810
        %v893 = vunpack.c.h.b16 %v810
        %v894 = vunpack.c.l.b16 %v811
        %v895 = vunpack.c.h.b16 %v811
        %v896 = vunpack.c.l.b16 %v812
        %v897 = vunpack.c.h.b16 %v812
        %v898 = vunpack.c.l.b16 %v813
        %v899 = vunpack.c.h.b16 %v813
        %v900 = vunpack.c.l.b16 %v814
        %v901 = vunpack.c.h.b16 %v814
        %v902 = vunpack.c.l.b16 %v815
        %v903 = vunpack.c.h.b16 %v815
        %v904 = vunpack.c.l.b16 %v816
        %v905 = vunpack.c.h.b16 %v816
        %v906 = vunpack.c.l.b16 %v817
        %v907 = vunpack.c.h.b16 %v817
        %v908 = vunpack.c.l.b16 %v818
        %v909 = vunpack.c.h.b16 %v818
        %v910 = vunpack.c.l.b16 %v819
        %v911 = vunpack.c.h.b16 %v819
        %v912 = vunpack.c.l.b16 %v820
        %v913 = vunpack.c.h.b16 %v820
        %v914 = vunpack.c.l.b16 %v821
        %v915 = vunpack.c.h.b16 %v821
        %v916 = vunpack.c.l.b16 %v822
        %v917 = vunpack.c.h.b16 %v822
        %v918 = vunpack.c.l.b16 %v823
        %v919 = vunpack.c.h.b16 %v823
        %v920 = vpack.c.b16 %v890, %v888
        %v921 = vpack.c.b16 %v891, %v889
        %v922 = vpack.c.b16 %v894, %v892
        %v923 = vpack.c.b16 %v895, %v893
        %v924 = vpack.c.b16 %v898, %v896
        %v925 = vpack.c.b16 %v899, %v897
        %v926 = vpack.c.b16 %v902, %v900
        %v927 = vpack.c.b16 %v903, %v901
        %v928 = vpack.c.b16 %v906, %v904
        %v929 = vpack.c.b16 %v907, %v905
        %v930 = vpack.c.b16 %v910, %v908
        %v931 = vpack.c.b16 %v911, %v909
        %v932 = vpack.c.b16 %v914, %v912
        %v933 = vpack.c.b16 %v915, %v913
        %v934 = vpack.c.b16 %v918, %v916
        %v935 = vpack.c.b16 %v919, %v917
        %952 = vmatprep.subr.bf16.mxu0 %v921
        %953 = vmatpush1.bf16.msra.mxu0 %v920
        %954 = vmatprep.subr.bf16.mxu0 %v923
        %955 = vmatpush1.bf16.msra.mxu0 %v922
        %956 = vmatprep.subr.bf16.mxu0 %v925
        %957 = vmatpush1.bf16.msra.mxu0 %v924
        %958 = vmatprep.subr.bf16.mxu0 %v927
        %959 = vmatpush1.bf16.msra.mxu0 %v926
        %960 = vmatprep.subr.bf16.mxu0 %v929
        %961 = vmatpush1.bf16.msra.mxu0 %v928
        %962 = vmatprep.subr.bf16.mxu0 %v931
        %963 = vmatpush1.bf16.msra.mxu0 %v930
        %964 = vmatprep.subr.bf16.mxu0 %v933
        %965 = vmatpush1.bf16.msra.mxu0 %v932
        %966 = vmatprep.subr.bf16.mxu0 %v935
        %967 = vmatpush1.bf16.msra.mxu0 %v934
        %968 = vmatprep.subr.bf16.mxu0 0
        %969 = vmatpush1.bf16.msra.mxu0 0
        %970 = vmatprep.subr.bf16.mxu0 0
        %971 = vmatpush1.bf16.msra.mxu0 0
        %972 = vmatprep.subr.bf16.mxu0 0
        %973 = vmatpush1.bf16.msra.mxu0 0
        %974 = vmatprep.subr.bf16.mxu0 0
        %975 = vmatpush1.bf16.msra.mxu0 0
        %976 = vmatprep.subr.bf16.mxu0 0
        %977 = vmatpush1.bf16.msra.mxu0 0
        %978 = vmatprep.subr.bf16.mxu0 0
        %979 = vmatpush1.bf16.msra.mxu0 0
        %980 = vmatprep.subr.bf16.mxu0 0
        %981 = vmatpush1.bf16.msra.mxu0 0
        %982 = vmatprep.subr.bf16.mxu0 0
        %983 = vmatpush1.bf16.msra.mxu0 0
        %984 = vmatprep.mubr.bf16.mxu0 0
        %985 = vmatmul.mubr.bf16.gmra.mrb[0].mxu0 %v856
        %v986 = vpop.f32.mrb[0].mxu0
        %v987 = vadd.f32 0.0, %v986
        %v988 = vpop.f32.mrb[0].mxu0
        %v989 = vadd.f32 0.0, %v988
        %v990 = vpop.f32.mrb[0].mxu0
        %v991 = vadd.f32 0.0, %v990
        %v992 = vpop.f32.mrb[0].mxu0
        %v993 = vadd.f32 0.0, %v992
        %994 = vmatprep.mubr.bf16.mxu0 0
        %995 = vmatmul.mubr.bf16.gmra.mrb[0].mxu0 %v857
        %v996 = vpop.f32.mrb[0].mxu0
        %v997 = vadd.f32 0.0, %v996
        %v998 = vpop.f32.mrb[0].mxu0
        %v999 = vadd.f32 0.0, %v998
        %v1000 = vpop.f32.mrb[0].mxu0
        %v1001 = vadd.f32 0.0, %v1000
        %v1002 = vpop.f32.mrb[0].mxu0
        %v1003 = vadd.f32 0.0, %v1002
        %1004 = vmatprep.mubr.bf16.mxu0 0
        %1005 = vmatmul.mubr.bf16.gmra.mrb[0].mxu0 %v858
        %v1006 = vpop.f32.mrb[0].mxu0
        %v1007 = vadd.f32 0.0, %v1006
        %v1008 = vpop.f32.mrb[0].mxu0
        %v1009 = vadd.f32 0.0, %v1008
        %v1010 = vpop.f32.mrb[0].mxu0
        %v1011 = vadd.f32 0.0, %v1010
        %v1012 = vpop.f32.mrb[0].mxu0
        %v1013 = vadd.f32 0.0, %v1012
        %1014 = vmatprep.mubr.bf16.mxu0 0
        %1015 = vmatmul.mubr.bf16.gmra.mrb[0].mxu0 %v859
        %v1016 = vpop.f32.mrb[0].mxu0
        %v1017 = vadd.f32 0.0, %v1016
        %v1018 = vpop.f32.mrb[0].mxu0
        %v1019 = vadd.f32 0.0, %v1018
        %v1020 = vpop.f32.mrb[0].mxu0
        %v1021 = vadd.f32 0.0, %v1020
        %v1022 = vpop.f32.mrb[0].mxu0
        %v1023 = vadd.f32 0.0, %v1022
        %1024 = vmatprep.mubr.bf16.mxu0 0
        %1025 = vmatmul.mubr.bf16.gmra.mrb[0].mxu0 %v860
        %v1026 = vpop.f32.mrb[0].mxu0
        %v1027 = vadd.f32 0.0, %v1026
        %v1028 = vpop.f32.mrb[0].mxu0
        %v1029 = vadd.f32 0.0, %v1028
        %v1030 = vpop.f32.mrb[0].mxu0
        %v1031 = vadd.f32 0.0, %v1030
        %v1032 = vpop.f32.mrb[0].mxu0
        %v1033 = vadd.f32 0.0, %v1032
        %1034 = vmatprep.mubr.bf16.mxu0 0
        %1035 = vmatmul.mubr.bf16.gmra.mrb[0].mxu0 %v861
        %v1036 = vpop.f32.mrb[0].mxu0
        %v1037 = vadd.f32 0.0, %v1036
        %v1038 = vpop.f32.mrb[0].mxu0
        %v1039 = vadd.f32 0.0, %v1038
        %v1040 = vpop.f32.mrb[0].mxu0
        %v1041 = vadd.f32 0.0, %v1040
        %v1042 = vpop.f32.mrb[0].mxu0
        %v1043 = vadd.f32 0.0, %v1042
        %1044 = vmatprep.mubr.bf16.mxu0 0
        %1045 = vmatmul.mubr.bf16.gmra.mrb[0].mxu0 %v862
        %v1046 = vpop.f32.mrb[0].mxu0
        %v1047 = vadd.f32 0.0, %v1046
        %v1048 = vpop.f32.mrb[0].mxu0
        %v1049 = vadd.f32 0.0, %v1048
        %v1050 = vpop.f32.mrb[0].mxu0
        %v1051 = vadd.f32 0.0, %v1050
        %v1052 = vpop.f32.mrb[0].mxu0
        %v1053 = vadd.f32 0.0, %v1052
        %1054 = vmatprep.mubr.bf16.mxu0 0
        %1055 = vmatmul.mubr.bf16.gmra.mrb[0].mxu0 %v863
        %v1056 = vpop.f32.mrb[0].mxu0
        %v1057 = vadd.f32 0.0, %v1056
        %v1058 = vpop.f32.mrb[0].mxu0
        %v1059 = vadd.f32 0.0, %v1058
        %v1060 = vpop.f32.mrb[0].mxu0
        %v1061 = vadd.f32 0.0, %v1060
        %v1062 = vpop.f32.mrb[0].mxu0
        %v1063 = vadd.f32 0.0, %v1062
        %1064 = vdwg.mxu0
        %s1065 = scalar_lea.vmem %s475, 64 [#allocation2]
        %v1066 = vld [vmem:[%s1065] sm:$0xf]
        %v1067 = vld [vmem:[%s1065 + $0x4] sm:$0xf]
        %v1068 = vld [vmem:[%s1065 + $0x8] sm:$0xf]
        %v1069 = vld [vmem:[%s1065 + $0xc] sm:$0xf]
        %v1070 = vld [vmem:[%s1065 + $0x10] sm:$0xf]
        %v1071 = vld [vmem:[%s1065 + $0x14] sm:$0xf]
        %v1072 = vld [vmem:[%s1065 + $0x18] sm:$0xf]
        %v1073 = vld [vmem:[%s1065 + $0x1c] sm:$0xf]
        %v1074 = vld [vmem:[%s1065 + $0x20] sm:$0xf]
        %v1075 = vld [vmem:[%s1065 + $0x24] sm:$0xf]
        %v1076 = vld [vmem:[%s1065 + $0x28] sm:$0xf]
        %v1077 = vld [vmem:[%s1065 + $0x2c] sm:$0xf]
        %v1078 = vld [vmem:[%s1065 + $0x30] sm:$0xf]
        %v1079 = vld [vmem:[%s1065 + $0x34] sm:$0xf]
        %v1080 = vld [vmem:[%s1065 + $0x38] sm:$0xf]
        %v1081 = vld [vmem:[%s1065 + $0x3c] sm:$0xf]
        %v1098 = vunpack.c.l.b16 %v1066
        %v1099 = vunpack.c.l.b16 %v1067
        %v1100 = vunpack.c.l.b16 %v1068
        %v1101 = vunpack.c.l.b16 %v1069
        %v1102 = vunpack.c.l.b16 %v1070
        %v1103 = vunpack.c.l.b16 %v1071
        %v1104 = vunpack.c.l.b16 %v1072
        %v1105 = vunpack.c.l.b16 %v1073
        %v1106 = vunpack.c.l.b16 %v1074
        %v1107 = vunpack.c.l.b16 %v1075
        %v1108 = vunpack.c.l.b16 %v1076
        %v1109 = vunpack.c.l.b16 %v1077
        %v1110 = vunpack.c.l.b16 %v1078
        %v1111 = vunpack.c.l.b16 %v1079
        %v1112 = vunpack.c.l.b16 %v1080
        %v1113 = vunpack.c.l.b16 %v1081
        %v1114 = vpack.c.b16 %v1099, %v1098
        %v1115 = vpack.c.b16 %v1101, %v1100
        %v1116 = vpack.c.b16 %v1103, %v1102
        %v1117 = vpack.c.b16 %v1105, %v1104
        %v1118 = vpack.c.b16 %v1107, %v1106
        %v1119 = vpack.c.b16 %v1109, %v1108
        %v1120 = vpack.c.b16 %v1111, %v1110
        %v1121 = vpack.c.b16 %v1113, %v1112
        %1130 = vmatprep.subr.bf16.mxu0 %v921
        %1131 = vmatpush1.bf16.msra.mxu0 %v920
        %1132 = vmatprep.subr.bf16.mxu0 %v923
        %1133 = vmatpush1.bf16.msra.mxu0 %v922
        %1134 = vmatprep.subr.bf16.mxu0 %v925
        %1135 = vmatpush1.bf16.msra.mxu0 %v924
        %1136 = vmatprep.subr.bf16.mxu0 %v927
        %1137 = vmatpush1.bf16.msra.mxu0 %v926
        %1138 = vmatprep.subr.bf16.mxu0 %v929
        %1139 = vmatpush1.bf16.msra.mxu0 %v928
        %1140 = vmatprep.subr.bf16.mxu0 %v931
        %1141 = vmatpush1.bf16.msra.mxu0 %v930
        %1142 = vmatprep.subr.bf16.mxu0 %v933
        %1143 = vmatpush1.bf16.msra.mxu0 %v932
        %1144 = vmatprep.subr.bf16.mxu0 %v935
        %1145 = vmatpush1.bf16.msra.mxu0 %v934
        %1146 = vmatprep.subr.bf16.mxu0 0
        %1147 = vmatpush1.bf16.msra.mxu0 0
        %1148 = vmatprep.subr.bf16.mxu0 0
        %1149 = vmatpush1.bf16.msra.mxu0 0
        %1150 = vmatprep.subr.bf16.mxu0 0
        %1151 = vmatpush1.bf16.msra.mxu0 0
        %1152 = vmatprep.subr.bf16.mxu0 0
        %1153 = vmatpush1.bf16.msra.mxu0 0
        %1154 = vmatprep.subr.bf16.mxu0 0
        %1155 = vmatpush1.bf16.msra.mxu0 0
        %1156 = vmatprep.subr.bf16.mxu0 0
        %1157 = vmatpush1.bf16.msra.mxu0 0
        %1158 = vmatprep.subr.bf16.mxu0 0
        %1159 = vmatpush1.bf16.msra.mxu0 0
        %1160 = vmatprep.subr.bf16.mxu0 0
        %1161 = vmatpush1.bf16.msra.mxu0 0
        %1162 = vmatprep.mubr.bf16.mxu0 0
        %1163 = vmatmul.mubr.bf16.gmra.mrb[0].mxu0 %v1114
        %v1164 = vpop.f32.mrb[0].mxu0
        %v1165 = vadd.f32 0.0, %v1164
        %v1166 = vpop.f32.mrb[0].mxu0
        %v1167 = vadd.f32 0.0, %v1166
        %v1168 = vpop.f32.mrb[0].mxu0
        %v1169 = vadd.f32 0.0, %v1168
        %v1170 = vpop.f32.mrb[0].mxu0
        %v1171 = vadd.f32 0.0, %v1170
        %1172 = vmatprep.mubr.bf16.mxu0 0
        %1173 = vmatmul.mubr.bf16.gmra.mrb[0].mxu0 %v1115
        %v1174 = vpop.f32.mrb[0].mxu0
        %v1175 = vadd.f32 0.0, %v1174
        %v1176 = vpop.f32.mrb[0].mxu0
        %v1177 = vadd.f32 0.0, %v1176
        %v1178 = vpop.f32.mrb[0].mxu0
        %v1179 = vadd.f32 0.0, %v1178
        %v1180 = vpop.f32.mrb[0].mxu0
        %v1181 = vadd.f32 0.0, %v1180
        %1182 = vmatprep.mubr.bf16.mxu0 0
        %1183 = vmatmul.mubr.bf16.gmra.mrb[0].mxu0 %v1116
        %v1184 = vpop.f32.mrb[0].mxu0
        %v1185 = vadd.f32 0.0, %v1184
        %v1186 = vpop.f32.mrb[0].mxu0
        %v1187 = vadd.f32 0.0, %v1186
        %v1188 = vpop.f32.mrb[0].mxu0
        %v1189 = vadd.f32 0.0, %v1188
        %v1190 = vpop.f32.mrb[0].mxu0
        %v1191 = vadd.f32 0.0, %v1190
        %1192 = vmatprep.mubr.bf16.mxu0 0
        %1193 = vmatmul.mubr.bf16.gmra.mrb[0].mxu0 %v1117
        %v1194 = vpop.f32.mrb[0].mxu0
        %v1195 = vadd.f32 0.0, %v1194
        %v1196 = vpop.f32.mrb[0].mxu0
        %v1197 = vadd.f32 0.0, %v1196
        %v1198 = vpop.f32.mrb[0].mxu0
        %v1199 = vadd.f32 0.0, %v1198
        %v1200 = vpop.f32.mrb[0].mxu0
        %v1201 = vadd.f32 0.0, %v1200
        %1202 = vmatprep.mubr.bf16.mxu0 0
        %1203 = vmatmul.mubr.bf16.gmra.mrb[0].mxu0 %v1118
        %v1204 = vpop.f32.mrb[0].mxu0
        %v1205 = vadd.f32 0.0, %v1204
        %v1206 = vpop.f32.mrb[0].mxu0
        %v1207 = vadd.f32 0.0, %v1206
        %v1208 = vpop.f32.mrb[0].mxu0
        %v1209 = vadd.f32 0.0, %v1208
        %v1210 = vpop.f32.mrb[0].mxu0
        %v1211 = vadd.f32 0.0, %v1210
        %1212 = vmatprep.mubr.bf16.mxu0 0
        %1213 = vmatmul.mubr.bf16.gmra.mrb[0].mxu0 %v1119
        %v1214 = vpop.f32.mrb[0].mxu0
        %v1215 = vadd.f32 0.0, %v1214
        %v1216 = vpop.f32.mrb[0].mxu0
        %v1217 = vadd.f32 0.0, %v1216
        %v1218 = vpop.f32.mrb[0].mxu0
        %v1219 = vadd.f32 0.0, %v1218
        %v1220 = vpop.f32.mrb[0].mxu0
        %v1221 = vadd.f32 0.0, %v1220
        %1222 = vmatprep.mubr.bf16.mxu0 0
        %1223 = vmatmul.mubr.bf16.gmra.mrb[0].mxu0 %v1120
        %v1224 = vpop.f32.mrb[0].mxu0
        %v1225 = vadd.f32 0.0, %v1224
        %v1226 = vpop.f32.mrb[0].mxu0
        %v1227 = vadd.f32 0.0, %v1226
        %v1228 = vpop.f32.mrb[0].mxu0
        %v1229 = vadd.f32 0.0, %v1228
        %v1230 = vpop.f32.mrb[0].mxu0
        %v1231 = vadd.f32 0.0, %v1230
        %1232 = vmatprep.mubr.bf16.mxu0 0
        %1233 = vmatmul.mubr.bf16.gmra.mrb[0].mxu0 %v1121
        %v1234 = vpop.f32.mrb[0].mxu0
        %v1235 = vadd.f32 0.0, %v1234
        %v1236 = vpop.f32.mrb[0].mxu0
        %v1237 = vadd.f32 0.0, %v1236
        %v1238 = vpop.f32.mrb[0].mxu0
        %v1239 = vadd.f32 0.0, %v1238
        %v1240 = vpop.f32.mrb[0].mxu0
        %v1241 = vadd.f32 0.0, %v1240
        %1242 = vdwg.mxu0
        %v1243 = vmax.f32 %v987, %v1165
        %v1244 = vmax.f32 %v989, %v1167
        %v1245 = vmax.f32 %v991, %v1169
        %v1246 = vmax.f32 %v993, %v1171
        %v1247 = vmax.f32 %v997, %v1175
        %v1248 = vmax.f32 %v999, %v1177
        %v1249 = vmax.f32 %v1001, %v1179
        %v1250 = vmax.f32 %v1003, %v1181
        %v1251 = vmax.f32 %v1007, %v1185
        %v1252 = vmax.f32 %v1009, %v1187
        %v1253 = vmax.f32 %v1011, %v1189
        %v1254 = vmax.f32 %v1013, %v1191
        %v1255 = vmax.f32 %v1017, %v1195
        %v1256 = vmax.f32 %v1019, %v1197
        %v1257 = vmax.f32 %v1021, %v1199
        %v1258 = vmax.f32 %v1023, %v1201
        %v1259 = vmax.f32 %v1027, %v1205
        %v1260 = vmax.f32 %v1029, %v1207
        %v1261 = vmax.f32 %v1031, %v1209
        %v1262 = vmax.f32 %v1033, %v1211
        %v1263 = vmax.f32 %v1037, %v1215
        %v1264 = vmax.f32 %v1039, %v1217
        %v1265 = vmax.f32 %v1041, %v1219
        %v1266 = vmax.f32 %v1043, %v1221
        %v1267 = vmax.f32 %v1047, %v1225
        %v1268 = vmax.f32 %v1049, %v1227
        %v1269 = vmax.f32 %v1051, %v1229
        %v1270 = vmax.f32 %v1053, %v1231
        %v1271 = vmax.f32 %v1057, %v1235
        %v1272 = vmax.f32 %v1059, %v1237
        %v1273 = vmax.f32 %v1061, %v1239
        %v1274 = vmax.f32 %v1063, %v1241
        %s1275 = scalar_lea.vmem %s475, 128 [#allocation2]
        %v1276 = vld [vmem:[%s1275] sm:$0xf]
        %v1277 = vld [vmem:[%s1275 + $0x4] sm:$0xf]
        %v1278 = vld [vmem:[%s1275 + $0x8] sm:$0xf]
        %v1279 = vld [vmem:[%s1275 + $0xc] sm:$0xf]
        %v1280 = vld [vmem:[%s1275 + $0x10] sm:$0xf]
        %v1281 = vld [vmem:[%s1275 + $0x14] sm:$0xf]
        %v1282 = vld [vmem:[%s1275 + $0x18] sm:$0xf]
        %v1283 = vld [vmem:[%s1275 + $0x1c] sm:$0xf]
        %v1284 = vld [vmem:[%s1275 + $0x20] sm:$0xf]
        %v1285 = vld [vmem:[%s1275 + $0x24] sm:$0xf]
        %v1286 = vld [vmem:[%s1275 + $0x28] sm:$0xf]
        %v1287 = vld [vmem:[%s1275 + $0x2c] sm:$0xf]
        %v1288 = vld [vmem:[%s1275 + $0x30] sm:$0xf]
        %v1289 = vld [vmem:[%s1275 + $0x34] sm:$0xf]
        %v1290 = vld [vmem:[%s1275 + $0x38] sm:$0xf]
        %v1291 = vld [vmem:[%s1275 + $0x3c] sm:$0xf]
        %v1308 = vunpack.c.l.b16 %v1276
        %v1309 = vunpack.c.l.b16 %v1277
        %v1310 = vunpack.c.l.b16 %v1278
        %v1311 = vunpack.c.l.b16 %v1279
        %v1312 = vunpack.c.l.b16 %v1280
        %v1313 = vunpack.c.l.b16 %v1281
        %v1314 = vunpack.c.l.b16 %v1282
        %v1315 = vunpack.c.l.b16 %v1283
        %v1316 = vunpack.c.l.b16 %v1284
        %v1317 = vunpack.c.l.b16 %v1285
        %v1318 = vunpack.c.l.b16 %v1286
        %v1319 = vunpack.c.l.b16 %v1287
        %v1320 = vunpack.c.l.b16 %v1288
        %v1321 = vunpack.c.l.b16 %v1289
        %v1322 = vunpack.c.l.b16 %v1290
        %v1323 = vunpack.c.l.b16 %v1291
        %v1324 = vpack.c.b16 %v1309, %v1308
        %v1325 = vpack.c.b16 %v1311, %v1310
        %v1326 = vpack.c.b16 %v1313, %v1312
        %v1327 = vpack.c.b16 %v1315, %v1314
        %v1328 = vpack.c.b16 %v1317, %v1316
        %v1329 = vpack.c.b16 %v1319, %v1318
        %v1330 = vpack.c.b16 %v1321, %v1320
        %v1331 = vpack.c.b16 %v1323, %v1322
        %1340 = vmatprep.subr.bf16.mxu0 %v921
        %1341 = vmatpush1.bf16.msra.mxu0 %v920
        %1342 = vmatprep.subr.bf16.mxu0 %v923
        %1343 = vmatpush1.bf16.msra.mxu0 %v922
        %1344 = vmatprep.subr.bf16.mxu0 %v925
        %1345 = vmatpush1.bf16.msra.mxu0 %v924
        %1346 = vmatprep.subr.bf16.mxu0 %v927
        %1347 = vmatpush1.bf16.msra.mxu0 %v926
        %1348 = vmatprep.subr.bf16.mxu0 %v929
        %1349 = vmatpush1.bf16.msra.mxu0 %v928
        %1350 = vmatprep.subr.bf16.mxu0 %v931
        %1351 = vmatpush1.bf16.msra.mxu0 %v930
        %1352 = vmatprep.subr.bf16.mxu0 %v933
        %1353 = vmatpush1.bf16.msra.mxu0 %v932
        %1354 = vmatprep.subr.bf16.mxu0 %v935
        %1355 = vmatpush1.bf16.msra.mxu0 %v934
        %1356 = vmatprep.subr.bf16.mxu0 0
        %1357 = vmatpush1.bf16.msra.mxu0 0
        %1358 = vmatprep.subr.bf16.mxu0 0
        %1359 = vmatpush1.bf16.msra.mxu0 0
        %1360 = vmatprep.subr.bf16.mxu0 0
        %1361 = vmatpush1.bf16.msra.mxu0 0
        %1362 = vmatprep.subr.bf16.mxu0 0
        %1363 = vmatpush1.bf16.msra.mxu0 0
        %1364 = vmatprep.subr.bf16.mxu0 0
        %1365 = vmatpush1.bf16.msra.mxu0 0
        %1366 = vmatprep.subr.bf16.mxu0 0
        %1367 = vmatpush1.bf16.msra.mxu0 0
        %1368 = vmatprep.subr.bf16.mxu0 0
        %1369 = vmatpush1.bf16.msra.mxu0 0
        %1370 = vmatprep.subr.bf16.mxu0 0
        %1371 = vmatpush1.bf16.msra.mxu0 0
        %1372 = vmatprep.mubr.bf16.mxu0 0
        %1373 = vmatmul.mubr.bf16.gmra.mrb[0].mxu0 %v1324
        %v1374 = vpop.f32.mrb[0].mxu0
        %v1375 = vadd.f32 0.0, %v1374
        %v1376 = vpop.f32.mrb[0].mxu0
        %v1377 = vadd.f32 0.0, %v1376
        %v1378 = vpop.f32.mrb[0].mxu0
        %v1379 = vadd.f32 0.0, %v1378
        %v1380 = vpop.f32.mrb[0].mxu0
        %v1381 = vadd.f32 0.0, %v1380
        %1382 = vmatprep.mubr.bf16.mxu0 0
        %1383 = vmatmul.mubr.bf16.gmra.mrb[0].mxu0 %v1325
        %v1384 = vpop.f32.mrb[0].mxu0
        %v1385 = vadd.f32 0.0, %v1384
        %v1386 = vpop.f32.mrb[0].mxu0
        %v1387 = vadd.f32 0.0, %v1386
        %v1388 = vpop.f32.mrb[0].mxu0
        %v1389 = vadd.f32 0.0, %v1388
        %v1390 = vpop.f32.mrb[0].mxu0
        %v1391 = vadd.f32 0.0, %v1390
        %1392 = vmatprep.mubr.bf16.mxu0 0
        %1393 = vmatmul.mubr.bf16.gmra.mrb[0].mxu0 %v1326
        %v1394 = vpop.f32.mrb[0].mxu0
        %v1395 = vadd.f32 0.0, %v1394
        %v1396 = vpop.f32.mrb[0].mxu0
        %v1397 = vadd.f32 0.0, %v1396
        %v1398 = vpop.f32.mrb[0].mxu0
        %v1399 = vadd.f32 0.0, %v1398
        %v1400 = vpop.f32.mrb[0].mxu0
        %v1401 = vadd.f32 0.0, %v1400
        %1402 = vmatprep.mubr.bf16.mxu0 0
        %1403 = vmatmul.mubr.bf16.gmra.mrb[0].mxu0 %v1327
        %v1404 = vpop.f32.mrb[0].mxu0
        %v1405 = vadd.f32 0.0, %v1404
        %v1406 = vpop.f32.mrb[0].mxu0
        %v1407 = vadd.f32 0.0, %v1406
        %v1408 = vpop.f32.mrb[0].mxu0
        %v1409 = vadd.f32 0.0, %v1408
        %v1410 = vpop.f32.mrb[0].mxu0
        %v1411 = vadd.f32 0.0, %v1410
        %1412 = vmatprep.mubr.bf16.mxu0 0
        %1413 = vmatmul.mubr.bf16.gmra.mrb[0].mxu0 %v1328
        %v1414 = vpop.f32.mrb[0].mxu0
        %v1415 = vadd.f32 0.0, %v1414
        %v1416 = vpop.f32.mrb[0].mxu0
        %v1417 = vadd.f32 0.0, %v1416
        %v1418 = vpop.f32.mrb[0].mxu0
        %v1419 = vadd.f32 0.0, %v1418
        %v1420 = vpop.f32.mrb[0].mxu0
        %v1421 = vadd.f32 0.0, %v1420
        %1422 = vmatprep.mubr.bf16.mxu0 0
        %1423 = vmatmul.mubr.bf16.gmra.mrb[0].mxu0 %v1329
        %v1424 = vpop.f32.mrb[0].mxu0
        %v1425 = vadd.f32 0.0, %v1424
        %v1426 = vpop.f32.mrb[0].mxu0
        %v1427 = vadd.f32 0.0, %v1426
        %v1428 = vpop.f32.mrb[0].mxu0
        %v1429 = vadd.f32 0.0, %v1428
        %v1430 = vpop.f32.mrb[0].mxu0
        %v1431 = vadd.f32 0.0, %v1430
        %1432 = vmatprep.mubr.bf16.mxu0 0
        %1433 = vmatmul.mubr.bf16.gmra.mrb[0].mxu0 %v1330
        %v1434 = vpop.f32.mrb[0].mxu0
        %v1435 = vadd.f32 0.0, %v1434
        %v1436 = vpop.f32.mrb[0].mxu0
        %v1437 = vadd.f32 0.0, %v1436
        %v1438 = vpop.f32.mrb[0].mxu0
        %v1439 = vadd.f32 0.0, %v1438
        %v1440 = vpop.f32.mrb[0].mxu0
        %v1441 = vadd.f32 0.0, %v1440
        %1442 = vmatprep.mubr.bf16.mxu0 0
        %1443 = vmatmul.mubr.bf16.gmra.mrb[0].mxu0 %v1331
        %v1444 = vpop.f32.mrb[0].mxu0
        %v1445 = vadd.f32 0.0, %v1444
        %v1446 = vpop.f32.mrb[0].mxu0
        %v1447 = vadd.f32 0.0, %v1446
        %v1448 = vpop.f32.mrb[0].mxu0
        %v1449 = vadd.f32 0.0, %v1448
        %v1450 = vpop.f32.mrb[0].mxu0
        %v1451 = vadd.f32 0.0, %v1450
        %1452 = vdwg.mxu0
        %v1453 = vmax.f32 %v1243, %v1375
        %v1454 = vmax.f32 %v1244, %v1377
        %v1455 = vmax.f32 %v1245, %v1379
        %v1456 = vmax.f32 %v1246, %v1381
        %v1457 = vmax.f32 %v1247, %v1385
        %v1458 = vmax.f32 %v1248, %v1387
        %v1459 = vmax.f32 %v1249, %v1389
        %v1460 = vmax.f32 %v1250, %v1391
        %v1461 = vmax.f32 %v1251, %v1395
        %v1462 = vmax.f32 %v1252, %v1397
        %v1463 = vmax.f32 %v1253, %v1399
        %v1464 = vmax.f32 %v1254, %v1401
        %v1465 = vmax.f32 %v1255, %v1405
        %v1466 = vmax.f32 %v1256, %v1407
        %v1467 = vmax.f32 %v1257, %v1409
        %v1468 = vmax.f32 %v1258, %v1411
        %v1469 = vmax.f32 %v1259, %v1415
        %v1470 = vmax.f32 %v1260, %v1417
        %v1471 = vmax.f32 %v1261, %v1419
        %v1472 = vmax.f32 %v1262, %v1421
        %v1473 = vmax.f32 %v1263, %v1425
        %v1474 = vmax.f32 %v1264, %v1427
        %v1475 = vmax.f32 %v1265, %v1429
        %v1476 = vmax.f32 %v1266, %v1431
        %v1477 = vmax.f32 %v1267, %v1435
        %v1478 = vmax.f32 %v1268, %v1437
        %v1479 = vmax.f32 %v1269, %v1439
        %v1480 = vmax.f32 %v1270, %v1441
        %v1481 = vmax.f32 %v1271, %v1445
        %v1482 = vmax.f32 %v1272, %v1447
        %v1483 = vmax.f32 %v1273, %v1449
        %v1484 = vmax.f32 %v1274, %v1451
        %s1485 = scalar_lea.vmem %s475, 192 [#allocation2]
        %v1486 = vld [vmem:[%s1485] sm:$0xf]
        %v1487 = vld [vmem:[%s1485 + $0x4] sm:$0xf]
        %v1488 = vld [vmem:[%s1485 + $0x8] sm:$0xf]
        %v1489 = vld [vmem:[%s1485 + $0xc] sm:$0xf]
        %v1490 = vld [vmem:[%s1485 + $0x10] sm:$0xf]
        %v1491 = vld [vmem:[%s1485 + $0x14] sm:$0xf]
        %v1492 = vld [vmem:[%s1485 + $0x18] sm:$0xf]
        %v1493 = vld [vmem:[%s1485 + $0x1c] sm:$0xf]
        %v1494 = vld [vmem:[%s1485 + $0x20] sm:$0xf]
        %v1495 = vld [vmem:[%s1485 + $0x24] sm:$0xf]
        %v1496 = vld [vmem:[%s1485 + $0x28] sm:$0xf]
        %v1497 = vld [vmem:[%s1485 + $0x2c] sm:$0xf]
        %v1498 = vld [vmem:[%s1485 + $0x30] sm:$0xf]
        %v1499 = vld [vmem:[%s1485 + $0x34] sm:$0xf]
        %v1500 = vld [vmem:[%s1485 + $0x38] sm:$0xf]
        %v1501 = vld [vmem:[%s1485 + $0x3c] sm:$0xf]
        %v1518 = vunpack.c.l.b16 %v1486
        %v1519 = vunpack.c.l.b16 %v1487
        %v1520 = vunpack.c.l.b16 %v1488
        %v1521 = vunpack.c.l.b16 %v1489
        %v1522 = vunpack.c.l.b16 %v1490
        %v1523 = vunpack.c.l.b16 %v1491
        %v1524 = vunpack.c.l.b16 %v1492
        %v1525 = vunpack.c.l.b16 %v1493
        %v1526 = vunpack.c.l.b16 %v1494
        %v1527 = vunpack.c.l.b16 %v1495
        %v1528 = vunpack.c.l.b16 %v1496
        %v1529 = vunpack.c.l.b16 %v1497
        %v1530 = vunpack.c.l.b16 %v1498
        %v1531 = vunpack.c.l.b16 %v1499
        %v1532 = vunpack.c.l.b16 %v1500
        %v1533 = vunpack.c.l.b16 %v1501
        %v1534 = vpack.c.b16 %v1519, %v1518
        %v1535 = vpack.c.b16 %v1521, %v1520
        %v1536 = vpack.c.b16 %v1523, %v1522
        %v1537 = vpack.c.b16 %v1525, %v1524
        %v1538 = vpack.c.b16 %v1527, %v1526
        %v1539 = vpack.c.b16 %v1529, %v1528
        %v1540 = vpack.c.b16 %v1531, %v1530
        %v1541 = vpack.c.b16 %v1533, %v1532
        %1550 = vmatprep.subr.bf16.mxu0 %v921
        %1551 = vmatpush1.bf16.msra.mxu0 %v920
        %1552 = vmatprep.subr.bf16.mxu0 %v923
        %1553 = vmatpush1.bf16.msra.mxu0 %v922
        %1554 = vmatprep.subr.bf16.mxu0 %v925
        %1555 = vmatpush1.bf16.msra.mxu0 %v924
        %1556 = vmatprep.subr.bf16.mxu0 %v927
        %1557 = vmatpush1.bf16.msra.mxu0 %v926
        %1558 = vmatprep.subr.bf16.mxu0 %v929
        %1559 = vmatpush1.bf16.msra.mxu0 %v928
        %1560 = vmatprep.subr.bf16.mxu0 %v931
        %1561 = vmatpush1.bf16.msra.mxu0 %v930
        %1562 = vmatprep.subr.bf16.mxu0 %v933
        %1563 = vmatpush1.bf16.msra.mxu0 %v932
        %1564 = vmatprep.subr.bf16.mxu0 %v935
        %1565 = vmatpush1.bf16.msra.mxu0 %v934
        %1566 = vmatprep.subr.bf16.mxu0 0
        %1567 = vmatpush1.bf16.msra.mxu0 0
        %1568 = vmatprep.subr.bf16.mxu0 0
        %1569 = vmatpush1.bf16.msra.mxu0 0
        %1570 = vmatprep.subr.bf16.mxu0 0
        %1571 = vmatpush1.bf16.msra.mxu0 0
        %1572 = vmatprep.subr.bf16.mxu0 0
        %1573 = vmatpush1.bf16.msra.mxu0 0
        %1574 = vmatprep.subr.bf16.mxu0 0
        %1575 = vmatpush1.bf16.msra.mxu0 0
        %1576 = vmatprep.subr.bf16.mxu0 0
        %1577 = vmatpush1.bf16.msra.mxu0 0
        %1578 = vmatprep.subr.bf16.mxu0 0
        %1579 = vmatpush1.bf16.msra.mxu0 0
        %1580 = vmatprep.subr.bf16.mxu0 0
        %1581 = vmatpush1.bf16.msra.mxu0 0
        %1582 = vmatprep.mubr.bf16.mxu0 0
        %1583 = vmatmul.mubr.bf16.gmra.mrb[0].mxu0 %v1534
        %v1584 = vpop.f32.mrb[0].mxu0
        %v1585 = vadd.f32 0.0, %v1584
        %v1586 = vpop.f32.mrb[0].mxu0
        %v1587 = vadd.f32 0.0, %v1586
        %v1588 = vpop.f32.mrb[0].mxu0
        %v1589 = vadd.f32 0.0, %v1588
        %v1590 = vpop.f32.mrb[0].mxu0
        %v1591 = vadd.f32 0.0, %v1590
        %1592 = vmatprep.mubr.bf16.mxu0 0
        %1593 = vmatmul.mubr.bf16.gmra.mrb[0].mxu0 %v1535
        %v1594 = vpop.f32.mrb[0].mxu0
        %v1595 = vadd.f32 0.0, %v1594
        %v1596 = vpop.f32.mrb[0].mxu0
        %v1597 = vadd.f32 0.0, %v1596
        %v1598 = vpop.f32.mrb[0].mxu0
        %v1599 = vadd.f32 0.0, %v1598
        %v1600 = vpop.f32.mrb[0].mxu0
        %v1601 = vadd.f32 0.0, %v1600
        %1602 = vmatprep.mubr.bf16.mxu0 0
        %1603 = vmatmul.mubr.bf16.gmra.mrb[0].mxu0 %v1536
        %v1604 = vpop.f32.mrb[0].mxu0
        %v1605 = vadd.f32 0.0, %v1604
        %v1606 = vpop.f32.mrb[0].mxu0
        %v1607 = vadd.f32 0.0, %v1606
        %v1608 = vpop.f32.mrb[0].mxu0
        %v1609 = vadd.f32 0.0, %v1608
        %v1610 = vpop.f32.mrb[0].mxu0
        %v1611 = vadd.f32 0.0, %v1610
        %1612 = vmatprep.mubr.bf16.mxu0 0
        %1613 = vmatmul.mubr.bf16.gmra.mrb[0].mxu0 %v1537
        %v1614 = vpop.f32.mrb[0].mxu0
        %v1615 = vadd.f32 0.0, %v1614
        %v1616 = vpop.f32.mrb[0].mxu0
        %v1617 = vadd.f32 0.0, %v1616
        %v1618 = vpop.f32.mrb[0].mxu0
        %v1619 = vadd.f32 0.0, %v1618
        %v1620 = vpop.f32.mrb[0].mxu0
        %v1621 = vadd.f32 0.0, %v1620
        %1622 = vmatprep.mubr.bf16.mxu0 0
        %1623 = vmatmul.mubr.bf16.gmra.mrb[0].mxu0 %v1538
        %v1624 = vpop.f32.mrb[0].mxu0
        %v1625 = vadd.f32 0.0, %v1624
        %v1626 = vpop.f32.mrb[0].mxu0
        %v1627 = vadd.f32 0.0, %v1626
        %v1628 = vpop.f32.mrb[0].mxu0
        %v1629 = vadd.f32 0.0, %v1628
        %v1630 = vpop.f32.mrb[0].mxu0
        %v1631 = vadd.f32 0.0, %v1630
        %1632 = vmatprep.mubr.bf16.mxu0 0
        %1633 = vmatmul.mubr.bf16.gmra.mrb[0].mxu0 %v1539
        %v1634 = vpop.f32.mrb[0].mxu0
        %v1635 = vadd.f32 0.0, %v1634
        %v1636 = vpop.f32.mrb[0].mxu0
        %v1637 = vadd.f32 0.0, %v1636
        %v1638 = vpop.f32.mrb[0].mxu0
        %v1639 = vadd.f32 0.0, %v1638
        %v1640 = vpop.f32.mrb[0].mxu0
        %v1641 = vadd.f32 0.0, %v1640
        %1642 = vmatprep.mubr.bf16.mxu0 0
        %1643 = vmatmul.mubr.bf16.gmra.mrb[0].mxu0 %v1540
        %v1644 = vpop.f32.mrb[0].mxu0
        %v1645 = vadd.f32 0.0, %v1644
        %v1646 = vpop.f32.mrb[0].mxu0
        %v1647 = vadd.f32 0.0, %v1646
        %v1648 = vpop.f32.mrb[0].mxu0
        %v1649 = vadd.f32 0.0, %v1648
        %v1650 = vpop.f32.mrb[0].mxu0
        %v1651 = vadd.f32 0.0, %v1650
        %1652 = vmatprep.mubr.bf16.mxu0 0
        %1653 = vmatmul.mubr.bf16.gmra.mrb[0].mxu0 %v1541
        %v1654 = vpop.f32.mrb[0].mxu0
        %v1655 = vadd.f32 0.0, %v1654
        %v1656 = vpop.f32.mrb[0].mxu0
        %v1657 = vadd.f32 0.0, %v1656
        %v1658 = vpop.f32.mrb[0].mxu0
        %v1659 = vadd.f32 0.0, %v1658
        %v1660 = vpop.f32.mrb[0].mxu0
        %v1661 = vadd.f32 0.0, %v1660
        %1662 = vdwg.mxu0
        %v1663 = vmax.f32 %v1453, %v1585
        %v1664 = vmax.f32 %v1454, %v1587
        %v1665 = vmax.f32 %v1455, %v1589
        %v1666 = vmax.f32 %v1456, %v1591
        %v1667 = vmax.f32 %v1457, %v1595
        %v1668 = vmax.f32 %v1458, %v1597
        %v1669 = vmax.f32 %v1459, %v1599
        %v1670 = vmax.f32 %v1460, %v1601
        %v1671 = vmax.f32 %v1461, %v1605
        %v1672 = vmax.f32 %v1462, %v1607
        %v1673 = vmax.f32 %v1463, %v1609
        %v1674 = vmax.f32 %v1464, %v1611
        %v1675 = vmax.f32 %v1465, %v1615
        %v1676 = vmax.f32 %v1466, %v1617
        %v1677 = vmax.f32 %v1467, %v1619
        %v1678 = vmax.f32 %v1468, %v1621
        %v1679 = vmax.f32 %v1469, %v1625
        %v1680 = vmax.f32 %v1470, %v1627
        %v1681 = vmax.f32 %v1471, %v1629
        %v1682 = vmax.f32 %v1472, %v1631
        %v1683 = vmax.f32 %v1473, %v1635
        %v1684 = vmax.f32 %v1474, %v1637
        %v1685 = vmax.f32 %v1475, %v1639
        %v1686 = vmax.f32 %v1476, %v1641
        %v1687 = vmax.f32 %v1477, %v1645
        %v1688 = vmax.f32 %v1478, %v1647
        %v1689 = vmax.f32 %v1479, %v1649
        %v1690 = vmax.f32 %v1480, %v1651
        %v1691 = vmax.f32 %v1481, %v1655
        %v1692 = vmax.f32 %v1482, %v1657
        %v1693 = vmax.f32 %v1483, %v1659
        %v1694 = vmax.f32 %v1484, %v1661
        %v1695 = vadd.f32 %v1663, %v714
        %v1696 = vadd.f32 %v1664, %v716
        %v1697 = vadd.f32 %v1665, %v718
        %v1698 = vadd.f32 %v1666, %v720
        %v1699 = vadd.f32 %v1667, %v724
        %v1700 = vadd.f32 %v1668, %v726
        %v1701 = vadd.f32 %v1669, %v728
        %v1702 = vadd.f32 %v1670, %v730
        %v1703 = vadd.f32 %v1671, %v734
        %v1704 = vadd.f32 %v1672, %v736
        %v1705 = vadd.f32 %v1673, %v738
        %v1706 = vadd.f32 %v1674, %v740
        %v1707 = vadd.f32 %v1675, %v744
        %v1708 = vadd.f32 %v1676, %v746
        %v1709 = vadd.f32 %v1677, %v748
        %v1710 = vadd.f32 %v1678, %v750
        %v1711 = vadd.f32 %v1679, %v754
        %v1712 = vadd.f32 %v1680, %v756
        %v1713 = vadd.f32 %v1681, %v758
        %v1714 = vadd.f32 %v1682, %v760
        %v1715 = vadd.f32 %v1683, %v764
        %v1716 = vadd.f32 %v1684, %v766
        %v1717 = vadd.f32 %v1685, %v768
        %v1718 = vadd.f32 %v1686, %v770
        %v1719 = vadd.f32 %v1687, %v774
        %v1720 = vadd.f32 %v1688, %v776
        %v1721 = vadd.f32 %v1689, %v778
        %v1722 = vadd.f32 %v1690, %v780
        %v1723 = vadd.f32 %v1691, %v784
        %v1724 = vadd.f32 %v1692, %v786
        %v1725 = vadd.f32 %v1693, %v788
        %v1726 = vadd.f32 %v1694, %v790
        %v1727 = vmax.f32 %v1695, 0.0
        %v1728 = vmax.f32 %v1696, 0.0
        %v1729 = vmax.f32 %v1697, 0.0
        %v1730 = vmax.f32 %v1698, 0.0
        %v1731 = vmax.f32 %v1699, 0.0
        %v1732 = vmax.f32 %v1700, 0.0
        %v1733 = vmax.f32 %v1701, 0.0
        %v1734 = vmax.f32 %v1702, 0.0
        %v1735 = vmax.f32 %v1703, 0.0
        %v1736 = vmax.f32 %v1704, 0.0
        %v1737 = vmax.f32 %v1705, 0.0
        %v1738 = vmax.f32 %v1706, 0.0
        %v1739 = vmax.f32 %v1707, 0.0
        %v1740 = vmax.f32 %v1708, 0.0
        %v1741 = vmax.f32 %v1709, 0.0
        %v1742 = vmax.f32 %v1710, 0.0
        %v1743 = vmax.f32 %v1711, 0.0
        %v1744 = vmax.f32 %v1712, 0.0
        %v1745 = vmax.f32 %v1713, 0.0
        %v1746 = vmax.f32 %v1714, 0.0
        %v1747 = vmax.f32 %v1715, 0.0
        %v1748 = vmax.f32 %v1716, 0.0
        %v1749 = vmax.f32 %v1717, 0.0
        %v1750 = vmax.f32 %v1718, 0.0
        %v1751 = vmax.f32 %v1719, 0.0
        %v1752 = vmax.f32 %v1720, 0.0
        %v1753 = vmax.f32 %v1721, 0.0
        %v1754 = vmax.f32 %v1722, 0.0
        %v1755 = vmax.f32 %v1723, 0.0
        %v1756 = vmax.f32 %v1724, 0.0
        %v1757 = vmax.f32 %v1725, 0.0
        %v1758 = vmax.f32 %v1726, 0.0
        %1759 = vst [vmem:[%s516] sm:$0xff] %v1727
        %1760 = vst [vmem:[%s516 + $0x8] sm:$0xff] %v1728
        %1761 = vst [vmem:[%s516 + $0x10] sm:$0xff] %v1729
        %1762 = vst [vmem:[%s516 + $0x18] sm:$0xff] %v1730
        %1763 = vst [vmem:[%s516 + $0x20] sm:$0xff] %v1731
        %1764 = vst [vmem:[%s516 + $0x28] sm:$0xff] %v1732
        %1765 = vst [vmem:[%s516 + $0x30] sm:$0xff] %v1733
        %1766 = vst [vmem:[%s516 + $0x38] sm:$0xff] %v1734
        %1767 = vst [vmem:[%s516 + $0x40] sm:$0xff] %v1735
        %1768 = vst [vmem:[%s516 + $0x48] sm:$0xff] %v1736
        %1769 = vst [vmem:[%s516 + $0x50] sm:$0xff] %v1737
        %1770 = vst [vmem:[%s516 + $0x58] sm:$0xff] %v1738
        %1771 = vst [vmem:[%s516 + $0x60] sm:$0xff] %v1739
        %1772 = vst [vmem:[%s516 + $0x68] sm:$0xff] %v1740
        %1773 = vst [vmem:[%s516 + $0x70] sm:$0xff] %v1741
        %1774 = vst [vmem:[%s516 + $0x78] sm:$0xff] %v1742
        %1775 = vst [vmem:[%s516 + $0x80] sm:$0xff] %v1743
        %1776 = vst [vmem:[%s516 + $0x88] sm:$0xff] %v1744
        %1777 = vst [vmem:[%s516 + $0x90] sm:$0xff] %v1745
        %1778 = vst [vmem:[%s516 + $0x98] sm:$0xff] %v1746
        %1779 = vst [vmem:[%s516 + $0xa0] sm:$0xff] %v1747
        %1780 = vst [vmem:[%s516 + $0xa8] sm:$0xff] %v1748
        %1781 = vst [vmem:[%s516 + $0xb0] sm:$0xff] %v1749
        %1782 = vst [vmem:[%s516 + $0xb8] sm:$0xff] %v1750
        %1783 = vst [vmem:[%s516 + $0xc0] sm:$0xff] %v1751
        %1784 = vst [vmem:[%s516 + $0xc8] sm:$0xff] %v1752
        %1785 = vst [vmem:[%s516 + $0xd0] sm:$0xff] %v1753
        %1786 = vst [vmem:[%s516 + $0xd8] sm:$0xff] %v1754
        %1787 = vst [vmem:[%s516 + $0xe0] sm:$0xff] %v1755
        %1788 = vst [vmem:[%s516 + $0xe8] sm:$0xff] %v1756
        %1789 = vst [vmem:[%s516 + $0xf0] sm:$0xff] %v1757
        %1790 = vst [vmem:[%s516 + $0xf8] sm:$0xff] %v1758
        %s1791 = smul.u32 16, %s15
        %p1792 = scmp.lt.s32.totalorder %s1791, 31
        %s1793 = scalar_select %p1792, %s1791, 31
        %s1794 = smul.addr %s1793, 2
        %s1795 = smul.addr %s1794, 8
        %s1796 = scalar_lea.vmem %s4, %s1795
        // Predicated region
        $region78: #{net_conpu_v7_forward.9} parent=72 // pred_check
          %p1797 = pneg %p127
        $region79: #{net_conpu_v7_forward.9} parent=72 // pred_check_branch
          %1799 = sbr.rel (%p1797) target = $region81
        $region80: #{net_conpu_v7_forward.9} parent=72 // pred_region
          %s1800 = smul.u32 16, %s15
        $region81: #{net_conpu_v7_forward.9} parent=72 // pred_fallthru
          _
      $region73: #{net_conpu_v7_forward.9} parent=5 // pred_fallthru
        _
      %p1801 = scmp.le.s32.totalorder 2, %s10
      // Predicated region
      $region82: #{net_conpu_v7_forward.9} parent=5 // pred_check
        %p1802 = pneg %p1801
      $region83: #{net_conpu_v7_forward.9} parent=5 // pred_check_branch
        %1804 = sbr.rel (%p1802) target = $region85
      $region84: #{net_conpu_v7_forward.9} parent=5 // pred_region
        %s1805 = ssub.s32 %s10, 2
        // Predicated region
        $region86: #{net_conpu_v7_forward.9} parent=84 // pred_check
          %p1806 = pneg %p133
        $region87: #{net_conpu_v7_forward.9} parent=84 // pred_check_branch
          %1808 = sbr.rel (%p1806) target = $region89
        $region88: #{net_conpu_v7_forward.9} parent=84 // pred_region
          %s1809 = smul.u32 16, %s16
          %p1810 = scmp.lt.s32.totalorder %s1809, 31
          %s1811 = scalar_select %p1810, %s1809, 31
          %s1812 = smul.addr %s1811, 2
          %s1813 = smul.addr %s1812, 8
          %s1814 = scalar_lea.vmem %s4, %s1813
        $region89: #{net_conpu_v7_forward.9} parent=84 // pred_fallthru
          _
      $region85: #{net_conpu_v7_forward.9} parent=5 // pred_fallthru
        _
    $region6: #{net_conpu_v7_forward.9} parent=1 // loop_footer
      %s14 = sadd.s32 1, %s10
    $region7: #{net_conpu_v7_forward.9} parent=1 // loop_footer_branch
      %9 = sbr.rel target = $region3
    $region8: #{net_conpu_v7_forward.9} parent=1 // loop_exit
      _

// kernel: net_conpu_v7_forward.10
$region0: #{net_conpu_v7_forward.10}
  #allocation0 [shape = 'u32[]', space=smem, size = 0x4, offset = 0x4, fixed_abs, tag = 'smem constant byte address 0x4 - core index']
  #allocation1 [shape = 'u32[144,128]{1,0:T(1,128)}', space=vmem, size = 0x12000, scoped, tag = 'internal scratch']
  %s0 = inlined_call_operand.vmem [shape: bf16[256,64], index: 0, kind: input, shape index: {}]
  %s1 = inlined_call_operand.vmem [shape: bf16[256,64], index: 1, kind: input, shape index: {}]
  %s2 = inlined_call_operand.vmem [shape: bf16[256,128], index: 2, kind: input, shape index: {}]
  %s3 = inlined_call_operand.vmem [shape: bf16[256,256], index: 3, kind: input, shape index: {}]
  %s4 = inlined_call_operand.vmem [shape: bf16[64,32], index: 4, kind: input, shape index: {}]
  %s5 = inlined_call_operand.vmem [shape: bf16[64,32], index: 5, kind: input, shape index: {}]
  %s6 = inlined_call_operand.vmem [shape: bf16[128,32], index: 6, kind: input, shape index: {}]
  %s7 = inlined_call_operand.vmem [shape: bf16[256,32], index: 7, kind: input, shape index: {}]
  %s8 = inlined_call_operand.vmem [shape: f32[256,32], index: 8, kind: output, shape index: {}]
  %s9 = sld [smem:[#allocation0]]
  $region65: #{net_conpu_v7_forward.10} parent=0
    _
  %s11 = ssub.s32 1, %s9
  %s12 = scalar_select 0, %s11, %s9
  loop: start=0, step=1, limit=4
  $region2: #{net_conpu_v7_forward.10} parent=0 // loop_pre_header
    _
  $region3: #{net_conpu_v7_forward.10} parent=0 // loop_header
    %s14 = sphi 0, %s18
    %p15 = scmp.ge.s32.totalorder %s14, 4
    %s24 = sphi 0, %s26
    %s27 = sphi 0, %s24
    %s28 = sphi 0, %s27
    %s44 = sphi 0, %s28
    %s50 = sphi 0, %s52
    %s53 = sphi 0, %s50
    %s54 = sphi 0, %s53
    %s70 = sphi 0, %s54
    %s76 = sphi 0, %s78
    %s79 = sphi 0, %s76
    %s80 = sphi 0, %s79
    %s96 = sphi 0, %s80
    %s102 = sphi 0, %s104
    %s105 = sphi 0, %s102
    %s106 = sphi 0, %s105
    %s122 = sphi 0, %s106
    %s126 = sphi 0, %s126
    %s128 = sphi 0, %s126
    %s129 = sphi 0, %s128
    %s143 = sphi 0, %s129
    %s147 = sphi 0, %s147
    %s149 = sphi 0, %s147
    %s150 = sphi 0, %s149
    %s164 = sphi 0, %s150
    %s168 = sphi 0, %s168
    %s170 = sphi 0, %s168
    %s171 = sphi 0, %s170
    %s185 = sphi 0, %s171
    %s189 = sphi 0, %s189
    %s191 = sphi 0, %s189
    %s192 = sphi 0, %s191
    %s206 = sphi 0, %s192
    %s212 = sphi 0, %s214
    %s215 = sphi 0, %s212
    %s216 = sphi 0, %s215
    %s232 = sphi 0, %s216
  $region4: #{net_conpu_v7_forward.10} parent=0 // loop_header_branch
    %17 = sbr.rel (%p15) target = $region8
  $region5: #{net_conpu_v7_forward.10} parent=0 // loop_body
    %s19 = ssub.s32 %s14, 1
    %s20 = ssub.s32 %s14, 2
    %s21 = sadd.s32 %s14, 1
    %s22 = ssub.s32 %s14, %s21
    %p23 = scmp.eq.s32.totalorder %s22, 0
    %s25 = sadd.s32 %s24, 1
    %s26 = scalar_select %p23, %s24, %s25
    %p29 = pneg %p23
    %p30 = scmp.eq.s32.totalorder %s14, 1
    %p31 = por %p29, %p30
    %p32 = scmp.ne.s32.totalorder %s24, %s27
    %p33 = scmp.eq.s32.totalorder %s14, 0
    %p34 = por %p32, %p33
    %p35 = scmp.ne.s32.totalorder %s24, %s27
    %p36 = scmp.eq.s32.totalorder %s19, 1
    %p37 = por %p35, %p36
    %p38 = scmp.ne.s32.totalorder %s27, %s28
    %p39 = scmp.eq.s32.totalorder %s19, 0
    %p40 = por %p38, %p39
    %p41 = scmp.ne.s32.totalorder %s27, %s28
    %p42 = scmp.eq.s32.totalorder %s20, 1
    %p43 = por %p41, %p42
    %p45 = scmp.ne.s32.totalorder %s28, %s44
    %p46 = scmp.eq.s32.totalorder %s20, 0
    %p47 = por %p45, %p46
    %s48 = ssub.s32 %s14, %s21
    %p49 = scmp.eq.s32.totalorder %s48, 0
    %s51 = sadd.s32 %s50, 1
    %s52 = scalar_select %p49, %s50, %s51
    %p55 = pneg %p49
    %p56 = scmp.eq.s32.totalorder %s14, 1
    %p57 = por %p55, %p56
    %p58 = scmp.ne.s32.totalorder %s50, %s53
    %p59 = scmp.eq.s32.totalorder %s14, 0
    %p60 = por %p58, %p59
    %p61 = scmp.ne.s32.totalorder %s50, %s53
    %p62 = scmp.eq.s32.totalorder %s19, 1
    %p63 = por %p61, %p62
    %p64 = scmp.ne.s32.totalorder %s53, %s54
    %p65 = scmp.eq.s32.totalorder %s19, 0
    %p66 = por %p64, %p65
    %p67 = scmp.ne.s32.totalorder %s53, %s54
    %p68 = scmp.eq.s32.totalorder %s20, 1
    %p69 = por %p67, %p68
    %p71 = scmp.ne.s32.totalorder %s54, %s70
    %p72 = scmp.eq.s32.totalorder %s20, 0
    %p73 = por %p71, %p72
    %s74 = ssub.s32 %s14, %s21
    %p75 = scmp.eq.s32.totalorder %s74, 0
    %s77 = sadd.s32 %s76, 1
    %s78 = scalar_select %p75, %s76, %s77
    %p81 = pneg %p75
    %p82 = scmp.eq.s32.totalorder %s14, 1
    %p83 = por %p81, %p82
    %p84 = scmp.ne.s32.totalorder %s76, %s79
    %p85 = scmp.eq.s32.totalorder %s14, 0
    %p86 = por %p84, %p85
    %p87 = scmp.ne.s32.totalorder %s76, %s79
    %p88 = scmp.eq.s32.totalorder %s19, 1
    %p89 = por %p87, %p88
    %p90 = scmp.ne.s32.totalorder %s79, %s80
    %p91 = scmp.eq.s32.totalorder %s19, 0
    %p92 = por %p90, %p91
    %p93 = scmp.ne.s32.totalorder %s79, %s80
    %p94 = scmp.eq.s32.totalorder %s20, 1
    %p95 = por %p93, %p94
    %p97 = scmp.ne.s32.totalorder %s80, %s96
    %p98 = scmp.eq.s32.totalorder %s20, 0
    %p99 = por %p97, %p98
    %s100 = ssub.s32 %s14, %s21
    %p101 = scmp.eq.s32.totalorder %s100, 0
    %s103 = sadd.s32 %s102, 1
    %s104 = scalar_select %p101, %s102, %s103
    %p107 = pneg %p101
    %p108 = scmp.eq.s32.totalorder %s14, 1
    %p109 = por %p107, %p108
    %p110 = scmp.ne.s32.totalorder %s102, %s105
    %p111 = scmp.eq.s32.totalorder %s14, 0
    %p112 = por %p110, %p111
    %p113 = scmp.ne.s32.totalorder %s102, %s105
    %p114 = scmp.eq.s32.totalorder %s19, 1
    %p115 = por %p113, %p114
    %p116 = scmp.ne.s32.totalorder %s105, %s106
    %p117 = scmp.eq.s32.totalorder %s19, 0
    %p118 = por %p116, %p117
    %p119 = scmp.ne.s32.totalorder %s105, %s106
    %p120 = scmp.eq.s32.totalorder %s20, 1
    %p121 = por %p119, %p120
    %p123 = scmp.ne.s32.totalorder %s106, %s122
    %p124 = scmp.eq.s32.totalorder %s20, 0
    %p125 = por %p123, %p124
    %s127 = sadd.s32 %s126, 1
    %p130 = scmp.eq.s32.totalorder %s14, 1
    %p131 = scmp.ne.s32.totalorder %s126, %s128
    %p132 = scmp.eq.s32.totalorder %s14, 0
    %p133 = por %p131, %p132
    %p134 = scmp.ne.s32.totalorder %s126, %s128
    %p135 = scmp.eq.s32.totalorder %s19, 1
    %p136 = por %p134, %p135
    %p137 = scmp.ne.s32.totalorder %s128, %s129
    %p138 = scmp.eq.s32.totalorder %s19, 0
    %p139 = por %p137, %p138
    %p140 = scmp.ne.s32.totalorder %s128, %s129
    %p141 = scmp.eq.s32.totalorder %s20, 1
    %p142 = por %p140, %p141
    %p144 = scmp.ne.s32.totalorder %s129, %s143
    %p145 = scmp.eq.s32.totalorder %s20, 0
    %p146 = por %p144, %p145
    %s148 = sadd.s32 %s147, 1
    %p151 = scmp.eq.s32.totalorder %s14, 1
    %p152 = scmp.ne.s32.totalorder %s147, %s149
    %p153 = scmp.eq.s32.totalorder %s14, 0
    %p154 = por %p152, %p153
    %p155 = scmp.ne.s32.totalorder %s147, %s149
    %p156 = scmp.eq.s32.totalorder %s19, 1
    %p157 = por %p155, %p156
    %p158 = scmp.ne.s32.totalorder %s149, %s150
    %p159 = scmp.eq.s32.totalorder %s19, 0
    %p160 = por %p158, %p159
    %p161 = scmp.ne.s32.totalorder %s149, %s150
    %p162 = scmp.eq.s32.totalorder %s20, 1
    %p163 = por %p161, %p162
    %p165 = scmp.ne.s32.totalorder %s150, %s164
    %p166 = scmp.eq.s32.totalorder %s20, 0
    %p167 = por %p165, %p166
    %s169 = sadd.s32 %s168, 1
    %p172 = scmp.eq.s32.totalorder %s14, 1
    %p173 = scmp.ne.s32.totalorder %s168, %s170
    %p174 = scmp.eq.s32.totalorder %s14, 0
    %p175 = por %p173, %p174
    %p176 = scmp.ne.s32.totalorder %s168, %s170
    %p177 = scmp.eq.s32.totalorder %s19, 1
    %p178 = por %p176, %p177
    %p179 = scmp.ne.s32.totalorder %s170, %s171
    %p180 = scmp.eq.s32.totalorder %s19, 0
    %p181 = por %p179, %p180
    %p182 = scmp.ne.s32.totalorder %s170, %s171
    %p183 = scmp.eq.s32.totalorder %s20, 1
    %p184 = por %p182, %p183
    %p186 = scmp.ne.s32.totalorder %s171, %s185
    %p187 = scmp.eq.s32.totalorder %s20, 0
    %p188 = por %p186, %p187
    %s190 = sadd.s32 %s189, 1
    %p193 = scmp.eq.s32.totalorder %s14, 1
    %p194 = scmp.ne.s32.totalorder %s189, %s191
    %p195 = scmp.eq.s32.totalorder %s14, 0
    %p196 = por %p194, %p195
    %p197 = scmp.ne.s32.totalorder %s189, %s191
    %p198 = scmp.eq.s32.totalorder %s19, 1
    %p199 = por %p197, %p198
    %p200 = scmp.ne.s32.totalorder %s191, %s192
    %p201 = scmp.eq.s32.totalorder %s19, 0
    %p202 = por %p200, %p201
    %p203 = scmp.ne.s32.totalorder %s191, %s192
    %p204 = scmp.eq.s32.totalorder %s20, 1
    %p205 = por %p203, %p204
    %p207 = scmp.ne.s32.totalorder %s192, %s206
    %p208 = scmp.eq.s32.totalorder %s20, 0
    %p209 = por %p207, %p208
    %s210 = ssub.s32 %s14, %s21
    %p211 = scmp.eq.s32.totalorder %s210, 0
    %s213 = sadd.s32 %s212, 1
    %s214 = scalar_select %p211, %s212, %s213
    %p217 = pneg %p211
    %p218 = scmp.eq.s32.totalorder %s14, 1
    %p219 = por %p217, %p218
    %p220 = scmp.ne.s32.totalorder %s212, %s215
    %p221 = scmp.eq.s32.totalorder %s14, 0
    %p222 = por %p220, %p221
    %p223 = scmp.ne.s32.totalorder %s212, %s215
    %p224 = scmp.eq.s32.totalorder %s19, 1
    %p225 = por %p223, %p224
    %p226 = scmp.ne.s32.totalorder %s215, %s216
    %p227 = scmp.eq.s32.totalorder %s19, 0
    %p228 = por %p226, %p227
    %p229 = scmp.ne.s32.totalorder %s215, %s216
    %p230 = scmp.eq.s32.totalorder %s20, 1
    %p231 = por %p229, %p230
    %p233 = scmp.ne.s32.totalorder %s216, %s232
    %p234 = scmp.eq.s32.totalorder %s20, 0
    %p235 = por %p233, %p234
    %p236 = scmp.le.s32.totalorder 1, %s14
    %p237 = scmp.lt.s32.totalorder %s14, 3
    %p238 = pnand %p236, %p237
    %p239 = pneg %p238
    // Predicated region
    $region9: #{net_conpu_v7_forward.10} parent=5 // pred_check
      _
    $region10: #{net_conpu_v7_forward.10} parent=5 // pred_check_branch
      %241 = sbr.rel (%p238) target = $region12
    $region11: #{net_conpu_v7_forward.10} parent=5 // pred_region
      %s242 = ssub.s32 %s14, 1
      // Predicated region
      $region13: #{net_conpu_v7_forward.10} parent=11 // pred_check
        %p243 = pneg %p139
      $region14: #{net_conpu_v7_forward.10} parent=11 // pred_check_branch
        %245 = sbr.rel (%p243) target = $region16
      $region15: #{net_conpu_v7_forward.10} parent=11 // pred_region
        _
      $region16: #{net_conpu_v7_forward.10} parent=11 // pred_fallthru
        _
      // Predicated region
      $region17: #{net_conpu_v7_forward.10} parent=11 // pred_check
        %p246 = pneg %p160
      $region18: #{net_conpu_v7_forward.10} parent=11 // pred_check_branch
        %248 = sbr.rel (%p246) target = $region20
      $region19: #{net_conpu_v7_forward.10} parent=11 // pred_region
        _
      $region20: #{net_conpu_v7_forward.10} parent=11 // pred_fallthru
        _
      // Predicated region
      $region21: #{net_conpu_v7_forward.10} parent=11 // pred_check
        %p249 = pneg %p181
      $region22: #{net_conpu_v7_forward.10} parent=11 // pred_check_branch
        %251 = sbr.rel (%p249) target = $region24
      $region23: #{net_conpu_v7_forward.10} parent=11 // pred_region
        _
      $region24: #{net_conpu_v7_forward.10} parent=11 // pred_fallthru
        _
      // Predicated region
      $region25: #{net_conpu_v7_forward.10} parent=11 // pred_check
        %p252 = pneg %p202
      $region26: #{net_conpu_v7_forward.10} parent=11 // pred_check_branch
        %254 = sbr.rel (%p252) target = $region28
      $region27: #{net_conpu_v7_forward.10} parent=11 // pred_region
        _
      $region28: #{net_conpu_v7_forward.10} parent=11 // pred_fallthru
        _
    $region12: #{net_conpu_v7_forward.10} parent=5 // pred_fallthru
      _
    %p255 = scmp.lt.s32.totalorder %s14, 2
    // Predicated region
    $region29: #{net_conpu_v7_forward.10} parent=5 // pred_check
      %p256 = pneg %p255
    $region30: #{net_conpu_v7_forward.10} parent=5 // pred_check_branch
      %258 = sbr.rel (%p256) target = $region32
    $region31: #{net_conpu_v7_forward.10} parent=5 // pred_region
      // Predicated region
      $region33: #{net_conpu_v7_forward.10} parent=31 // pred_check
        %p259 = pneg %p34
      $region34: #{net_conpu_v7_forward.10} parent=31 // pred_check_branch
        %261 = sbr.rel (%p259) target = $region36
      $region35: #{net_conpu_v7_forward.10} parent=31 // pred_region
        %s262 = smul.u32 16, %s14
        %p263 = scmp.lt.s32.totalorder %s262, 31
        %s264 = scalar_select %p263, %s262, 31
        %s265 = smul.addr %s264, 4
        %s266 = scalar_lea.vmem %s0, %s265
        %s267 = smul.u32 16, %s14
      $region36: #{net_conpu_v7_forward.10} parent=31 // pred_fallthru
        _
      // Predicated region
      $region37: #{net_conpu_v7_forward.10} parent=31 // pred_check
        %p268 = pneg %p60
      $region38: #{net_conpu_v7_forward.10} parent=31 // pred_check_branch
        %270 = sbr.rel (%p268) target = $region40
      $region39: #{net_conpu_v7_forward.10} parent=31 // pred_region
        %s271 = smul.u32 16, %s14
        %p272 = scmp.lt.s32.totalorder %s271, 31
        %s273 = scalar_select %p272, %s271, 31
        %s274 = smul.addr %s273, 4
        %s275 = scalar_lea.vmem %s1, %s274
        %s276 = smul.u32 16, %s14
      $region40: #{net_conpu_v7_forward.10} parent=31 // pred_fallthru
        _
      // Predicated region
      $region41: #{net_conpu_v7_forward.10} parent=31 // pred_check
        %p277 = pneg %p86
      $region42: #{net_conpu_v7_forward.10} parent=31 // pred_check_branch
        %279 = sbr.rel (%p277) target = $region44
      $region43: #{net_conpu_v7_forward.10} parent=31 // pred_region
        %s280 = smul.u32 16, %s14
        %p281 = scmp.lt.s32.totalorder %s280, 31
        %s282 = scalar_select %p281, %s280, 31
        %s283 = smul.addr %s282, 4
        %s284 = scalar_lea.vmem %s2, %s283
        %s285 = smul.u32 16, %s14
      $region44: #{net_conpu_v7_forward.10} parent=31 // pred_fallthru
        _
      // Predicated region
      $region45: #{net_conpu_v7_forward.10} parent=31 // pred_check
        %p286 = pneg %p112
      $region46: #{net_conpu_v7_forward.10} parent=31 // pred_check_branch
        %288 = sbr.rel (%p286) target = $region48
      $region47: #{net_conpu_v7_forward.10} parent=31 // pred_region
        %s289 = smul.u32 16, %s14
        %p290 = scmp.lt.s32.totalorder %s289, 31
        %s291 = scalar_select %p290, %s289, 31
        %s292 = smul.addr %s291, 2
        %s293 = smul.addr %s292, 4
        %s294 = scalar_lea.vmem %s3, %s293
        %s295 = smul.u32 16, %s14
      $region48: #{net_conpu_v7_forward.10} parent=31 // pred_fallthru
        _
    $region32: #{net_conpu_v7_forward.10} parent=5 // pred_fallthru
      _
    %p296 = scmp.le.s32.totalorder 1, %s14
    %p297 = scmp.lt.s32.totalorder %s14, 3
    %p298 = pnand %p296, %p297
    %p299 = pneg %p298
    // Predicated region
    $region49: #{net_conpu_v7_forward.10} parent=5 // pred_check
      _
    $region50: #{net_conpu_v7_forward.10} parent=5 // pred_check_branch
      %301 = sbr.rel (%p298) target = $region52
    $region51: #{net_conpu_v7_forward.10} parent=5 // pred_region
      %s302 = ssub.s32 %s14, 1
      %s303 = smul.u32 16, %s19
      %p304 = scmp.lt.s32.totalorder %s303, 31
      %s305 = scalar_select %p304, %s303, 31
      %s306 = smul.addr %s305, 4
      %s307 = scalar_lea.vmem %s0, %s306
      %p308 = pneg %p40
      %p309 = pneg %p37
      %s310 = smul.u32 16, %s19
      %p311 = scmp.lt.s32.totalorder %s310, 31
      %s312 = scalar_select %p311, %s310, 31
      %s313 = smul.addr %s312, 4
      %s314 = scalar_lea.vmem %s1, %s313
      %p315 = pneg %p66
      %p316 = pneg %p63
      %s317 = smul.u32 16, %s19
      %p318 = scmp.lt.s32.totalorder %s317, 31
      %s319 = scalar_select %p318, %s317, 31
      %s320 = smul.addr %s319, 4
      %s321 = scalar_lea.vmem %s2, %s320
      %p322 = pneg %p92
      %p323 = pneg %p89
      %s324 = smul.u32 16, %s19
      %p325 = scmp.lt.s32.totalorder %s324, 31
      %s326 = scalar_select %p325, %s324, 31
      %s327 = smul.addr %s326, 2
      %s328 = smul.addr %s327, 4
      %s329 = scalar_lea.vmem %s3, %s328
      %p330 = pneg %p118
      %p331 = pneg %p115
      %p332 = pneg %p139
      %p333 = pneg %p136
      %p334 = pneg %p160
      %p335 = pneg %p157
      %p336 = pneg %p181
      %p337 = pneg %p178
      %p338 = pneg %p202
      %p339 = pneg %p199
      %p340 = pneg %p228
      %p341 = pneg %p225
      %s342 = smul.u32 16, %s19
      %p343 = scmp.lt.s32.totalorder %s342, 31
      %s344 = scalar_select %p343, %s342, 31
      %s345 = smul.addr %s344, 8
      %s346 = scalar_lea.vmem %s8, %s345
      %s347 = smul.u32 16, %s19
      %p348 = scmp.lt.s32.totalorder %s347, 31
      %s349 = scalar_select %p348, %s347, 31
      %s350 = smul.addr %s349, 4
      %s351 = scalar_lea.vmem %s0, %s350
      %s352 = smul.u32 16, %s19
      %s353 = smul.u32 16, %s19
      %p354 = scmp.lt.s32.totalorder %s353, 31
      %s355 = scalar_select %p354, %s353, 31
      %s356 = smul.addr %s355, 4
      %s357 = scalar_lea.vmem %s1, %s356
      %s358 = smul.u32 16, %s19
      %s359 = smul.u32 16, %s19
      %p360 = scmp.lt.s32.totalorder %s359, 31
      %s361 = scalar_select %p360, %s359, 31
      %s362 = smul.addr %s361, 4
      %s363 = scalar_lea.vmem %s2, %s362
      %s364 = smul.u32 16, %s19
      %s365 = smul.u32 16, %s19
      %p366 = scmp.lt.s32.totalorder %s365, 31
      %s367 = scalar_select %p366, %s365, 31
      %s368 = smul.addr %s367, 2
      %s369 = smul.addr %s368, 4
      %s370 = scalar_lea.vmem %s3, %s369
      %s371 = smul.u32 16, %s19
      %s372 = smul.u32 16, %s19
      %p373 = scmp.lt.s32.totalorder %s372, 31
      %s374 = scalar_select %p373, %s372, 31
      %s375 = smul.addr %s374, 8
      %s376 = scalar_lea.vmem %s8, %s375
      %s377 = smul.u32 16, %s19
      %v379 = vld [vmem:[%s351] sm:$0xf]
      %v380 = vld [vmem:[%s351 + $0x4] sm:$0xf]
      %v381 = vld [vmem:[%s351 + $0x8] sm:$0xf]
      %v382 = vld [vmem:[%s351 + $0xc] sm:$0xf]
      %v383 = vld [vmem:[%s351 + $0x10] sm:$0xf]
      %v384 = vld [vmem:[%s351 + $0x14] sm:$0xf]
      %v385 = vld [vmem:[%s351 + $0x18] sm:$0xf]
      %v386 = vld [vmem:[%s351 + $0x1c] sm:$0xf]
      %v387 = vld [vmem:[%s351 + $0x20] sm:$0xf]
      %v388 = vld [vmem:[%s351 + $0x24] sm:$0xf]
      %v389 = vld [vmem:[%s351 + $0x28] sm:$0xf]
      %v390 = vld [vmem:[%s351 + $0x2c] sm:$0xf]
      %v391 = vld [vmem:[%s351 + $0x30] sm:$0xf]
      %v392 = vld [vmem:[%s351 + $0x34] sm:$0xf]
      %v393 = vld [vmem:[%s351 + $0x38] sm:$0xf]
      %v394 = vld [vmem:[%s351 + $0x3c] sm:$0xf]
      %v395 = vld [vmem:[%s4] sm:$0xf]
      %v396 = vld [vmem:[%s4 + $0x4] sm:$0xf]
      %v397 = vld [vmem:[%s4 + $0x8] sm:$0xf]
      %v398 = vld [vmem:[%s4 + $0xc] sm:$0xf]
      %v399 = vld [vmem:[%s4 + $0x10] sm:$0xf]
      %v400 = vld [vmem:[%s4 + $0x14] sm:$0xf]
      %v401 = vld [vmem:[%s4 + $0x18] sm:$0xf]
      %v402 = vld [vmem:[%s4 + $0x1c] sm:$0xf]
      %v403 = vld [vmem:[%s357] sm:$0xf]
      %v404 = vld [vmem:[%s357 + $0x4] sm:$0xf]
      %v405 = vld [vmem:[%s357 + $0x8] sm:$0xf]
      %v406 = vld [vmem:[%s357 + $0xc] sm:$0xf]
      %v407 = vld [vmem:[%s357 + $0x10] sm:$0xf]
      %v408 = vld [vmem:[%s357 + $0x14] sm:$0xf]
      %v409 = vld [vmem:[%s357 + $0x18] sm:$0xf]
      %v410 = vld [vmem:[%s357 + $0x1c] sm:$0xf]
      %v411 = vld [vmem:[%s357 + $0x20] sm:$0xf]
      %v412 = vld [vmem:[%s357 + $0x24] sm:$0xf]
      %v413 = vld [vmem:[%s357 + $0x28] sm:$0xf]
      %v414 = vld [vmem:[%s357 + $0x2c] sm:$0xf]
      %v415 = vld [vmem:[%s357 + $0x30] sm:$0xf]
      %v416 = vld [vmem:[%s357 + $0x34] sm:$0xf]
      %v417 = vld [vmem:[%s357 + $0x38] sm:$0xf]
      %v418 = vld [vmem:[%s357 + $0x3c] sm:$0xf]
      %v419 = vld [vmem:[%s5] sm:$0xf]
      %v420 = vld [vmem:[%s5 + $0x4] sm:$0xf]
      %v421 = vld [vmem:[%s5 + $0x8] sm:$0xf]
      %v422 = vld [vmem:[%s5 + $0xc] sm:$0xf]
      %v423 = vld [vmem:[%s5 + $0x10] sm:$0xf]
      %v424 = vld [vmem:[%s5 + $0x14] sm:$0xf]
      %v425 = vld [vmem:[%s5 + $0x18] sm:$0xf]
      %v426 = vld [vmem:[%s5 + $0x1c] sm:$0xf]
      %v443 = vunpack.c.l.b16 %v403
      %v444 = vunpack.c.l.b16 %v404
      %v445 = vunpack.c.l.b16 %v405
      %v446 = vunpack.c.l.b16 %v406
      %v447 = vunpack.c.l.b16 %v407
      %v448 = vunpack.c.l.b16 %v408
      %v449 = vunpack.c.l.b16 %v409
      %v450 = vunpack.c.l.b16 %v410
      %v451 = vunpack.c.l.b16 %v411
      %v452 = vunpack.c.l.b16 %v412
      %v453 = vunpack.c.l.b16 %v413
      %v454 = vunpack.c.l.b16 %v414
      %v455 = vunpack.c.l.b16 %v415
      %v456 = vunpack.c.l.b16 %v416
      %v457 = vunpack.c.l.b16 %v417
      %v458 = vunpack.c.l.b16 %v418
      %v459 = vpack.c.b16 %v444, %v443
      %v460 = vpack.c.b16 %v446, %v445
      %v461 = vpack.c.b16 %v448, %v447
      %v462 = vpack.c.b16 %v450, %v449
      %v463 = vpack.c.b16 %v452, %v451
      %v464 = vpack.c.b16 %v454, %v453
      %v465 = vpack.c.b16 %v456, %v455
      %v466 = vpack.c.b16 %v458, %v457
      %v475 = vunpack.c.l.b16 %v419
      %v476 = vunpack.c.l.b16 %v420
      %v477 = vunpack.c.l.b16 %v421
      %v478 = vunpack.c.l.b16 %v422
      %v479 = vunpack.c.l.b16 %v423
      %v480 = vunpack.c.l.b16 %v424
      %v481 = vunpack.c.l.b16 %v425
      %v482 = vunpack.c.l.b16 %v426
      %v483 = vpack.c.b16 %v476, %v475
      %v484 = vpack.c.b16 %v478, %v477
      %v485 = vpack.c.b16 %v480, %v479
      %v486 = vpack.c.b16 %v482, %v481
      %vm491 = vcmask 523264
      %v493 = vsel %vm491, %v459, 0
      %v496 = vsel %vm491, %v460, 0
      %v499 = vsel %vm491, %v461, 0
      %v502 = vsel %vm491, %v462, 0
      %v505 = vsel %vm491, %v463, 0
      %v508 = vsel %vm491, %v464, 0
      %v511 = vsel %vm491, %v465, 0
      %v514 = vsel %vm491, %v466, 0
      %516 = vmatprep.subr.bf16.mxu0 0
      %517 = vmatpush1.bf16.msra.mxu0 %v483
      %518 = vmatprep.subr.bf16.mxu0 0
      %519 = vmatpush1.bf16.msra.mxu0 %v484
      %520 = vmatprep.subr.bf16.mxu0 0
      %521 = vmatpush1.bf16.msra.mxu0 %v485
      %522 = vmatprep.subr.bf16.mxu0 0
      %523 = vmatpush1.bf16.msra.mxu0 %v486
      %524 = vmatprep.subr.bf16.mxu0 0
      %525 = vmatpush1.bf16.msra.mxu0 0
      %526 = vmatprep.subr.bf16.mxu0 0
      %527 = vmatpush1.bf16.msra.mxu0 0
      %528 = vmatprep.subr.bf16.mxu0 0
      %529 = vmatpush1.bf16.msra.mxu0 0
      %530 = vmatprep.subr.bf16.mxu0 0
      %531 = vmatpush1.bf16.msra.mxu0 0
      %532 = vmatprep.subr.bf16.mxu0 0
      %533 = vmatpush1.bf16.msra.mxu0 0
      %534 = vmatprep.subr.bf16.mxu0 0
      %535 = vmatpush1.bf16.msra.mxu0 0
      %536 = vmatprep.subr.bf16.mxu0 0
      %537 = vmatpush1.bf16.msra.mxu0 0
      %538 = vmatprep.subr.bf16.mxu0 0
      %539 = vmatpush1.bf16.msra.mxu0 0
      %540 = vmatprep.subr.bf16.mxu0 0
      %541 = vmatpush1.bf16.msra.mxu0 0
      %542 = vmatprep.subr.bf16.mxu0 0
      %543 = vmatpush1.bf16.msra.mxu0 0
      %544 = vmatprep.subr.bf16.mxu0 0
      %545 = vmatpush1.bf16.msra.mxu0 0
      %546 = vmatprep.subr.bf16.mxu0 0
      %547 = vmatpush1.bf16.msra.mxu0 0
      %548 = vmatprep.mubr.bf16.mxu0 0
      %549 = vmatmul.mubr.bf16.gmra.mrb[0].mxu0 %v493
      %v550 = vpop.f32.mrb[0].mxu0
      %v551 = vadd.f32 0.0, %v550
      %v552 = vpop.f32.mrb[0].mxu0
      %v553 = vpop.f32.mrb[0].mxu0
      %v554 = vadd.f32 0.0, %v553
      %v555 = vpop.f32.mrb[0].mxu0
      %556 = vmatprep.mubr.bf16.mxu0 0
      %557 = vmatmul.mubr.bf16.gmra.mrb[0].mxu0 %v496
      %v558 = vpop.f32.mrb[0].mxu0
      %v559 = vadd.f32 0.0, %v558
      %v560 = vpop.f32.mrb[0].mxu0
      %v561 = vpop.f32.mrb[0].mxu0
      %v562 = vadd.f32 0.0, %v561
      %v563 = vpop.f32.mrb[0].mxu0
      %564 = vmatprep.mubr.bf16.mxu0 0
      %565 = vmatmul.mubr.bf16.gmra.mrb[0].mxu0 %v499
      %v566 = vpop.f32.mrb[0].mxu0
      %v567 = vadd.f32 0.0, %v566
      %v568 = vpop.f32.mrb[0].mxu0
      %v569 = vpop.f32.mrb[0].mxu0
      %v570 = vadd.f32 0.0, %v569
      %v571 = vpop.f32.mrb[0].mxu0
      %572 = vmatprep.mubr.bf16.mxu0 0
      %573 = vmatmul.mubr.bf16.gmra.mrb[0].mxu0 %v502
      %v574 = vpop.f32.mrb[0].mxu0
      %v575 = vadd.f32 0.0, %v574
      %v576 = vpop.f32.mrb[0].mxu0
      %v577 = vpop.f32.mrb[0].mxu0
      %v578 = vadd.f32 0.0, %v577
      %v579 = vpop.f32.mrb[0].mxu0
      %580 = vmatprep.mubr.bf16.mxu0 0
      %581 = vmatmul.mubr.bf16.gmra.mrb[0].mxu0 %v505
      %v582 = vpop.f32.mrb[0].mxu0
      %v583 = vadd.f32 0.0, %v582
      %v584 = vpop.f32.mrb[0].mxu0
      %v585 = vpop.f32.mrb[0].mxu0
      %v586 = vadd.f32 0.0, %v585
      %v587 = vpop.f32.mrb[0].mxu0
      %588 = vmatprep.mubr.bf16.mxu0 0
      %589 = vmatmul.mubr.bf16.gmra.mrb[0].mxu0 %v508
      %v590 = vpop.f32.mrb[0].mxu0
      %v591 = vadd.f32 0.0, %v590
      %v592 = vpop.f32.mrb[0].mxu0
      %v593 = vpop.f32.mrb[0].mxu0
      %v594 = vadd.f32 0.0, %v593
      %v595 = vpop.f32.mrb[0].mxu0
      %596 = vmatprep.mubr.bf16.mxu0 0
      %597 = vmatmul.mubr.bf16.gmra.mrb[0].mxu0 %v511
      %v598 = vpop.f32.mrb[0].mxu0
      %v599 = vadd.f32 0.0, %v598
      %v600 = vpop.f32.mrb[0].mxu0
      %v601 = vpop.f32.mrb[0].mxu0
      %v602 = vadd.f32 0.0, %v601
      %v603 = vpop.f32.mrb[0].mxu0
      %604 = vmatprep.mubr.bf16.mxu0 0
      %605 = vmatmul.mubr.bf16.gmra.mrb[0].mxu0 %v514
      %v606 = vpop.f32.mrb[0].mxu0
      %v607 = vadd.f32 0.0, %v606
      %v608 = vpop.f32.mrb[0].mxu0
      %v609 = vpop.f32.mrb[0].mxu0
      %v610 = vadd.f32 0.0, %v609
      %v611 = vpop.f32.mrb[0].mxu0
      %612 = vdwg.mxu0
      %v629 = vunpack.c.l.b16 %v379
      %v630 = vunpack.c.l.b16 %v380
      %v631 = vunpack.c.l.b16 %v381
      %v632 = vunpack.c.l.b16 %v382
      %v633 = vunpack.c.l.b16 %v383
      %v634 = vunpack.c.l.b16 %v384
      %v635 = vunpack.c.l.b16 %v385
      %v636 = vunpack.c.l.b16 %v386
      %v637 = vunpack.c.l.b16 %v387
      %v638 = vunpack.c.l.b16 %v388
      %v639 = vunpack.c.l.b16 %v389
      %v640 = vunpack.c.l.b16 %v390
      %v641 = vunpack.c.l.b16 %v391
      %v642 = vunpack.c.l.b16 %v392
      %v643 = vunpack.c.l.b16 %v393
      %v644 = vunpack.c.l.b16 %v394
      %v645 = vpack.c.b16 %v630, %v629
      %v646 = vpack.c.b16 %v632, %v631
      %v647 = vpack.c.b16 %v634, %v633
      %v648 = vpack.c.b16 %v636, %v635
      %v649 = vpack.c.b16 %v638, %v637
      %v650 = vpack.c.b16 %v640, %v639
      %v651 = vpack.c.b16 %v642, %v641
      %v652 = vpack.c.b16 %v644, %v643
      %v661 = vunpack.c.l.b16 %v395
      %v662 = vunpack.c.l.b16 %v396
      %v663 = vunpack.c.l.b16 %v397
      %v664 = vunpack.c.l.b16 %v398
      %v665 = vunpack.c.l.b16 %v399
      %v666 = vunpack.c.l.b16 %v400
      %v667 = vunpack.c.l.b16 %v401
      %v668 = vunpack.c.l.b16 %v402
      %v669 = vpack.c.b16 %v662, %v661
      %v670 = vpack.c.b16 %v664, %v663
      %v671 = vpack.c.b16 %v666, %v665
      %v672 = vpack.c.b16 %v668, %v667
      %v678 = vsel %vm491, %v645, 0
      %v681 = vsel %vm491, %v646, 0
      %v684 = vsel %vm491, %v647, 0
      %v687 = vsel %vm491, %v648, 0
      %v690 = vsel %vm491, %v649, 0
      %v693 = vsel %vm491, %v650, 0
      %v696 = vsel %vm491, %v651, 0
      %v699 = vsel %vm491, %v652, 0
      %701 = vmatprep.subr.bf16.mxu0 0
      %702 = vmatpush1.bf16.msra.mxu0 %v669
      %703 = vmatprep.subr.bf16.mxu0 0
      %704 = vmatpush1.bf16.msra.mxu0 %v670
      %705 = vmatprep.subr.bf16.mxu0 0
      %706 = vmatpush1.bf16.msra.mxu0 %v671
      %707 = vmatprep.subr.bf16.mxu0 0
      %708 = vmatpush1.bf16.msra.mxu0 %v672
      %709 = vmatprep.subr.bf16.mxu0 0
      %710 = vmatpush1.bf16.msra.mxu0 0
      %711 = vmatprep.subr.bf16.mxu0 0
      %712 = vmatpush1.bf16.msra.mxu0 0
      %713 = vmatprep.subr.bf16.mxu0 0
      %714 = vmatpush1.bf16.msra.mxu0 0
      %715 = vmatprep.subr.bf16.mxu0 0
      %716 = vmatpush1.bf16.msra.mxu0 0
      %717 = vmatprep.subr.bf16.mxu0 0
      %718 = vmatpush1.bf16.msra.mxu0 0
      %719 = vmatprep.subr.bf16.mxu0 0
      %720 = vmatpush1.bf16.msra.mxu0 0
      %721 = vmatprep.subr.bf16.mxu0 0
      %722 = vmatpush1.bf16.msra.mxu0 0
      %723 = vmatprep.subr.bf16.mxu0 0
      %724 = vmatpush1.bf16.msra.mxu0 0
      %725 = vmatprep.subr.bf16.mxu0 0
      %726 = vmatpush1.bf16.msra.mxu0 0
      %727 = vmatprep.subr.bf16.mxu0 0
      %728 = vmatpush1.bf16.msra.mxu0 0
      %729 = vmatprep.subr.bf16.mxu0 0
      %730 = vmatpush1.bf16.msra.mxu0 0
      %731 = vmatprep.subr.bf16.mxu0 0
      %732 = vmatpush1.bf16.msra.mxu0 0
      %733 = vmatprep.mubr.bf16.mxu0 0
      %734 = vmatmul.mubr.bf16.gmra.mrb[0].mxu0 %v678
      %v735 = vpop.f32.mrb[0].mxu0
      %v736 = vadd.f32 %v551, %v735
      %v737 = vpop.f32.mrb[0].mxu0
      %v738 = vpop.f32.mrb[0].mxu0
      %v739 = vadd.f32 %v554, %v738
      %v740 = vpop.f32.mrb[0].mxu0
      %741 = vmatprep.mubr.bf16.mxu0 0
      %742 = vmatmul.mubr.bf16.gmra.mrb[0].mxu0 %v681
      %v743 = vpop.f32.mrb[0].mxu0
      %v744 = vadd.f32 %v559, %v743
      %v745 = vpop.f32.mrb[0].mxu0
      %v746 = vpop.f32.mrb[0].mxu0
      %v747 = vadd.f32 %v562, %v746
      %v748 = vpop.f32.mrb[0].mxu0
      %749 = vmatprep.mubr.bf16.mxu0 0
      %750 = vmatmul.mubr.bf16.gmra.mrb[0].mxu0 %v684
      %v751 = vpop.f32.mrb[0].mxu0
      %v752 = vadd.f32 %v567, %v751
      %v753 = vpop.f32.mrb[0].mxu0
      %v754 = vpop.f32.mrb[0].mxu0
      %v755 = vadd.f32 %v570, %v754
      %v756 = vpop.f32.mrb[0].mxu0
      %757 = vmatprep.mubr.bf16.mxu0 0
      %758 = vmatmul.mubr.bf16.gmra.mrb[0].mxu0 %v687
      %v759 = vpop.f32.mrb[0].mxu0
      %v760 = vadd.f32 %v575, %v759
      %v761 = vpop.f32.mrb[0].mxu0
      %v762 = vpop.f32.mrb[0].mxu0
      %v763 = vadd.f32 %v578, %v762
      %v764 = vpop.f32.mrb[0].mxu0
      %765 = vmatprep.mubr.bf16.mxu0 0
      %766 = vmatmul.mubr.bf16.gmra.mrb[0].mxu0 %v690
      %v767 = vpop.f32.mrb[0].mxu0
      %v768 = vadd.f32 %v583, %v767
      %v769 = vpop.f32.mrb[0].mxu0
      %v770 = vpop.f32.mrb[0].mxu0
      %v771 = vadd.f32 %v586, %v770
      %v772 = vpop.f32.mrb[0].mxu0
      %773 = vmatprep.mubr.bf16.mxu0 0
      %774 = vmatmul.mubr.bf16.gmra.mrb[0].mxu0 %v693
      %v775 = vpop.f32.mrb[0].mxu0
      %v776 = vadd.f32 %v591, %v775
      %v777 = vpop.f32.mrb[0].mxu0
      %v778 = vpop.f32.mrb[0].mxu0
      %v779 = vadd.f32 %v594, %v778
      %v780 = vpop.f32.mrb[0].mxu0
      %781 = vmatprep.mubr.bf16.mxu0 0
      %782 = vmatmul.mubr.bf16.gmra.mrb[0].mxu0 %v696
      %v783 = vpop.f32.mrb[0].mxu0
      %v784 = vadd.f32 %v599, %v783
      %v785 = vpop.f32.mrb[0].mxu0
      %v786 = vpop.f32.mrb[0].mxu0
      %v787 = vadd.f32 %v602, %v786
      %v788 = vpop.f32.mrb[0].mxu0
      %789 = vmatprep.mubr.bf16.mxu0 0
      %790 = vmatmul.mubr.bf16.gmra.mrb[0].mxu0 %v699
      %v791 = vpop.f32.mrb[0].mxu0
      %v792 = vadd.f32 %v607, %v791
      %v793 = vpop.f32.mrb[0].mxu0
      %v794 = vpop.f32.mrb[0].mxu0
      %v795 = vadd.f32 %v610, %v794
      %v796 = vpop.f32.mrb[0].mxu0
      %797 = vdwg.mxu0
      %v798 = vld [vmem:[%s363] sm:$0xf]
      %v799 = vld [vmem:[%s363 + $0x4] sm:$0xf]
      %v800 = vld [vmem:[%s363 + $0x8] sm:$0xf]
      %v801 = vld [vmem:[%s363 + $0xc] sm:$0xf]
      %v802 = vld [vmem:[%s363 + $0x10] sm:$0xf]
      %v803 = vld [vmem:[%s363 + $0x14] sm:$0xf]
      %v804 = vld [vmem:[%s363 + $0x18] sm:$0xf]
      %v805 = vld [vmem:[%s363 + $0x1c] sm:$0xf]
      %v806 = vld [vmem:[%s363 + $0x20] sm:$0xf]
      %v807 = vld [vmem:[%s363 + $0x24] sm:$0xf]
      %v808 = vld [vmem:[%s363 + $0x28] sm:$0xf]
      %v809 = vld [vmem:[%s363 + $0x2c] sm:$0xf]
      %v810 = vld [vmem:[%s363 + $0x30] sm:$0xf]
      %v811 = vld [vmem:[%s363 + $0x34] sm:$0xf]
      %v812 = vld [vmem:[%s363 + $0x38] sm:$0xf]
      %v813 = vld [vmem:[%s363 + $0x3c] sm:$0xf]
      %v814 = vld [vmem:[%s6] sm:$0xf]
      %v815 = vld [vmem:[%s6 + $0x4] sm:$0xf]
      %v816 = vld [vmem:[%s6 + $0x8] sm:$0xf]
      %v817 = vld [vmem:[%s6 + $0xc] sm:$0xf]
      %v818 = vld [vmem:[%s6 + $0x10] sm:$0xf]
      %v819 = vld [vmem:[%s6 + $0x14] sm:$0xf]
      %v820 = vld [vmem:[%s6 + $0x18] sm:$0xf]
      %v821 = vld [vmem:[%s6 + $0x1c] sm:$0xf]
      %v822 = vld [vmem:[%s6 + $0x20] sm:$0xf]
      %v823 = vld [vmem:[%s6 + $0x24] sm:$0xf]
      %v824 = vld [vmem:[%s6 + $0x28] sm:$0xf]
      %v825 = vld [vmem:[%s6 + $0x2c] sm:$0xf]
      %v826 = vld [vmem:[%s6 + $0x30] sm:$0xf]
      %v827 = vld [vmem:[%s6 + $0x34] sm:$0xf]
      %v828 = vld [vmem:[%s6 + $0x38] sm:$0xf]
      %v829 = vld [vmem:[%s6 + $0x3c] sm:$0xf]
      %v846 = vunpack.c.l.b16 %v798
      %v847 = vunpack.c.l.b16 %v799
      %v848 = vunpack.c.l.b16 %v800
      %v849 = vunpack.c.l.b16 %v801
      %v850 = vunpack.c.l.b16 %v802
      %v851 = vunpack.c.l.b16 %v803
      %v852 = vunpack.c.l.b16 %v804
      %v853 = vunpack.c.l.b16 %v805
      %v854 = vunpack.c.l.b16 %v806
      %v855 = vunpack.c.l.b16 %v807
      %v856 = vunpack.c.l.b16 %v808
      %v857 = vunpack.c.l.b16 %v809
      %v858 = vunpack.c.l.b16 %v810
      %v859 = vunpack.c.l.b16 %v811
      %v860 = vunpack.c.l.b16 %v812
      %v861 = vunpack.c.l.b16 %v813
      %v862 = vpack.c.b16 %v847, %v846
      %v863 = vpack.c.b16 %v849, %v848
      %v864 = vpack.c.b16 %v851, %v850
      %v865 = vpack.c.b16 %v853, %v852
      %v866 = vpack.c.b16 %v855, %v854
      %v867 = vpack.c.b16 %v857, %v856
      %v868 = vpack.c.b16 %v859, %v858
      %v869 = vpack.c.b16 %v861, %v860
      %v894 = vunpack.c.l.b16 %v814
      %v895 = vunpack.c.l.b16 %v815
      %v896 = vunpack.c.l.b16 %v816
      %v897 = vunpack.c.l.b16 %v817
      %v898 = vunpack.c.l.b16 %v818
      %v899 = vunpack.c.l.b16 %v819
      %v900 = vunpack.c.l.b16 %v820
      %v901 = vunpack.c.l.b16 %v821
      %v902 = vunpack.c.l.b16 %v822
      %v903 = vunpack.c.l.b16 %v823
      %v904 = vunpack.c.l.b16 %v824
      %v905 = vunpack.c.l.b16 %v825
      %v906 = vunpack.c.l.b16 %v826
      %v907 = vunpack.c.l.b16 %v827
      %v908 = vunpack.c.l.b16 %v828
      %v909 = vunpack.c.l.b16 %v829
      %v910 = vpack.c.b16 %v895, %v894
      %v911 = vpack.c.b16 %v897, %v896
      %v912 = vpack.c.b16 %v899, %v898
      %v913 = vpack.c.b16 %v901, %v900
      %v914 = vpack.c.b16 %v903, %v902
      %v915 = vpack.c.b16 %v905, %v904
      %v916 = vpack.c.b16 %v907, %v906
      %v917 = vpack.c.b16 %v909, %v908
      %926 = vmatprep.subr.bf16.mxu0 0
      %927 = vmatpush1.bf16.msra.mxu0 %v910
      %928 = vmatprep.subr.bf16.mxu0 0
      %929 = vmatpush1.bf16.msra.mxu0 %v911
      %930 = vmatprep.subr.bf16.mxu0 0
      %931 = vmatpush1.bf16.msra.mxu0 %v912
      %932 = vmatprep.subr.bf16.mxu0 0
      %933 = vmatpush1.bf16.msra.mxu0 %v913
      %934 = vmatprep.subr.bf16.mxu0 0
      %935 = vmatpush1.bf16.msra.mxu0 %v914
      %936 = vmatprep.subr.bf16.mxu0 0
      %937 = vmatpush1.bf16.msra.mxu0 %v915
      %938 = vmatprep.subr.bf16.mxu0 0
      %939 = vmatpush1.bf16.msra.mxu0 %v916
      %940 = vmatprep.subr.bf16.mxu0 0
      %941 = vmatpush1.bf16.msra.mxu0 %v917
      %942 = vmatprep.subr.bf16.mxu0 0
      %943 = vmatpush1.bf16.msra.mxu0 0
      %944 = vmatprep.subr.bf16.mxu0 0
      %945 = vmatpush1.bf16.msra.mxu0 0
      %946 = vmatprep.subr.bf16.mxu0 0
      %947 = vmatpush1.bf16.msra.mxu0 0
      %948 = vmatprep.subr.bf16.mxu0 0
      %949 = vmatpush1.bf16.msra.mxu0 0
      %950 = vmatprep.subr.bf16.mxu0 0
      %951 = vmatpush1.bf16.msra.mxu0 0
      %952 = vmatprep.subr.bf16.mxu0 0
      %953 = vmatpush1.bf16.msra.mxu0 0
      %954 = vmatprep.subr.bf16.mxu0 0
      %955 = vmatpush1.bf16.msra.mxu0 0
      %956 = vmatprep.subr.bf16.mxu0 0
      %957 = vmatpush1.bf16.msra.mxu0 0
      %958 = vmatprep.mubr.bf16.mxu0 0
      %959 = vmatmul.mubr.bf16.gmra.mrb[0].mxu0 %v862
      %v960 = vpop.f32.mrb[0].mxu0
      %v961 = vadd.f32 0.0, %v960
      %v962 = vpop.f32.mrb[0].mxu0
      %v963 = vpop.f32.mrb[0].mxu0
      %v964 = vadd.f32 0.0, %v963
      %v965 = vpop.f32.mrb[0].mxu0
      %966 = vmatprep.mubr.bf16.mxu0 0
      %967 = vmatmul.mubr.bf16.gmra.mrb[0].mxu0 %v863
      %v968 = vpop.f32.mrb[0].mxu0
      %v969 = vadd.f32 0.0, %v968
      %v970 = vpop.f32.mrb[0].mxu0
      %v971 = vpop.f32.mrb[0].mxu0
      %v972 = vadd.f32 0.0, %v971
      %v973 = vpop.f32.mrb[0].mxu0
      %974 = vmatprep.mubr.bf16.mxu0 0
      %975 = vmatmul.mubr.bf16.gmra.mrb[0].mxu0 %v864
      %v976 = vpop.f32.mrb[0].mxu0
      %v977 = vadd.f32 0.0, %v976
      %v978 = vpop.f32.mrb[0].mxu0
      %v979 = vpop.f32.mrb[0].mxu0
      %v980 = vadd.f32 0.0, %v979
      %v981 = vpop.f32.mrb[0].mxu0
      %982 = vmatprep.mubr.bf16.mxu0 0
      %983 = vmatmul.mubr.bf16.gmra.mrb[0].mxu0 %v865
      %v984 = vpop.f32.mrb[0].mxu0
      %v985 = vadd.f32 0.0, %v984
      %v986 = vpop.f32.mrb[0].mxu0
      %v987 = vpop.f32.mrb[0].mxu0
      %v988 = vadd.f32 0.0, %v987
      %v989 = vpop.f32.mrb[0].mxu0
      %990 = vmatprep.mubr.bf16.mxu0 0
      %991 = vmatmul.mubr.bf16.gmra.mrb[0].mxu0 %v866
      %v992 = vpop.f32.mrb[0].mxu0
      %v993 = vadd.f32 0.0, %v992
      %v994 = vpop.f32.mrb[0].mxu0
      %v995 = vpop.f32.mrb[0].mxu0
      %v996 = vadd.f32 0.0, %v995
      %v997 = vpop.f32.mrb[0].mxu0
      %998 = vmatprep.mubr.bf16.mxu0 0
      %999 = vmatmul.mubr.bf16.gmra.mrb[0].mxu0 %v867
      %v1000 = vpop.f32.mrb[0].mxu0
      %v1001 = vadd.f32 0.0, %v1000
      %v1002 = vpop.f32.mrb[0].mxu0
      %v1003 = vpop.f32.mrb[0].mxu0
      %v1004 = vadd.f32 0.0, %v1003
      %v1005 = vpop.f32.mrb[0].mxu0
      %1006 = vmatprep.mubr.bf16.mxu0 0
      %1007 = vmatmul.mubr.bf16.gmra.mrb[0].mxu0 %v868
      %v1008 = vpop.f32.mrb[0].mxu0
      %v1009 = vadd.f32 0.0, %v1008
      %v1010 = vpop.f32.mrb[0].mxu0
      %v1011 = vpop.f32.mrb[0].mxu0
      %v1012 = vadd.f32 0.0, %v1011
      %v1013 = vpop.f32.mrb[0].mxu0
      %1014 = vmatprep.mubr.bf16.mxu0 0
      %1015 = vmatmul.mubr.bf16.gmra.mrb[0].mxu0 %v869
      %v1016 = vpop.f32.mrb[0].mxu0
      %v1017 = vadd.f32 0.0, %v1016
      %v1018 = vpop.f32.mrb[0].mxu0
      %v1019 = vpop.f32.mrb[0].mxu0
      %v1020 = vadd.f32 0.0, %v1019
      %v1021 = vpop.f32.mrb[0].mxu0
      %1022 = vdwg.mxu0
      %v1023 = vadd.f32 %v736, %v961
      %v1024 = vadd.f32 %v739, %v964
      %v1025 = vadd.f32 %v744, %v969
      %v1026 = vadd.f32 %v747, %v972
      %v1027 = vadd.f32 %v752, %v977
      %v1028 = vadd.f32 %v755, %v980
      %v1029 = vadd.f32 %v760, %v985
      %v1030 = vadd.f32 %v763, %v988
      %v1031 = vadd.f32 %v768, %v993
      %v1032 = vadd.f32 %v771, %v996
      %v1033 = vadd.f32 %v776, %v1001
      %v1034 = vadd.f32 %v779, %v1004
      %v1035 = vadd.f32 %v784, %v1009
      %v1036 = vadd.f32 %v787, %v1012
      %v1037 = vadd.f32 %v792, %v1017
      %v1038 = vadd.f32 %v795, %v1020
      %v1039 = vld [vmem:[%s370] sm:$0xff]
      %v1040 = vld [vmem:[%s370 + $0x8] sm:$0xff]
      %v1041 = vld [vmem:[%s370 + $0x10] sm:$0xff]
      %v1042 = vld [vmem:[%s370 + $0x18] sm:$0xff]
      %v1043 = vld [vmem:[%s370 + $0x20] sm:$0xff]
      %v1044 = vld [vmem:[%s370 + $0x28] sm:$0xff]
      %v1045 = vld [vmem:[%s370 + $0x30] sm:$0xff]
      %v1046 = vld [vmem:[%s370 + $0x38] sm:$0xff]
      %v1047 = vld [vmem:[%s370 + $0x40] sm:$0xff]
      %v1048 = vld [vmem:[%s370 + $0x48] sm:$0xff]
      %v1049 = vld [vmem:[%s370 + $0x50] sm:$0xff]
      %v1050 = vld [vmem:[%s370 + $0x58] sm:$0xff]
      %v1051 = vld [vmem:[%s370 + $0x60] sm:$0xff]
      %v1052 = vld [vmem:[%s370 + $0x68] sm:$0xff]
      %v1053 = vld [vmem:[%s370 + $0x70] sm:$0xff]
      %v1054 = vld [vmem:[%s370 + $0x78] sm:$0xff]
      %v1055 = vld [vmem:[%s7] sm:$0xf]
      %v1056 = vld [vmem:[%s7 + $0x4] sm:$0xf]
      %v1057 = vld [vmem:[%s7 + $0x8] sm:$0xf]
      %v1058 = vld [vmem:[%s7 + $0xc] sm:$0xf]
      %v1059 = vld [vmem:[%s7 + $0x10] sm:$0xf]
      %v1060 = vld [vmem:[%s7 + $0x14] sm:$0xf]
      %v1061 = vld [vmem:[%s7 + $0x18] sm:$0xf]
      %v1062 = vld [vmem:[%s7 + $0x1c] sm:$0xf]
      %v1063 = vld [vmem:[%s7 + $0x20] sm:$0xf]
      %v1064 = vld [vmem:[%s7 + $0x24] sm:$0xf]
      %v1065 = vld [vmem:[%s7 + $0x28] sm:$0xf]
      %v1066 = vld [vmem:[%s7 + $0x2c] sm:$0xf]
      %v1067 = vld [vmem:[%s7 + $0x30] sm:$0xf]
      %v1068 = vld [vmem:[%s7 + $0x34] sm:$0xf]
      %v1069 = vld [vmem:[%s7 + $0x38] sm:$0xf]
      %v1070 = vld [vmem:[%s7 + $0x3c] sm:$0xf]
      %v1071 = vld [vmem:[%s7 + $0x40] sm:$0xf]
      %v1072 = vld [vmem:[%s7 + $0x44] sm:$0xf]
      %v1073 = vld [vmem:[%s7 + $0x48] sm:$0xf]
      %v1074 = vld [vmem:[%s7 + $0x4c] sm:$0xf]
      %v1075 = vld [vmem:[%s7 + $0x50] sm:$0xf]
      %v1076 = vld [vmem:[%s7 + $0x54] sm:$0xf]
      %v1077 = vld [vmem:[%s7 + $0x58] sm:$0xf]
      %v1078 = vld [vmem:[%s7 + $0x5c] sm:$0xf]
      %v1079 = vld [vmem:[%s7 + $0x60] sm:$0xf]
      %v1080 = vld [vmem:[%s7 + $0x64] sm:$0xf]
      %v1081 = vld [vmem:[%s7 + $0x68] sm:$0xf]
      %v1082 = vld [vmem:[%s7 + $0x6c] sm:$0xf]
      %v1083 = vld [vmem:[%s7 + $0x70] sm:$0xf]
      %v1084 = vld [vmem:[%s7 + $0x74] sm:$0xf]
      %v1085 = vld [vmem:[%s7 + $0x78] sm:$0xf]
      %v1086 = vld [vmem:[%s7 + $0x7c] sm:$0xf]
      %v1103 = vunpack.c.l.b16 %v1039
      %v1104 = vunpack.c.h.b16 %v1039
      %v1105 = vunpack.c.l.b16 %v1040
      %v1106 = vunpack.c.h.b16 %v1040
      %v1107 = vunpack.c.l.b16 %v1041
      %v1108 = vunpack.c.h.b16 %v1041
      %v1109 = vunpack.c.l.b16 %v1042
      %v1110 = vunpack.c.h.b16 %v1042
      %v1111 = vunpack.c.l.b16 %v1043
      %v1112 = vunpack.c.h.b16 %v1043
      %v1113 = vunpack.c.l.b16 %v1044
      %v1114 = vunpack.c.h.b16 %v1044
      %v1115 = vunpack.c.l.b16 %v1045
      %v1116 = vunpack.c.h.b16 %v1045
      %v1117 = vunpack.c.l.b16 %v1046
      %v1118 = vunpack.c.h.b16 %v1046
      %v1119 = vunpack.c.l.b16 %v1047
      %v1120 = vunpack.c.h.b16 %v1047
      %v1121 = vunpack.c.l.b16 %v1048
      %v1122 = vunpack.c.h.b16 %v1048
      %v1123 = vunpack.c.l.b16 %v1049
      %v1124 = vunpack.c.h.b16 %v1049
      %v1125 = vunpack.c.l.b16 %v1050
      %v1126 = vunpack.c.h.b16 %v1050
      %v1127 = vunpack.c.l.b16 %v1051
      %v1128 = vunpack.c.h.b16 %v1051
      %v1129 = vunpack.c.l.b16 %v1052
      %v1130 = vunpack.c.h.b16 %v1052
      %v1131 = vunpack.c.l.b16 %v1053
      %v1132 = vunpack.c.h.b16 %v1053
      %v1133 = vunpack.c.l.b16 %v1054
      %v1134 = vunpack.c.h.b16 %v1054
      %v1135 = vpack.c.b16 %v1105, %v1103
      %v1136 = vpack.c.b16 %v1106, %v1104
      %v1137 = vpack.c.b16 %v1109, %v1107
      %v1138 = vpack.c.b16 %v1110, %v1108
      %v1139 = vpack.c.b16 %v1113, %v1111
      %v1140 = vpack.c.b16 %v1114, %v1112
      %v1141 = vpack.c.b16 %v1117, %v1115
      %v1142 = vpack.c.b16 %v1118, %v1116
      %v1143 = vpack.c.b16 %v1121, %v1119
      %v1144 = vpack.c.b16 %v1122, %v1120
      %v1145 = vpack.c.b16 %v1125, %v1123
      %v1146 = vpack.c.b16 %v1126, %v1124
      %v1147 = vpack.c.b16 %v1129, %v1127
      %v1148 = vpack.c.b16 %v1130, %v1128
      %v1149 = vpack.c.b16 %v1133, %v1131
      %v1150 = vpack.c.b16 %v1134, %v1132
      %v1199 = vunpack.c.l.b16 %v1055
      %v1200 = vunpack.c.l.b16 %v1056
      %v1201 = vunpack.c.l.b16 %v1057
      %v1202 = vunpack.c.l.b16 %v1058
      %v1203 = vunpack.c.l.b16 %v1059
      %v1204 = vunpack.c.l.b16 %v1060
      %v1205 = vunpack.c.l.b16 %v1061
      %v1206 = vunpack.c.l.b16 %v1062
      %v1207 = vunpack.c.l.b16 %v1063
      %v1208 = vunpack.c.l.b16 %v1064
      %v1209 = vunpack.c.l.b16 %v1065
      %v1210 = vunpack.c.l.b16 %v1066
      %v1211 = vunpack.c.l.b16 %v1067
      %v1212 = vunpack.c.l.b16 %v1068
      %v1213 = vunpack.c.l.b16 %v1069
      %v1214 = vunpack.c.l.b16 %v1070
      %v1215 = vunpack.c.l.b16 %v1071
      %v1216 = vunpack.c.l.b16 %v1072
      %v1217 = vunpack.c.l.b16 %v1073
      %v1218 = vunpack.c.l.b16 %v1074
      %v1219 = vunpack.c.l.b16 %v1075
      %v1220 = vunpack.c.l.b16 %v1076
      %v1221 = vunpack.c.l.b16 %v1077
      %v1222 = vunpack.c.l.b16 %v1078
      %v1223 = vunpack.c.l.b16 %v1079
      %v1224 = vunpack.c.l.b16 %v1080
      %v1225 = vunpack.c.l.b16 %v1081
      %v1226 = vunpack.c.l.b16 %v1082
      %v1227 = vunpack.c.l.b16 %v1083
      %v1228 = vunpack.c.l.b16 %v1084
      %v1229 = vunpack.c.l.b16 %v1085
      %v1230 = vunpack.c.l.b16 %v1086
      %v1231 = vpack.c.b16 %v1200, %v1199
      %v1232 = vpack.c.b16 %v1202, %v1201
      %v1233 = vpack.c.b16 %v1204, %v1203
      %v1234 = vpack.c.b16 %v1206, %v1205
      %v1235 = vpack.c.b16 %v1208, %v1207
      %v1236 = vpack.c.b16 %v1210, %v1209
      %v1237 = vpack.c.b16 %v1212, %v1211
      %v1238 = vpack.c.b16 %v1214, %v1213
      %v1239 = vpack.c.b16 %v1216, %v1215
      %v1240 = vpack.c.b16 %v1218, %v1217
      %v1241 = vpack.c.b16 %v1220, %v1219
      %v1242 = vpack.c.b16 %v1222, %v1221
      %v1243 = vpack.c.b16 %v1224, %v1223
      %v1244 = vpack.c.b16 %v1226, %v1225
      %v1245 = vpack.c.b16 %v1228, %v1227
      %v1246 = vpack.c.b16 %v1230, %v1229
      %1263 = vmatprep.subr.bf16.mxu0 0
      %1264 = vmatpush1.bf16.msra.mxu0 %v1231
      %1265 = vmatprep.subr.bf16.mxu0 0
      %1266 = vmatpush1.bf16.msra.mxu0 %v1232
      %1267 = vmatprep.subr.bf16.mxu0 0
      %1268 = vmatpush1.bf16.msra.mxu0 %v1233
      %1269 = vmatprep.subr.bf16.mxu0 0
      %1270 = vmatpush1.bf16.msra.mxu0 %v1234
      %1271 = vmatprep.subr.bf16.mxu0 0
      %1272 = vmatpush1.bf16.msra.mxu0 %v1235
      %1273 = vmatprep.subr.bf16.mxu0 0
      %1274 = vmatpush1.bf16.msra.mxu0 %v1236
      %1275 = vmatprep.subr.bf16.mxu0 0
      %1276 = vmatpush1.bf16.msra.mxu0 %v1237
      %1277 = vmatprep.subr.bf16.mxu0 0
      %1278 = vmatpush1.bf16.msra.mxu0 %v1238
      %1279 = vmatprep.subr.bf16.mxu0 0
      %1280 = vmatpush1.bf16.msra.mxu0 %v1239
      %1281 = vmatprep.subr.bf16.mxu0 0
      %1282 = vmatpush1.bf16.msra.mxu0 %v1240
      %1283 = vmatprep.subr.bf16.mxu0 0
      %1284 = vmatpush1.bf16.msra.mxu0 %v1241
      %1285 = vmatprep.subr.bf16.mxu0 0
      %1286 = vmatpush1.bf16.msra.mxu0 %v1242
      %1287 = vmatprep.subr.bf16.mxu0 0
      %1288 = vmatpush1.bf16.msra.mxu0 %v1243
      %1289 = vmatprep.subr.bf16.mxu0 0
      %1290 = vmatpush1.bf16.msra.mxu0 %v1244
      %1291 = vmatprep.subr.bf16.mxu0 0
      %1292 = vmatpush1.bf16.msra.mxu0 %v1245
      %1293 = vmatprep.subr.bf16.mxu0 0
      %1294 = vmatpush1.bf16.msra.mxu0 %v1246
      %1295 = vmatprep.mubr.bf16.mxu0 %v1136
      %1296 = vmatmul.mubr.bf16.gmra.mrb[0].mxu0 %v1135
      %v1297 = vpop.f32.mrb[0].mxu0
      %v1298 = vadd.f32 0.0, %v1297
      %v1299 = vpop.f32.mrb[0].mxu0
      %v1300 = vpop.f32.mrb[0].mxu0
      %v1301 = vadd.f32 0.0, %v1300
      %v1302 = vpop.f32.mrb[0].mxu0
      %1303 = vmatprep.mubr.bf16.mxu0 %v1138
      %1304 = vmatmul.mubr.bf16.gmra.mrb[0].mxu0 %v1137
      %v1305 = vpop.f32.mrb[0].mxu0
      %v1306 = vadd.f32 0.0, %v1305
      %v1307 = vpop.f32.mrb[0].mxu0
      %v1308 = vpop.f32.mrb[0].mxu0
      %v1309 = vadd.f32 0.0, %v1308
      %v1310 = vpop.f32.mrb[0].mxu0
      %1311 = vmatprep.mubr.bf16.mxu0 %v1140
      %1312 = vmatmul.mubr.bf16.gmra.mrb[0].mxu0 %v1139
      %v1313 = vpop.f32.mrb[0].mxu0
      %v1314 = vadd.f32 0.0, %v1313
      %v1315 = vpop.f32.mrb[0].mxu0
      %v1316 = vpop.f32.mrb[0].mxu0
      %v1317 = vadd.f32 0.0, %v1316
      %v1318 = vpop.f32.mrb[0].mxu0
      %1319 = vmatprep.mubr.bf16.mxu0 %v1142
      %1320 = vmatmul.mubr.bf16.gmra.mrb[0].mxu0 %v1141
      %v1321 = vpop.f32.mrb[0].mxu0
      %v1322 = vadd.f32 0.0, %v1321
      %v1323 = vpop.f32.mrb[0].mxu0
      %v1324 = vpop.f32.mrb[0].mxu0
      %v1325 = vadd.f32 0.0, %v1324
      %v1326 = vpop.f32.mrb[0].mxu0
      %1327 = vmatprep.mubr.bf16.mxu0 %v1144
      %1328 = vmatmul.mubr.bf16.gmra.mrb[0].mxu0 %v1143
      %v1329 = vpop.f32.mrb[0].mxu0
      %v1330 = vadd.f32 0.0, %v1329
      %v1331 = vpop.f32.mrb[0].mxu0
      %v1332 = vpop.f32.mrb[0].mxu0
      %v1333 = vadd.f32 0.0, %v1332
      %v1334 = vpop.f32.mrb[0].mxu0
      %1335 = vmatprep.mubr.bf16.mxu0 %v1146
      %1336 = vmatmul.mubr.bf16.gmra.mrb[0].mxu0 %v1145
      %v1337 = vpop.f32.mrb[0].mxu0
      %v1338 = vadd.f32 0.0, %v1337
      %v1339 = vpop.f32.mrb[0].mxu0
      %v1340 = vpop.f32.mrb[0].mxu0
      %v1341 = vadd.f32 0.0, %v1340
      %v1342 = vpop.f32.mrb[0].mxu0
      %1343 = vmatprep.mubr.bf16.mxu0 %v1148
      %1344 = vmatmul.mubr.bf16.gmra.mrb[0].mxu0 %v1147
      %v1345 = vpop.f32.mrb[0].mxu0
      %v1346 = vadd.f32 0.0, %v1345
      %v1347 = vpop.f32.mrb[0].mxu0
      %v1348 = vpop.f32.mrb[0].mxu0
      %v1349 = vadd.f32 0.0, %v1348
      %v1350 = vpop.f32.mrb[0].mxu0
      %1351 = vmatprep.mubr.bf16.mxu0 %v1150
      %1352 = vmatmul.mubr.bf16.gmra.mrb[0].mxu0 %v1149
      %v1353 = vpop.f32.mrb[0].mxu0
      %v1354 = vadd.f32 0.0, %v1353
      %v1355 = vpop.f32.mrb[0].mxu0
      %v1356 = vpop.f32.mrb[0].mxu0
      %v1357 = vadd.f32 0.0, %v1356
      %v1358 = vpop.f32.mrb[0].mxu0
      %1359 = vdwg.mxu0
      %v1360 = vadd.f32 %v1023, %v1298
      %v1361 = vadd.f32 %v1024, %v1301
      %v1362 = vadd.f32 %v1025, %v1306
      %v1363 = vadd.f32 %v1026, %v1309
      %v1364 = vadd.f32 %v1027, %v1314
      %v1365 = vadd.f32 %v1028, %v1317
      %v1366 = vadd.f32 %v1029, %v1322
      %v1367 = vadd.f32 %v1030, %v1325
      %v1368 = vadd.f32 %v1031, %v1330
      %v1369 = vadd.f32 %v1032, %v1333
      %v1370 = vadd.f32 %v1033, %v1338
      %v1371 = vadd.f32 %v1034, %v1341
      %v1372 = vadd.f32 %v1035, %v1346
      %v1373 = vadd.f32 %v1036, %v1349
      %v1374 = vadd.f32 %v1037, %v1354
      %v1375 = vadd.f32 %v1038, %v1357
      %v1376 = vtanh.pop %v1360
      %v1377 = vtanh.pop %v1361
      %v1378 = vtanh.pop %v1362
      %v1379 = vtanh.pop %v1363
      %v1380 = vtanh.pop %v1364
      %v1381 = vtanh.pop %v1365
      %v1382 = vtanh.pop %v1366
      %v1383 = vtanh.pop %v1367
      %v1384 = vtanh.pop %v1368
      %v1385 = vtanh.pop %v1369
      %v1386 = vtanh.pop %v1370
      %v1387 = vtanh.pop %v1371
      %v1388 = vtanh.pop %v1372
      %v1389 = vtanh.pop %v1373
      %v1390 = vtanh.pop %v1374
      %v1391 = vtanh.pop %v1375
      %vm1392 = vcmask 261120
      %1393 = vst.msk [vmem:[%s376] sm:$0xff] %vm1392, %v1376
      %1394 = vst.msk [vmem:[%s376 + $0x8] sm:$0xff] %vm1392, %v1377
      %1395 = vst.msk [vmem:[%s376 + $0x10] sm:$0xff] %vm1392, %v1378
      %1396 = vst.msk [vmem:[%s376 + $0x18] sm:$0xff] %vm1392, %v1379
      %1397 = vst.msk [vmem:[%s376 + $0x20] sm:$0xff] %vm1392, %v1380
      %1398 = vst.msk [vmem:[%s376 + $0x28] sm:$0xff] %vm1392, %v1381
      %1399 = vst.msk [vmem:[%s376 + $0x30] sm:$0xff] %vm1392, %v1382
      %1400 = vst.msk [vmem:[%s376 + $0x38] sm:$0xff] %vm1392, %v1383
      %1401 = vst.msk [vmem:[%s376 + $0x40] sm:$0xff] %vm1392, %v1384
      %1402 = vst.msk [vmem:[%s376 + $0x48] sm:$0xff] %vm1392, %v1385
      %1403 = vst.msk [vmem:[%s376 + $0x50] sm:$0xff] %vm1392, %v1386
      %1404 = vst.msk [vmem:[%s376 + $0x58] sm:$0xff] %vm1392, %v1387
      %1405 = vst.msk [vmem:[%s376 + $0x60] sm:$0xff] %vm1392, %v1388
      %1406 = vst.msk [vmem:[%s376 + $0x68] sm:$0xff] %vm1392, %v1389
      %1407 = vst.msk [vmem:[%s376 + $0x70] sm:$0xff] %vm1392, %v1390
      %1408 = vst.msk [vmem:[%s376 + $0x78] sm:$0xff] %vm1392, %v1391
      %s1409 = smul.u32 16, %s19
      %p1410 = scmp.lt.s32.totalorder %s1409, 31
      %s1411 = scalar_select %p1410, %s1409, 31
      %s1412 = smul.addr %s1411, 8
      %s1413 = scalar_lea.vmem %s8, %s1412
      // Predicated region
      $region53: #{net_conpu_v7_forward.10} parent=51 // pred_check
        %p1414 = pneg %p225
      $region54: #{net_conpu_v7_forward.10} parent=51 // pred_check_branch
        %1416 = sbr.rel (%p1414) target = $region56
      $region55: #{net_conpu_v7_forward.10} parent=51 // pred_region
        %s1417 = smul.u32 16, %s19
      $region56: #{net_conpu_v7_forward.10} parent=51 // pred_fallthru
        _
    $region52: #{net_conpu_v7_forward.10} parent=5 // pred_fallthru
      _
    %p1418 = scmp.le.s32.totalorder 2, %s14
    // Predicated region
    $region57: #{net_conpu_v7_forward.10} parent=5 // pred_check
      %p1419 = pneg %p1418
    $region58: #{net_conpu_v7_forward.10} parent=5 // pred_check_branch
      %1421 = sbr.rel (%p1419) target = $region60
    $region59: #{net_conpu_v7_forward.10} parent=5 // pred_region
      %s1422 = ssub.s32 %s14, 2
      // Predicated region
      $region61: #{net_conpu_v7_forward.10} parent=59 // pred_check
        %p1423 = pneg %p231
      $region62: #{net_conpu_v7_forward.10} parent=59 // pred_check_branch
        %1425 = sbr.rel (%p1423) target = $region64
      $region63: #{net_conpu_v7_forward.10} parent=59 // pred_region
        %s1426 = smul.u32 16, %s20
        %p1427 = scmp.lt.s32.totalorder %s1426, 31
        %s1428 = scalar_select %p1427, %s1426, 31
        %s1429 = smul.addr %s1428, 8
        %s1430 = scalar_lea.vmem %s8, %s1429
      $region64: #{net_conpu_v7_forward.10} parent=59 // pred_fallthru
        _
    $region60: #{net_conpu_v7_forward.10} parent=5 // pred_fallthru
      _
  $region6: #{net_conpu_v7_forward.10} parent=0 // loop_footer
    %s18 = sadd.s32 1, %s14
  $region7: #{net_conpu_v7_forward.10} parent=0 // loop_footer_branch
    %13 = sbr.rel target = $region3
  $region8: #{net_conpu_v7_forward.10} parent=0 // loop_exit
    _

// kernel: net_conpu_v7_forward.11
$region0: #{net_conpu_v7_forward.11}
  #allocation0 [shape = 'u32[]', space=smem, size = 0x4, offset = 0x4, fixed_abs, tag = 'smem constant byte address 0x4 - core index']
  #allocation1 [shape = 'u32[144,128]{1,0:T(1,128)}', space=vmem, size = 0x12000, scoped, tag = 'internal scratch']
  %s0 = inlined_call_operand.vmem [shape: bf16[32,64], index: 0, kind: input, shape index: {}]
  %s1 = inlined_call_operand.vmem [shape: f32[32,3], index: 1, kind: input, shape index: {}]
  %s2 = inlined_call_operand.vmem [shape: bf16[64,144], index: 2, kind: input, shape index: {}]
  %s3 = inlined_call_operand.vmem [shape: f32[1,144], index: 3, kind: input, shape index: {}]
  %s4 = inlined_call_operand.vmem [shape: bf16[128,64], index: 4, kind: input, shape index: {}]
  %s5 = inlined_call_operand.vmem [shape: f32[1,64], index: 5, kind: input, shape index: {}]
  %s6 = inlined_call_operand.vmem [shape: bf16[64,64], index: 6, kind: input, shape index: {}]
  %s7 = inlined_call_operand.vmem [shape: f32[4,64], index: 7, kind: input, shape index: {}]
  %s8 = inlined_call_operand.vmem [shape: f32[1,64], index: 8, kind: input, shape index: {}]
  %s9 = inlined_call_operand.vmem [shape: bf16[64,32], index: 9, kind: input, shape index: {}]
  %s10 = inlined_call_operand.vmem [shape: f32[1,32], index: 10, kind: input, shape index: {}]
  %s11 = inlined_call_operand.vmem [shape: bf16[32,3], index: 11, kind: input, shape index: {}]
  %s12 = inlined_call_operand.vmem [shape: f32[1,3], index: 12, kind: input, shape index: {}]
  %s13 = inlined_call_operand.vmem [shape: f32[32,12], index: 13, kind: output, shape index: {0}]
  %s14 = inlined_call_operand.hbm [shape: f32[32,16], index: 14, kind: output, shape index: {1}]
  %15 = xla_tuple %s13, %s14
  %s16 = sld [smem:[#allocation0]]
  $region93: #{net_conpu_v7_forward.11} parent=0
    _
  %s18 = ssub.s32 1, %s16
  %s19 = scalar_select 0, %s18, %s16
  $region1: #{net_conpu_v7_forward.11} parent=0
    #allocation2 [shape = 'u8[16384]{0}', space=vmem, size = 0x4000, scoped, tag = 'output window, operand 1']
    #allocation3 [shape = 's32[2]{0}', space=sflag, size = 0x8, scoped, tag = 'scoped memory for net_conpu_v7_forward.11']
    %20 = vsyncpa [#allocation3], 0
    %s21 = scalar_lea.sflag [#allocation3], 1
    %22 = vsyncpa %s21, 0
    loop: start=0, step=1, limit=4
    $region2: #{net_conpu_v7_forward.11} parent=1 // loop_pre_header
      _
    $region3: #{net_conpu_v7_forward.11} parent=1 // loop_header
      %s24 = sphi 0, %s28
      %p25 = scmp.ge.s32.totalorder %s24, 4
      %s34 = sphi 0, %s36
      %s37 = sphi 0, %s34
      %s38 = sphi 0, %s37
      %s54 = sphi 0, %s38
      %s60 = sphi 0, %s62
      %s63 = sphi 0, %s60
      %s64 = sphi 0, %s63
      %s80 = sphi 0, %s64
      %s84 = sphi 0, %s84
      %s86 = sphi 0, %s84
      %s87 = sphi 0, %s86
      %s101 = sphi 0, %s87
      %s105 = sphi 0, %s105
      %s107 = sphi 0, %s105
      %s108 = sphi 0, %s107
      %s122 = sphi 0, %s108
      %s126 = sphi 0, %s126
      %s128 = sphi 0, %s126
      %s129 = sphi 0, %s128
      %s143 = sphi 0, %s129
      %s147 = sphi 0, %s147
      %s149 = sphi 0, %s147
      %s150 = sphi 0, %s149
      %s164 = sphi 0, %s150
      %s168 = sphi 0, %s168
      %s170 = sphi 0, %s168
      %s171 = sphi 0, %s170
      %s185 = sphi 0, %s171
      %s189 = sphi 0, %s189
      %s191 = sphi 0, %s189
      %s192 = sphi 0, %s191
      %s206 = sphi 0, %s192
      %s210 = sphi 0, %s210
      %s212 = sphi 0, %s210
      %s213 = sphi 0, %s212
      %s227 = sphi 0, %s213
      %s231 = sphi 0, %s231
      %s233 = sphi 0, %s231
      %s234 = sphi 0, %s233
      %s248 = sphi 0, %s234
      %s252 = sphi 0, %s252
      %s254 = sphi 0, %s252
      %s255 = sphi 0, %s254
      %s269 = sphi 0, %s255
      %s273 = sphi 0, %s273
      %s275 = sphi 0, %s273
      %s276 = sphi 0, %s275
      %s290 = sphi 0, %s276
      %s294 = sphi 0, %s294
      %s296 = sphi 0, %s294
      %s297 = sphi 0, %s296
      %s311 = sphi 0, %s297
      %s317 = sphi 0, %s319
      %s320 = sphi 0, %s317
      %s321 = sphi 0, %s320
      %s337 = sphi 0, %s321
      %s343 = sphi 0, %s345
      %s346 = sphi 0, %s343
      %s347 = sphi 0, %s346
      %s363 = sphi 0, %s347
    $region4: #{net_conpu_v7_forward.11} parent=1 // loop_header_branch
      %27 = sbr.rel (%p25) target = $region8
    $region5: #{net_conpu_v7_forward.11} parent=1 // loop_body
      %s29 = ssub.s32 %s24, 1
      %s30 = ssub.s32 %s24, 2
      %s31 = sadd.s32 %s24, 1
      %s32 = ssub.s32 %s24, %s31
      %p33 = scmp.eq.s32.totalorder %s32, 0
      %s35 = sadd.s32 %s34, 1
      %s36 = scalar_select %p33, %s34, %s35
      %p39 = pneg %p33
      %p40 = scmp.eq.s32.totalorder %s24, 1
      %p41 = por %p39, %p40
      %p42 = scmp.ne.s32.totalorder %s34, %s37
      %p43 = scmp.eq.s32.totalorder %s24, 0
      %p44 = por %p42, %p43
      %p45 = scmp.ne.s32.totalorder %s34, %s37
      %p46 = scmp.eq.s32.totalorder %s29, 1
      %p47 = por %p45, %p46
      %p48 = scmp.ne.s32.totalorder %s37, %s38
      %p49 = scmp.eq.s32.totalorder %s29, 0
      %p50 = por %p48, %p49
      %p51 = scmp.ne.s32.totalorder %s37, %s38
      %p52 = scmp.eq.s32.totalorder %s30, 1
      %p53 = por %p51, %p52
      %p55 = scmp.ne.s32.totalorder %s38, %s54
      %p56 = scmp.eq.s32.totalorder %s30, 0
      %p57 = por %p55, %p56
      %s58 = ssub.s32 %s24, %s31
      %p59 = scmp.eq.s32.totalorder %s58, 0
      %s61 = sadd.s32 %s60, 1
      %s62 = scalar_select %p59, %s60, %s61
      %p65 = pneg %p59
      %p66 = scmp.eq.s32.totalorder %s24, 1
      %p67 = por %p65, %p66
      %p68 = scmp.ne.s32.totalorder %s60, %s63
      %p69 = scmp.eq.s32.totalorder %s24, 0
      %p70 = por %p68, %p69
      %p71 = scmp.ne.s32.totalorder %s60, %s63
      %p72 = scmp.eq.s32.totalorder %s29, 1
      %p73 = por %p71, %p72
      %p74 = scmp.ne.s32.totalorder %s63, %s64
      %p75 = scmp.eq.s32.totalorder %s29, 0
      %p76 = por %p74, %p75
      %p77 = scmp.ne.s32.totalorder %s63, %s64
      %p78 = scmp.eq.s32.totalorder %s30, 1
      %p79 = por %p77, %p78
      %p81 = scmp.ne.s32.totalorder %s64, %s80
      %p82 = scmp.eq.s32.totalorder %s30, 0
      %p83 = por %p81, %p82
      %s85 = sadd.s32 %s84, 1
      %p88 = scmp.eq.s32.totalorder %s24, 1
      %p89 = scmp.ne.s32.totalorder %s84, %s86
      %p90 = scmp.eq.s32.totalorder %s24, 0
      %p91 = por %p89, %p90
      %p92 = scmp.ne.s32.totalorder %s84, %s86
      %p93 = scmp.eq.s32.totalorder %s29, 1
      %p94 = por %p92, %p93
      %p95 = scmp.ne.s32.totalorder %s86, %s87
      %p96 = scmp.eq.s32.totalorder %s29, 0
      %p97 = por %p95, %p96
      %p98 = scmp.ne.s32.totalorder %s86, %s87
      %p99 = scmp.eq.s32.totalorder %s30, 1
      %p100 = por %p98, %p99
      %p102 = scmp.ne.s32.totalorder %s87, %s101
      %p103 = scmp.eq.s32.totalorder %s30, 0
      %p104 = por %p102, %p103
      %s106 = sadd.s32 %s105, 1
      %p109 = scmp.eq.s32.totalorder %s24, 1
      %p110 = scmp.ne.s32.totalorder %s105, %s107
      %p111 = scmp.eq.s32.totalorder %s24, 0
      %p112 = por %p110, %p111
      %p113 = scmp.ne.s32.totalorder %s105, %s107
      %p114 = scmp.eq.s32.totalorder %s29, 1
      %p115 = por %p113, %p114
      %p116 = scmp.ne.s32.totalorder %s107, %s108
      %p117 = scmp.eq.s32.totalorder %s29, 0
      %p118 = por %p116, %p117
      %p119 = scmp.ne.s32.totalorder %s107, %s108
      %p120 = scmp.eq.s32.totalorder %s30, 1
      %p121 = por %p119, %p120
      %p123 = scmp.ne.s32.totalorder %s108, %s122
      %p124 = scmp.eq.s32.totalorder %s30, 0
      %p125 = por %p123, %p124
      %s127 = sadd.s32 %s126, 1
      %p130 = scmp.eq.s32.totalorder %s24, 1
      %p131 = scmp.ne.s32.totalorder %s126, %s128
      %p132 = scmp.eq.s32.totalorder %s24, 0
      %p133 = por %p131, %p132
      %p134 = scmp.ne.s32.totalorder %s126, %s128
      %p135 = scmp.eq.s32.totalorder %s29, 1
      %p136 = por %p134, %p135
      %p137 = scmp.ne.s32.totalorder %s128, %s129
      %p138 = scmp.eq.s32.totalorder %s29, 0
      %p139 = por %p137, %p138
      %p140 = scmp.ne.s32.totalorder %s128, %s129
      %p141 = scmp.eq.s32.totalorder %s30, 1
      %p142 = por %p140, %p141
      %p144 = scmp.ne.s32.totalorder %s129, %s143
      %p145 = scmp.eq.s32.totalorder %s30, 0
      %p146 = por %p144, %p145
      %s148 = sadd.s32 %s147, 1
      %p151 = scmp.eq.s32.totalorder %s24, 1
      %p152 = scmp.ne.s32.totalorder %s147, %s149
      %p153 = scmp.eq.s32.totalorder %s24, 0
      %p154 = por %p152, %p153
      %p155 = scmp.ne.s32.totalorder %s147, %s149
      %p156 = scmp.eq.s32.totalorder %s29, 1
      %p157 = por %p155, %p156
      %p158 = scmp.ne.s32.totalorder %s149, %s150
      %p159 = scmp.eq.s32.totalorder %s29, 0
      %p160 = por %p158, %p159
      %p161 = scmp.ne.s32.totalorder %s149, %s150
      %p162 = scmp.eq.s32.totalorder %s30, 1
      %p163 = por %p161, %p162
      %p165 = scmp.ne.s32.totalorder %s150, %s164
      %p166 = scmp.eq.s32.totalorder %s30, 0
      %p167 = por %p165, %p166
      %s169 = sadd.s32 %s168, 1
      %p172 = scmp.eq.s32.totalorder %s24, 1
      %p173 = scmp.ne.s32.totalorder %s168, %s170
      %p174 = scmp.eq.s32.totalorder %s24, 0
      %p175 = por %p173, %p174
      %p176 = scmp.ne.s32.totalorder %s168, %s170
      %p177 = scmp.eq.s32.totalorder %s29, 1
      %p178 = por %p176, %p177
      %p179 = scmp.ne.s32.totalorder %s170, %s171
      %p180 = scmp.eq.s32.totalorder %s29, 0
      %p181 = por %p179, %p180
      %p182 = scmp.ne.s32.totalorder %s170, %s171
      %p183 = scmp.eq.s32.totalorder %s30, 1
      %p184 = por %p182, %p183
      %p186 = scmp.ne.s32.totalorder %s171, %s185
      %p187 = scmp.eq.s32.totalorder %s30, 0
      %p188 = por %p186, %p187
      %s190 = sadd.s32 %s189, 1
      %p193 = scmp.eq.s32.totalorder %s24, 1
      %p194 = scmp.ne.s32.totalorder %s189, %s191
      %p195 = scmp.eq.s32.totalorder %s24, 0
      %p196 = por %p194, %p195
      %p197 = scmp.ne.s32.totalorder %s189, %s191
      %p198 = scmp.eq.s32.totalorder %s29, 1
      %p199 = por %p197, %p198
      %p200 = scmp.ne.s32.totalorder %s191, %s192
      %p201 = scmp.eq.s32.totalorder %s29, 0
      %p202 = por %p200, %p201
      %p203 = scmp.ne.s32.totalorder %s191, %s192
      %p204 = scmp.eq.s32.totalorder %s30, 1
      %p205 = por %p203, %p204
      %p207 = scmp.ne.s32.totalorder %s192, %s206
      %p208 = scmp.eq.s32.totalorder %s30, 0
      %p209 = por %p207, %p208
      %s211 = sadd.s32 %s210, 1
      %p214 = scmp.eq.s32.totalorder %s24, 1
      %p215 = scmp.ne.s32.totalorder %s210, %s212
      %p216 = scmp.eq.s32.totalorder %s24, 0
      %p217 = por %p215, %p216
      %p218 = scmp.ne.s32.totalorder %s210, %s212
      %p219 = scmp.eq.s32.totalorder %s29, 1
      %p220 = por %p218, %p219
      %p221 = scmp.ne.s32.totalorder %s212, %s213
      %p222 = scmp.eq.s32.totalorder %s29, 0
      %p223 = por %p221, %p222
      %p224 = scmp.ne.s32.totalorder %s212, %s213
      %p225 = scmp.eq.s32.totalorder %s30, 1
      %p226 = por %p224, %p225
      %p228 = scmp.ne.s32.totalorder %s213, %s227
      %p229 = scmp.eq.s32.totalorder %s30, 0
      %p230 = por %p228, %p229
      %s232 = sadd.s32 %s231, 1
      %p235 = scmp.eq.s32.totalorder %s24, 1
      %p236 = scmp.ne.s32.totalorder %s231, %s233
      %p237 = scmp.eq.s32.totalorder %s24, 0
      %p238 = por %p236, %p237
      %p239 = scmp.ne.s32.totalorder %s231, %s233
      %p240 = scmp.eq.s32.totalorder %s29, 1
      %p241 = por %p239, %p240
      %p242 = scmp.ne.s32.totalorder %s233, %s234
      %p243 = scmp.eq.s32.totalorder %s29, 0
      %p244 = por %p242, %p243
      %p245 = scmp.ne.s32.totalorder %s233, %s234
      %p246 = scmp.eq.s32.totalorder %s30, 1
      %p247 = por %p245, %p246
      %p249 = scmp.ne.s32.totalorder %s234, %s248
      %p250 = scmp.eq.s32.totalorder %s30, 0
      %p251 = por %p249, %p250
      %s253 = sadd.s32 %s252, 1
      %p256 = scmp.eq.s32.totalorder %s24, 1
      %p257 = scmp.ne.s32.totalorder %s252, %s254
      %p258 = scmp.eq.s32.totalorder %s24, 0
      %p259 = por %p257, %p258
      %p260 = scmp.ne.s32.totalorder %s252, %s254
      %p261 = scmp.eq.s32.totalorder %s29, 1
      %p262 = por %p260, %p261
      %p263 = scmp.ne.s32.totalorder %s254, %s255
      %p264 = scmp.eq.s32.totalorder %s29, 0
      %p265 = por %p263, %p264
      %p266 = scmp.ne.s32.totalorder %s254, %s255
      %p267 = scmp.eq.s32.totalorder %s30, 1
      %p268 = por %p266, %p267
      %p270 = scmp.ne.s32.totalorder %s255, %s269
      %p271 = scmp.eq.s32.totalorder %s30, 0
      %p272 = por %p270, %p271
      %s274 = sadd.s32 %s273, 1
      %p277 = scmp.eq.s32.totalorder %s24, 1
      %p278 = scmp.ne.s32.totalorder %s273, %s275
      %p279 = scmp.eq.s32.totalorder %s24, 0
      %p280 = por %p278, %p279
      %p281 = scmp.ne.s32.totalorder %s273, %s275
      %p282 = scmp.eq.s32.totalorder %s29, 1
      %p283 = por %p281, %p282
      %p284 = scmp.ne.s32.totalorder %s275, %s276
      %p285 = scmp.eq.s32.totalorder %s29, 0
      %p286 = por %p284, %p285
      %p287 = scmp.ne.s32.totalorder %s275, %s276
      %p288 = scmp.eq.s32.totalorder %s30, 1
      %p289 = por %p287, %p288
      %p291 = scmp.ne.s32.totalorder %s276, %s290
      %p292 = scmp.eq.s32.totalorder %s30, 0
      %p293 = por %p291, %p292
      %s295 = sadd.s32 %s294, 1
      %p298 = scmp.eq.s32.totalorder %s24, 1
      %p299 = scmp.ne.s32.totalorder %s294, %s296
      %p300 = scmp.eq.s32.totalorder %s24, 0
      %p301 = por %p299, %p300
      %p302 = scmp.ne.s32.totalorder %s294, %s296
      %p303 = scmp.eq.s32.totalorder %s29, 1
      %p304 = por %p302, %p303
      %p305 = scmp.ne.s32.totalorder %s296, %s297
      %p306 = scmp.eq.s32.totalorder %s29, 0
      %p307 = por %p305, %p306
      %p308 = scmp.ne.s32.totalorder %s296, %s297
      %p309 = scmp.eq.s32.totalorder %s30, 1
      %p310 = por %p308, %p309
      %p312 = scmp.ne.s32.totalorder %s297, %s311
      %p313 = scmp.eq.s32.totalorder %s30, 0
      %p314 = por %p312, %p313
      %s315 = ssub.s32 %s24, %s31
      %p316 = scmp.eq.s32.totalorder %s315, 0
      %s318 = sadd.s32 %s317, 1
      %s319 = scalar_select %p316, %s317, %s318
      %p322 = pneg %p316
      %p323 = scmp.eq.s32.totalorder %s24, 1
      %p324 = por %p322, %p323
      %p325 = scmp.ne.s32.totalorder %s317, %s320
      %p326 = scmp.eq.s32.totalorder %s24, 0
      %p327 = por %p325, %p326
      %p328 = scmp.ne.s32.totalorder %s317, %s320
      %p329 = scmp.eq.s32.totalorder %s29, 1
      %p330 = por %p328, %p329
      %p331 = scmp.ne.s32.totalorder %s320, %s321
      %p332 = scmp.eq.s32.totalorder %s29, 0
      %p333 = por %p331, %p332
      %p334 = scmp.ne.s32.totalorder %s320, %s321
      %p335 = scmp.eq.s32.totalorder %s30, 1
      %p336 = por %p334, %p335
      %p338 = scmp.ne.s32.totalorder %s321, %s337
      %p339 = scmp.eq.s32.totalorder %s30, 0
      %p340 = por %p338, %p339
      %s341 = ssub.s32 %s24, %s31
      %p342 = scmp.eq.s32.totalorder %s341, 0
      %s344 = sadd.s32 %s343, 1
      %s345 = scalar_select %p342, %s343, %s344
      %p348 = pneg %p342
      %p349 = scmp.eq.s32.totalorder %s24, 1
      %p350 = por %p348, %p349
      %p351 = scmp.ne.s32.totalorder %s343, %s346
      %p352 = scmp.eq.s32.totalorder %s24, 0
      %p353 = por %p351, %p352
      %p354 = scmp.ne.s32.totalorder %s343, %s346
      %p355 = scmp.eq.s32.totalorder %s29, 1
      %p356 = por %p354, %p355
      %p357 = scmp.ne.s32.totalorder %s346, %s347
      %p358 = scmp.eq.s32.totalorder %s29, 0
      %p359 = por %p357, %p358
      %p360 = scmp.ne.s32.totalorder %s346, %s347
      %p361 = scmp.eq.s32.totalorder %s30, 1
      %p362 = por %p360, %p361
      %p364 = scmp.ne.s32.totalorder %s347, %s363
      %p365 = scmp.eq.s32.totalorder %s30, 0
      %p366 = por %p364, %p365
      %p367 = scmp.le.s32.totalorder 1, %s24
      %p368 = scmp.lt.s32.totalorder %s24, 3
      %p369 = pnand %p367, %p368
      %p370 = pneg %p369
      // Predicated region
      $region9: #{net_conpu_v7_forward.11} parent=5 // pred_check
        _
      $region10: #{net_conpu_v7_forward.11} parent=5 // pred_check_branch
        %372 = sbr.rel (%p369) target = $region12
      $region11: #{net_conpu_v7_forward.11} parent=5 // pred_region
        %s373 = ssub.s32 %s24, 1
        // Predicated region
        $region13: #{net_conpu_v7_forward.11} parent=11 // pred_check
          %p374 = pneg %p97
        $region14: #{net_conpu_v7_forward.11} parent=11 // pred_check_branch
          %376 = sbr.rel (%p374) target = $region16
        $region15: #{net_conpu_v7_forward.11} parent=11 // pred_region
          _
        $region16: #{net_conpu_v7_forward.11} parent=11 // pred_fallthru
          _
        // Predicated region
        $region17: #{net_conpu_v7_forward.11} parent=11 // pred_check
          %p377 = pneg %p118
        $region18: #{net_conpu_v7_forward.11} parent=11 // pred_check_branch
          %379 = sbr.rel (%p377) target = $region20
        $region19: #{net_conpu_v7_forward.11} parent=11 // pred_region
          _
        $region20: #{net_conpu_v7_forward.11} parent=11 // pred_fallthru
          _
        // Predicated region
        $region21: #{net_conpu_v7_forward.11} parent=11 // pred_check
          %p380 = pneg %p139
        $region22: #{net_conpu_v7_forward.11} parent=11 // pred_check_branch
          %382 = sbr.rel (%p380) target = $region24
        $region23: #{net_conpu_v7_forward.11} parent=11 // pred_region
          _
        $region24: #{net_conpu_v7_forward.11} parent=11 // pred_fallthru
          _
        // Predicated region
        $region25: #{net_conpu_v7_forward.11} parent=11 // pred_check
          %p383 = pneg %p160
        $region26: #{net_conpu_v7_forward.11} parent=11 // pred_check_branch
          %385 = sbr.rel (%p383) target = $region28
        $region27: #{net_conpu_v7_forward.11} parent=11 // pred_region
          _
        $region28: #{net_conpu_v7_forward.11} parent=11 // pred_fallthru
          _
        // Predicated region
        $region29: #{net_conpu_v7_forward.11} parent=11 // pred_check
          %p386 = pneg %p181
        $region30: #{net_conpu_v7_forward.11} parent=11 // pred_check_branch
          %388 = sbr.rel (%p386) target = $region32
        $region31: #{net_conpu_v7_forward.11} parent=11 // pred_region
          _
        $region32: #{net_conpu_v7_forward.11} parent=11 // pred_fallthru
          _
        // Predicated region
        $region33: #{net_conpu_v7_forward.11} parent=11 // pred_check
          %p389 = pneg %p202
        $region34: #{net_conpu_v7_forward.11} parent=11 // pred_check_branch
          %391 = sbr.rel (%p389) target = $region36
        $region35: #{net_conpu_v7_forward.11} parent=11 // pred_region
          _
        $region36: #{net_conpu_v7_forward.11} parent=11 // pred_fallthru
          _
        // Predicated region
        $region37: #{net_conpu_v7_forward.11} parent=11 // pred_check
          %p392 = pneg %p223
        $region38: #{net_conpu_v7_forward.11} parent=11 // pred_check_branch
          %394 = sbr.rel (%p392) target = $region40
        $region39: #{net_conpu_v7_forward.11} parent=11 // pred_region
          _
        $region40: #{net_conpu_v7_forward.11} parent=11 // pred_fallthru
          _
        // Predicated region
        $region41: #{net_conpu_v7_forward.11} parent=11 // pred_check
          %p395 = pneg %p244
        $region42: #{net_conpu_v7_forward.11} parent=11 // pred_check_branch
          %397 = sbr.rel (%p395) target = $region44
        $region43: #{net_conpu_v7_forward.11} parent=11 // pred_region
          _
        $region44: #{net_conpu_v7_forward.11} parent=11 // pred_fallthru
          _
        // Predicated region
        $region45: #{net_conpu_v7_forward.11} parent=11 // pred_check
          %p398 = pneg %p265
        $region46: #{net_conpu_v7_forward.11} parent=11 // pred_check_branch
          %400 = sbr.rel (%p398) target = $region48
        $region47: #{net_conpu_v7_forward.11} parent=11 // pred_region
          _
        $region48: #{net_conpu_v7_forward.11} parent=11 // pred_fallthru
          _
        // Predicated region
        $region49: #{net_conpu_v7_forward.11} parent=11 // pred_check
          %p401 = pneg %p286
        $region50: #{net_conpu_v7_forward.11} parent=11 // pred_check_branch
          %403 = sbr.rel (%p401) target = $region52
        $region51: #{net_conpu_v7_forward.11} parent=11 // pred_region
          _
        $region52: #{net_conpu_v7_forward.11} parent=11 // pred_fallthru
          _
        // Predicated region
        $region53: #{net_conpu_v7_forward.11} parent=11 // pred_check
          %p404 = pneg %p307
        $region54: #{net_conpu_v7_forward.11} parent=11 // pred_check_branch
          %406 = sbr.rel (%p404) target = $region56
        $region55: #{net_conpu_v7_forward.11} parent=11 // pred_region
          _
        $region56: #{net_conpu_v7_forward.11} parent=11 // pred_fallthru
          _
      $region12: #{net_conpu_v7_forward.11} parent=5 // pred_fallthru
        _
      %p407 = scmp.lt.s32.totalorder %s24, 2
      // Predicated region
      $region57: #{net_conpu_v7_forward.11} parent=5 // pred_check
        %p408 = pneg %p407
      $region58: #{net_conpu_v7_forward.11} parent=5 // pred_check_branch
        %410 = sbr.rel (%p408) target = $region60
      $region59: #{net_conpu_v7_forward.11} parent=5 // pred_region
        // Predicated region
        $region61: #{net_conpu_v7_forward.11} parent=59 // pred_check
          %p411 = pneg %p44
        $region62: #{net_conpu_v7_forward.11} parent=59 // pred_check_branch
          %413 = sbr.rel (%p411) target = $region64
        $region63: #{net_conpu_v7_forward.11} parent=59 // pred_region
          %s414 = smul.u32 2, %s24
          %p415 = scmp.lt.s32.totalorder %s414, 3
          %s416 = scalar_select %p415, %s414, 3
          %s417 = smul.addr %s416, 4
          %s418 = scalar_lea.vmem %s0, %s417
          %s419 = smul.u32 2, %s24
        $region64: #{net_conpu_v7_forward.11} parent=59 // pred_fallthru
          _
        // Predicated region
        $region65: #{net_conpu_v7_forward.11} parent=59 // pred_check
          %p420 = pneg %p70
        $region66: #{net_conpu_v7_forward.11} parent=59 // pred_check_branch
          %422 = sbr.rel (%p420) target = $region68
        $region67: #{net_conpu_v7_forward.11} parent=59 // pred_region
          %s423 = smul.u32 2, %s24
          %p424 = scmp.lt.s32.totalorder %s423, 3
          %s425 = scalar_select %p424, %s423, 3
          %s426 = smul.addr %s425, 8
          %s427 = scalar_lea.vmem %s1, %s426
          %s428 = smul.u32 2, %s24
        $region68: #{net_conpu_v7_forward.11} parent=59 // pred_fallthru
          _
      $region60: #{net_conpu_v7_forward.11} parent=5 // pred_fallthru
        _
      %p429 = scmp.le.s32.totalorder 1, %s24
      %p430 = scmp.lt.s32.totalorder %s24, 3
      %p431 = pnand %p429, %p430
      %p432 = pneg %p431
      // Predicated region
      $region69: #{net_conpu_v7_forward.11} parent=5 // pred_check
        _
      $region70: #{net_conpu_v7_forward.11} parent=5 // pred_check_branch
        %434 = sbr.rel (%p431) target = $region72
      $region71: #{net_conpu_v7_forward.11} parent=5 // pred_region
        %s435 = ssub.s32 %s24, 1
        %s436 = smul.u32 2, %s29
        %p437 = scmp.lt.s32.totalorder %s436, 3
        %s438 = scalar_select %p437, %s436, 3
        %s439 = smul.addr %s438, 4
        %s440 = scalar_lea.vmem %s0, %s439
        %p441 = pneg %p50
        %p442 = pneg %p47
        %s443 = smul.u32 2, %s29
        %p444 = scmp.lt.s32.totalorder %s443, 3
        %s445 = scalar_select %p444, %s443, 3
        %s446 = smul.addr %s445, 8
        %s447 = scalar_lea.vmem %s1, %s446
        %p448 = pneg %p76
        %p449 = pneg %p73
        %p450 = pneg %p97
        %p451 = pneg %p94
        %p452 = pneg %p118
        %p453 = pneg %p115
        %p454 = pneg %p139
        %p455 = pneg %p136
        %p456 = pneg %p160
        %p457 = pneg %p157
        %p458 = pneg %p181
        %p459 = pneg %p178
        %p460 = pneg %p202
        %p461 = pneg %p199
        %p462 = pneg %p223
        %p463 = pneg %p220
        %p464 = pneg %p244
        %p465 = pneg %p241
        %p466 = pneg %p265
        %p467 = pneg %p262
        %p468 = pneg %p286
        %p469 = pneg %p283
        %p470 = pneg %p307
        %p471 = pneg %p304
        %p472 = pneg %p333
        %p473 = pneg %p330
        %s474 = smul.u32 2, %s29
        %p475 = scmp.lt.s32.totalorder %s474, 3
        %s476 = scalar_select %p475, %s474, 3
        %s477 = smul.addr %s476, 8
        %s478 = scalar_lea.vmem %s13, %s477
        %p479 = pneg %p359
        %p480 = pneg %p356
        %s481 = sand.u32 %s346, 1
        %s482 = scalar_lea.sflag [#allocation3], %s481
        %s483 = sand.u32 %s346, 1
        %s484 = smul.addr %s483, 16
        %s485 = scalar_lea.vmem [#allocation2], %s484
        %s486 = smul.u32 2, %s29
        %p487 = scmp.lt.s32.totalorder %s486, 3
        %s488 = scalar_select %p487, %s486, 3
        %s489 = smul.addr %s488, 4
        %s490 = scalar_lea.vmem %s0, %s489
        %s491 = smul.u32 2, %s29
        %s492 = smul.u32 2, %s29
        %p493 = scmp.lt.s32.totalorder %s492, 3
        %s494 = scalar_select %p493, %s492, 3
        %s495 = smul.addr %s494, 8
        %s496 = scalar_lea.vmem %s1, %s495
        %s497 = smul.u32 2, %s29
        %s498 = smul.u32 2, %s29
        %p499 = scmp.lt.s32.totalorder %s498, 3
        %s500 = scalar_select %p499, %s498, 3
        %s501 = smul.addr %s500, 8
        %s502 = scalar_lea.vmem %s13, %s501
        %s503 = smul.u32 2, %s29
        %s504 = smul.u32 2, %s29
        %v506 = vld [vmem:[%s490] sm:$0xf]
        %v507 = vld [vmem:[%s490 + $0x4] sm:$0xf]
        %v508 = vld [vmem:[%s2] sm:$0xff]
        %v509 = vld [vmem:[%s2 + $0x8] sm:$0xff]
        %v510 = vld [vmem:[%s2 + $0x10] sm:$0xff]
        %v511 = vld [vmem:[%s2 + $0x18] sm:$0xff]
        %v512 = vld [vmem:[%s2 + $0x20] sm:$0xff]
        %v513 = vld [vmem:[%s2 + $0x28] sm:$0xff]
        %v514 = vld [vmem:[%s2 + $0x30] sm:$0xff]
        %v515 = vld [vmem:[%s2 + $0x38] sm:$0xff]
        %v516 = vld [vmem:[%s3] sm:$0x3]
        %v518 = vlaneseq
        %v519 = vshrl.u32 %v518, 7
        %v520 = vsub.s32 0, %v519
        %v521 = vrot.slane %v516, %v520
        %v522 = vlaneseq
        %v523 = vshrl.u32 %v522, 7
        %v524 = vsub.s32 1, %v523
        %v525 = vrot.slane %v516, %v524
        %v530 = vunpack.c.l.b16 %v506
        %v531 = vunpack.c.l.b16 %v507
        %v532 = vpack.c.b16 %v531, %v530
        %v541 = vunpack.c.l.b16 %v508
        %v542 = vunpack.c.h.b16 %v508
        %v543 = vunpack.c.l.b16 %v509
        %v544 = vunpack.c.h.b16 %v509
        %v545 = vunpack.c.l.b16 %v510
        %v546 = vunpack.c.h.b16 %v510
        %v547 = vunpack.c.l.b16 %v511
        %v548 = vunpack.c.h.b16 %v511
        %v549 = vunpack.c.l.b16 %v512
        %v550 = vunpack.c.h.b16 %v512
        %v551 = vunpack.c.l.b16 %v513
        %v552 = vunpack.c.h.b16 %v513
        %v553 = vunpack.c.l.b16 %v514
        %v554 = vunpack.c.h.b16 %v514
        %v555 = vunpack.c.l.b16 %v515
        %v556 = vunpack.c.h.b16 %v515
        %v557 = vpack.c.b16 %v543, %v541
        %v558 = vpack.c.b16 %v544, %v542
        %v559 = vpack.c.b16 %v547, %v545
        %v560 = vpack.c.b16 %v548, %v546
        %v561 = vpack.c.b16 %v551, %v549
        %v562 = vpack.c.b16 %v552, %v550
        %v563 = vpack.c.b16 %v555, %v553
        %v564 = vpack.c.b16 %v556, %v554
        %vm573 = vcmask 523264
        %v575 = vsel %vm573, %v532, 0
        %577 = vmatprep.subr.bf16.mxu0 %v558
        %578 = vmatpush1.bf16.msra.mxu0 %v557
        %579 = vmatprep.subr.bf16.mxu0 %v560
        %580 = vmatpush1.bf16.msra.mxu0 %v559
        %581 = vmatprep.subr.bf16.mxu0 %v562
        %582 = vmatpush1.bf16.msra.mxu0 %v561
        %583 = vmatprep.subr.bf16.mxu0 %v564
        %584 = vmatpush1.bf16.msra.mxu0 %v563
        %585 = vmatprep.subr.bf16.mxu0 0
        %586 = vmatpush1.bf16.msra.mxu0 0
        %587 = vmatprep.subr.bf16.mxu0 0
        %588 = vmatpush1.bf16.msra.mxu0 0
        %589 = vmatprep.subr.bf16.mxu0 0
        %590 = vmatpush1.bf16.msra.mxu0 0
        %591 = vmatprep.subr.bf16.mxu0 0
        %592 = vmatpush1.bf16.msra.mxu0 0
        %593 = vmatprep.subr.bf16.mxu0 0
        %594 = vmatpush1.bf16.msra.mxu0 0
        %595 = vmatprep.subr.bf16.mxu0 0
        %596 = vmatpush1.bf16.msra.mxu0 0
        %597 = vmatprep.subr.bf16.mxu0 0
        %598 = vmatpush1.bf16.msra.mxu0 0
        %599 = vmatprep.subr.bf16.mxu0 0
        %600 = vmatpush1.bf16.msra.mxu0 0
        %601 = vmatprep.subr.bf16.mxu0 0
        %602 = vmatpush1.bf16.msra.mxu0 0
        %603 = vmatprep.subr.bf16.mxu0 0
        %604 = vmatpush1.bf16.msra.mxu0 0
        %605 = vmatprep.subr.bf16.mxu0 0
        %606 = vmatpush1.bf16.msra.mxu0 0
        %607 = vmatprep.subr.bf16.mxu0 0
        %608 = vmatpush1.bf16.msra.mxu0 0
        %609 = vmatprep.mubr.bf16.mxu0 0
        %610 = vmatmul.mubr.bf16.gmra.mrb[0].mxu0 %v575
        %v611 = vpop.f32.mrb[0].mxu0
        %v612 = vadd.f32 %v521, %v611
        %v613 = vpop.f32.mrb[0].mxu0
        %v614 = vadd.f32 %v525, %v613
        %v615 = vpop.f32.mrb[0].mxu0
        %v616 = vadd.f32 %v521, %v615
        %v617 = vpop.f32.mrb[0].mxu0
        %v618 = vadd.f32 %v525, %v617
        %619 = vdwg.mxu0
        %v620 = vmax.f32 %v612, 0.0
        %v621 = vmax.f32 %v614, 0.0
        %v622 = vmax.f32 %v616, 0.0
        %v623 = vmax.f32 %v618, 0.0
        %vm624 = vcmask 130048
        %625 = vst.msk [vmem:[%s485] sm:$0xff] %vm624, %v621
        %626 = vst.msk [vmem:[%s485 + $0x8] sm:$0xff] %vm624, %v623
        %v627 = vpack.c.bf16 %v622, %v620
        %v628 = vld [vmem:[%s4] sm:$0xf]
        %v629 = vld [vmem:[%s4 + $0x4] sm:$0xf]
        %v630 = vld [vmem:[%s4 + $0x8] sm:$0xf]
        %v631 = vld [vmem:[%s4 + $0xc] sm:$0xf]
        %v632 = vld [vmem:[%s4 + $0x10] sm:$0xf]
        %v633 = vld [vmem:[%s4 + $0x14] sm:$0xf]
        %v634 = vld [vmem:[%s4 + $0x18] sm:$0xf]
        %v635 = vld [vmem:[%s4 + $0x1c] sm:$0xf]
        %v636 = vld [vmem:[%s4 + $0x20] sm:$0xf]
        %v637 = vld [vmem:[%s4 + $0x24] sm:$0xf]
        %v638 = vld [vmem:[%s4 + $0x28] sm:$0xf]
        %v639 = vld [vmem:[%s4 + $0x2c] sm:$0xf]
        %v640 = vld [vmem:[%s4 + $0x30] sm:$0xf]
        %v641 = vld [vmem:[%s4 + $0x34] sm:$0xf]
        %v642 = vld [vmem:[%s4 + $0x38] sm:$0xf]
        %v643 = vld [vmem:[%s4 + $0x3c] sm:$0xf]
        %v644 = vld [vmem:[%s5] sm:$0x1]
        %v646 = vlaneseq
        %v647 = vshrl.u32 %v646, 7
        %v648 = vsub.s32 0, %v647
        %v649 = vrot.slane %v644, %v648
        %v667 = vunpack.c.l.b16 %v628
        %v668 = vunpack.c.l.b16 %v629
        %v669 = vunpack.c.l.b16 %v630
        %v670 = vunpack.c.l.b16 %v631
        %v671 = vunpack.c.l.b16 %v632
        %v672 = vunpack.c.l.b16 %v633
        %v673 = vunpack.c.l.b16 %v634
        %v674 = vunpack.c.l.b16 %v635
        %v675 = vunpack.c.l.b16 %v636
        %v676 = vunpack.c.l.b16 %v637
        %v677 = vunpack.c.l.b16 %v638
        %v678 = vunpack.c.l.b16 %v639
        %v679 = vunpack.c.l.b16 %v640
        %v680 = vunpack.c.l.b16 %v641
        %v681 = vunpack.c.l.b16 %v642
        %v682 = vunpack.c.l.b16 %v643
        %v683 = vpack.c.b16 %v668, %v667
        %v684 = vpack.c.b16 %v670, %v669
        %v685 = vpack.c.b16 %v672, %v671
        %v686 = vpack.c.b16 %v674, %v673
        %v687 = vpack.c.b16 %v676, %v675
        %v688 = vpack.c.b16 %v678, %v677
        %v689 = vpack.c.b16 %v680, %v679
        %v690 = vpack.c.b16 %v682, %v681
        %699 = vmatprep.subr.bf16.mxu0 0
        %700 = vmatpush1.bf16.msra.mxu0 %v683
        %701 = vmatprep.subr.bf16.mxu0 0
        %702 = vmatpush1.bf16.msra.mxu0 %v684
        %703 = vmatprep.subr.bf16.mxu0 0
        %704 = vmatpush1.bf16.msra.mxu0 %v685
        %705 = vmatprep.subr.bf16.mxu0 0
        %706 = vmatpush1.bf16.msra.mxu0 %v686
        %707 = vmatprep.subr.bf16.mxu0 0
        %708 = vmatpush1.bf16.msra.mxu0 %v687
        %709 = vmatprep.subr.bf16.mxu0 0
        %710 = vmatpush1.bf16.msra.mxu0 %v688
        %711 = vmatprep.subr.bf16.mxu0 0
        %712 = vmatpush1.bf16.msra.mxu0 %v689
        %713 = vmatprep.subr.bf16.mxu0 0
        %714 = vmatpush1.bf16.msra.mxu0 %v690
        %715 = vmatprep.subr.bf16.mxu0 0
        %716 = vmatpush1.bf16.msra.mxu0 0
        %717 = vmatprep.subr.bf16.mxu0 0
        %718 = vmatpush1.bf16.msra.mxu0 0
        %719 = vmatprep.subr.bf16.mxu0 0
        %720 = vmatpush1.bf16.msra.mxu0 0
        %721 = vmatprep.subr.bf16.mxu0 0
        %722 = vmatpush1.bf16.msra.mxu0 0
        %723 = vmatprep.subr.bf16.mxu0 0
        %724 = vmatpush1.bf16.msra.mxu0 0
        %725 = vmatprep.subr.bf16.mxu0 0
        %726 = vmatpush1.bf16.msra.mxu0 0
        %727 = vmatprep.subr.bf16.mxu0 0
        %728 = vmatpush1.bf16.msra.mxu0 0
        %729 = vmatprep.subr.bf16.mxu0 0
        %730 = vmatpush1.bf16.msra.mxu0 0
        %731 = vmatprep.mubr.bf16.mxu0 0
        %732 = vmatmul.mubr.bf16.gmra.mrb[0].mxu0 %v627
        %v733 = vpop.f32.mrb[0].mxu0
        %v734 = vadd.f32 %v649, %v733
        %v735 = vpop.f32.mrb[0].mxu0
        %v736 = vpop.f32.mrb[0].mxu0
        %v737 = vadd.f32 %v649, %v736
        %v738 = vpop.f32.mrb[0].mxu0
        %739 = vdwg.mxu0
        %v740 = vmax.f32 %v734, 0.0
        %v741 = vmax.f32 %v737, 0.0
        %v742 = vunpack.c.l.bf16 %v506
        %v743 = vunpack.c.l.bf16 %v507
        %v744 = vadd.f32 %v742, %v740
        %v745 = vadd.f32 %v743, %v741
        %v746 = vpack.c.bf16 %v745, %v744
        %v747 = vld [vmem:[%s6] sm:$0xf]
        %v748 = vld [vmem:[%s6 + $0x4] sm:$0xf]
        %v749 = vld [vmem:[%s6 + $0x8] sm:$0xf]
        %v750 = vld [vmem:[%s6 + $0xc] sm:$0xf]
        %v751 = vld [vmem:[%s6 + $0x10] sm:$0xf]
        %v752 = vld [vmem:[%s6 + $0x14] sm:$0xf]
        %v753 = vld [vmem:[%s6 + $0x18] sm:$0xf]
        %v754 = vld [vmem:[%s6 + $0x1c] sm:$0xf]
        %v755 = vld [vmem:[%s8] sm:$0x1]
        %v757 = vlaneseq
        %v758 = vshrl.u32 %v757, 7
        %v759 = vsub.s32 0, %v758
        %v760 = vrot.slane %v755, %v759
        %v770 = vunpack.c.l.b16 %v747
        %v771 = vunpack.c.l.b16 %v748
        %v772 = vunpack.c.l.b16 %v749
        %v773 = vunpack.c.l.b16 %v750
        %v774 = vunpack.c.l.b16 %v751
        %v775 = vunpack.c.l.b16 %v752
        %v776 = vunpack.c.l.b16 %v753
        %v777 = vunpack.c.l.b16 %v754
        %v778 = vpack.c.b16 %v771, %v770
        %v779 = vpack.c.b16 %v773, %v772
        %v780 = vpack.c.b16 %v775, %v774
        %v781 = vpack.c.b16 %v777, %v776
        %v787 = vsel %vm573, %v746, 0
        %789 = vmatprep.subr.bf16.mxu0 0
        %790 = vmatpush1.bf16.msra.mxu0 %v778
        %791 = vmatprep.subr.bf16.mxu0 0
        %792 = vmatpush1.bf16.msra.mxu0 %v779
        %793 = vmatprep.subr.bf16.mxu0 0
        %794 = vmatpush1.bf16.msra.mxu0 %v780
        %795 = vmatprep.subr.bf16.mxu0 0
        %796 = vmatpush1.bf16.msra.mxu0 %v781
        %797 = vmatprep.subr.bf16.mxu0 0
        %798 = vmatpush1.bf16.msra.mxu0 0
        %799 = vmatprep.subr.bf16.mxu0 0
        %800 = vmatpush1.bf16.msra.mxu0 0
        %801 = vmatprep.subr.bf16.mxu0 0
        %802 = vmatpush1.bf16.msra.mxu0 0
        %803 = vmatprep.subr.bf16.mxu0 0
        %804 = vmatpush1.bf16.msra.mxu0 0
        %805 = vmatprep.subr.bf16.mxu0 0
        %806 = vmatpush1.bf16.msra.mxu0 0
        %807 = vmatprep.subr.bf16.mxu0 0
        %808 = vmatpush1.bf16.msra.mxu0 0
        %809 = vmatprep.subr.bf16.mxu0 0
        %810 = vmatpush1.bf16.msra.mxu0 0
        %811 = vmatprep.subr.bf16.mxu0 0
        %812 = vmatpush1.bf16.msra.mxu0 0
        %813 = vmatprep.subr.bf16.mxu0 0
        %814 = vmatpush1.bf16.msra.mxu0 0
        %815 = vmatprep.subr.bf16.mxu0 0
        %816 = vmatpush1.bf16.msra.mxu0 0
        %817 = vmatprep.subr.bf16.mxu0 0
        %818 = vmatpush1.bf16.msra.mxu0 0
        %819 = vmatprep.subr.bf16.mxu0 0
        %820 = vmatpush1.bf16.msra.mxu0 0
        %821 = vmatprep.mubr.bf16.mxu0 0
        %822 = vmatmul.mubr.bf16.gmra.mrb[0].mxu0 %v787
        %v823 = vpop.f32.mrb[0].mxu0
        %v824 = vadd.f32 %v760, %v823
        %v825 = vpop.f32.mrb[0].mxu0
        %v826 = vpop.f32.mrb[0].mxu0
        %v827 = vadd.f32 %v760, %v826
        %v828 = vpop.f32.mrb[0].mxu0
        %829 = vdwg.mxu0
        %v830 = vld [vmem:[%s7] sm:$0xf]
        %v831 = vld [vmem:[%s496] sm:$0xff]
        %v832 = vld [vmem:[%s496 + $0x8] sm:$0xff]
        %v833 = vld [vmem:[%s12] sm:$0x1]
        %v834 = vlaneseq
        %v835 = vshrl.u32 %v834, 7
        %v836 = vsub.s32 0, %v835
        %v837 = vrot.slane %v830, %v836
        %v838 = vadd.f32 %v824, %v837
        %v839 = vadd.f32 %v827, %v837
        %v840 = vmax.f32 %v838, 0.0
        %v841 = vmax.f32 %v839, 0.0
        %v842 = vpack.c.bf16 %v841, %v840
        %v843 = vld [vmem:[%s9] sm:$0xf]
        %v844 = vld [vmem:[%s9 + $0x4] sm:$0xf]
        %v845 = vld [vmem:[%s9 + $0x8] sm:$0xf]
        %v846 = vld [vmem:[%s9 + $0xc] sm:$0xf]
        %v847 = vld [vmem:[%s9 + $0x10] sm:$0xf]
        %v848 = vld [vmem:[%s9 + $0x14] sm:$0xf]
        %v849 = vld [vmem:[%s9 + $0x18] sm:$0xf]
        %v850 = vld [vmem:[%s9 + $0x1c] sm:$0xf]
        %v851 = vld [vmem:[%s10] sm:$0x1]
        %v853 = vlaneseq
        %v854 = vshrl.u32 %v853, 7
        %v855 = vsub.s32 0, %v854
        %v856 = vrot.slane %v851, %v855
        %v866 = vunpack.c.l.b16 %v843
        %v867 = vunpack.c.l.b16 %v844
        %v868 = vunpack.c.l.b16 %v845
        %v869 = vunpack.c.l.b16 %v846
        %v870 = vunpack.c.l.b16 %v847
        %v871 = vunpack.c.l.b16 %v848
        %v872 = vunpack.c.l.b16 %v849
        %v873 = vunpack.c.l.b16 %v850
        %v874 = vpack.c.b16 %v867, %v866
        %v875 = vpack.c.b16 %v869, %v868
        %v876 = vpack.c.b16 %v871, %v870
        %v877 = vpack.c.b16 %v873, %v872
        %v883 = vsel %vm573, %v842, 0
        %885 = vmatprep.subr.bf16.mxu0 0
        %886 = vmatpush1.bf16.msra.mxu0 %v874
        %887 = vmatprep.subr.bf16.mxu0 0
        %888 = vmatpush1.bf16.msra.mxu0 %v875
        %889 = vmatprep.subr.bf16.mxu0 0
        %890 = vmatpush1.bf16.msra.mxu0 %v876
        %891 = vmatprep.subr.bf16.mxu0 0
        %892 = vmatpush1.bf16.msra.mxu0 %v877
        %893 = vmatprep.subr.bf16.mxu0 0
        %894 = vmatpush1.bf16.msra.mxu0 0
        %895 = vmatprep.subr.bf16.mxu0 0
        %896 = vmatpush1.bf16.msra.mxu0 0
        %897 = vmatprep.subr.bf16.mxu0 0
        %898 = vmatpush1.bf16.msra.mxu0 0
        %899 = vmatprep.subr.bf16.mxu0 0
        %900 = vmatpush1.bf16.msra.mxu0 0
        %901 = vmatprep.subr.bf16.mxu0 0
        %902 = vmatpush1.bf16.msra.mxu0 0
        %903 = vmatprep.subr.bf16.mxu0 0
        %904 = vmatpush1.bf16.msra.mxu0 0
        %905 = vmatprep.subr.bf16.mxu0 0
        %906 = vmatpush1.bf16.msra.mxu0 0
        %907 = vmatprep.subr.bf16.mxu0 0
        %908 = vmatpush1.bf16.msra.mxu0 0
        %909 = vmatprep.subr.bf16.mxu0 0
        %910 = vmatpush1.bf16.msra.mxu0 0
        %911 = vmatprep.subr.bf16.mxu0 0
        %912 = vmatpush1.bf16.msra.mxu0 0
        %913 = vmatprep.subr.bf16.mxu0 0
        %914 = vmatpush1.bf16.msra.mxu0 0
        %915 = vmatprep.subr.bf16.mxu0 0
        %916 = vmatpush1.bf16.msra.mxu0 0
        %917 = vmatprep.mubr.bf16.mxu0 0
        %918 = vmatmul.mubr.bf16.gmra.mrb[0].mxu0 %v883
        %v919 = vpop.f32.mrb[0].mxu0
        %v920 = vadd.f32 %v856, %v919
        %v921 = vpop.f32.mrb[0].mxu0
        %v922 = vpop.f32.mrb[0].mxu0
        %v923 = vadd.f32 %v856, %v922
        %v924 = vpop.f32.mrb[0].mxu0
        %925 = vdwg.mxu0
        %v926 = vmax.f32 %v920, 0.0
        %v927 = vmax.f32 %v923, 0.0
        %v928 = vpack.c.bf16 %v927, %v926
        %v929 = vld [vmem:[%s11] sm:$0xf]
        %v930 = vld [vmem:[%s11 + $0x4] sm:$0xf]
        %v931 = vld [vmem:[%s11 + $0x8] sm:$0xf]
        %v932 = vld [vmem:[%s11 + $0xc] sm:$0xf]
        %v934 = vlaneseq
        %v935 = vshrl.u32 %v934, 7
        %v936 = vsub.s32 0, %v935
        %v937 = vrot.slane %v833, %v936
        %v943 = vunpack.c.l.b16 %v929
        %v944 = vunpack.c.l.b16 %v930
        %v945 = vunpack.c.l.b16 %v931
        %v946 = vunpack.c.l.b16 %v932
        %v947 = vpack.c.b16 %v944, %v943
        %v948 = vpack.c.b16 %v946, %v945
        %vm951 = vcmask 261120
        %v953 = vsel %vm951, %v928, 0
        %955 = vmatprep.subr.bf16.mxu0 0
        %956 = vmatpush1.bf16.msra.mxu0 %v947
        %957 = vmatprep.subr.bf16.mxu0 0
        %958 = vmatpush1.bf16.msra.mxu0 %v948
        %959 = vmatprep.subr.bf16.mxu0 0
        %960 = vmatpush1.bf16.msra.mxu0 0
        %961 = vmatprep.subr.bf16.mxu0 0
        %962 = vmatpush1.bf16.msra.mxu0 0
        %963 = vmatprep.subr.bf16.mxu0 0
        %964 = vmatpush1.bf16.msra.mxu0 0
        %965 = vmatprep.subr.bf16.mxu0 0
        %966 = vmatpush1.bf16.msra.mxu0 0
        %967 = vmatprep.subr.bf16.mxu0 0
        %968 = vmatpush1.bf16.msra.mxu0 0
        %969 = vmatprep.subr.bf16.mxu0 0
        %970 = vmatpush1.bf16.msra.mxu0 0
        %971 = vmatprep.subr.bf16.mxu0 0
        %972 = vmatpush1.bf16.msra.mxu0 0
        %973 = vmatprep.subr.bf16.mxu0 0
        %974 = vmatpush1.bf16.msra.mxu0 0
        %975 = vmatprep.subr.bf16.mxu0 0
        %976 = vmatpush1.bf16.msra.mxu0 0
        %977 = vmatprep.subr.bf16.mxu0 0
        %978 = vmatpush1.bf16.msra.mxu0 0
        %979 = vmatprep.subr.bf16.mxu0 0
        %980 = vmatpush1.bf16.msra.mxu0 0
        %981 = vmatprep.subr.bf16.mxu0 0
        %982 = vmatpush1.bf16.msra.mxu0 0
        %983 = vmatprep.subr.bf16.mxu0 0
        %984 = vmatpush1.bf16.msra.mxu0 0
        %985 = vmatprep.subr.bf16.mxu0 0
        %986 = vmatpush1.bf16.msra.mxu0 0
        %987 = vmatprep.mubr.bf16.mxu0 0
        %988 = vmatmul.mubr.bf16.gmra.mrb[0].mxu0 %v953
        %v989 = vpop.f32.mrb[0].mxu0
        %v990 = vadd.f32 %v937, %v989
        %v991 = vpop.f32.mrb[0].mxu0
        %v992 = vpop.f32.mrb[0].mxu0
        %v993 = vadd.f32 %v937, %v992
        %v994 = vpop.f32.mrb[0].mxu0
        %995 = vdwg.mxu0
        %v996 = vadd.f32 %v990, %v831
        %v997 = vadd.f32 %v993, %v832
        %v998 = vlaneseq
        %v999 = vshrl.u32 %v998, 7
        %v1000 = vsub.s32 1, %v999
        %v1001 = vrot.slane %v830, %v1000
        %v1002 = vadd.f32 %v824, %v1001
        %v1003 = vadd.f32 %v827, %v1001
        %v1004 = vmax.f32 %v1002, 0.0
        %v1005 = vmax.f32 %v1003, 0.0
        %v1006 = vpack.c.bf16 %v1005, %v1004
        %v1008 = vsel %vm573, %v1006, 0
        %1010 = vmatprep.subr.bf16.mxu0 0
        %1011 = vmatpush1.bf16.msra.mxu0 %v874
        %1012 = vmatprep.subr.bf16.mxu0 0
        %1013 = vmatpush1.bf16.msra.mxu0 %v875
        %1014 = vmatprep.subr.bf16.mxu0 0
        %1015 = vmatpush1.bf16.msra.mxu0 %v876
        %1016 = vmatprep.subr.bf16.mxu0 0
        %1017 = vmatpush1.bf16.msra.mxu0 %v877
        %1018 = vmatprep.subr.bf16.mxu0 0
        %1019 = vmatpush1.bf16.msra.mxu0 0
        %1020 = vmatprep.subr.bf16.mxu0 0
        %1021 = vmatpush1.bf16.msra.mxu0 0
        %1022 = vmatprep.subr.bf16.mxu0 0
        %1023 = vmatpush1.bf16.msra.mxu0 0
        %1024 = vmatprep.subr.bf16.mxu0 0
        %1025 = vmatpush1.bf16.msra.mxu0 0
        %1026 = vmatprep.subr.bf16.mxu0 0
        %1027 = vmatpush1.bf16.msra.mxu0 0
        %1028 = vmatprep.subr.bf16.mxu0 0
        %1029 = vmatpush1.bf16.msra.mxu0 0
        %1030 = vmatprep.subr.bf16.mxu0 0
        %1031 = vmatpush1.bf16.msra.mxu0 0
        %1032 = vmatprep.subr.bf16.mxu0 0
        %1033 = vmatpush1.bf16.msra.mxu0 0
        %1034 = vmatprep.subr.bf16.mxu0 0
        %1035 = vmatpush1.bf16.msra.mxu0 0
        %1036 = vmatprep.subr.bf16.mxu0 0
        %1037 = vmatpush1.bf16.msra.mxu0 0
        %1038 = vmatprep.subr.bf16.mxu0 0
        %1039 = vmatpush1.bf16.msra.mxu0 0
        %1040 = vmatprep.subr.bf16.mxu0 0
        %1041 = vmatpush1.bf16.msra.mxu0 0
        %1042 = vmatprep.mubr.bf16.mxu0 0
        %1043 = vmatmul.mubr.bf16.gmra.mrb[0].mxu0 %v1008
        %v1044 = vpop.f32.mrb[0].mxu0
        %v1045 = vadd.f32 %v856, %v1044
        %v1046 = vpop.f32.mrb[0].mxu0
        %v1047 = vpop.f32.mrb[0].mxu0
        %v1048 = vadd.f32 %v856, %v1047
        %v1049 = vpop.f32.mrb[0].mxu0
        %1050 = vdwg.mxu0
        %v1051 = vmax.f32 %v1045, 0.0
        %v1052 = vmax.f32 %v1048, 0.0
        %v1053 = vpack.c.bf16 %v1052, %v1051
        %v1055 = vsel %vm951, %v1053, 0
        %1057 = vmatprep.subr.bf16.mxu0 0
        %1058 = vmatpush1.bf16.msra.mxu0 %v947
        %1059 = vmatprep.subr.bf16.mxu0 0
        %1060 = vmatpush1.bf16.msra.mxu0 %v948
        %1061 = vmatprep.subr.bf16.mxu0 0
        %1062 = vmatpush1.bf16.msra.mxu0 0
        %1063 = vmatprep.subr.bf16.mxu0 0
        %1064 = vmatpush1.bf16.msra.mxu0 0
        %1065 = vmatprep.subr.bf16.mxu0 0
        %1066 = vmatpush1.bf16.msra.mxu0 0
        %1067 = vmatprep.subr.bf16.mxu0 0
        %1068 = vmatpush1.bf16.msra.mxu0 0
        %1069 = vmatprep.subr.bf16.mxu0 0
        %1070 = vmatpush1.bf16.msra.mxu0 0
        %1071 = vmatprep.subr.bf16.mxu0 0
        %1072 = vmatpush1.bf16.msra.mxu0 0
        %1073 = vmatprep.subr.bf16.mxu0 0
        %1074 = vmatpush1.bf16.msra.mxu0 0
        %1075 = vmatprep.subr.bf16.mxu0 0
        %1076 = vmatpush1.bf16.msra.mxu0 0
        %1077 = vmatprep.subr.bf16.mxu0 0
        %1078 = vmatpush1.bf16.msra.mxu0 0
        %1079 = vmatprep.subr.bf16.mxu0 0
        %1080 = vmatpush1.bf16.msra.mxu0 0
        %1081 = vmatprep.subr.bf16.mxu0 0
        %1082 = vmatpush1.bf16.msra.mxu0 0
        %1083 = vmatprep.subr.bf16.mxu0 0
        %1084 = vmatpush1.bf16.msra.mxu0 0
        %1085 = vmatprep.subr.bf16.mxu0 0
        %1086 = vmatpush1.bf16.msra.mxu0 0
        %1087 = vmatprep.subr.bf16.mxu0 0
        %1088 = vmatpush1.bf16.msra.mxu0 0
        %1089 = vmatprep.mubr.bf16.mxu0 0
        %1090 = vmatmul.mubr.bf16.gmra.mrb[0].mxu0 %v1055
        %v1091 = vpop.f32.mrb[0].mxu0
        %v1092 = vadd.f32 %v937, %v1091
        %v1093 = vpop.f32.mrb[0].mxu0
        %v1094 = vpop.f32.mrb[0].mxu0
        %v1095 = vadd.f32 %v937, %v1094
        %v1096 = vpop.f32.mrb[0].mxu0
        %1097 = vdwg.mxu0
        %v1098 = vadd.f32 %v1092, %v831
        %v1099 = vadd.f32 %v1095, %v832
        %v1100 = vlaneseq
        %v1101 = vshrl.u32 %v1100, 7
        %v1102 = vsub.s32 2, %v1101
        %v1103 = vrot.slane %v830, %v1102
        %v1104 = vadd.f32 %v824, %v1103
        %v1105 = vadd.f32 %v827, %v1103
        %v1106 = vmax.f32 %v1104, 0.0
        %v1107 = vmax.f32 %v1105, 0.0
        %v1108 = vpack.c.bf16 %v1107, %v1106
        %v1110 = vsel %vm573, %v1108, 0
        %1112 = vmatprep.subr.bf16.mxu0 0
        %1113 = vmatpush1.bf16.msra.mxu0 %v874
        %1114 = vmatprep.subr.bf16.mxu0 0
        %1115 = vmatpush1.bf16.msra.mxu0 %v875
        %1116 = vmatprep.subr.bf16.mxu0 0
        %1117 = vmatpush1.bf16.msra.mxu0 %v876
        %1118 = vmatprep.subr.bf16.mxu0 0
        %1119 = vmatpush1.bf16.msra.mxu0 %v877
        %1120 = vmatprep.subr.bf16.mxu0 0
        %1121 = vmatpush1.bf16.msra.mxu0 0
        %1122 = vmatprep.subr.bf16.mxu0 0
        %1123 = vmatpush1.bf16.msra.mxu0 0
        %1124 = vmatprep.subr.bf16.mxu0 0
        %1125 = vmatpush1.bf16.msra.mxu0 0
        %1126 = vmatprep.subr.bf16.mxu0 0
        %1127 = vmatpush1.bf16.msra.mxu0 0
        %1128 = vmatprep.subr.bf16.mxu0 0
        %1129 = vmatpush1.bf16.msra.mxu0 0
        %1130 = vmatprep.subr.bf16.mxu0 0
        %1131 = vmatpush1.bf16.msra.mxu0 0
        %1132 = vmatprep.subr.bf16.mxu0 0
        %1133 = vmatpush1.bf16.msra.mxu0 0
        %1134 = vmatprep.subr.bf16.mxu0 0
        %1135 = vmatpush1.bf16.msra.mxu0 0
        %1136 = vmatprep.subr.bf16.mxu0 0
        %1137 = vmatpush1.bf16.msra.mxu0 0
        %1138 = vmatprep.subr.bf16.mxu0 0
        %1139 = vmatpush1.bf16.msra.mxu0 0
        %1140 = vmatprep.subr.bf16.mxu0 0
        %1141 = vmatpush1.bf16.msra.mxu0 0
        %1142 = vmatprep.subr.bf16.mxu0 0
        %1143 = vmatpush1.bf16.msra.mxu0 0
        %1144 = vmatprep.mubr.bf16.mxu0 0
        %1145 = vmatmul.mubr.bf16.gmra.mrb[0].mxu0 %v1110
        %v1146 = vpop.f32.mrb[0].mxu0
        %v1147 = vadd.f32 %v856, %v1146
        %v1148 = vpop.f32.mrb[0].mxu0
        %v1149 = vpop.f32.mrb[0].mxu0
        %v1150 = vadd.f32 %v856, %v1149
        %v1151 = vpop.f32.mrb[0].mxu0
        %1152 = vdwg.mxu0
        %v1153 = vmax.f32 %v1147, 0.0
        %v1154 = vmax.f32 %v1150, 0.0
        %v1155 = vpack.c.bf16 %v1154, %v1153
        %v1157 = vsel %vm951, %v1155, 0
        %1159 = vmatprep.subr.bf16.mxu0 0
        %1160 = vmatpush1.bf16.msra.mxu0 %v947
        %1161 = vmatprep.subr.bf16.mxu0 0
        %1162 = vmatpush1.bf16.msra.mxu0 %v948
        %1163 = vmatprep.subr.bf16.mxu0 0
        %1164 = vmatpush1.bf16.msra.mxu0 0
        %1165 = vmatprep.subr.bf16.mxu0 0
        %1166 = vmatpush1.bf16.msra.mxu0 0
        %1167 = vmatprep.subr.bf16.mxu0 0
        %1168 = vmatpush1.bf16.msra.mxu0 0
        %1169 = vmatprep.subr.bf16.mxu0 0
        %1170 = vmatpush1.bf16.msra.mxu0 0
        %1171 = vmatprep.subr.bf16.mxu0 0
        %1172 = vmatpush1.bf16.msra.mxu0 0
        %1173 = vmatprep.subr.bf16.mxu0 0
        %1174 = vmatpush1.bf16.msra.mxu0 0
        %1175 = vmatprep.subr.bf16.mxu0 0
        %1176 = vmatpush1.bf16.msra.mxu0 0
        %1177 = vmatprep.subr.bf16.mxu0 0
        %1178 = vmatpush1.bf16.msra.mxu0 0
        %1179 = vmatprep.subr.bf16.mxu0 0
        %1180 = vmatpush1.bf16.msra.mxu0 0
        %1181 = vmatprep.subr.bf16.mxu0 0
        %1182 = vmatpush1.bf16.msra.mxu0 0
        %1183 = vmatprep.subr.bf16.mxu0 0
        %1184 = vmatpush1.bf16.msra.mxu0 0
        %1185 = vmatprep.subr.bf16.mxu0 0
        %1186 = vmatpush1.bf16.msra.mxu0 0
        %1187 = vmatprep.subr.bf16.mxu0 0
        %1188 = vmatpush1.bf16.msra.mxu0 0
        %1189 = vmatprep.subr.bf16.mxu0 0
        %1190 = vmatpush1.bf16.msra.mxu0 0
        %1191 = vmatprep.mubr.bf16.mxu0 0
        %1192 = vmatmul.mubr.bf16.gmra.mrb[0].mxu0 %v1157
        %v1193 = vpop.f32.mrb[0].mxu0
        %v1194 = vadd.f32 %v937, %v1193
        %v1195 = vpop.f32.mrb[0].mxu0
        %v1196 = vpop.f32.mrb[0].mxu0
        %v1197 = vadd.f32 %v937, %v1196
        %v1198 = vpop.f32.mrb[0].mxu0
        %1199 = vdwg.mxu0
        %v1200 = vadd.f32 %v1194, %v831
        %v1201 = vadd.f32 %v1197, %v832
        %v1202 = vlaneseq
        %v1203 = vshrl.u32 %v1202, 7
        %v1204 = vsub.s32 3, %v1203
        %v1205 = vrot.slane %v830, %v1204
        %v1206 = vadd.f32 %v824, %v1205
        %v1207 = vadd.f32 %v827, %v1205
        %v1208 = vmax.f32 %v1206, 0.0
        %v1209 = vmax.f32 %v1207, 0.0
        %v1210 = vpack.c.bf16 %v1209, %v1208
        %v1212 = vsel %vm573, %v1210, 0
        %1214 = vmatprep.subr.bf16.mxu0 0
        %1215 = vmatpush1.bf16.msra.mxu0 %v874
        %1216 = vmatprep.subr.bf16.mxu0 0
        %1217 = vmatpush1.bf16.msra.mxu0 %v875
        %1218 = vmatprep.subr.bf16.mxu0 0
        %1219 = vmatpush1.bf16.msra.mxu0 %v876
        %1220 = vmatprep.subr.bf16.mxu0 0
        %1221 = vmatpush1.bf16.msra.mxu0 %v877
        %1222 = vmatprep.subr.bf16.mxu0 0
        %1223 = vmatpush1.bf16.msra.mxu0 0
        %1224 = vmatprep.subr.bf16.mxu0 0
        %1225 = vmatpush1.bf16.msra.mxu0 0
        %1226 = vmatprep.subr.bf16.mxu0 0
        %1227 = vmatpush1.bf16.msra.mxu0 0
        %1228 = vmatprep.subr.bf16.mxu0 0
        %1229 = vmatpush1.bf16.msra.mxu0 0
        %1230 = vmatprep.subr.bf16.mxu0 0
        %1231 = vmatpush1.bf16.msra.mxu0 0
        %1232 = vmatprep.subr.bf16.mxu0 0
        %1233 = vmatpush1.bf16.msra.mxu0 0
        %1234 = vmatprep.subr.bf16.mxu0 0
        %1235 = vmatpush1.bf16.msra.mxu0 0
        %1236 = vmatprep.subr.bf16.mxu0 0
        %1237 = vmatpush1.bf16.msra.mxu0 0
        %1238 = vmatprep.subr.bf16.mxu0 0
        %1239 = vmatpush1.bf16.msra.mxu0 0
        %1240 = vmatprep.subr.bf16.mxu0 0
        %1241 = vmatpush1.bf16.msra.mxu0 0
        %1242 = vmatprep.subr.bf16.mxu0 0
        %1243 = vmatpush1.bf16.msra.mxu0 0
        %1244 = vmatprep.subr.bf16.mxu0 0
        %1245 = vmatpush1.bf16.msra.mxu0 0
        %1246 = vmatprep.mubr.bf16.mxu0 0
        %1247 = vmatmul.mubr.bf16.gmra.mrb[0].mxu0 %v1212
        %v1248 = vpop.f32.mrb[0].mxu0
        %v1249 = vadd.f32 %v856, %v1248
        %v1250 = vpop.f32.mrb[0].mxu0
        %v1251 = vpop.f32.mrb[0].mxu0
        %v1252 = vadd.f32 %v856, %v1251
        %v1253 = vpop.f32.mrb[0].mxu0
        %1254 = vdwg.mxu0
        %v1255 = vmax.f32 %v1249, 0.0
        %v1256 = vmax.f32 %v1252, 0.0
        %v1257 = vpack.c.bf16 %v1256, %v1255
        %v1259 = vsel %vm951, %v1257, 0
        %1261 = vmatprep.subr.bf16.mxu0 0
        %1262 = vmatpush1.bf16.msra.mxu0 %v947
        %1263 = vmatprep.subr.bf16.mxu0 0
        %1264 = vmatpush1.bf16.msra.mxu0 %v948
        %1265 = vmatprep.subr.bf16.mxu0 0
        %1266 = vmatpush1.bf16.msra.mxu0 0
        %1267 = vmatprep.subr.bf16.mxu0 0
        %1268 = vmatpush1.bf16.msra.mxu0 0
        %1269 = vmatprep.subr.bf16.mxu0 0
        %1270 = vmatpush1.bf16.msra.mxu0 0
        %1271 = vmatprep.subr.bf16.mxu0 0
        %1272 = vmatpush1.bf16.msra.mxu0 0
        %1273 = vmatprep.subr.bf16.mxu0 0
        %1274 = vmatpush1.bf16.msra.mxu0 0
        %1275 = vmatprep.subr.bf16.mxu0 0
        %1276 = vmatpush1.bf16.msra.mxu0 0
        %1277 = vmatprep.subr.bf16.mxu0 0
        %1278 = vmatpush1.bf16.msra.mxu0 0
        %1279 = vmatprep.subr.bf16.mxu0 0
        %1280 = vmatpush1.bf16.msra.mxu0 0
        %1281 = vmatprep.subr.bf16.mxu0 0
        %1282 = vmatpush1.bf16.msra.mxu0 0
        %1283 = vmatprep.subr.bf16.mxu0 0
        %1284 = vmatpush1.bf16.msra.mxu0 0
        %1285 = vmatprep.subr.bf16.mxu0 0
        %1286 = vmatpush1.bf16.msra.mxu0 0
        %1287 = vmatprep.subr.bf16.mxu0 0
        %1288 = vmatpush1.bf16.msra.mxu0 0
        %1289 = vmatprep.subr.bf16.mxu0 0
        %1290 = vmatpush1.bf16.msra.mxu0 0
        %1291 = vmatprep.subr.bf16.mxu0 0
        %1292 = vmatpush1.bf16.msra.mxu0 0
        %1293 = vmatprep.mubr.bf16.mxu0 0
        %1294 = vmatmul.mubr.bf16.gmra.mrb[0].mxu0 %v1259
        %v1295 = vpop.f32.mrb[0].mxu0
        %v1296 = vadd.f32 %v937, %v1295
        %v1297 = vpop.f32.mrb[0].mxu0
        %v1298 = vpop.f32.mrb[0].mxu0
        %v1299 = vadd.f32 %v937, %v1298
        %v1300 = vpop.f32.mrb[0].mxu0
        %1301 = vdwg.mxu0
        %v1302 = vadd.f32 %v1296, %v831
        %v1303 = vadd.f32 %v1299, %v832
        %1306 = vrot.lane.b32.xlu0 %v1098, 3
        %v1307 = vpop.permute.xlu0 %1306
        %1308 = vrot.lane.b32.xlu0 %v1099, 3
        %v1309 = vpop.permute.xlu0 %1308
        %1314 = vrot.lane.b32.xlu0 %v1200, 6
        %v1315 = vpop.permute.xlu0 %1314
        %1316 = vrot.lane.b32.xlu0 %v1201, 6
        %v1317 = vpop.permute.xlu0 %1316
        %1322 = vrot.lane.b32.xlu0 %v1302, 9
        %v1323 = vpop.permute.xlu0 %1322
        %1324 = vrot.lane.b32.xlu0 %v1303, 9
        %v1325 = vpop.permute.xlu0 %1324
        %vm1328 = vcmask 23552
        %v1329 = vsel %vm1328, %v996, %v1307
        %v1330 = vsel %vm1328, %v997, %v1309
        %vm1331 = vcmask 48128
        %v1332 = vsel %vm1331, %v1329, %v1315
        %v1333 = vsel %vm1331, %v1330, %v1317
        %vm1334 = vcmask 72704
        %v1335 = vsel %vm1334, %v1332, %v1323
        %v1336 = vsel %vm1334, %v1333, %v1325
        %vm1337 = vcmask 97280
        %1338 = vst.msk [vmem:[%s502] sm:$0xff] %vm1337, %v1335
        %1339 = vst.msk [vmem:[%s502 + $0x8] sm:$0xff] %vm1337, %v1336
        %s1340 = smul.u32 2, %s29
        %p1341 = scmp.lt.s32.totalorder %s1340, 3
        %s1342 = scalar_select %p1341, %s1340, 3
        %s1343 = smul.addr %s1342, 8
        %s1344 = scalar_lea.vmem %s13, %s1343
        %s1345 = sand.u32 %s346, 1
        %s1346 = scalar_lea.sflag [#allocation3], %s1345
        %s1347 = sand.u32 %s346, 1
        %s1348 = smul.addr %s1347, 16
        %s1349 = scalar_lea.vmem [#allocation2], %s1348
        // Predicated region
        $region73: #{net_conpu_v7_forward.11} parent=71 // pred_check
          %p1350 = pneg %p330
        $region74: #{net_conpu_v7_forward.11} parent=71 // pred_check_branch
          %1352 = sbr.rel (%p1350) target = $region76
        $region75: #{net_conpu_v7_forward.11} parent=71 // pred_region
          %s1353 = smul.u32 2, %s29
        $region76: #{net_conpu_v7_forward.11} parent=71 // pred_fallthru
          _
        // Predicated region
        $region77: #{net_conpu_v7_forward.11} parent=71 // pred_check
          %p1354 = pneg %p356
        $region78: #{net_conpu_v7_forward.11} parent=71 // pred_check_branch
          %1356 = sbr.rel (%p1354) target = $region80
        $region79: #{net_conpu_v7_forward.11} parent=71 // pred_region
          %s1357 = smul.u32 2, %s29
          %s1359 = ssub.s32 256, 256
          %1360 = vsyncadd %s1346, %s1359
          %s1361 = smul.addr %s1357, 128
          %s1362 = scalar_lea.hbm %s14, %s1361
          %s1363 = sshll.u32 %s1349, 4
          %s1364 = int_to_ptr.vmem [resolvable:$true] %s1363
          %1369 = dma.vmem_to_hbm [thread:$0]  %s1364, 256, %s1362, %s1346, 128, 128, 8
        $region80: #{net_conpu_v7_forward.11} parent=71 // pred_fallthru
          _
      $region72: #{net_conpu_v7_forward.11} parent=5 // pred_fallthru
        _
      %p1370 = scmp.le.s32.totalorder 2, %s24
      // Predicated region
      $region81: #{net_conpu_v7_forward.11} parent=5 // pred_check
        %p1371 = pneg %p1370
      $region82: #{net_conpu_v7_forward.11} parent=5 // pred_check_branch
        %1373 = sbr.rel (%p1371) target = $region84
      $region83: #{net_conpu_v7_forward.11} parent=5 // pred_region
        %s1374 = ssub.s32 %s24, 2
        // Predicated region
        $region85: #{net_conpu_v7_forward.11} parent=83 // pred_check
          %p1375 = pneg %p336
        $region86: #{net_conpu_v7_forward.11} parent=83 // pred_check_branch
          %1377 = sbr.rel (%p1375) target = $region88
        $region87: #{net_conpu_v7_forward.11} parent=83 // pred_region
          %s1378 = smul.u32 2, %s30
          %p1379 = scmp.lt.s32.totalorder %s1378, 3
          %s1380 = scalar_select %p1379, %s1378, 3
          %s1381 = smul.addr %s1380, 8
          %s1382 = scalar_lea.vmem %s13, %s1381
        $region88: #{net_conpu_v7_forward.11} parent=83 // pred_fallthru
          _
        // Predicated region
        $region89: #{net_conpu_v7_forward.11} parent=83 // pred_check
          %p1383 = pneg %p362
        $region90: #{net_conpu_v7_forward.11} parent=83 // pred_check_branch
          %1385 = sbr.rel (%p1383) target = $region92
        $region91: #{net_conpu_v7_forward.11} parent=83 // pred_region
          %s1386 = sand.u32 %s347, 1
          %s1387 = scalar_lea.sflag [#allocation3], %s1386
          %s1388 = sand.u32 %s347, 1
          %s1389 = smul.addr %s1388, 16
          %s1390 = scalar_lea.vmem [#allocation2], %s1389
          %1391 = dma.done %s1387, 256
        $region92: #{net_conpu_v7_forward.11} parent=83 // pred_fallthru
          _
      $region84: #{net_conpu_v7_forward.11} parent=5 // pred_fallthru
        _
    $region6: #{net_conpu_v7_forward.11} parent=1 // loop_footer
      %s28 = sadd.s32 1, %s24
    $region7: #{net_conpu_v7_forward.11} parent=1 // loop_footer_branch
      %23 = sbr.rel target = $region3
    $region8: #{net_conpu_v7_forward.11} parent=1 // loop_exit
      _
    %1392 = vsyncpa [#allocation3], 1
    %s1393 = scalar_lea.sflag [#allocation3], 1
    %1394 = vsyncpa %s1393, 1

</llo_original>
